<compile_context>
chip_gen: v6e
topology: v6e:2x2x1
jax: 0.10.0
libtpu: 0.0.40
codegen_flags: <defaults>
</compile_context>

<pallas_src>
import jax
import jax.numpy as jnp
from jax.experimental import pallas as pl
from jax.experimental.pallas import tpu as pltpu

LRELU_SLOPE = 0.2
BN_EPS = 1e-5


# ----------------------------- fused Pallas kernel -------------------------- #

def _make_fused_kernel(bn_counts):
    """Builds the fused 5-layer kernel body.

    `bn_counts` are the per-channel element counts (N*OH*OW) of the three
    BatchNorm layers, in network order.
    """

    def conv(a, s_ref, t_ref):
        # sum over the 4 kernel rows: (S[ki] @ A) @ T[ki]
        y = None
        for ki in range(s_ref.shape[0]):
            rows = jnp.dot(s_ref[ki], a, preferred_element_type=jnp.float32)
            contrib = jnp.dot(rows, t_ref[ki], preferred_element_type=jnp.float32)
            y = contrib if y is None else y + contrib
        return y

    def lrelu(v):
        return jnp.where(v >= 0, v, LRELU_SLOPE * v)

    def kernel(*all_refs):
        a_ref, refs, out_ref = all_refs[0], all_refs[1:-1], all_refs[-1]
        idx = 0
        a = a_ref[...]                                   # (N*H, W*C) f32

        # ---- layer 1: conv + LeakyReLU ---------------------------------- #
        y = conv(a, refs[idx], refs[idx + 1]); idx += 2
        a = lrelu(y)

        # ---- layers 2-4: conv + BatchNorm(batch stats) + LeakyReLU ------- #
        for count in bn_counts:
            y = conv(a, refs[idx], refs[idx + 1])
            p = refs[idx + 2][...]      # (OW*OC, OC)  lane -> channel pooling
            q = refs[idx + 3][...]      # (OC, OW*OC)  channel -> lane broadcast
            g = refs[idx + 4][...]      # (1, OC) gamma
            b = refs[idx + 5][...]      # (1, OC) beta
            idx += 6
            inv_n = 1.0 / float(count)
            # single-pass per-channel sum and sum-of-squares, all f32
            csum = jnp.dot(jnp.sum(y, axis=0, keepdims=True), p,
                           preferred_element_type=jnp.float32)
            csq = jnp.dot(jnp.sum(y * y, axis=0, keepdims=True), p,
                          preferred_element_type=jnp.float32)
            mean = csum * inv_n
            var = csq * inv_n - mean * mean              # biased variance
            scale = g * jax.lax.rsqrt(var + BN_EPS)      # (1, OC)
            shift = b - mean * scale                     # (1, OC)
            y = (y * jnp.dot(scale, q, preferred_element_type=jnp.float32)
                 + jnp.dot(shift, q, preferred_element_type=jnp.float32))
            a = lrelu(y)

        # ---- layer 5: conv to (N, 2) logits + log-softmax over classes ---- #
        y = conv(a, refs[idx], refs[idx + 1])            # (N, 2)
        m = jnp.max(y, axis=1, keepdims=True)
        z = y - m
        lse = jnp.log(jnp.sum(jnp.exp(z), axis=1, keepdims=True))
        out_ref[...] = z - lse

    return kernel


# --------------------------- host-side operator packing --------------------- #

def _pack_operators(params, n, c0, h0, w0):
    """Builds the constant selection / Toeplitz / pooling operators.

    Activation layout inside the kernel: rows = (n, h) with h minor,
    lanes = (w, c) with c minor.
    """
    layer_defs = [
        ("w1", None, None, 2, 1),
        ("w2", "g2", "b2", 2, 1),
        ("w3", "g3", "b3", 2, 1),
        ("w4", "g4", "b4", 2, 1),
        ("w5", None, None, 1, 0),
    ]
    operands = []
    bn_counts = []
    h, w, c = h0, w0, c0
    eye_n = jnp.eye(n, dtype=jnp.float32)
    for wname, gname, bname, stride, pad in layer_defs:
        wt = params[wname].astype(jnp.float32)           # (OC, IC, KH, KW)
        oc, ic, kh, kw = wt.shape
        assert ic == c
        oh = (h + 2 * pad - kh) // stride + 1
        ow = (w + 2 * pad - kw) // stride + 1

        # Row selection S[ki, (n,oh), (n,h)]: 1 iff same n and h == s*oh+ki-pad.
        hh = jnp.arange(h)
        tgt_h = (stride * jnp.arange(oh)[None, :, None]
                 + jnp.arange(kh)[:, None, None] - pad)            # (KH, OH, 1)
        s_base = (hh[None, None, :] == tgt_h).astype(jnp.float32)  # (KH, OH, H)
        s_op = jnp.einsum("nm,koh->knomh", eye_n, s_base).reshape(kh, n * oh, n * h)

        # Toeplitz T[ki, (w,c), (ow,oc)] = W[oc,c,ki,kj] iff w == s*ow+kj-pad.
        ww = jnp.arange(w)
        tgt_w = (stride * jnp.arange(ow)[None, None, :]
                 + jnp.arange(kw)[:, None, None] - pad)            # (KW, 1, OW)
        m_w = (ww[None, :, None] == tgt_w).astype(jnp.float32)     # (KW, W, OW)
        w_hwio = jnp.transpose(wt, (2, 3, 1, 0))                   # (KH, KW, IC, OC)
        t_op = jnp.einsum("jwv,ijco->iwcvo", m_w, w_hwio).reshape(
            kh, w * ic, ow * oc)

        operands += [s_op, t_op]

        if gname is not None:
            p_op = jnp.tile(jnp.eye(oc, dtype=jnp.float32), (ow, 1))  # (OW*OC, OC)
            q_op = p_op.T                                             # (OC, OW*OC)
            operands += [
                p_op, q_op,
                params[gname].reshape(1, oc).astype(jnp.float32),
                params[bname].reshape(1, oc).astype(jnp.float32),
            ]
            bn_counts.append(n * oh * ow)

        h, w, c = oh, ow, oc
    return operands, tuple(bn_counts)


# ----------------------------- forward (Pallas) ----------------------------- #

def discriminator_forward(x_nchw, params):
    n, c, h, w = x_nchw.shape
    # rows = (n, h), lanes = (w, c)
    a0 = jnp.transpose(x_nchw.astype(jnp.float32), (0, 2, 3, 1)).reshape(n * h, w * c)
    operands, bn_counts = _pack_operators(params, n, c, h, w)
    inputs = [a0] + operands
    kernel = _make_fused_kernel(bn_counts)

    def _spec(shape):
        nd = len(shape)
        return pl.BlockSpec(shape, lambda i, _nd=nd: (0,) * _nd)

    out = pl.pallas_call(
        kernel,
        grid=(1,),
        in_specs=[_spec(x.shape) for x in inputs],
        out_specs=_spec((n, 2)),
        out_shape=jax.ShapeDtypeStruct((n, 2), jnp.float32),
        compiler_params=pltpu.CompilerParams(
            dimension_semantics=("arbitrary",),
            vmem_limit_bytes=48 * 1024 * 1024,
        ),
    )(*inputs)
    return out[:, :, None, None]                          # NCHW (N, 2, 1, 1)


# --------------------------- reference (plain JAX) -------------------------- #

def _reference_forward(x_nchw, params):
    x = jnp.transpose(x_nchw, (0, 2, 3, 1)).astype(jnp.float32)

    def conv(x, w, stride, pad):
        w_hwio = jnp.transpose(w, (2, 3, 1, 0))
        return jax.lax.conv_general_dilated(
            x, w_hwio, window_strides=(stride, stride),
            padding=((pad, pad), (pad, pad)),
            dimension_numbers=("NHWC", "HWIO", "NHWC"))

    def lrelu(v):
        return jnp.where(v >= 0, v, LRELU_SLOPE * v)

    def bn(v, g, b):
        mean = jnp.mean(v, axis=(0, 1, 2), keepdims=True)
        var = jnp.mean((v - mean) ** 2, axis=(0, 1, 2), keepdims=True)
        return (v - mean) * jax.lax.rsqrt(var + BN_EPS) * g + b

    x = lrelu(conv(x, params["w1"], 2, 1))
    x = lrelu(bn(conv(x, params["w2"], 2, 1), params["g2"], params["b2"]))
    x = lrelu(bn(conv(x, params["w3"], 2, 1), params["g3"], params["b3"]))
    x = lrelu(bn(conv(x, params["w4"], 2, 1), params["g4"], params["b4"]))
    x = conv(x, params["w5"], 1, 0)
    x = jax.nn.log_softmax(x, axis=-1)
    return jnp.transpose(x, (0, 3, 1, 2))


# ---------------------------------- main ------------------------------------ #

def _init_params(key, feature_map_size, color_channels):
    f = feature_map_size
    keys = jax.random.split(key, 16)

    def w(k, oc, ic):
        return 0.02 * jax.random.normal(k, (oc, ic, 4, 4), jnp.float32)

    params = {
        "w1": w(keys[0], f, color_channels),
        "w2": w(keys[1], 2 * f, f),
        "w3": w(keys[2], 4 * f, 2 * f),
        "w4": w(keys[3], 8 * f, 4 * f),
        "w5": w(keys[4], 2, 8 * f),
        "g2": 1.0 + 0.05 * jax.random.normal(keys[5], (2 * f,), jnp.float32),
        "b2": 0.05 * jax.random.normal(keys[6], (2 * f,), jnp.float32),
        "g3": 1.0 + 0.05 * jax.random.normal(keys[7], (4 * f,), jnp.float32),
        "b3": 0.05 * jax.random.normal(keys[8], (4 * f,), jnp.float32),
        "g4": 1.0 + 0.05 * jax.random.normal(keys[9], (8 * f,), jnp.float32),
        "b4": 0.05 * jax.random.normal(keys[10], (8 * f,), jnp.float32),
    }
    return params


if __name__ == "__main__":
    key = jax.random.PRNGKey(0)
    k_x, k_p = jax.random.split(key)

    batch, color_channels, spatial = 2, 3, 64   # 64 -> 32 -> 16 -> 8 -> 4 -> 1
    feature_map_size = 8                        # small variant of the default 64

    x = jax.random.normal(k_x, (batch, color_channels, spatial, spatial), jnp.float32)
    params = _init_params(k_p, feature_map_size, color_channels)

    fwd = jax.jit(discriminator_forward)
    out = jax.block_until_ready(fwd(x, params))

    assert out.shape == (batch, 2, 1, 1), out.shape

    ref = jax.block_until_ready(_reference_forward(x, params))
    if not jnp.allclose(out, ref, atol=1e-3, rtol=1e-3):
        raise AssertionError("Pallas output mismatch vs JAX reference")

    print("KERNEL_OK")
</pallas_src>

<mosaic_0001>
module attributes {stable_mosaic.version = 11 : i64} {
  func.func @kernel(%arg0: i32, %arg1: memref<128x192xf32, #tpu.memory_space<vmem>>, %arg2: memref<4x64x128xf32, #tpu.memory_space<vmem>>, %arg3: memref<4x192x256xf32, #tpu.memory_space<vmem>>, %arg4: memref<4x32x64xf32, #tpu.memory_space<vmem>>, %arg5: memref<4x256x256xf32, #tpu.memory_space<vmem>>, %arg6: memref<256x16xf32, #tpu.memory_space<vmem>>, %arg7: memref<16x256xf32, #tpu.memory_space<vmem>>, %arg8: memref<1x16xf32, #tpu.memory_space<vmem>>, %arg9: memref<1x16xf32, #tpu.memory_space<vmem>>, %arg10: memref<4x16x32xf32, #tpu.memory_space<vmem>>, %arg11: memref<4x256x256xf32, #tpu.memory_space<vmem>>, %arg12: memref<256x32xf32, #tpu.memory_space<vmem>>, %arg13: memref<32x256xf32, #tpu.memory_space<vmem>>, %arg14: memref<1x32xf32, #tpu.memory_space<vmem>>, %arg15: memref<1x32xf32, #tpu.memory_space<vmem>>, %arg16: memref<4x8x16xf32, #tpu.memory_space<vmem>>, %arg17: memref<4x256x256xf32, #tpu.memory_space<vmem>>, %arg18: memref<256x64xf32, #tpu.memory_space<vmem>>, %arg19: memref<64x256xf32, #tpu.memory_space<vmem>>, %arg20: memref<1x64xf32, #tpu.memory_space<vmem>>, %arg21: memref<1x64xf32, #tpu.memory_space<vmem>>, %arg22: memref<4x2x8xf32, #tpu.memory_space<vmem>>, %arg23: memref<4x256x2xf32, #tpu.memory_space<vmem>>, %arg24: memref<2x2xf32, #tpu.memory_space<vmem>>) attributes {dimension_semantics = [#tpu.dimension_semantics<arbitrary>], iteration_bounds = array<i64: 1>, scalar_prefetch = 0 : i64, scratch_operands = 0 : i64, tpu.core_type = #tpu.core_type<tc>, window_params = [{pipeline_mode = #tpu.pipeline_mode<synchronous>, transform_indices = @transform_0, window_bounds = array<i64: 128, 192>}, {pipeline_mode = #tpu.pipeline_mode<synchronous>, transform_indices = @transform_1, window_bounds = array<i64: 4, 64, 128>}, {pipeline_mode = #tpu.pipeline_mode<synchronous>, transform_indices = @transform_2, window_bounds = array<i64: 4, 192, 256>}, {pipeline_mode = #tpu.pipeline_mode<synchronous>, transform_indices = @transform_3, window_bounds = array<i64: 4, 32, 64>}, {pipeline_mode = #tpu.pipeline_mode<synchronous>, transform_indices = @transform_4, window_bounds = array<i64: 4, 256, 256>}, {pipeline_mode = #tpu.pipeline_mode<synchronous>, transform_indices = @transform_5, window_bounds = array<i64: 256, 16>}, {pipeline_mode = #tpu.pipeline_mode<synchronous>, transform_indices = @transform_6, window_bounds = array<i64: 16, 256>}, {pipeline_mode = #tpu.pipeline_mode<synchronous>, transform_indices = @transform_7, window_bounds = array<i64: 1, 16>}, {pipeline_mode = #tpu.pipeline_mode<synchronous>, transform_indices = @transform_8, window_bounds = array<i64: 1, 16>}, {pipeline_mode = #tpu.pipeline_mode<synchronous>, transform_indices = @transform_9, window_bounds = array<i64: 4, 16, 32>}, {pipeline_mode = #tpu.pipeline_mode<synchronous>, transform_indices = @transform_10, window_bounds = array<i64: 4, 256, 256>}, {pipeline_mode = #tpu.pipeline_mode<synchronous>, transform_indices = @transform_11, window_bounds = array<i64: 256, 32>}, {pipeline_mode = #tpu.pipeline_mode<synchronous>, transform_indices = @transform_12, window_bounds = array<i64: 32, 256>}, {pipeline_mode = #tpu.pipeline_mode<synchronous>, transform_indices = @transform_13, window_bounds = array<i64: 1, 32>}, {pipeline_mode = #tpu.pipeline_mode<synchronous>, transform_indices = @transform_14, window_bounds = array<i64: 1, 32>}, {pipeline_mode = #tpu.pipeline_mode<synchronous>, transform_indices = @transform_15, window_bounds = array<i64: 4, 8, 16>}, {pipeline_mode = #tpu.pipeline_mode<synchronous>, transform_indices = @transform_16, window_bounds = array<i64: 4, 256, 256>}, {pipeline_mode = #tpu.pipeline_mode<synchronous>, transform_indices = @transform_17, window_bounds = array<i64: 256, 64>}, {pipeline_mode = #tpu.pipeline_mode<synchronous>, transform_indices = @transform_18, window_bounds = array<i64: 64, 256>}, {pipeline_mode = #tpu.pipeline_mode<synchronous>, transform_indices = @transform_19, window_bounds = array<i64: 1, 64>}, {pipeline_mode = #tpu.pipeline_mode<synchronous>, transform_indices = @transform_20, window_bounds = array<i64: 1, 64>}, {pipeline_mode = #tpu.pipeline_mode<synchronous>, transform_indices = @transform_21, window_bounds = array<i64: 4, 2, 8>}, {pipeline_mode = #tpu.pipeline_mode<synchronous>, transform_indices = @transform_22, window_bounds = array<i64: 4, 256, 2>}, {pipeline_mode = #tpu.pipeline_mode<synchronous>, transform_indices = @transform_23, window_bounds = array<i64: 2, 2>}]} {
    %c0 = arith.constant 0 : index
    %c0_0 = arith.constant 0 : index
    %0 = vector.load %arg1[%c0, %c0_0] : memref<128x192xf32, #tpu.memory_space<vmem>>, vector<128x192xf32>
    %c0_1 = arith.constant 0 : index
    %c0_2 = arith.constant 0 : index
    %c0_3 = arith.constant 0 : index
    %1 = vector.load %arg2[%c0_1, %c0_2, %c0_3] : memref<4x64x128xf32, #tpu.memory_space<vmem>>, vector<1x64x128xf32>
    %2 = vector.shape_cast %1 : vector<1x64x128xf32> to vector<64x128xf32>
    %cst = arith.constant dense<0.000000e+00> : vector<64x192xf32>
    %3 = tpu.matmul %2, %0, %cst {dimension_numbers = #tpu.dot_dimension_numbers<[1], [0], [0], [1], [0, 0, 1, 1], [], []>} : vector<64x128xf32>, vector<128x192xf32>, vector<64x192xf32> -> vector<64x192xf32>
    %c0_4 = arith.constant 0 : index
    %c0_5 = arith.constant 0 : index
    %c0_6 = arith.constant 0 : index
    %4 = vector.load %arg3[%c0_4, %c0_5, %c0_6] : memref<4x192x256xf32, #tpu.memory_space<vmem>>, vector<1x192x256xf32>
    %5 = vector.shape_cast %4 : vector<1x192x256xf32> to vector<192x256xf32>
    %cst_7 = arith.constant dense<0.000000e+00> : vector<64x256xf32>
    %6 = tpu.matmul %3, %5, %cst_7 {dimension_numbers = #tpu.dot_dimension_numbers<[1], [0], [0], [1], [0, 0, 1, 1], [], []>} : vector<64x192xf32>, vector<192x256xf32>, vector<64x256xf32> -> vector<64x256xf32>
    %c1 = arith.constant 1 : index
    %c0_8 = arith.constant 0 : index
    %c0_9 = arith.constant 0 : index
    %7 = vector.load %arg2[%c1, %c0_8, %c0_9] : memref<4x64x128xf32, #tpu.memory_space<vmem>>, vector<1x64x128xf32>
    %8 = vector.shape_cast %7 : vector<1x64x128xf32> to vector<64x128xf32>
    %cst_10 = arith.constant dense<0.000000e+00> : vector<64x192xf32>
    %9 = tpu.matmul %8, %0, %cst_10 {dimension_numbers = #tpu.dot_dimension_numbers<[1], [0], [0], [1], [0, 0, 1, 1], [], []>} : vector<64x128xf32>, vector<128x192xf32>, vector<64x192xf32> -> vector<64x192xf32>
    %c1_11 = arith.constant 1 : index
    %c0_12 = arith.constant 0 : index
    %c0_13 = arith.constant 0 : index
    %10 = vector.load %arg3[%c1_11, %c0_12, %c0_13] : memref<4x192x256xf32, #tpu.memory_space<vmem>>, vector<1x192x256xf32>
    %11 = vector.shape_cast %10 : vector<1x192x256xf32> to vector<192x256xf32>
    %cst_14 = arith.constant dense<0.000000e+00> : vector<64x256xf32>
    %12 = tpu.matmul %9, %11, %cst_14 {dimension_numbers = #tpu.dot_dimension_numbers<[1], [0], [0], [1], [0, 0, 1, 1], [], []>} : vector<64x192xf32>, vector<192x256xf32>, vector<64x256xf32> -> vector<64x256xf32>
    %13 = arith.addf %6, %12 : vector<64x256xf32>
    %c2 = arith.constant 2 : index
    %c0_15 = arith.constant 0 : index
    %c0_16 = arith.constant 0 : index
    %14 = vector.load %arg2[%c2, %c0_15, %c0_16] : memref<4x64x128xf32, #tpu.memory_space<vmem>>, vector<1x64x128xf32>
    %15 = vector.shape_cast %14 : vector<1x64x128xf32> to vector<64x128xf32>
    %cst_17 = arith.constant dense<0.000000e+00> : vector<64x192xf32>
    %16 = tpu.matmul %15, %0, %cst_17 {dimension_numbers = #tpu.dot_dimension_numbers<[1], [0], [0], [1], [0, 0, 1, 1], [], []>} : vector<64x128xf32>, vector<128x192xf32>, vector<64x192xf32> -> vector<64x192xf32>
    %c2_18 = arith.constant 2 : index
    %c0_19 = arith.constant 0 : index
    %c0_20 = arith.constant 0 : index
    %17 = vector.load %arg3[%c2_18, %c0_19, %c0_20] : memref<4x192x256xf32, #tpu.memory_space<vmem>>, vector<1x192x256xf32>
    %18 = vector.shape_cast %17 : vector<1x192x256xf32> to vector<192x256xf32>
    %cst_21 = arith.constant dense<0.000000e+00> : vector<64x256xf32>
    %19 = tpu.matmul %16, %18, %cst_21 {dimension_numbers = #tpu.dot_dimension_numbers<[1], [0], [0], [1], [0, 0, 1, 1], [], []>} : vector<64x192xf32>, vector<192x256xf32>, vector<64x256xf32> -> vector<64x256xf32>
    %20 = arith.addf %13, %19 : vector<64x256xf32>
    %c3 = arith.constant 3 : index
    %c0_22 = arith.constant 0 : index
    %c0_23 = arith.constant 0 : index
    %21 = vector.load %arg2[%c3, %c0_22, %c0_23] : memref<4x64x128xf32, #tpu.memory_space<vmem>>, vector<1x64x128xf32>
    %22 = vector.shape_cast %21 : vector<1x64x128xf32> to vector<64x128xf32>
    %cst_24 = arith.constant dense<0.000000e+00> : vector<64x192xf32>
    %23 = tpu.matmul %22, %0, %cst_24 {dimension_numbers = #tpu.dot_dimension_numbers<[1], [0], [0], [1], [0, 0, 1, 1], [], []>} : vector<64x128xf32>, vector<128x192xf32>, vector<64x192xf32> -> vector<64x192xf32>
    %c3_25 = arith.constant 3 : index
    %c0_26 = arith.constant 0 : index
    %c0_27 = arith.constant 0 : index
    %24 = vector.load %arg3[%c3_25, %c0_26, %c0_27] : memref<4x192x256xf32, #tpu.memory_space<vmem>>, vector<1x192x256xf32>
    %25 = vector.shape_cast %24 : vector<1x192x256xf32> to vector<192x256xf32>
    %cst_28 = arith.constant dense<0.000000e+00> : vector<64x256xf32>
    %26 = tpu.matmul %23, %25, %cst_28 {dimension_numbers = #tpu.dot_dimension_numbers<[1], [0], [0], [1], [0, 0, 1, 1], [], []>} : vector<64x192xf32>, vector<192x256xf32>, vector<64x256xf32> -> vector<64x256xf32>
    %27 = arith.addf %20, %26 : vector<64x256xf32>
    %cst_29 = arith.constant 0.000000e+00 : f32
    %28 = vector.broadcast %cst_29 : f32 to vector<64x256xf32>
    %29 = arith.cmpf oge, %27, %28 : vector<64x256xf32>
    %cst_30 = arith.constant 2.000000e-01 : f32
    %30 = vector.broadcast %cst_30 : f32 to vector<64x256xf32>
    %31 = arith.mulf %30, %27 : vector<64x256xf32>
    %32 = arith.select %29, %27, %31 : vector<64x256xi1>, vector<64x256xf32>
    %c0_31 = arith.constant 0 : index
    %c0_32 = arith.constant 0 : index
    %c0_33 = arith.constant 0 : index
    %33 = vector.load %arg4[%c0_31, %c0_32, %c0_33] : memref<4x32x64xf32, #tpu.memory_space<vmem>>, vector<1x32x64xf32>
    %34 = vector.shape_cast %33 : vector<1x32x64xf32> to vector<32x64xf32>
    %cst_34 = arith.constant dense<0.000000e+00> : vector<32x256xf32>
    %35 = tpu.matmul %34, %32, %cst_34 {dimension_numbers = #tpu.dot_dimension_numbers<[1], [0], [0], [1], [0, 0, 1, 1], [], []>} : vector<32x64xf32>, vector<64x256xf32>, vector<32x256xf32> -> vector<32x256xf32>
    %c0_35 = arith.constant 0 : index
    %c0_36 = arith.constant 0 : index
    %c0_37 = arith.constant 0 : index
    %36 = vector.load %arg5[%c0_35, %c0_36, %c0_37] : memref<4x256x256xf32, #tpu.memory_space<vmem>>, vector<1x256x256xf32>
    %37 = vector.shape_cast %36 : vector<1x256x256xf32> to vector<256x256xf32>
    %cst_38 = arith.constant dense<0.000000e+00> : vector<32x256xf32>
    %38 = tpu.matmul %35, %37, %cst_38 {dimension_numbers = #tpu.dot_dimension_numbers<[1], [0], [0], [1], [0, 0, 1, 1], [], []>} : vector<32x256xf32>, vector<256x256xf32>, vector<32x256xf32> -> vector<32x256xf32>
    %c1_39 = arith.constant 1 : index
    %c0_40 = arith.constant 0 : index
    %c0_41 = arith.constant 0 : index
    %39 = vector.load %arg4[%c1_39, %c0_40, %c0_41] : memref<4x32x64xf32, #tpu.memory_space<vmem>>, vector<1x32x64xf32>
    %40 = vector.shape_cast %39 : vector<1x32x64xf32> to vector<32x64xf32>
    %cst_42 = arith.constant dense<0.000000e+00> : vector<32x256xf32>
    %41 = tpu.matmul %40, %32, %cst_42 {dimension_numbers = #tpu.dot_dimension_numbers<[1], [0], [0], [1], [0, 0, 1, 1], [], []>} : vector<32x64xf32>, vector<64x256xf32>, vector<32x256xf32> -> vector<32x256xf32>
    %c1_43 = arith.constant 1 : index
    %c0_44 = arith.constant 0 : index
    %c0_45 = arith.constant 0 : index
    %42 = vector.load %arg5[%c1_43, %c0_44, %c0_45] : memref<4x256x256xf32, #tpu.memory_space<vmem>>, vector<1x256x256xf32>
    %43 = vector.shape_cast %42 : vector<1x256x256xf32> to vector<256x256xf32>
    %cst_46 = arith.constant dense<0.000000e+00> : vector<32x256xf32>
    %44 = tpu.matmul %41, %43, %cst_46 {dimension_numbers = #tpu.dot_dimension_numbers<[1], [0], [0], [1], [0, 0, 1, 1], [], []>} : vector<32x256xf32>, vector<256x256xf32>, vector<32x256xf32> -> vector<32x256xf32>
    %45 = arith.addf %38, %44 : vector<32x256xf32>
    %c2_47 = arith.constant 2 : index
    %c0_48 = arith.constant 0 : index
    %c0_49 = arith.constant 0 : index
    %46 = vector.load %arg4[%c2_47, %c0_48, %c0_49] : memref<4x32x64xf32, #tpu.memory_space<vmem>>, vector<1x32x64xf32>
    %47 = vector.shape_cast %46 : vector<1x32x64xf32> to vector<32x64xf32>
    %cst_50 = arith.constant dense<0.000000e+00> : vector<32x256xf32>
    %48 = tpu.matmul %47, %32, %cst_50 {dimension_numbers = #tpu.dot_dimension_numbers<[1], [0], [0], [1], [0, 0, 1, 1], [], []>} : vector<32x64xf32>, vector<64x256xf32>, vector<32x256xf32> -> vector<32x256xf32>
    %c2_51 = arith.constant 2 : index
    %c0_52 = arith.constant 0 : index
    %c0_53 = arith.constant 0 : index
    %49 = vector.load %arg5[%c2_51, %c0_52, %c0_53] : memref<4x256x256xf32, #tpu.memory_space<vmem>>, vector<1x256x256xf32>
    %50 = vector.shape_cast %49 : vector<1x256x256xf32> to vector<256x256xf32>
    %cst_54 = arith.constant dense<0.000000e+00> : vector<32x256xf32>
    %51 = tpu.matmul %48, %50, %cst_54 {dimension_numbers = #tpu.dot_dimension_numbers<[1], [0], [0], [1], [0, 0, 1, 1], [], []>} : vector<32x256xf32>, vector<256x256xf32>, vector<32x256xf32> -> vector<32x256xf32>
    %52 = arith.addf %45, %51 : vector<32x256xf32>
    %c3_55 = arith.constant 3 : index
    %c0_56 = arith.constant 0 : index
    %c0_57 = arith.constant 0 : index
    %53 = vector.load %arg4[%c3_55, %c0_56, %c0_57] : memref<4x32x64xf32, #tpu.memory_space<vmem>>, vector<1x32x64xf32>
    %54 = vector.shape_cast %53 : vector<1x32x64xf32> to vector<32x64xf32>
    %cst_58 = arith.constant dense<0.000000e+00> : vector<32x256xf32>
    %55 = tpu.matmul %54, %32, %cst_58 {dimension_numbers = #tpu.dot_dimension_numbers<[1], [0], [0], [1], [0, 0, 1, 1], [], []>} : vector<32x64xf32>, vector<64x256xf32>, vector<32x256xf32> -> vector<32x256xf32>
    %c3_59 = arith.constant 3 : index
    %c0_60 = arith.constant 0 : index
    %c0_61 = arith.constant 0 : index
    %56 = vector.load %arg5[%c3_59, %c0_60, %c0_61] : memref<4x256x256xf32, #tpu.memory_space<vmem>>, vector<1x256x256xf32>
    %57 = vector.shape_cast %56 : vector<1x256x256xf32> to vector<256x256xf32>
    %cst_62 = arith.constant dense<0.000000e+00> : vector<32x256xf32>
    %58 = tpu.matmul %55, %57, %cst_62 {dimension_numbers = #tpu.dot_dimension_numbers<[1], [0], [0], [1], [0, 0, 1, 1], [], []>} : vector<32x256xf32>, vector<256x256xf32>, vector<32x256xf32> -> vector<32x256xf32>
    %59 = arith.addf %52, %58 : vector<32x256xf32>
    %c0_63 = arith.constant 0 : index
    %c0_64 = arith.constant 0 : index
    %60 = vector.load %arg6[%c0_63, %c0_64] : memref<256x16xf32, #tpu.memory_space<vmem>>, vector<256x16xf32>
    %c0_65 = arith.constant 0 : index
    %c0_66 = arith.constant 0 : index
    %61 = vector.load %arg7[%c0_65, %c0_66] : memref<16x256xf32, #tpu.memory_space<vmem>>, vector<16x256xf32>
    %c0_67 = arith.constant 0 : index
    %c0_68 = arith.constant 0 : index
    %62 = vector.load %arg8[%c0_67, %c0_68] : memref<1x16xf32, #tpu.memory_space<vmem>>, vector<1x16xf32>
    %c0_69 = arith.constant 0 : index
    %c0_70 = arith.constant 0 : index
    %63 = vector.load %arg9[%c0_69, %c0_70] : memref<1x16xf32, #tpu.memory_space<vmem>>, vector<1x16xf32>
    %cst_71 = arith.constant dense<0.000000e+00> : vector<256xf32>
    %64 = vector.multi_reduction <add>, %59, %cst_71 [0] : vector<32x256xf32> to vector<256xf32>
    %65 = vector.shape_cast %64 : vector<256xf32> to vector<1x256xf32>
    %cst_72 = arith.constant dense<0.000000e+00> : vector<1x16xf32>
    %66 = tpu.matmul %65, %60, %cst_72 {dimension_numbers = #tpu.dot_dimension_numbers<[1], [0], [0], [1], [0, 0, 1, 1], [], []>} : vector<1x256xf32>, vector<256x16xf32>, vector<1x16xf32> -> vector<1x16xf32>
    %67 = arith.mulf %59, %59 : vector<32x256xf32>
    %cst_73 = arith.constant dense<0.000000e+00> : vector<256xf32>
    %68 = vector.multi_reduction <add>, %67, %cst_73 [0] : vector<32x256xf32> to vector<256xf32>
    %69 = vector.shape_cast %68 : vector<256xf32> to vector<1x256xf32>
    %cst_74 = arith.constant dense<0.000000e+00> : vector<1x16xf32>
    %70 = tpu.matmul %69, %60, %cst_74 {dimension_numbers = #tpu.dot_dimension_numbers<[1], [0], [0], [1], [0, 0, 1, 1], [], []>} : vector<1x256xf32>, vector<256x16xf32>, vector<1x16xf32> -> vector<1x16xf32>
    %cst_75 = arith.constant 0.001953125 : f32
    %71 = vector.broadcast %cst_75 : f32 to vector<1x16xf32>
    %72 = arith.mulf %66, %71 : vector<1x16xf32>
    %cst_76 = arith.constant 0.001953125 : f32
    %73 = vector.broadcast %cst_76 : f32 to vector<1x16xf32>
    %74 = arith.mulf %70, %73 : vector<1x16xf32>
    %75 = arith.mulf %72, %72 : vector<1x16xf32>
    %76 = arith.subf %74, %75 : vector<1x16xf32>
    %cst_77 = arith.constant 9.99999974E-6 : f32
    %77 = vector.broadcast %cst_77 : f32 to vector<1x16xf32>
    %78 = arith.addf %76, %77 : vector<1x16xf32>
    %79 = math.rsqrt %78 : vector<1x16xf32>
    %80 = arith.mulf %62, %79 : vector<1x16xf32>
    %81 = arith.mulf %72, %80 : vector<1x16xf32>
    %82 = arith.subf %63, %81 : vector<1x16xf32>
    %cst_78 = arith.constant dense<0.000000e+00> : vector<1x256xf32>
    %83 = tpu.matmul %80, %61, %cst_78 {dimension_numbers = #tpu.dot_dimension_numbers<[1], [0], [0], [1], [0, 0, 1, 1], [], []>} : vector<1x16xf32>, vector<16x256xf32>, vector<1x256xf32> -> vector<1x256xf32>
    %84 = vector.broadcast %83 : vector<1x256xf32> to vector<32x256xf32>
    %85 = arith.mulf %59, %84 : vector<32x256xf32>
    %cst_79 = arith.constant dense<0.000000e+00> : vector<1x256xf32>
    %86 = tpu.matmul %82, %61, %cst_79 {dimension_numbers = #tpu.dot_dimension_numbers<[1], [0], [0], [1], [0, 0, 1, 1], [], []>} : vector<1x16xf32>, vector<16x256xf32>, vector<1x256xf32> -> vector<1x256xf32>
    %87 = vector.broadcast %86 : vector<1x256xf32> to vector<32x256xf32>
    %88 = arith.addf %85, %87 : vector<32x256xf32>
    %cst_80 = arith.constant 0.000000e+00 : f32
    %89 = vector.broadcast %cst_80 : f32 to vector<32x256xf32>
    %90 = arith.cmpf oge, %88, %89 : vector<32x256xf32>
    %cst_81 = arith.constant 2.000000e-01 : f32
    %91 = vector.broadcast %cst_81 : f32 to vector<32x256xf32>
    %92 = arith.mulf %91, %88 : vector<32x256xf32>
    %93 = arith.select %90, %88, %92 : vector<32x256xi1>, vector<32x256xf32>
    %c0_82 = arith.constant 0 : index
    %c0_83 = arith.constant 0 : index
    %c0_84 = arith.constant 0 : index
    %94 = vector.load %arg10[%c0_82, %c0_83, %c0_84] : memref<4x16x32xf32, #tpu.memory_space<vmem>>, vector<1x16x32xf32>
    %95 = vector.shape_cast %94 : vector<1x16x32xf32> to vector<16x32xf32>
    %cst_85 = arith.constant dense<0.000000e+00> : vector<16x256xf32>
    %96 = tpu.matmul %95, %93, %cst_85 {dimension_numbers = #tpu.dot_dimension_numbers<[1], [0], [0], [1], [0, 0, 1, 1], [], []>} : vector<16x32xf32>, vector<32x256xf32>, vector<16x256xf32> -> vector<16x256xf32>
    %c0_86 = arith.constant 0 : index
    %c0_87 = arith.constant 0 : index
    %c0_88 = arith.constant 0 : index
    %97 = vector.load %arg11[%c0_86, %c0_87, %c0_88] : memref<4x256x256xf32, #tpu.memory_space<vmem>>, vector<1x256x256xf32>
    %98 = vector.shape_cast %97 : vector<1x256x256xf32> to vector<256x256xf32>
    %cst_89 = arith.constant dense<0.000000e+00> : vector<16x256xf32>
    %99 = tpu.matmul %96, %98, %cst_89 {dimension_numbers = #tpu.dot_dimension_numbers<[1], [0], [0], [1], [0, 0, 1, 1], [], []>} : vector<16x256xf32>, vector<256x256xf32>, vector<16x256xf32> -> vector<16x256xf32>
    %c1_90 = arith.constant 1 : index
    %c0_91 = arith.constant 0 : index
    %c0_92 = arith.constant 0 : index
    %100 = vector.load %arg10[%c1_90, %c0_91, %c0_92] : memref<4x16x32xf32, #tpu.memory_space<vmem>>, vector<1x16x32xf32>
    %101 = vector.shape_cast %100 : vector<1x16x32xf32> to vector<16x32xf32>
    %cst_93 = arith.constant dense<0.000000e+00> : vector<16x256xf32>
    %102 = tpu.matmul %101, %93, %cst_93 {dimension_numbers = #tpu.dot_dimension_numbers<[1], [0], [0], [1], [0, 0, 1, 1], [], []>} : vector<16x32xf32>, vector<32x256xf32>, vector<16x256xf32> -> vector<16x256xf32>
    %c1_94 = arith.constant 1 : index
    %c0_95 = arith.constant 0 : index
    %c0_96 = arith.constant 0 : index
    %103 = vector.load %arg11[%c1_94, %c0_95, %c0_96] : memref<4x256x256xf32, #tpu.memory_space<vmem>>, vector<1x256x256xf32>
    %104 = vector.shape_cast %103 : vector<1x256x256xf32> to vector<256x256xf32>
    %cst_97 = arith.constant dense<0.000000e+00> : vector<16x256xf32>
    %105 = tpu.matmul %102, %104, %cst_97 {dimension_numbers = #tpu.dot_dimension_numbers<[1], [0], [0], [1], [0, 0, 1, 1], [], []>} : vector<16x256xf32>, vector<256x256xf32>, vector<16x256xf32> -> vector<16x256xf32>
    %106 = arith.addf %99, %105 : vector<16x256xf32>
    %c2_98 = arith.constant 2 : index
    %c0_99 = arith.constant 0 : index
    %c0_100 = arith.constant 0 : index
    %107 = vector.load %arg10[%c2_98, %c0_99, %c0_100] : memref<4x16x32xf32, #tpu.memory_space<vmem>>, vector<1x16x32xf32>
    %108 = vector.shape_cast %107 : vector<1x16x32xf32> to vector<16x32xf32>
    %cst_101 = arith.constant dense<0.000000e+00> : vector<16x256xf32>
    %109 = tpu.matmul %108, %93, %cst_101 {dimension_numbers = #tpu.dot_dimension_numbers<[1], [0], [0], [1], [0, 0, 1, 1], [], []>} : vector<16x32xf32>, vector<32x256xf32>, vector<16x256xf32> -> vector<16x256xf32>
    %c2_102 = arith.constant 2 : index
    %c0_103 = arith.constant 0 : index
    %c0_104 = arith.constant 0 : index
    %110 = vector.load %arg11[%c2_102, %c0_103, %c0_104] : memref<4x256x256xf32, #tpu.memory_space<vmem>>, vector<1x256x256xf32>
    %111 = vector.shape_cast %110 : vector<1x256x256xf32> to vector<256x256xf32>
    %cst_105 = arith.constant dense<0.000000e+00> : vector<16x256xf32>
    %112 = tpu.matmul %109, %111, %cst_105 {dimension_numbers = #tpu.dot_dimension_numbers<[1], [0], [0], [1], [0, 0, 1, 1], [], []>} : vector<16x256xf32>, vector<256x256xf32>, vector<16x256xf32> -> vector<16x256xf32>
    %113 = arith.addf %106, %112 : vector<16x256xf32>
    %c3_106 = arith.constant 3 : index
    %c0_107 = arith.constant 0 : index
    %c0_108 = arith.constant 0 : index
    %114 = vector.load %arg10[%c3_106, %c0_107, %c0_108] : memref<4x16x32xf32, #tpu.memory_space<vmem>>, vector<1x16x32xf32>
    %115 = vector.shape_cast %114 : vector<1x16x32xf32> to vector<16x32xf32>
    %cst_109 = arith.constant dense<0.000000e+00> : vector<16x256xf32>
    %116 = tpu.matmul %115, %93, %cst_109 {dimension_numbers = #tpu.dot_dimension_numbers<[1], [0], [0], [1], [0, 0, 1, 1], [], []>} : vector<16x32xf32>, vector<32x256xf32>, vector<16x256xf32> -> vector<16x256xf32>
    %c3_110 = arith.constant 3 : index
    %c0_111 = arith.constant 0 : index
    %c0_112 = arith.constant 0 : index
    %117 = vector.load %arg11[%c3_110, %c0_111, %c0_112] : memref<4x256x256xf32, #tpu.memory_space<vmem>>, vector<1x256x256xf32>
    %118 = vector.shape_cast %117 : vector<1x256x256xf32> to vector<256x256xf32>
    %cst_113 = arith.constant dense<0.000000e+00> : vector<16x256xf32>
    %119 = tpu.matmul %116, %118, %cst_113 {dimension_numbers = #tpu.dot_dimension_numbers<[1], [0], [0], [1], [0, 0, 1, 1], [], []>} : vector<16x256xf32>, vector<256x256xf32>, vector<16x256xf32> -> vector<16x256xf32>
    %120 = arith.addf %113, %119 : vector<16x256xf32>
    %c0_114 = arith.constant 0 : index
    %c0_115 = arith.constant 0 : index
    %121 = vector.load %arg12[%c0_114, %c0_115] : memref<256x32xf32, #tpu.memory_space<vmem>>, vector<256x32xf32>
    %c0_116 = arith.constant 0 : index
    %c0_117 = arith.constant 0 : index
    %122 = vector.load %arg13[%c0_116, %c0_117] : memref<32x256xf32, #tpu.memory_space<vmem>>, vector<32x256xf32>
    %c0_118 = arith.constant 0 : index
    %c0_119 = arith.constant 0 : index
    %123 = vector.load %arg14[%c0_118, %c0_119] : memref<1x32xf32, #tpu.memory_space<vmem>>, vector<1x32xf32>
    %c0_120 = arith.constant 0 : index
    %c0_121 = arith.constant 0 : index
    %124 = vector.load %arg15[%c0_120, %c0_121] : memref<1x32xf32, #tpu.memory_space<vmem>>, vector<1x32xf32>
    %cst_122 = arith.constant dense<0.000000e+00> : vector<256xf32>
    %125 = vector.multi_reduction <add>, %120, %cst_122 [0] : vector<16x256xf32> to vector<256xf32>
    %126 = vector.shape_cast %125 : vector<256xf32> to vector<1x256xf32>
    %cst_123 = arith.constant dense<0.000000e+00> : vector<1x32xf32>
    %127 = tpu.matmul %126, %121, %cst_123 {dimension_numbers = #tpu.dot_dimension_numbers<[1], [0], [0], [1], [0, 0, 1, 1], [], []>} : vector<1x256xf32>, vector<256x32xf32>, vector<1x32xf32> -> vector<1x32xf32>
    %128 = arith.mulf %120, %120 : vector<16x256xf32>
    %cst_124 = arith.constant dense<0.000000e+00> : vector<256xf32>
    %129 = vector.multi_reduction <add>, %128, %cst_124 [0] : vector<16x256xf32> to vector<256xf32>
    %130 = vector.shape_cast %129 : vector<256xf32> to vector<1x256xf32>
    %cst_125 = arith.constant dense<0.000000e+00> : vector<1x32xf32>
    %131 = tpu.matmul %130, %121, %cst_125 {dimension_numbers = #tpu.dot_dimension_numbers<[1], [0], [0], [1], [0, 0, 1, 1], [], []>} : vector<1x256xf32>, vector<256x32xf32>, vector<1x32xf32> -> vector<1x32xf32>
    %cst_126 = arith.constant 7.812500e-03 : f32
    %132 = vector.broadcast %cst_126 : f32 to vector<1x32xf32>
    %133 = arith.mulf %127, %132 : vector<1x32xf32>
    %cst_127 = arith.constant 7.812500e-03 : f32
    %134 = vector.broadcast %cst_127 : f32 to vector<1x32xf32>
    %135 = arith.mulf %131, %134 : vector<1x32xf32>
    %136 = arith.mulf %133, %133 : vector<1x32xf32>
    %137 = arith.subf %135, %136 : vector<1x32xf32>
    %cst_128 = arith.constant 9.99999974E-6 : f32
    %138 = vector.broadcast %cst_128 : f32 to vector<1x32xf32>
    %139 = arith.addf %137, %138 : vector<1x32xf32>
    %140 = math.rsqrt %139 : vector<1x32xf32>
    %141 = arith.mulf %123, %140 : vector<1x32xf32>
    %142 = arith.mulf %133, %141 : vector<1x32xf32>
    %143 = arith.subf %124, %142 : vector<1x32xf32>
    %cst_129 = arith.constant dense<0.000000e+00> : vector<1x256xf32>
    %144 = tpu.matmul %141, %122, %cst_129 {dimension_numbers = #tpu.dot_dimension_numbers<[1], [0], [0], [1], [0, 0, 1, 1], [], []>} : vector<1x32xf32>, vector<32x256xf32>, vector<1x256xf32> -> vector<1x256xf32>
    %145 = vector.broadcast %144 : vector<1x256xf32> to vector<16x256xf32>
    %146 = arith.mulf %120, %145 : vector<16x256xf32>
    %cst_130 = arith.constant dense<0.000000e+00> : vector<1x256xf32>
    %147 = tpu.matmul %143, %122, %cst_130 {dimension_numbers = #tpu.dot_dimension_numbers<[1], [0], [0], [1], [0, 0, 1, 1], [], []>} : vector<1x32xf32>, vector<32x256xf32>, vector<1x256xf32> -> vector<1x256xf32>
    %148 = vector.broadcast %147 : vector<1x256xf32> to vector<16x256xf32>
    %149 = arith.addf %146, %148 : vector<16x256xf32>
    %cst_131 = arith.constant 0.000000e+00 : f32
    %150 = vector.broadcast %cst_131 : f32 to vector<16x256xf32>
    %151 = arith.cmpf oge, %149, %150 : vector<16x256xf32>
    %cst_132 = arith.constant 2.000000e-01 : f32
    %152 = vector.broadcast %cst_132 : f32 to vector<16x256xf32>
    %153 = arith.mulf %152, %149 : vector<16x256xf32>
    %154 = arith.select %151, %149, %153 : vector<16x256xi1>, vector<16x256xf32>
    %c0_133 = arith.constant 0 : index
    %c0_134 = arith.constant 0 : index
    %c0_135 = arith.constant 0 : index
    %155 = vector.load %arg16[%c0_133, %c0_134, %c0_135] : memref<4x8x16xf32, #tpu.memory_space<vmem>>, vector<1x8x16xf32>
    %156 = vector.shape_cast %155 : vector<1x8x16xf32> to vector<8x16xf32>
    %cst_136 = arith.constant dense<0.000000e+00> : vector<8x256xf32>
    %157 = tpu.matmul %156, %154, %cst_136 {dimension_numbers = #tpu.dot_dimension_numbers<[1], [0], [0], [1], [0, 0, 1, 1], [], []>} : vector<8x16xf32>, vector<16x256xf32>, vector<8x256xf32> -> vector<8x256xf32>
    %c0_137 = arith.constant 0 : index
    %c0_138 = arith.constant 0 : index
    %c0_139 = arith.constant 0 : index
    %158 = vector.load %arg17[%c0_137, %c0_138, %c0_139] : memref<4x256x256xf32, #tpu.memory_space<vmem>>, vector<1x256x256xf32>
    %159 = vector.shape_cast %158 : vector<1x256x256xf32> to vector<256x256xf32>
    %cst_140 = arith.constant dense<0.000000e+00> : vector<8x256xf32>
    %160 = tpu.matmul %157, %159, %cst_140 {dimension_numbers = #tpu.dot_dimension_numbers<[1], [0], [0], [1], [0, 0, 1, 1], [], []>} : vector<8x256xf32>, vector<256x256xf32>, vector<8x256xf32> -> vector<8x256xf32>
    %c1_141 = arith.constant 1 : index
    %c0_142 = arith.constant 0 : index
    %c0_143 = arith.constant 0 : index
    %161 = vector.load %arg16[%c1_141, %c0_142, %c0_143] : memref<4x8x16xf32, #tpu.memory_space<vmem>>, vector<1x8x16xf32>
    %162 = vector.shape_cast %161 : vector<1x8x16xf32> to vector<8x16xf32>
    %cst_144 = arith.constant dense<0.000000e+00> : vector<8x256xf32>
    %163 = tpu.matmul %162, %154, %cst_144 {dimension_numbers = #tpu.dot_dimension_numbers<[1], [0], [0], [1], [0, 0, 1, 1], [], []>} : vector<8x16xf32>, vector<16x256xf32>, vector<8x256xf32> -> vector<8x256xf32>
    %c1_145 = arith.constant 1 : index
    %c0_146 = arith.constant 0 : index
    %c0_147 = arith.constant 0 : index
    %164 = vector.load %arg17[%c1_145, %c0_146, %c0_147] : memref<4x256x256xf32, #tpu.memory_space<vmem>>, vector<1x256x256xf32>
    %165 = vector.shape_cast %164 : vector<1x256x256xf32> to vector<256x256xf32>
    %cst_148 = arith.constant dense<0.000000e+00> : vector<8x256xf32>
    %166 = tpu.matmul %163, %165, %cst_148 {dimension_numbers = #tpu.dot_dimension_numbers<[1], [0], [0], [1], [0, 0, 1, 1], [], []>} : vector<8x256xf32>, vector<256x256xf32>, vector<8x256xf32> -> vector<8x256xf32>
    %167 = arith.addf %160, %166 : vector<8x256xf32>
    %c2_149 = arith.constant 2 : index
    %c0_150 = arith.constant 0 : index
    %c0_151 = arith.constant 0 : index
    %168 = vector.load %arg16[%c2_149, %c0_150, %c0_151] : memref<4x8x16xf32, #tpu.memory_space<vmem>>, vector<1x8x16xf32>
    %169 = vector.shape_cast %168 : vector<1x8x16xf32> to vector<8x16xf32>
    %cst_152 = arith.constant dense<0.000000e+00> : vector<8x256xf32>
    %170 = tpu.matmul %169, %154, %cst_152 {dimension_numbers = #tpu.dot_dimension_numbers<[1], [0], [0], [1], [0, 0, 1, 1], [], []>} : vector<8x16xf32>, vector<16x256xf32>, vector<8x256xf32> -> vector<8x256xf32>
    %c2_153 = arith.constant 2 : index
    %c0_154 = arith.constant 0 : index
    %c0_155 = arith.constant 0 : index
    %171 = vector.load %arg17[%c2_153, %c0_154, %c0_155] : memref<4x256x256xf32, #tpu.memory_space<vmem>>, vector<1x256x256xf32>
    %172 = vector.shape_cast %171 : vector<1x256x256xf32> to vector<256x256xf32>
    %cst_156 = arith.constant dense<0.000000e+00> : vector<8x256xf32>
    %173 = tpu.matmul %170, %172, %cst_156 {dimension_numbers = #tpu.dot_dimension_numbers<[1], [0], [0], [1], [0, 0, 1, 1], [], []>} : vector<8x256xf32>, vector<256x256xf32>, vector<8x256xf32> -> vector<8x256xf32>
    %174 = arith.addf %167, %173 : vector<8x256xf32>
    %c3_157 = arith.constant 3 : index
    %c0_158 = arith.constant 0 : index
    %c0_159 = arith.constant 0 : index
    %175 = vector.load %arg16[%c3_157, %c0_158, %c0_159] : memref<4x8x16xf32, #tpu.memory_space<vmem>>, vector<1x8x16xf32>
    %176 = vector.shape_cast %175 : vector<1x8x16xf32> to vector<8x16xf32>
    %cst_160 = arith.constant dense<0.000000e+00> : vector<8x256xf32>
    %177 = tpu.matmul %176, %154, %cst_160 {dimension_numbers = #tpu.dot_dimension_numbers<[1], [0], [0], [1], [0, 0, 1, 1], [], []>} : vector<8x16xf32>, vector<16x256xf32>, vector<8x256xf32> -> vector<8x256xf32>
    %c3_161 = arith.constant 3 : index
    %c0_162 = arith.constant 0 : index
    %c0_163 = arith.constant 0 : index
    %178 = vector.load %arg17[%c3_161, %c0_162, %c0_163] : memref<4x256x256xf32, #tpu.memory_space<vmem>>, vector<1x256x256xf32>
    %179 = vector.shape_cast %178 : vector<1x256x256xf32> to vector<256x256xf32>
    %cst_164 = arith.constant dense<0.000000e+00> : vector<8x256xf32>
    %180 = tpu.matmul %177, %179, %cst_164 {dimension_numbers = #tpu.dot_dimension_numbers<[1], [0], [0], [1], [0, 0, 1, 1], [], []>} : vector<8x256xf32>, vector<256x256xf32>, vector<8x256xf32> -> vector<8x256xf32>
    %181 = arith.addf %174, %180 : vector<8x256xf32>
    %c0_165 = arith.constant 0 : index
    %c0_166 = arith.constant 0 : index
    %182 = vector.load %arg18[%c0_165, %c0_166] : memref<256x64xf32, #tpu.memory_space<vmem>>, vector<256x64xf32>
    %c0_167 = arith.constant 0 : index
    %c0_168 = arith.constant 0 : index
    %183 = vector.load %arg19[%c0_167, %c0_168] : memref<64x256xf32, #tpu.memory_space<vmem>>, vector<64x256xf32>
    %c0_169 = arith.constant 0 : index
    %c0_170 = arith.constant 0 : index
    %184 = vector.load %arg20[%c0_169, %c0_170] : memref<1x64xf32, #tpu.memory_space<vmem>>, vector<1x64xf32>
    %c0_171 = arith.constant 0 : index
    %c0_172 = arith.constant 0 : index
    %185 = vector.load %arg21[%c0_171, %c0_172] : memref<1x64xf32, #tpu.memory_space<vmem>>, vector<1x64xf32>
    %cst_173 = arith.constant dense<0.000000e+00> : vector<256xf32>
    %186 = vector.multi_reduction <add>, %181, %cst_173 [0] : vector<8x256xf32> to vector<256xf32>
    %187 = vector.shape_cast %186 : vector<256xf32> to vector<1x256xf32>
    %cst_174 = arith.constant dense<0.000000e+00> : vector<1x64xf32>
    %188 = tpu.matmul %187, %182, %cst_174 {dimension_numbers = #tpu.dot_dimension_numbers<[1], [0], [0], [1], [0, 0, 1, 1], [], []>} : vector<1x256xf32>, vector<256x64xf32>, vector<1x64xf32> -> vector<1x64xf32>
    %189 = arith.mulf %181, %181 : vector<8x256xf32>
    %cst_175 = arith.constant dense<0.000000e+00> : vector<256xf32>
    %190 = vector.multi_reduction <add>, %189, %cst_175 [0] : vector<8x256xf32> to vector<256xf32>
    %191 = vector.shape_cast %190 : vector<256xf32> to vector<1x256xf32>
    %cst_176 = arith.constant dense<0.000000e+00> : vector<1x64xf32>
    %192 = tpu.matmul %191, %182, %cst_176 {dimension_numbers = #tpu.dot_dimension_numbers<[1], [0], [0], [1], [0, 0, 1, 1], [], []>} : vector<1x256xf32>, vector<256x64xf32>, vector<1x64xf32> -> vector<1x64xf32>
    %cst_177 = arith.constant 3.125000e-02 : f32
    %193 = vector.broadcast %cst_177 : f32 to vector<1x64xf32>
    %194 = arith.mulf %188, %193 : vector<1x64xf32>
    %cst_178 = arith.constant 3.125000e-02 : f32
    %195 = vector.broadcast %cst_178 : f32 to vector<1x64xf32>
    %196 = arith.mulf %192, %195 : vector<1x64xf32>
    %197 = arith.mulf %194, %194 : vector<1x64xf32>
    %198 = arith.subf %196, %197 : vector<1x64xf32>
    %cst_179 = arith.constant 9.99999974E-6 : f32
    %199 = vector.broadcast %cst_179 : f32 to vector<1x64xf32>
    %200 = arith.addf %198, %199 : vector<1x64xf32>
    %201 = math.rsqrt %200 : vector<1x64xf32>
    %202 = arith.mulf %184, %201 : vector<1x64xf32>
    %203 = arith.mulf %194, %202 : vector<1x64xf32>
    %204 = arith.subf %185, %203 : vector<1x64xf32>
    %cst_180 = arith.constant dense<0.000000e+00> : vector<1x256xf32>
    %205 = tpu.matmul %202, %183, %cst_180 {dimension_numbers = #tpu.dot_dimension_numbers<[1], [0], [0], [1], [0, 0, 1, 1], [], []>} : vector<1x64xf32>, vector<64x256xf32>, vector<1x256xf32> -> vector<1x256xf32>
    %206 = vector.broadcast %205 : vector<1x256xf32> to vector<8x256xf32>
    %207 = arith.mulf %181, %206 : vector<8x256xf32>
    %cst_181 = arith.constant dense<0.000000e+00> : vector<1x256xf32>
    %208 = tpu.matmul %204, %183, %cst_181 {dimension_numbers = #tpu.dot_dimension_numbers<[1], [0], [0], [1], [0, 0, 1, 1], [], []>} : vector<1x64xf32>, vector<64x256xf32>, vector<1x256xf32> -> vector<1x256xf32>
    %209 = vector.broadcast %208 : vector<1x256xf32> to vector<8x256xf32>
    %210 = arith.addf %207, %209 : vector<8x256xf32>
    %cst_182 = arith.constant 0.000000e+00 : f32
    %211 = vector.broadcast %cst_182 : f32 to vector<8x256xf32>
    %212 = arith.cmpf oge, %210, %211 : vector<8x256xf32>
    %cst_183 = arith.constant 2.000000e-01 : f32
    %213 = vector.broadcast %cst_183 : f32 to vector<8x256xf32>
    %214 = arith.mulf %213, %210 : vector<8x256xf32>
    %215 = arith.select %212, %210, %214 : vector<8x256xi1>, vector<8x256xf32>
    %c0_184 = arith.constant 0 : index
    %c0_185 = arith.constant 0 : index
    %c0_186 = arith.constant 0 : index
    %216 = vector.load %arg22[%c0_184, %c0_185, %c0_186] : memref<4x2x8xf32, #tpu.memory_space<vmem>>, vector<1x2x8xf32>
    %217 = vector.shape_cast %216 : vector<1x2x8xf32> to vector<2x8xf32>
    %cst_187 = arith.constant dense<0.000000e+00> : vector<2x256xf32>
    %218 = tpu.matmul %217, %215, %cst_187 {dimension_numbers = #tpu.dot_dimension_numbers<[1], [0], [0], [1], [0, 0, 1, 1], [], []>} : vector<2x8xf32>, vector<8x256xf32>, vector<2x256xf32> -> vector<2x256xf32>
    %c0_188 = arith.constant 0 : index
    %c0_189 = arith.constant 0 : index
    %c0_190 = arith.constant 0 : index
    %219 = vector.load %arg23[%c0_188, %c0_189, %c0_190] : memref<4x256x2xf32, #tpu.memory_space<vmem>>, vector<1x256x2xf32>
    %220 = vector.shape_cast %219 : vector<1x256x2xf32> to vector<256x2xf32>
    %cst_191 = arith.constant dense<0.000000e+00> : vector<2x2xf32>
    %221 = tpu.matmul %218, %220, %cst_191 {dimension_numbers = #tpu.dot_dimension_numbers<[1], [0], [0], [1], [0, 0, 1, 1], [], []>} : vector<2x256xf32>, vector<256x2xf32>, vector<2x2xf32> -> vector<2x2xf32>
    %c1_192 = arith.constant 1 : index
    %c0_193 = arith.constant 0 : index
    %c0_194 = arith.constant 0 : index
    %222 = vector.load %arg22[%c1_192, %c0_193, %c0_194] : memref<4x2x8xf32, #tpu.memory_space<vmem>>, vector<1x2x8xf32>
    %223 = vector.shape_cast %222 : vector<1x2x8xf32> to vector<2x8xf32>
    %cst_195 = arith.constant dense<0.000000e+00> : vector<2x256xf32>
    %224 = tpu.matmul %223, %215, %cst_195 {dimension_numbers = #tpu.dot_dimension_numbers<[1], [0], [0], [1], [0, 0, 1, 1], [], []>} : vector<2x8xf32>, vector<8x256xf32>, vector<2x256xf32> -> vector<2x256xf32>
    %c1_196 = arith.constant 1 : index
    %c0_197 = arith.constant 0 : index
    %c0_198 = arith.constant 0 : index
    %225 = vector.load %arg23[%c1_196, %c0_197, %c0_198] : memref<4x256x2xf32, #tpu.memory_space<vmem>>, vector<1x256x2xf32>
    %226 = vector.shape_cast %225 : vector<1x256x2xf32> to vector<256x2xf32>
    %cst_199 = arith.constant dense<0.000000e+00> : vector<2x2xf32>
    %227 = tpu.matmul %224, %226, %cst_199 {dimension_numbers = #tpu.dot_dimension_numbers<[1], [0], [0], [1], [0, 0, 1, 1], [], []>} : vector<2x256xf32>, vector<256x2xf32>, vector<2x2xf32> -> vector<2x2xf32>
    %228 = arith.addf %221, %227 : vector<2x2xf32>
    %c2_200 = arith.constant 2 : index
    %c0_201 = arith.constant 0 : index
    %c0_202 = arith.constant 0 : index
    %229 = vector.load %arg22[%c2_200, %c0_201, %c0_202] : memref<4x2x8xf32, #tpu.memory_space<vmem>>, vector<1x2x8xf32>
    %230 = vector.shape_cast %229 : vector<1x2x8xf32> to vector<2x8xf32>
    %cst_203 = arith.constant dense<0.000000e+00> : vector<2x256xf32>
    %231 = tpu.matmul %230, %215, %cst_203 {dimension_numbers = #tpu.dot_dimension_numbers<[1], [0], [0], [1], [0, 0, 1, 1], [], []>} : vector<2x8xf32>, vector<8x256xf32>, vector<2x256xf32> -> vector<2x256xf32>
    %c2_204 = arith.constant 2 : index
    %c0_205 = arith.constant 0 : index
    %c0_206 = arith.constant 0 : index
    %232 = vector.load %arg23[%c2_204, %c0_205, %c0_206] : memref<4x256x2xf32, #tpu.memory_space<vmem>>, vector<1x256x2xf32>
    %233 = vector.shape_cast %232 : vector<1x256x2xf32> to vector<256x2xf32>
    %cst_207 = arith.constant dense<0.000000e+00> : vector<2x2xf32>
    %234 = tpu.matmul %231, %233, %cst_207 {dimension_numbers = #tpu.dot_dimension_numbers<[1], [0], [0], [1], [0, 0, 1, 1], [], []>} : vector<2x256xf32>, vector<256x2xf32>, vector<2x2xf32> -> vector<2x2xf32>
    %235 = arith.addf %228, %234 : vector<2x2xf32>
    %c3_208 = arith.constant 3 : index
    %c0_209 = arith.constant 0 : index
    %c0_210 = arith.constant 0 : index
    %236 = vector.load %arg22[%c3_208, %c0_209, %c0_210] : memref<4x2x8xf32, #tpu.memory_space<vmem>>, vector<1x2x8xf32>
    %237 = vector.shape_cast %236 : vector<1x2x8xf32> to vector<2x8xf32>
    %cst_211 = arith.constant dense<0.000000e+00> : vector<2x256xf32>
    %238 = tpu.matmul %237, %215, %cst_211 {dimension_numbers = #tpu.dot_dimension_numbers<[1], [0], [0], [1], [0, 0, 1, 1], [], []>} : vector<2x8xf32>, vector<8x256xf32>, vector<2x256xf32> -> vector<2x256xf32>
    %c3_212 = arith.constant 3 : index
    %c0_213 = arith.constant 0 : index
    %c0_214 = arith.constant 0 : index
    %239 = vector.load %arg23[%c3_212, %c0_213, %c0_214] : memref<4x256x2xf32, #tpu.memory_space<vmem>>, vector<1x256x2xf32>
    %240 = vector.shape_cast %239 : vector<1x256x2xf32> to vector<256x2xf32>
    %cst_215 = arith.constant dense<0.000000e+00> : vector<2x2xf32>
    %241 = tpu.matmul %238, %240, %cst_215 {dimension_numbers = #tpu.dot_dimension_numbers<[1], [0], [0], [1], [0, 0, 1, 1], [], []>} : vector<2x256xf32>, vector<256x2xf32>, vector<2x2xf32> -> vector<2x2xf32>
    %242 = arith.addf %235, %241 : vector<2x2xf32>
    %cst_216 = arith.constant dense<0xFF800000> : vector<2xf32>
    %243 = vector.multi_reduction <maximumf>, %242, %cst_216 [1] : vector<2x2xf32> to vector<2xf32>
    %244 = vector.shape_cast %243 : vector<2xf32> to vector<2x1xf32>
    %245 = vector.broadcast %244 : vector<2x1xf32> to vector<2x2xf32>
    %246 = arith.subf %242, %245 : vector<2x2xf32>
    %247 = math.exp %246 : vector<2x2xf32>
    %cst_217 = arith.constant dense<0.000000e+00> : vector<2xf32>
    %248 = vector.multi_reduction <add>, %247, %cst_217 [1] : vector<2x2xf32> to vector<2xf32>
    %249 = vector.shape_cast %248 : vector<2xf32> to vector<2x1xf32>
    %250 = math.log %249 : vector<2x1xf32>
    %251 = vector.broadcast %250 : vector<2x1xf32> to vector<2x2xf32>
    %252 = arith.subf %246, %251 : vector<2x2xf32>
    %c0_218 = arith.constant 0 : index
    %c0_219 = arith.constant 0 : index
    %253 = vector.load %arg24[%c0_218, %c0_219] : memref<2x2xf32, #tpu.memory_space<vmem>>, vector<2x2xf32>
    tpu.vector_store %arg24[%c0_218, %c0_219], %252 {strides = array<i32>} : memref<2x2xf32, #tpu.memory_space<vmem>>, vector<2x2xf32>,
    return
  }
  func.func @transform_0(%arg0: i32) -> (i32, i32) {
    %c0_i32 = arith.constant 0 : i32
    %c0_i32_0 = arith.constant 0 : i32
    %c0_i32_1 = arith.constant 0 : i32
    return %c0_i32, %c0_i32_0 : i32, i32
  }
  func.func @transform_1(%arg0: i32) -> (i32, i32, i32) {
    %c0_i32 = arith.constant 0 : i32
    %c0_i32_0 = arith.constant 0 : i32
    %c0_i32_1 = arith.constant 0 : i32
    %c0_i32_2 = arith.constant 0 : i32
    return %c0_i32, %c0_i32_0, %c0_i32_1 : i32, i32, i32
  }
  func.func @transform_2(%arg0: i32) -> (i32, i32, i32) {
    %c0_i32 = arith.constant 0 : i32
    %c0_i32_0 = arith.constant 0 : i32
    %c0_i32_1 = arith.constant 0 : i32
    %c0_i32_2 = arith.constant 0 : i32
    return %c0_i32, %c0_i32_0, %c0_i32_1 : i32, i32, i32
  }
  func.func @transform_3(%arg0: i32) -> (i32, i32, i32) {
    %c0_i32 = arith.constant 0 : i32
    %c0_i32_0 = arith.constant 0 : i32
    %c0_i32_1 = arith.constant 0 : i32
    %c0_i32_2 = arith.constant 0 : i32
    return %c0_i32, %c0_i32_0, %c0_i32_1 : i32, i32, i32
  }
  func.func @transform_4(%arg0: i32) -> (i32, i32, i32) {
    %c0_i32 = arith.constant 0 : i32
    %c0_i32_0 = arith.constant 0 : i32
    %c0_i32_1 = arith.constant 0 : i32
    %c0_i32_2 = arith.constant 0 : i32
    return %c0_i32, %c0_i32_0, %c0_i32_1 : i32, i32, i32
  }
  func.func @transform_5(%arg0: i32) -> (i32, i32) {
    %c0_i32 = arith.constant 0 : i32
    %c0_i32_0 = arith.constant 0 : i32
    %c0_i32_1 = arith.constant 0 : i32
    return %c0_i32, %c0_i32_0 : i32, i32
  }
  func.func @transform_6(%arg0: i32) -> (i32, i32) {
    %c0_i32 = arith.constant 0 : i32
    %c0_i32_0 = arith.constant 0 : i32
    %c0_i32_1 = arith.constant 0 : i32
    return %c0_i32, %c0_i32_0 : i32, i32
  }
  func.func @transform_7(%arg0: i32) -> (i32, i32) {
    %c0_i32 = arith.constant 0 : i32
    %c0_i32_0 = arith.constant 0 : i32
    %c0_i32_1 = arith.constant 0 : i32
    return %c0_i32, %c0_i32_0 : i32, i32
  }
  func.func @transform_8(%arg0: i32) -> (i32, i32) {
    %c0_i32 = arith.constant 0 : i32
    %c0_i32_0 = arith.constant 0 : i32
    %c0_i32_1 = arith.constant 0 : i32
    return %c0_i32, %c0_i32_0 : i32, i32
  }
  func.func @transform_9(%arg0: i32) -> (i32, i32, i32) {
    %c0_i32 = arith.constant 0 : i32
    %c0_i32_0 = arith.constant 0 : i32
    %c0_i32_1 = arith.constant 0 : i32
    %c0_i32_2 = arith.constant 0 : i32
    return %c0_i32, %c0_i32_0, %c0_i32_1 : i32, i32, i32
  }
  func.func @transform_10(%arg0: i32) -> (i32, i32, i32) {
    %c0_i32 = arith.constant 0 : i32
    %c0_i32_0 = arith.constant 0 : i32
    %c0_i32_1 = arith.constant 0 : i32
    %c0_i32_2 = arith.constant 0 : i32
    return %c0_i32, %c0_i32_0, %c0_i32_1 : i32, i32, i32
  }
  func.func @transform_11(%arg0: i32) -> (i32, i32) {
    %c0_i32 = arith.constant 0 : i32
    %c0_i32_0 = arith.constant 0 : i32
    %c0_i32_1 = arith.constant 0 : i32
    return %c0_i32, %c0_i32_0 : i32, i32
  }
  func.func @transform_12(%arg0: i32) -> (i32, i32) {
    %c0_i32 = arith.constant 0 : i32
    %c0_i32_0 = arith.constant 0 : i32
    %c0_i32_1 = arith.constant 0 : i32
    return %c0_i32, %c0_i32_0 : i32, i32
  }
  func.func @transform_13(%arg0: i32) -> (i32, i32) {
    %c0_i32 = arith.constant 0 : i32
    %c0_i32_0 = arith.constant 0 : i32
    %c0_i32_1 = arith.constant 0 : i32
    return %c0_i32, %c0_i32_0 : i32, i32
  }
  func.func @transform_14(%arg0: i32) -> (i32, i32) {
    %c0_i32 = arith.constant 0 : i32
    %c0_i32_0 = arith.constant 0 : i32
    %c0_i32_1 = arith.constant 0 : i32
    return %c0_i32, %c0_i32_0 : i32, i32
  }
  func.func @transform_15(%arg0: i32) -> (i32, i32, i32) {
    %c0_i32 = arith.constant 0 : i32
    %c0_i32_0 = arith.constant 0 : i32
    %c0_i32_1 = arith.constant 0 : i32
    %c0_i32_2 = arith.constant 0 : i32
    return %c0_i32, %c0_i32_0, %c0_i32_1 : i32, i32, i32
  }
  func.func @transform_16(%arg0: i32) -> (i32, i32, i32) {
    %c0_i32 = arith.constant 0 : i32
    %c0_i32_0 = arith.constant 0 : i32
    %c0_i32_1 = arith.constant 0 : i32
    %c0_i32_2 = arith.constant 0 : i32
    return %c0_i32, %c0_i32_0, %c0_i32_1 : i32, i32, i32
  }
  func.func @transform_17(%arg0: i32) -> (i32, i32) {
    %c0_i32 = arith.constant 0 : i32
    %c0_i32_0 = arith.constant 0 : i32
    %c0_i32_1 = arith.constant 0 : i32
    return %c0_i32, %c0_i32_0 : i32, i32
  }
  func.func @transform_18(%arg0: i32) -> (i32, i32) {
    %c0_i32 = arith.constant 0 : i32
    %c0_i32_0 = arith.constant 0 : i32
    %c0_i32_1 = arith.constant 0 : i32
    return %c0_i32, %c0_i32_0 : i32, i32
  }
  func.func @transform_19(%arg0: i32) -> (i32, i32) {
    %c0_i32 = arith.constant 0 : i32
    %c0_i32_0 = arith.constant 0 : i32
    %c0_i32_1 = arith.constant 0 : i32
    return %c0_i32, %c0_i32_0 : i32, i32
  }
  func.func @transform_20(%arg0: i32) -> (i32, i32) {
    %c0_i32 = arith.constant 0 : i32
    %c0_i32_0 = arith.constant 0 : i32
    %c0_i32_1 = arith.constant 0 : i32
    return %c0_i32, %c0_i32_0 : i32, i32
  }
  func.func @transform_21(%arg0: i32) -> (i32, i32, i32) {
    %c0_i32 = arith.constant 0 : i32
    %c0_i32_0 = arith.constant 0 : i32
    %c0_i32_1 = arith.constant 0 : i32
    %c0_i32_2 = arith.constant 0 : i32
    return %c0_i32, %c0_i32_0, %c0_i32_1 : i32, i32, i32
  }
  func.func @transform_22(%arg0: i32) -> (i32, i32, i32) {
    %c0_i32 = arith.constant 0 : i32
    %c0_i32_0 = arith.constant 0 : i32
    %c0_i32_1 = arith.constant 0 : i32
    %c0_i32_2 = arith.constant 0 : i32
    return %c0_i32, %c0_i32_0, %c0_i32_1 : i32, i32, i32
  }
  func.func @transform_23(%arg0: i32) -> (i32, i32) {
    %c0_i32 = arith.constant 0 : i32
    %c0_i32_0 = arith.constant 0 : i32
    %c0_i32_1 = arith.constant 0 : i32
    return %c0_i32, %c0_i32_0 : i32, i32
  }
}

</mosaic_0001>

<llo_original>
// kernel: tile.19
$region0: #{tile.19}
  %s0 = inlined_call_operand.vmem [shape: f32[16,16,16], index: 0, kind: input, shape index: {}]
  %s1 = inlined_call_operand.vmem [shape: f32[256,16], index: 1, kind: output, shape index: {}]
  %v2 = vld [vmem:[%s0] ss:$8 sm:$0xf]
  %v3 = vld [vmem:[%s0] ss:$8 sm:$0xf0]
  %vm4 = vcmask 1047556
  %v5 = vsel %vm4, %v3, %v2
  %vm6 = vcmask 130048
  %7 = vst.msk [vmem:[%s1] ss:$8 sm:$0x3] %vm6, %v5
  %s8 = scalar_lea.vmem %s1, 4294967281
  %9 = vst.msk [vmem:[%s8] ss:$8 sm:$0xc] %vm6, %v5
  %s10 = scalar_lea.vmem %s1, 4294967266
  %11 = vst.msk [vmem:[%s10] ss:$8 sm:$0x30] %vm6, %v5
  %s12 = scalar_lea.vmem %s1, 4294967251
  %13 = vst.msk [vmem:[%s12] ss:$8 sm:$0xc0] %vm6, %v5
  %s14 = scalar_lea.vmem %s0, 64
  %v15 = vld [vmem:[%s14] ss:$8 sm:$0xf]
  %s16 = scalar_lea.vmem %s0, 64
  %v17 = vld [vmem:[%s16] ss:$8 sm:$0xf0]
  %vm18 = vcmask 1047556
  %v19 = vsel %vm18, %v17, %v15
  %vm20 = vcmask 130048
  %s21 = scalar_lea.vmem %s1, 4
  %22 = vst.msk [vmem:[%s21] ss:$8 sm:$0x3] %vm20, %v19
  %s23 = scalar_lea.vmem %s1, 4294967285
  %24 = vst.msk [vmem:[%s23] ss:$8 sm:$0xc] %vm20, %v19
  %s25 = scalar_lea.vmem %s1, 4294967270
  %26 = vst.msk [vmem:[%s25] ss:$8 sm:$0x30] %vm20, %v19
  %s27 = scalar_lea.vmem %s1, 4294967255
  %28 = vst.msk [vmem:[%s27] ss:$8 sm:$0xc0] %vm20, %v19
  %s29 = scalar_lea.vmem %s0, 128
  %v30 = vld [vmem:[%s29] ss:$8 sm:$0xf]
  %s31 = scalar_lea.vmem %s0, 128
  %v32 = vld [vmem:[%s31] ss:$8 sm:$0xf0]
  %vm33 = vcmask 1047556
  %v34 = vsel %vm33, %v32, %v30
  %vm35 = vcmask 130048
  %s36 = scalar_lea.vmem %s1, 16
  %37 = vst.msk [vmem:[%s36] ss:$8 sm:$0x3] %vm35, %v34
  %s38 = scalar_lea.vmem %s1, 1
  %39 = vst.msk [vmem:[%s38] ss:$8 sm:$0xc] %vm35, %v34
  %s40 = scalar_lea.vmem %s1, 4294967282
  %41 = vst.msk [vmem:[%s40] ss:$8 sm:$0x30] %vm35, %v34
  %s42 = scalar_lea.vmem %s1, 4294967267
  %43 = vst.msk [vmem:[%s42] ss:$8 sm:$0xc0] %vm35, %v34
  %s44 = scalar_lea.vmem %s0, 192
  %v45 = vld [vmem:[%s44] ss:$8 sm:$0xf]
  %s46 = scalar_lea.vmem %s0, 192
  %v47 = vld [vmem:[%s46] ss:$8 sm:$0xf0]
  %vm48 = vcmask 1047556
  %v49 = vsel %vm48, %v47, %v45
  %vm50 = vcmask 130048
  %s51 = scalar_lea.vmem %s1, 20
  %52 = vst.msk [vmem:[%s51] ss:$8 sm:$0x3] %vm50, %v49
  %s53 = scalar_lea.vmem %s1, 5
  %54 = vst.msk [vmem:[%s53] ss:$8 sm:$0xc] %vm50, %v49
  %s55 = scalar_lea.vmem %s1, 4294967286
  %56 = vst.msk [vmem:[%s55] ss:$8 sm:$0x30] %vm50, %v49
  %s57 = scalar_lea.vmem %s1, 4294967271
  %58 = vst.msk [vmem:[%s57] ss:$8 sm:$0xc0] %vm50, %v49
  %s59 = scalar_lea.vmem %s0, 7
  %s60 = smov 3
  %v61 = vld [vmem:[%s59] ss:$16 sm:%s60]
  %s62 = scalar_lea.vmem %s0, 7
  %s63 = smov 12
  %v64 = vld [vmem:[%s62] ss:$16 sm:%s63]
  %vm65 = vcmask 1043458
  %v66 = vsel %vm65, %v64, %v61
  %s67 = scalar_lea.vmem %s0, 7
  %s68 = smov 48
  %v69 = vld [vmem:[%s67] ss:$16 sm:%s68]
  %vm70 = vcmask 1045508
  %v71 = vsel %vm70, %v69, %v66
  %s72 = scalar_lea.vmem %s0, 7
  %s73 = smov 192
  %v74 = vld [vmem:[%s72] ss:$16 sm:%s73]
  %vm75 = vcmask 1047558
  %v76 = vsel %vm75, %v74, %v71
  %77 = vrot.lane.b32.xlu0 %v76, 112
  %v78 = vpop.permute.xlu0 %77
  %vm79 = vcmask 1048448
  %80 = vst.msk [vmem:[%s1] sm:$0xff] %vm79, %v78
  %s81 = scalar_lea.vmem %s0, 15
  %s82 = smov 3
  %v83 = vld [vmem:[%s81] ss:$16 sm:%s82]
  %s84 = scalar_lea.vmem %s0, 15
  %s85 = smov 12
  %v86 = vld [vmem:[%s84] ss:$16 sm:%s85]
  %vm87 = vcmask 1043458
  %v88 = vsel %vm87, %v86, %v83
  %s89 = scalar_lea.vmem %s0, 15
  %s90 = smov 48
  %v91 = vld [vmem:[%s89] ss:$16 sm:%s90]
  %vm92 = vcmask 1045508
  %v93 = vsel %vm92, %v91, %v88
  %s94 = scalar_lea.vmem %s0, 15
  %s95 = smov 192
  %v96 = vld [vmem:[%s94] ss:$16 sm:%s95]
  %vm97 = vcmask 1047558
  %v98 = vsel %vm97, %v96, %v93
  %99 = vrot.lane.b32.xlu0 %v98, 112
  %v100 = vpop.permute.xlu0 %99
  %vm101 = vcmask 1048448
  %s102 = scalar_lea.vmem %s1, 8
  %103 = vst.msk [vmem:[%s102] sm:$0xff] %vm101, %v100
  %s104 = scalar_lea.vmem %s0, 135
  %s105 = smov 3
  %v106 = vld [vmem:[%s104] ss:$16 sm:%s105]
  %s107 = scalar_lea.vmem %s0, 135
  %s108 = smov 12
  %v109 = vld [vmem:[%s107] ss:$16 sm:%s108]
  %vm110 = vcmask 1043458
  %v111 = vsel %vm110, %v109, %v106
  %s112 = scalar_lea.vmem %s0, 135
  %s113 = smov 48
  %v114 = vld [vmem:[%s112] ss:$16 sm:%s113]
  %vm115 = vcmask 1045508
  %v116 = vsel %vm115, %v114, %v111
  %s117 = scalar_lea.vmem %s0, 135
  %s118 = smov 192
  %v119 = vld [vmem:[%s117] ss:$16 sm:%s118]
  %vm120 = vcmask 1047558
  %v121 = vsel %vm120, %v119, %v116
  %122 = vrot.lane.b32.xlu0 %v121, 112
  %v123 = vpop.permute.xlu0 %122
  %vm124 = vcmask 1048448
  %s125 = scalar_lea.vmem %s1, 16
  %126 = vst.msk [vmem:[%s125] sm:$0xff] %vm124, %v123
  %s127 = scalar_lea.vmem %s0, 143
  %s128 = smov 3
  %v129 = vld [vmem:[%s127] ss:$16 sm:%s128]
  %s130 = scalar_lea.vmem %s0, 143
  %s131 = smov 12
  %v132 = vld [vmem:[%s130] ss:$16 sm:%s131]
  %vm133 = vcmask 1043458
  %v134 = vsel %vm133, %v132, %v129
  %s135 = scalar_lea.vmem %s0, 143
  %s136 = smov 48
  %v137 = vld [vmem:[%s135] ss:$16 sm:%s136]
  %vm138 = vcmask 1045508
  %v139 = vsel %vm138, %v137, %v134
  %s140 = scalar_lea.vmem %s0, 143
  %s141 = smov 192
  %v142 = vld [vmem:[%s140] ss:$16 sm:%s141]
  %vm143 = vcmask 1047558
  %v144 = vsel %vm143, %v142, %v139
  %145 = vrot.lane.b32.xlu0 %v144, 112
  %v146 = vpop.permute.xlu0 %145
  %vm147 = vcmask 1048448
  %s148 = scalar_lea.vmem %s1, 24
  %149 = vst.msk [vmem:[%s148] sm:$0xff] %vm147, %v146
  %s150 = scalar_lea.vmem %s0, 6
  %s151 = smov 3
  %v152 = vld [vmem:[%s150] ss:$16 sm:%s151]
  %s153 = scalar_lea.vmem %s0, 6
  %s154 = smov 12
  %v155 = vld [vmem:[%s153] ss:$16 sm:%s154]
  %vm156 = vcmask 1043458
  %v157 = vsel %vm156, %v155, %v152
  %s158 = scalar_lea.vmem %s0, 6
  %s159 = smov 48
  %v160 = vld [vmem:[%s158] ss:$16 sm:%s159]
  %vm161 = vcmask 1045508
  %v162 = vsel %vm161, %v160, %v157
  %s163 = scalar_lea.vmem %s0, 6
  %s164 = smov 192
  %v165 = vld [vmem:[%s163] ss:$16 sm:%s164]
  %vm166 = vcmask 1047558
  %v167 = vsel %vm166, %v165, %v162
  %168 = vrot.lane.b32.xlu0 %v167, 96
  %v169 = vpop.permute.xlu0 %168
  %vm170 = vcmask 917248
  %171 = vst.msk [vmem:[%s1] sm:$0xff] %vm170, %v169
  %s172 = scalar_lea.vmem %s0, 14
  %s173 = smov 3
  %v174 = vld [vmem:[%s172] ss:$16 sm:%s173]
  %s175 = scalar_lea.vmem %s0, 14
  %s176 = smov 12
  %v177 = vld [vmem:[%s175] ss:$16 sm:%s176]
  %vm178 = vcmask 1043458
  %v179 = vsel %vm178, %v177, %v174
  %s180 = scalar_lea.vmem %s0, 14
  %s181 = smov 48
  %v182 = vld [vmem:[%s180] ss:$16 sm:%s181]
  %vm183 = vcmask 1045508
  %v184 = vsel %vm183, %v182, %v179
  %s185 = scalar_lea.vmem %s0, 14
  %s186 = smov 192
  %v187 = vld [vmem:[%s185] ss:$16 sm:%s186]
  %vm188 = vcmask 1047558
  %v189 = vsel %vm188, %v187, %v184
  %190 = vrot.lane.b32.xlu0 %v189, 96
  %v191 = vpop.permute.xlu0 %190
  %vm192 = vcmask 917248
  %s193 = scalar_lea.vmem %s1, 8
  %194 = vst.msk [vmem:[%s193] sm:$0xff] %vm192, %v191
  %s195 = scalar_lea.vmem %s0, 134
  %s196 = smov 3
  %v197 = vld [vmem:[%s195] ss:$16 sm:%s196]
  %s198 = scalar_lea.vmem %s0, 134
  %s199 = smov 12
  %v200 = vld [vmem:[%s198] ss:$16 sm:%s199]
  %vm201 = vcmask 1043458
  %v202 = vsel %vm201, %v200, %v197
  %s203 = scalar_lea.vmem %s0, 134
  %s204 = smov 48
  %v205 = vld [vmem:[%s203] ss:$16 sm:%s204]
  %vm206 = vcmask 1045508
  %v207 = vsel %vm206, %v205, %v202
  %s208 = scalar_lea.vmem %s0, 134
  %s209 = smov 192
  %v210 = vld [vmem:[%s208] ss:$16 sm:%s209]
  %vm211 = vcmask 1047558
  %v212 = vsel %vm211, %v210, %v207
  %213 = vrot.lane.b32.xlu0 %v212, 96
  %v214 = vpop.permute.xlu0 %213
  %vm215 = vcmask 917248
  %s216 = scalar_lea.vmem %s1, 16
  %217 = vst.msk [vmem:[%s216] sm:$0xff] %vm215, %v214
  %s218 = scalar_lea.vmem %s0, 142
  %s219 = smov 3
  %v220 = vld [vmem:[%s218] ss:$16 sm:%s219]
  %s221 = scalar_lea.vmem %s0, 142
  %s222 = smov 12
  %v223 = vld [vmem:[%s221] ss:$16 sm:%s222]
  %vm224 = vcmask 1043458
  %v225 = vsel %vm224, %v223, %v220
  %s226 = scalar_lea.vmem %s0, 142
  %s227 = smov 48
  %v228 = vld [vmem:[%s226] ss:$16 sm:%s227]
  %vm229 = vcmask 1045508
  %v230 = vsel %vm229, %v228, %v225
  %s231 = scalar_lea.vmem %s0, 142
  %s232 = smov 192
  %v233 = vld [vmem:[%s231] ss:$16 sm:%s232]
  %vm234 = vcmask 1047558
  %v235 = vsel %vm234, %v233, %v230
  %236 = vrot.lane.b32.xlu0 %v235, 96
  %v237 = vpop.permute.xlu0 %236
  %vm238 = vcmask 917248
  %s239 = scalar_lea.vmem %s1, 24
  %240 = vst.msk [vmem:[%s239] sm:$0xff] %vm238, %v237
  %s241 = scalar_lea.vmem %s0, 5
  %s242 = smov 3
  %v243 = vld [vmem:[%s241] ss:$16 sm:%s242]
  %s244 = scalar_lea.vmem %s0, 5
  %s245 = smov 12
  %v246 = vld [vmem:[%s244] ss:$16 sm:%s245]
  %vm247 = vcmask 1043458
  %v248 = vsel %vm247, %v246, %v243
  %s249 = scalar_lea.vmem %s0, 5
  %s250 = smov 48
  %v251 = vld [vmem:[%s249] ss:$16 sm:%s250]
  %vm252 = vcmask 1045508
  %v253 = vsel %vm252, %v251, %v248
  %s254 = scalar_lea.vmem %s0, 5
  %s255 = smov 192
  %v256 = vld [vmem:[%s254] ss:$16 sm:%s255]
  %vm257 = vcmask 1047558
  %v258 = vsel %vm257, %v256, %v253
  %259 = vrot.lane.b32.xlu0 %v258, 80
  %v260 = vpop.permute.xlu0 %259
  %vm261 = vcmask 786048
  %262 = vst.msk [vmem:[%s1] sm:$0xff] %vm261, %v260
  %s263 = scalar_lea.vmem %s0, 13
  %s264 = smov 3
  %v265 = vld [vmem:[%s263] ss:$16 sm:%s264]
  %s266 = scalar_lea.vmem %s0, 13
  %s267 = smov 12
  %v268 = vld [vmem:[%s266] ss:$16 sm:%s267]
  %vm269 = vcmask 1043458
  %v270 = vsel %vm269, %v268, %v265
  %s271 = scalar_lea.vmem %s0, 13
  %s272 = smov 48
  %v273 = vld [vmem:[%s271] ss:$16 sm:%s272]
  %vm274 = vcmask 1045508
  %v275 = vsel %vm274, %v273, %v270
  %s276 = scalar_lea.vmem %s0, 13
  %s277 = smov 192
  %v278 = vld [vmem:[%s276] ss:$16 sm:%s277]
  %vm279 = vcmask 1047558
  %v280 = vsel %vm279, %v278, %v275
  %281 = vrot.lane.b32.xlu0 %v280, 80
  %v282 = vpop.permute.xlu0 %281
  %vm283 = vcmask 786048
  %s284 = scalar_lea.vmem %s1, 8
  %285 = vst.msk [vmem:[%s284] sm:$0xff] %vm283, %v282
  %s286 = scalar_lea.vmem %s0, 133
  %s287 = smov 3
  %v288 = vld [vmem:[%s286] ss:$16 sm:%s287]
  %s289 = scalar_lea.vmem %s0, 133
  %s290 = smov 12
  %v291 = vld [vmem:[%s289] ss:$16 sm:%s290]
  %vm292 = vcmask 1043458
  %v293 = vsel %vm292, %v291, %v288
  %s294 = scalar_lea.vmem %s0, 133
  %s295 = smov 48
  %v296 = vld [vmem:[%s294] ss:$16 sm:%s295]
  %vm297 = vcmask 1045508
  %v298 = vsel %vm297, %v296, %v293
  %s299 = scalar_lea.vmem %s0, 133
  %s300 = smov 192
  %v301 = vld [vmem:[%s299] ss:$16 sm:%s300]
  %vm302 = vcmask 1047558
  %v303 = vsel %vm302, %v301, %v298
  %304 = vrot.lane.b32.xlu0 %v303, 80
  %v305 = vpop.permute.xlu0 %304
  %vm306 = vcmask 786048
  %s307 = scalar_lea.vmem %s1, 16
  %308 = vst.msk [vmem:[%s307] sm:$0xff] %vm306, %v305
  %s309 = scalar_lea.vmem %s0, 141
  %s310 = smov 3
  %v311 = vld [vmem:[%s309] ss:$16 sm:%s310]
  %s312 = scalar_lea.vmem %s0, 141
  %s313 = smov 12
  %v314 = vld [vmem:[%s312] ss:$16 sm:%s313]
  %vm315 = vcmask 1043458
  %v316 = vsel %vm315, %v314, %v311
  %s317 = scalar_lea.vmem %s0, 141
  %s318 = smov 48
  %v319 = vld [vmem:[%s317] ss:$16 sm:%s318]
  %vm320 = vcmask 1045508
  %v321 = vsel %vm320, %v319, %v316
  %s322 = scalar_lea.vmem %s0, 141
  %s323 = smov 192
  %v324 = vld [vmem:[%s322] ss:$16 sm:%s323]
  %vm325 = vcmask 1047558
  %v326 = vsel %vm325, %v324, %v321
  %327 = vrot.lane.b32.xlu0 %v326, 80
  %v328 = vpop.permute.xlu0 %327
  %vm329 = vcmask 786048
  %s330 = scalar_lea.vmem %s1, 24
  %331 = vst.msk [vmem:[%s330] sm:$0xff] %vm329, %v328
  %s332 = scalar_lea.vmem %s0, 4
  %s333 = smov 3
  %v334 = vld [vmem:[%s332] ss:$16 sm:%s333]
  %s335 = scalar_lea.vmem %s0, 4
  %s336 = smov 12
  %v337 = vld [vmem:[%s335] ss:$16 sm:%s336]
  %vm338 = vcmask 1043458
  %v339 = vsel %vm338, %v337, %v334
  %s340 = scalar_lea.vmem %s0, 4
  %s341 = smov 48
  %v342 = vld [vmem:[%s340] ss:$16 sm:%s341]
  %vm343 = vcmask 1045508
  %v344 = vsel %vm343, %v342, %v339
  %s345 = scalar_lea.vmem %s0, 4
  %s346 = smov 192
  %v347 = vld [vmem:[%s345] ss:$16 sm:%s346]
  %vm348 = vcmask 1047558
  %v349 = vsel %vm348, %v347, %v344
  %350 = vrot.lane.b32.xlu0 %v349, 64
  %v351 = vpop.permute.xlu0 %350
  %vm352 = vcmask 654848
  %353 = vst.msk [vmem:[%s1] sm:$0xff] %vm352, %v351
  %s354 = scalar_lea.vmem %s0, 12
  %s355 = smov 3
  %v356 = vld [vmem:[%s354] ss:$16 sm:%s355]
  %s357 = scalar_lea.vmem %s0, 12
  %s358 = smov 12
  %v359 = vld [vmem:[%s357] ss:$16 sm:%s358]
  %vm360 = vcmask 1043458
  %v361 = vsel %vm360, %v359, %v356
  %s362 = scalar_lea.vmem %s0, 12
  %s363 = smov 48
  %v364 = vld [vmem:[%s362] ss:$16 sm:%s363]
  %vm365 = vcmask 1045508
  %v366 = vsel %vm365, %v364, %v361
  %s367 = scalar_lea.vmem %s0, 12
  %s368 = smov 192
  %v369 = vld [vmem:[%s367] ss:$16 sm:%s368]
  %vm370 = vcmask 1047558
  %v371 = vsel %vm370, %v369, %v366
  %372 = vrot.lane.b32.xlu0 %v371, 64
  %v373 = vpop.permute.xlu0 %372
  %vm374 = vcmask 654848
  %s375 = scalar_lea.vmem %s1, 8
  %376 = vst.msk [vmem:[%s375] sm:$0xff] %vm374, %v373
  %s377 = scalar_lea.vmem %s0, 132
  %s378 = smov 3
  %v379 = vld [vmem:[%s377] ss:$16 sm:%s378]
  %s380 = scalar_lea.vmem %s0, 132
  %s381 = smov 12
  %v382 = vld [vmem:[%s380] ss:$16 sm:%s381]
  %vm383 = vcmask 1043458
  %v384 = vsel %vm383, %v382, %v379
  %s385 = scalar_lea.vmem %s0, 132
  %s386 = smov 48
  %v387 = vld [vmem:[%s385] ss:$16 sm:%s386]
  %vm388 = vcmask 1045508
  %v389 = vsel %vm388, %v387, %v384
  %s390 = scalar_lea.vmem %s0, 132
  %s391 = smov 192
  %v392 = vld [vmem:[%s390] ss:$16 sm:%s391]
  %vm393 = vcmask 1047558
  %v394 = vsel %vm393, %v392, %v389
  %395 = vrot.lane.b32.xlu0 %v394, 64
  %v396 = vpop.permute.xlu0 %395
  %vm397 = vcmask 654848
  %s398 = scalar_lea.vmem %s1, 16
  %399 = vst.msk [vmem:[%s398] sm:$0xff] %vm397, %v396
  %s400 = scalar_lea.vmem %s0, 140
  %s401 = smov 3
  %v402 = vld [vmem:[%s400] ss:$16 sm:%s401]
  %s403 = scalar_lea.vmem %s0, 140
  %s404 = smov 12
  %v405 = vld [vmem:[%s403] ss:$16 sm:%s404]
  %vm406 = vcmask 1043458
  %v407 = vsel %vm406, %v405, %v402
  %s408 = scalar_lea.vmem %s0, 140
  %s409 = smov 48
  %v410 = vld [vmem:[%s408] ss:$16 sm:%s409]
  %vm411 = vcmask 1045508
  %v412 = vsel %vm411, %v410, %v407
  %s413 = scalar_lea.vmem %s0, 140
  %s414 = smov 192
  %v415 = vld [vmem:[%s413] ss:$16 sm:%s414]
  %vm416 = vcmask 1047558
  %v417 = vsel %vm416, %v415, %v412
  %418 = vrot.lane.b32.xlu0 %v417, 64
  %v419 = vpop.permute.xlu0 %418
  %vm420 = vcmask 654848
  %s421 = scalar_lea.vmem %s1, 24
  %422 = vst.msk [vmem:[%s421] sm:$0xff] %vm420, %v419
  %s423 = scalar_lea.vmem %s0, 3
  %s424 = smov 3
  %v425 = vld [vmem:[%s423] ss:$16 sm:%s424]
  %s426 = scalar_lea.vmem %s0, 3
  %s427 = smov 12
  %v428 = vld [vmem:[%s426] ss:$16 sm:%s427]
  %vm429 = vcmask 1043458
  %v430 = vsel %vm429, %v428, %v425
  %s431 = scalar_lea.vmem %s0, 3
  %s432 = smov 48
  %v433 = vld [vmem:[%s431] ss:$16 sm:%s432]
  %vm434 = vcmask 1045508
  %v435 = vsel %vm434, %v433, %v430
  %s436 = scalar_lea.vmem %s0, 3
  %s437 = smov 192
  %v438 = vld [vmem:[%s436] ss:$16 sm:%s437]
  %vm439 = vcmask 1047558
  %v440 = vsel %vm439, %v438, %v435
  %441 = vrot.lane.b32.xlu0 %v440, 48
  %v442 = vpop.permute.xlu0 %441
  %vm443 = vcmask 523648
  %444 = vst.msk [vmem:[%s1] sm:$0xff] %vm443, %v442
  %s445 = scalar_lea.vmem %s0, 11
  %s446 = smov 3
  %v447 = vld [vmem:[%s445] ss:$16 sm:%s446]
  %s448 = scalar_lea.vmem %s0, 11
  %s449 = smov 12
  %v450 = vld [vmem:[%s448] ss:$16 sm:%s449]
  %vm451 = vcmask 1043458
  %v452 = vsel %vm451, %v450, %v447
  %s453 = scalar_lea.vmem %s0, 11
  %s454 = smov 48
  %v455 = vld [vmem:[%s453] ss:$16 sm:%s454]
  %vm456 = vcmask 1045508
  %v457 = vsel %vm456, %v455, %v452
  %s458 = scalar_lea.vmem %s0, 11
  %s459 = smov 192
  %v460 = vld [vmem:[%s458] ss:$16 sm:%s459]
  %vm461 = vcmask 1047558
  %v462 = vsel %vm461, %v460, %v457
  %463 = vrot.lane.b32.xlu0 %v462, 48
  %v464 = vpop.permute.xlu0 %463
  %vm465 = vcmask 523648
  %s466 = scalar_lea.vmem %s1, 8
  %467 = vst.msk [vmem:[%s466] sm:$0xff] %vm465, %v464
  %s468 = scalar_lea.vmem %s0, 131
  %s469 = smov 3
  %v470 = vld [vmem:[%s468] ss:$16 sm:%s469]
  %s471 = scalar_lea.vmem %s0, 131
  %s472 = smov 12
  %v473 = vld [vmem:[%s471] ss:$16 sm:%s472]
  %vm474 = vcmask 1043458
  %v475 = vsel %vm474, %v473, %v470
  %s476 = scalar_lea.vmem %s0, 131
  %s477 = smov 48
  %v478 = vld [vmem:[%s476] ss:$16 sm:%s477]
  %vm479 = vcmask 1045508
  %v480 = vsel %vm479, %v478, %v475
  %s481 = scalar_lea.vmem %s0, 131
  %s482 = smov 192
  %v483 = vld [vmem:[%s481] ss:$16 sm:%s482]
  %vm484 = vcmask 1047558
  %v485 = vsel %vm484, %v483, %v480
  %486 = vrot.lane.b32.xlu0 %v485, 48
  %v487 = vpop.permute.xlu0 %486
  %vm488 = vcmask 523648
  %s489 = scalar_lea.vmem %s1, 16
  %490 = vst.msk [vmem:[%s489] sm:$0xff] %vm488, %v487
  %s491 = scalar_lea.vmem %s0, 139
  %s492 = smov 3
  %v493 = vld [vmem:[%s491] ss:$16 sm:%s492]
  %s494 = scalar_lea.vmem %s0, 139
  %s495 = smov 12
  %v496 = vld [vmem:[%s494] ss:$16 sm:%s495]
  %vm497 = vcmask 1043458
  %v498 = vsel %vm497, %v496, %v493
  %s499 = scalar_lea.vmem %s0, 139
  %s500 = smov 48
  %v501 = vld [vmem:[%s499] ss:$16 sm:%s500]
  %vm502 = vcmask 1045508
  %v503 = vsel %vm502, %v501, %v498
  %s504 = scalar_lea.vmem %s0, 139
  %s505 = smov 192
  %v506 = vld [vmem:[%s504] ss:$16 sm:%s505]
  %vm507 = vcmask 1047558
  %v508 = vsel %vm507, %v506, %v503
  %509 = vrot.lane.b32.xlu0 %v508, 48
  %v510 = vpop.permute.xlu0 %509
  %vm511 = vcmask 523648
  %s512 = scalar_lea.vmem %s1, 24
  %513 = vst.msk [vmem:[%s512] sm:$0xff] %vm511, %v510
  %s514 = scalar_lea.vmem %s0, 2
  %s515 = smov 3
  %v516 = vld [vmem:[%s514] ss:$16 sm:%s515]
  %s517 = scalar_lea.vmem %s0, 2
  %s518 = smov 12
  %v519 = vld [vmem:[%s517] ss:$16 sm:%s518]
  %vm520 = vcmask 1043458
  %v521 = vsel %vm520, %v519, %v516
  %s522 = scalar_lea.vmem %s0, 2
  %s523 = smov 48
  %v524 = vld [vmem:[%s522] ss:$16 sm:%s523]
  %vm525 = vcmask 1045508
  %v526 = vsel %vm525, %v524, %v521
  %s527 = scalar_lea.vmem %s0, 2
  %s528 = smov 192
  %v529 = vld [vmem:[%s527] ss:$16 sm:%s528]
  %vm530 = vcmask 1047558
  %v531 = vsel %vm530, %v529, %v526
  %532 = vrot.lane.b32.xlu0 %v531, 32
  %v533 = vpop.permute.xlu0 %532
  %vm534 = vcmask 392448
  %535 = vst.msk [vmem:[%s1] sm:$0xff] %vm534, %v533
  %s536 = scalar_lea.vmem %s0, 10
  %s537 = smov 3
  %v538 = vld [vmem:[%s536] ss:$16 sm:%s537]
  %s539 = scalar_lea.vmem %s0, 10
  %s540 = smov 12
  %v541 = vld [vmem:[%s539] ss:$16 sm:%s540]
  %vm542 = vcmask 1043458
  %v543 = vsel %vm542, %v541, %v538
  %s544 = scalar_lea.vmem %s0, 10
  %s545 = smov 48
  %v546 = vld [vmem:[%s544] ss:$16 sm:%s545]
  %vm547 = vcmask 1045508
  %v548 = vsel %vm547, %v546, %v543
  %s549 = scalar_lea.vmem %s0, 10
  %s550 = smov 192
  %v551 = vld [vmem:[%s549] ss:$16 sm:%s550]
  %vm552 = vcmask 1047558
  %v553 = vsel %vm552, %v551, %v548
  %554 = vrot.lane.b32.xlu0 %v553, 32
  %v555 = vpop.permute.xlu0 %554
  %vm556 = vcmask 392448
  %s557 = scalar_lea.vmem %s1, 8
  %558 = vst.msk [vmem:[%s557] sm:$0xff] %vm556, %v555
  %s559 = scalar_lea.vmem %s0, 130
  %s560 = smov 3
  %v561 = vld [vmem:[%s559] ss:$16 sm:%s560]
  %s562 = scalar_lea.vmem %s0, 130
  %s563 = smov 12
  %v564 = vld [vmem:[%s562] ss:$16 sm:%s563]
  %vm565 = vcmask 1043458
  %v566 = vsel %vm565, %v564, %v561
  %s567 = scalar_lea.vmem %s0, 130
  %s568 = smov 48
  %v569 = vld [vmem:[%s567] ss:$16 sm:%s568]
  %vm570 = vcmask 1045508
  %v571 = vsel %vm570, %v569, %v566
  %s572 = scalar_lea.vmem %s0, 130
  %s573 = smov 192
  %v574 = vld [vmem:[%s572] ss:$16 sm:%s573]
  %vm575 = vcmask 1047558
  %v576 = vsel %vm575, %v574, %v571
  %577 = vrot.lane.b32.xlu0 %v576, 32
  %v578 = vpop.permute.xlu0 %577
  %vm579 = vcmask 392448
  %s580 = scalar_lea.vmem %s1, 16
  %581 = vst.msk [vmem:[%s580] sm:$0xff] %vm579, %v578
  %s582 = scalar_lea.vmem %s0, 138
  %s583 = smov 3
  %v584 = vld [vmem:[%s582] ss:$16 sm:%s583]
  %s585 = scalar_lea.vmem %s0, 138
  %s586 = smov 12
  %v587 = vld [vmem:[%s585] ss:$16 sm:%s586]
  %vm588 = vcmask 1043458
  %v589 = vsel %vm588, %v587, %v584
  %s590 = scalar_lea.vmem %s0, 138
  %s591 = smov 48
  %v592 = vld [vmem:[%s590] ss:$16 sm:%s591]
  %vm593 = vcmask 1045508
  %v594 = vsel %vm593, %v592, %v589
  %s595 = scalar_lea.vmem %s0, 138
  %s596 = smov 192
  %v597 = vld [vmem:[%s595] ss:$16 sm:%s596]
  %vm598 = vcmask 1047558
  %v599 = vsel %vm598, %v597, %v594
  %600 = vrot.lane.b32.xlu0 %v599, 32
  %v601 = vpop.permute.xlu0 %600
  %vm602 = vcmask 392448
  %s603 = scalar_lea.vmem %s1, 24
  %604 = vst.msk [vmem:[%s603] sm:$0xff] %vm602, %v601
  %s605 = scalar_lea.vmem %s0, 1
  %s606 = smov 3
  %v607 = vld [vmem:[%s605] ss:$16 sm:%s606]
  %s608 = scalar_lea.vmem %s0, 1
  %s609 = smov 12
  %v610 = vld [vmem:[%s608] ss:$16 sm:%s609]
  %vm611 = vcmask 1043458
  %v612 = vsel %vm611, %v610, %v607
  %s613 = scalar_lea.vmem %s0, 1
  %s614 = smov 48
  %v615 = vld [vmem:[%s613] ss:$16 sm:%s614]
  %vm616 = vcmask 1045508
  %v617 = vsel %vm616, %v615, %v612
  %s618 = scalar_lea.vmem %s0, 1
  %s619 = smov 192
  %v620 = vld [vmem:[%s618] ss:$16 sm:%s619]
  %vm621 = vcmask 1047558
  %v622 = vsel %vm621, %v620, %v617
  %623 = vrot.lane.b32.xlu0 %v622, 16
  %v624 = vpop.permute.xlu0 %623
  %vm625 = vcmask 261248
  %626 = vst.msk [vmem:[%s1] sm:$0xff] %vm625, %v624
  %s627 = scalar_lea.vmem %s0, 9
  %s628 = smov 3
  %v629 = vld [vmem:[%s627] ss:$16 sm:%s628]
  %s630 = scalar_lea.vmem %s0, 9
  %s631 = smov 12
  %v632 = vld [vmem:[%s630] ss:$16 sm:%s631]
  %vm633 = vcmask 1043458
  %v634 = vsel %vm633, %v632, %v629
  %s635 = scalar_lea.vmem %s0, 9
  %s636 = smov 48
  %v637 = vld [vmem:[%s635] ss:$16 sm:%s636]
  %vm638 = vcmask 1045508
  %v639 = vsel %vm638, %v637, %v634
  %s640 = scalar_lea.vmem %s0, 9
  %s641 = smov 192
  %v642 = vld [vmem:[%s640] ss:$16 sm:%s641]
  %vm643 = vcmask 1047558
  %v644 = vsel %vm643, %v642, %v639
  %645 = vrot.lane.b32.xlu0 %v644, 16
  %v646 = vpop.permute.xlu0 %645
  %vm647 = vcmask 261248
  %s648 = scalar_lea.vmem %s1, 8
  %649 = vst.msk [vmem:[%s648] sm:$0xff] %vm647, %v646
  %s650 = scalar_lea.vmem %s0, 129
  %s651 = smov 3
  %v652 = vld [vmem:[%s650] ss:$16 sm:%s651]
  %s653 = scalar_lea.vmem %s0, 129
  %s654 = smov 12
  %v655 = vld [vmem:[%s653] ss:$16 sm:%s654]
  %vm656 = vcmask 1043458
  %v657 = vsel %vm656, %v655, %v652
  %s658 = scalar_lea.vmem %s0, 129
  %s659 = smov 48
  %v660 = vld [vmem:[%s658] ss:$16 sm:%s659]
  %vm661 = vcmask 1045508
  %v662 = vsel %vm661, %v660, %v657
  %s663 = scalar_lea.vmem %s0, 129
  %s664 = smov 192
  %v665 = vld [vmem:[%s663] ss:$16 sm:%s664]
  %vm666 = vcmask 1047558
  %v667 = vsel %vm666, %v665, %v662
  %668 = vrot.lane.b32.xlu0 %v667, 16
  %v669 = vpop.permute.xlu0 %668
  %vm670 = vcmask 261248
  %s671 = scalar_lea.vmem %s1, 16
  %672 = vst.msk [vmem:[%s671] sm:$0xff] %vm670, %v669
  %s673 = scalar_lea.vmem %s0, 137
  %s674 = smov 3
  %v675 = vld [vmem:[%s673] ss:$16 sm:%s674]
  %s676 = scalar_lea.vmem %s0, 137
  %s677 = smov 12
  %v678 = vld [vmem:[%s676] ss:$16 sm:%s677]
  %vm679 = vcmask 1043458
  %v680 = vsel %vm679, %v678, %v675
  %s681 = scalar_lea.vmem %s0, 137
  %s682 = smov 48
  %v683 = vld [vmem:[%s681] ss:$16 sm:%s682]
  %vm684 = vcmask 1045508
  %v685 = vsel %vm684, %v683, %v680
  %s686 = scalar_lea.vmem %s0, 137
  %s687 = smov 192
  %v688 = vld [vmem:[%s686] ss:$16 sm:%s687]
  %vm689 = vcmask 1047558
  %v690 = vsel %vm689, %v688, %v685
  %691 = vrot.lane.b32.xlu0 %v690, 16
  %v692 = vpop.permute.xlu0 %691
  %vm693 = vcmask 261248
  %s694 = scalar_lea.vmem %s1, 24
  %695 = vst.msk [vmem:[%s694] sm:$0xff] %vm693, %v692

// kernel: tile.24
$region0: #{tile.24}
  %s0 = inlined_call_operand.vmem [shape: f32[8,32,32], index: 0, kind: input, shape index: {}]
  %s1 = inlined_call_operand.vmem [shape: f32[256,32], index: 1, kind: output, shape index: {}]
  %v2 = vld [vmem:[%s0] ss:$4 sm:$0xff]
  %vm3 = vcmask 261120
  %4 = vst.msk [vmem:[%s1] ss:$8 sm:$0x3] %vm3, %v2
  %s5 = scalar_lea.vmem %s1, 4294967281
  %6 = vst.msk [vmem:[%s5] ss:$8 sm:$0xc] %vm3, %v2
  %s7 = scalar_lea.vmem %s1, 4294967266
  %8 = vst.msk [vmem:[%s7] ss:$8 sm:$0x30] %vm3, %v2
  %s9 = scalar_lea.vmem %s1, 4294967251
  %10 = vst.msk [vmem:[%s9] ss:$8 sm:$0xc0] %vm3, %v2
  %s11 = scalar_lea.vmem %s0, 32
  %v12 = vld [vmem:[%s11] ss:$4 sm:$0xff]
  %vm13 = vcmask 261120
  %s14 = scalar_lea.vmem %s1, 4
  %15 = vst.msk [vmem:[%s14] ss:$8 sm:$0x3] %vm13, %v12
  %s16 = scalar_lea.vmem %s1, 4294967285
  %17 = vst.msk [vmem:[%s16] ss:$8 sm:$0xc] %vm13, %v12
  %s18 = scalar_lea.vmem %s1, 4294967270
  %19 = vst.msk [vmem:[%s18] ss:$8 sm:$0x30] %vm13, %v12
  %s20 = scalar_lea.vmem %s1, 4294967255
  %21 = vst.msk [vmem:[%s20] ss:$8 sm:$0xc0] %vm13, %v12
  %s22 = scalar_lea.vmem %s0, 64
  %v23 = vld [vmem:[%s22] ss:$4 sm:$0xff]
  %vm24 = vcmask 261120
  %s25 = scalar_lea.vmem %s1, 16
  %26 = vst.msk [vmem:[%s25] ss:$8 sm:$0x3] %vm24, %v23
  %s27 = scalar_lea.vmem %s1, 1
  %28 = vst.msk [vmem:[%s27] ss:$8 sm:$0xc] %vm24, %v23
  %s29 = scalar_lea.vmem %s1, 4294967282
  %30 = vst.msk [vmem:[%s29] ss:$8 sm:$0x30] %vm24, %v23
  %s31 = scalar_lea.vmem %s1, 4294967267
  %32 = vst.msk [vmem:[%s31] ss:$8 sm:$0xc0] %vm24, %v23
  %s33 = scalar_lea.vmem %s0, 96
  %v34 = vld [vmem:[%s33] ss:$4 sm:$0xff]
  %vm35 = vcmask 261120
  %s36 = scalar_lea.vmem %s1, 20
  %37 = vst.msk [vmem:[%s36] ss:$8 sm:$0x3] %vm35, %v34
  %s38 = scalar_lea.vmem %s1, 5
  %39 = vst.msk [vmem:[%s38] ss:$8 sm:$0xc] %vm35, %v34
  %s40 = scalar_lea.vmem %s1, 4294967286
  %41 = vst.msk [vmem:[%s40] ss:$8 sm:$0x30] %vm35, %v34
  %s42 = scalar_lea.vmem %s1, 4294967271
  %43 = vst.msk [vmem:[%s42] ss:$8 sm:$0xc0] %vm35, %v34
  %s44 = scalar_lea.vmem %s0, 128
  %v45 = vld [vmem:[%s44] ss:$4 sm:$0xff]
  %vm46 = vcmask 261120
  %s47 = scalar_lea.vmem %s1, 32
  %48 = vst.msk [vmem:[%s47] ss:$8 sm:$0x3] %vm46, %v45
  %s49 = scalar_lea.vmem %s1, 17
  %50 = vst.msk [vmem:[%s49] ss:$8 sm:$0xc] %vm46, %v45
  %s51 = scalar_lea.vmem %s1, 2
  %52 = vst.msk [vmem:[%s51] ss:$8 sm:$0x30] %vm46, %v45
  %s53 = scalar_lea.vmem %s1, 4294967283
  %54 = vst.msk [vmem:[%s53] ss:$8 sm:$0xc0] %vm46, %v45
  %s55 = scalar_lea.vmem %s0, 160
  %v56 = vld [vmem:[%s55] ss:$4 sm:$0xff]
  %vm57 = vcmask 261120
  %s58 = scalar_lea.vmem %s1, 36
  %59 = vst.msk [vmem:[%s58] ss:$8 sm:$0x3] %vm57, %v56
  %s60 = scalar_lea.vmem %s1, 21
  %61 = vst.msk [vmem:[%s60] ss:$8 sm:$0xc] %vm57, %v56
  %s62 = scalar_lea.vmem %s1, 6
  %63 = vst.msk [vmem:[%s62] ss:$8 sm:$0x30] %vm57, %v56
  %s64 = scalar_lea.vmem %s1, 4294967287
  %65 = vst.msk [vmem:[%s64] ss:$8 sm:$0xc0] %vm57, %v56
  %s66 = scalar_lea.vmem %s0, 192
  %v67 = vld [vmem:[%s66] ss:$4 sm:$0xff]
  %vm68 = vcmask 261120
  %s69 = scalar_lea.vmem %s1, 48
  %70 = vst.msk [vmem:[%s69] ss:$8 sm:$0x3] %vm68, %v67
  %s71 = scalar_lea.vmem %s1, 33
  %72 = vst.msk [vmem:[%s71] ss:$8 sm:$0xc] %vm68, %v67
  %s73 = scalar_lea.vmem %s1, 18
  %74 = vst.msk [vmem:[%s73] ss:$8 sm:$0x30] %vm68, %v67
  %s75 = scalar_lea.vmem %s1, 3
  %76 = vst.msk [vmem:[%s75] ss:$8 sm:$0xc0] %vm68, %v67
  %s77 = scalar_lea.vmem %s0, 224
  %v78 = vld [vmem:[%s77] ss:$4 sm:$0xff]
  %vm79 = vcmask 261120
  %s80 = scalar_lea.vmem %s1, 52
  %81 = vst.msk [vmem:[%s80] ss:$8 sm:$0x3] %vm79, %v78
  %s82 = scalar_lea.vmem %s1, 37
  %83 = vst.msk [vmem:[%s82] ss:$8 sm:$0xc] %vm79, %v78
  %s84 = scalar_lea.vmem %s1, 22
  %85 = vst.msk [vmem:[%s84] ss:$8 sm:$0x30] %vm79, %v78
  %s86 = scalar_lea.vmem %s1, 7
  %87 = vst.msk [vmem:[%s86] ss:$8 sm:$0xc0] %vm79, %v78
  %s88 = scalar_lea.vmem %s0, 3
  %v89 = vld [vmem:[%s88] ss:$8 sm:$0xf]
  %s90 = scalar_lea.vmem %s0, 3
  %v91 = vld [vmem:[%s90] ss:$8 sm:$0xf0]
  %vm92 = vcmask 1047556
  %v93 = vsel %vm92, %v91, %v89
  %94 = vrot.lane.b32.xlu0 %v93, 96
  %v95 = vpop.permute.xlu0 %94
  %vm96 = vcmask 1048320
  %97 = vst.msk [vmem:[%s1] sm:$0xff] %vm96, %v95
  %s98 = scalar_lea.vmem %s0, 131
  %v99 = vld [vmem:[%s98] ss:$8 sm:$0xf]
  %s100 = scalar_lea.vmem %s0, 131
  %v101 = vld [vmem:[%s100] ss:$8 sm:$0xf0]
  %vm102 = vcmask 1047556
  %v103 = vsel %vm102, %v101, %v99
  %104 = vrot.lane.b32.xlu0 %v103, 96
  %v105 = vpop.permute.xlu0 %104
  %vm106 = vcmask 1048320
  %s107 = scalar_lea.vmem %s1, 32
  %108 = vst.msk [vmem:[%s107] sm:$0xff] %vm106, %v105
  %s109 = scalar_lea.vmem %s0, 7
  %v110 = vld [vmem:[%s109] ss:$8 sm:$0xf]
  %s111 = scalar_lea.vmem %s0, 7
  %v112 = vld [vmem:[%s111] ss:$8 sm:$0xf0]
  %vm113 = vcmask 1047556
  %v114 = vsel %vm113, %v112, %v110
  %115 = vrot.lane.b32.xlu0 %v114, 96
  %v116 = vpop.permute.xlu0 %115
  %vm117 = vcmask 1048320
  %s118 = scalar_lea.vmem %s1, 8
  %119 = vst.msk [vmem:[%s118] sm:$0xff] %vm117, %v116
  %s120 = scalar_lea.vmem %s0, 135
  %v121 = vld [vmem:[%s120] ss:$8 sm:$0xf]
  %s122 = scalar_lea.vmem %s0, 135
  %v123 = vld [vmem:[%s122] ss:$8 sm:$0xf0]
  %vm124 = vcmask 1047556
  %v125 = vsel %vm124, %v123, %v121
  %126 = vrot.lane.b32.xlu0 %v125, 96
  %v127 = vpop.permute.xlu0 %126
  %vm128 = vcmask 1048320
  %s129 = scalar_lea.vmem %s1, 40
  %130 = vst.msk [vmem:[%s129] sm:$0xff] %vm128, %v127
  %s131 = scalar_lea.vmem %s0, 67
  %v132 = vld [vmem:[%s131] ss:$8 sm:$0xf]
  %s133 = scalar_lea.vmem %s0, 67
  %v134 = vld [vmem:[%s133] ss:$8 sm:$0xf0]
  %vm135 = vcmask 1047556
  %v136 = vsel %vm135, %v134, %v132
  %137 = vrot.lane.b32.xlu0 %v136, 96
  %v138 = vpop.permute.xlu0 %137
  %vm139 = vcmask 1048320
  %s140 = scalar_lea.vmem %s1, 16
  %141 = vst.msk [vmem:[%s140] sm:$0xff] %vm139, %v138
  %s142 = scalar_lea.vmem %s0, 195
  %v143 = vld [vmem:[%s142] ss:$8 sm:$0xf]
  %s144 = scalar_lea.vmem %s0, 195
  %v145 = vld [vmem:[%s144] ss:$8 sm:$0xf0]
  %vm146 = vcmask 1047556
  %v147 = vsel %vm146, %v145, %v143
  %148 = vrot.lane.b32.xlu0 %v147, 96
  %v149 = vpop.permute.xlu0 %148
  %vm150 = vcmask 1048320
  %s151 = scalar_lea.vmem %s1, 48
  %152 = vst.msk [vmem:[%s151] sm:$0xff] %vm150, %v149
  %s153 = scalar_lea.vmem %s0, 71
  %v154 = vld [vmem:[%s153] ss:$8 sm:$0xf]
  %s155 = scalar_lea.vmem %s0, 71
  %v156 = vld [vmem:[%s155] ss:$8 sm:$0xf0]
  %vm157 = vcmask 1047556
  %v158 = vsel %vm157, %v156, %v154
  %159 = vrot.lane.b32.xlu0 %v158, 96
  %v160 = vpop.permute.xlu0 %159
  %vm161 = vcmask 1048320
  %s162 = scalar_lea.vmem %s1, 24
  %163 = vst.msk [vmem:[%s162] sm:$0xff] %vm161, %v160
  %s164 = scalar_lea.vmem %s0, 199
  %v165 = vld [vmem:[%s164] ss:$8 sm:$0xf]
  %s166 = scalar_lea.vmem %s0, 199
  %v167 = vld [vmem:[%s166] ss:$8 sm:$0xf0]
  %vm168 = vcmask 1047556
  %v169 = vsel %vm168, %v167, %v165
  %170 = vrot.lane.b32.xlu0 %v169, 96
  %v171 = vpop.permute.xlu0 %170
  %vm172 = vcmask 1048320
  %s173 = scalar_lea.vmem %s1, 56
  %174 = vst.msk [vmem:[%s173] sm:$0xff] %vm172, %v171
  %s175 = scalar_lea.vmem %s0, 2
  %v176 = vld [vmem:[%s175] ss:$8 sm:$0xf]
  %s177 = scalar_lea.vmem %s0, 2
  %v178 = vld [vmem:[%s177] ss:$8 sm:$0xf0]
  %vm179 = vcmask 1047556
  %v180 = vsel %vm179, %v178, %v176
  %181 = vrot.lane.b32.xlu0 %v180, 64
  %v182 = vpop.permute.xlu0 %181
  %vm183 = vcmask 785920
  %184 = vst.msk [vmem:[%s1] sm:$0xff] %vm183, %v182
  %s185 = scalar_lea.vmem %s0, 130
  %v186 = vld [vmem:[%s185] ss:$8 sm:$0xf]
  %s187 = scalar_lea.vmem %s0, 130
  %v188 = vld [vmem:[%s187] ss:$8 sm:$0xf0]
  %vm189 = vcmask 1047556
  %v190 = vsel %vm189, %v188, %v186
  %191 = vrot.lane.b32.xlu0 %v190, 64
  %v192 = vpop.permute.xlu0 %191
  %vm193 = vcmask 785920
  %s194 = scalar_lea.vmem %s1, 32
  %195 = vst.msk [vmem:[%s194] sm:$0xff] %vm193, %v192
  %s196 = scalar_lea.vmem %s0, 6
  %v197 = vld [vmem:[%s196] ss:$8 sm:$0xf]
  %s198 = scalar_lea.vmem %s0, 6
  %v199 = vld [vmem:[%s198] ss:$8 sm:$0xf0]
  %vm200 = vcmask 1047556
  %v201 = vsel %vm200, %v199, %v197
  %202 = vrot.lane.b32.xlu0 %v201, 64
  %v203 = vpop.permute.xlu0 %202
  %vm204 = vcmask 785920
  %s205 = scalar_lea.vmem %s1, 8
  %206 = vst.msk [vmem:[%s205] sm:$0xff] %vm204, %v203
  %s207 = scalar_lea.vmem %s0, 134
  %v208 = vld [vmem:[%s207] ss:$8 sm:$0xf]
  %s209 = scalar_lea.vmem %s0, 134
  %v210 = vld [vmem:[%s209] ss:$8 sm:$0xf0]
  %vm211 = vcmask 1047556
  %v212 = vsel %vm211, %v210, %v208
  %213 = vrot.lane.b32.xlu0 %v212, 64
  %v214 = vpop.permute.xlu0 %213
  %vm215 = vcmask 785920
  %s216 = scalar_lea.vmem %s1, 40
  %217 = vst.msk [vmem:[%s216] sm:$0xff] %vm215, %v214
  %s218 = scalar_lea.vmem %s0, 66
  %v219 = vld [vmem:[%s218] ss:$8 sm:$0xf]
  %s220 = scalar_lea.vmem %s0, 66
  %v221 = vld [vmem:[%s220] ss:$8 sm:$0xf0]
  %vm222 = vcmask 1047556
  %v223 = vsel %vm222, %v221, %v219
  %224 = vrot.lane.b32.xlu0 %v223, 64
  %v225 = vpop.permute.xlu0 %224
  %vm226 = vcmask 785920
  %s227 = scalar_lea.vmem %s1, 16
  %228 = vst.msk [vmem:[%s227] sm:$0xff] %vm226, %v225
  %s229 = scalar_lea.vmem %s0, 194
  %v230 = vld [vmem:[%s229] ss:$8 sm:$0xf]
  %s231 = scalar_lea.vmem %s0, 194
  %v232 = vld [vmem:[%s231] ss:$8 sm:$0xf0]
  %vm233 = vcmask 1047556
  %v234 = vsel %vm233, %v232, %v230
  %235 = vrot.lane.b32.xlu0 %v234, 64
  %v236 = vpop.permute.xlu0 %235
  %vm237 = vcmask 785920
  %s238 = scalar_lea.vmem %s1, 48
  %239 = vst.msk [vmem:[%s238] sm:$0xff] %vm237, %v236
  %s240 = scalar_lea.vmem %s0, 70
  %v241 = vld [vmem:[%s240] ss:$8 sm:$0xf]
  %s242 = scalar_lea.vmem %s0, 70
  %v243 = vld [vmem:[%s242] ss:$8 sm:$0xf0]
  %vm244 = vcmask 1047556
  %v245 = vsel %vm244, %v243, %v241
  %246 = vrot.lane.b32.xlu0 %v245, 64
  %v247 = vpop.permute.xlu0 %246
  %vm248 = vcmask 785920
  %s249 = scalar_lea.vmem %s1, 24
  %250 = vst.msk [vmem:[%s249] sm:$0xff] %vm248, %v247
  %s251 = scalar_lea.vmem %s0, 198
  %v252 = vld [vmem:[%s251] ss:$8 sm:$0xf]
  %s253 = scalar_lea.vmem %s0, 198
  %v254 = vld [vmem:[%s253] ss:$8 sm:$0xf0]
  %vm255 = vcmask 1047556
  %v256 = vsel %vm255, %v254, %v252
  %257 = vrot.lane.b32.xlu0 %v256, 64
  %v258 = vpop.permute.xlu0 %257
  %vm259 = vcmask 785920
  %s260 = scalar_lea.vmem %s1, 56
  %261 = vst.msk [vmem:[%s260] sm:$0xff] %vm259, %v258
  %s262 = scalar_lea.vmem %s0, 1
  %v263 = vld [vmem:[%s262] ss:$8 sm:$0xf]
  %s264 = scalar_lea.vmem %s0, 1
  %v265 = vld [vmem:[%s264] ss:$8 sm:$0xf0]
  %vm266 = vcmask 1047556
  %v267 = vsel %vm266, %v265, %v263
  %268 = vrot.lane.b32.xlu0 %v267, 32
  %v269 = vpop.permute.xlu0 %268
  %vm270 = vcmask 523520
  %271 = vst.msk [vmem:[%s1] sm:$0xff] %vm270, %v269
  %s272 = scalar_lea.vmem %s0, 129
  %v273 = vld [vmem:[%s272] ss:$8 sm:$0xf]
  %s274 = scalar_lea.vmem %s0, 129
  %v275 = vld [vmem:[%s274] ss:$8 sm:$0xf0]
  %vm276 = vcmask 1047556
  %v277 = vsel %vm276, %v275, %v273
  %278 = vrot.lane.b32.xlu0 %v277, 32
  %v279 = vpop.permute.xlu0 %278
  %vm280 = vcmask 523520
  %s281 = scalar_lea.vmem %s1, 32
  %282 = vst.msk [vmem:[%s281] sm:$0xff] %vm280, %v279
  %s283 = scalar_lea.vmem %s0, 5
  %v284 = vld [vmem:[%s283] ss:$8 sm:$0xf]
  %s285 = scalar_lea.vmem %s0, 5
  %v286 = vld [vmem:[%s285] ss:$8 sm:$0xf0]
  %vm287 = vcmask 1047556
  %v288 = vsel %vm287, %v286, %v284
  %289 = vrot.lane.b32.xlu0 %v288, 32
  %v290 = vpop.permute.xlu0 %289
  %vm291 = vcmask 523520
  %s292 = scalar_lea.vmem %s1, 8
  %293 = vst.msk [vmem:[%s292] sm:$0xff] %vm291, %v290
  %s294 = scalar_lea.vmem %s0, 133
  %v295 = vld [vmem:[%s294] ss:$8 sm:$0xf]
  %s296 = scalar_lea.vmem %s0, 133
  %v297 = vld [vmem:[%s296] ss:$8 sm:$0xf0]
  %vm298 = vcmask 1047556
  %v299 = vsel %vm298, %v297, %v295
  %300 = vrot.lane.b32.xlu0 %v299, 32
  %v301 = vpop.permute.xlu0 %300
  %vm302 = vcmask 523520
  %s303 = scalar_lea.vmem %s1, 40
  %304 = vst.msk [vmem:[%s303] sm:$0xff] %vm302, %v301
  %s305 = scalar_lea.vmem %s0, 65
  %v306 = vld [vmem:[%s305] ss:$8 sm:$0xf]
  %s307 = scalar_lea.vmem %s0, 65
  %v308 = vld [vmem:[%s307] ss:$8 sm:$0xf0]
  %vm309 = vcmask 1047556
  %v310 = vsel %vm309, %v308, %v306
  %311 = vrot.lane.b32.xlu0 %v310, 32
  %v312 = vpop.permute.xlu0 %311
  %vm313 = vcmask 523520
  %s314 = scalar_lea.vmem %s1, 16
  %315 = vst.msk [vmem:[%s314] sm:$0xff] %vm313, %v312
  %s316 = scalar_lea.vmem %s0, 193
  %v317 = vld [vmem:[%s316] ss:$8 sm:$0xf]
  %s318 = scalar_lea.vmem %s0, 193
  %v319 = vld [vmem:[%s318] ss:$8 sm:$0xf0]
  %vm320 = vcmask 1047556
  %v321 = vsel %vm320, %v319, %v317
  %322 = vrot.lane.b32.xlu0 %v321, 32
  %v323 = vpop.permute.xlu0 %322
  %vm324 = vcmask 523520
  %s325 = scalar_lea.vmem %s1, 48
  %326 = vst.msk [vmem:[%s325] sm:$0xff] %vm324, %v323
  %s327 = scalar_lea.vmem %s0, 69
  %v328 = vld [vmem:[%s327] ss:$8 sm:$0xf]
  %s329 = scalar_lea.vmem %s0, 69
  %v330 = vld [vmem:[%s329] ss:$8 sm:$0xf0]
  %vm331 = vcmask 1047556
  %v332 = vsel %vm331, %v330, %v328
  %333 = vrot.lane.b32.xlu0 %v332, 32
  %v334 = vpop.permute.xlu0 %333
  %vm335 = vcmask 523520
  %s336 = scalar_lea.vmem %s1, 24
  %337 = vst.msk [vmem:[%s336] sm:$0xff] %vm335, %v334
  %s338 = scalar_lea.vmem %s0, 197
  %v339 = vld [vmem:[%s338] ss:$8 sm:$0xf]
  %s340 = scalar_lea.vmem %s0, 197
  %v341 = vld [vmem:[%s340] ss:$8 sm:$0xf0]
  %vm342 = vcmask 1047556
  %v343 = vsel %vm342, %v341, %v339
  %344 = vrot.lane.b32.xlu0 %v343, 32
  %v345 = vpop.permute.xlu0 %344
  %vm346 = vcmask 523520
  %s347 = scalar_lea.vmem %s1, 56
  %348 = vst.msk [vmem:[%s347] sm:$0xff] %vm346, %v345

// kernel: tile.29
$region0: #{tile.29}
  %s0 = inlined_call_operand.vmem [shape: f32[4,64,64], index: 0, kind: input, shape index: {}]
  %s1 = inlined_call_operand.vmem [shape: f32[256,64], index: 1, kind: output, shape index: {}]
  $region1: #{tile.29} parent=0
    #allocation0 [shape = 'u8[262144]{0}', space=vmem, size = 0x40000, scoped, tag = 'scoped mem for input reshape']
    %s3 = sshll.u32 1, 4
    %s4 = ssub.s32 %s3, 1
    %s5 = smul.addr 4, 63
    %s6 = scalar_lea.vmem %s0, %s5
    %v7 = vld [vmem:[%s6] sm:%s4]
    %s8 = scalar_lea.vmem [#allocation0], 504
    %9 = vst [vmem:[%s8] sm:%s4] %v7
    %s10 = smul.addr 4, 62
    %s11 = scalar_lea.vmem %s0, %s10
    %v12 = vld [vmem:[%s11] sm:%s4]
    %s13 = scalar_lea.vmem [#allocation0], 496
    %14 = vst [vmem:[%s13] sm:%s4] %v12
    %s15 = smul.addr 4, 61
    %s16 = scalar_lea.vmem %s0, %s15
    %v17 = vld [vmem:[%s16] sm:%s4]
    %s18 = scalar_lea.vmem [#allocation0], 488
    %19 = vst [vmem:[%s18] sm:%s4] %v17
    %s20 = smul.addr 4, 60
    %s21 = scalar_lea.vmem %s0, %s20
    %v22 = vld [vmem:[%s21] sm:%s4]
    %s23 = scalar_lea.vmem [#allocation0], 480
    %24 = vst [vmem:[%s23] sm:%s4] %v22
    %s25 = smul.addr 4, 59
    %s26 = scalar_lea.vmem %s0, %s25
    %v27 = vld [vmem:[%s26] sm:%s4]
    %s28 = scalar_lea.vmem [#allocation0], 472
    %29 = vst [vmem:[%s28] sm:%s4] %v27
    %s30 = smul.addr 4, 58
    %s31 = scalar_lea.vmem %s0, %s30
    %v32 = vld [vmem:[%s31] sm:%s4]
    %s33 = scalar_lea.vmem [#allocation0], 464
    %34 = vst [vmem:[%s33] sm:%s4] %v32
    %s35 = smul.addr 4, 57
    %s36 = scalar_lea.vmem %s0, %s35
    %v37 = vld [vmem:[%s36] sm:%s4]
    %s38 = scalar_lea.vmem [#allocation0], 456
    %39 = vst [vmem:[%s38] sm:%s4] %v37
    %s40 = smul.addr 4, 56
    %s41 = scalar_lea.vmem %s0, %s40
    %v42 = vld [vmem:[%s41] sm:%s4]
    %s43 = scalar_lea.vmem [#allocation0], 448
    %44 = vst [vmem:[%s43] sm:%s4] %v42
    %s45 = smul.addr 4, 55
    %s46 = scalar_lea.vmem %s0, %s45
    %v47 = vld [vmem:[%s46] sm:%s4]
    %s48 = scalar_lea.vmem [#allocation0], 440
    %49 = vst [vmem:[%s48] sm:%s4] %v47
    %s50 = smul.addr 4, 54
    %s51 = scalar_lea.vmem %s0, %s50
    %v52 = vld [vmem:[%s51] sm:%s4]
    %s53 = scalar_lea.vmem [#allocation0], 432
    %54 = vst [vmem:[%s53] sm:%s4] %v52
    %s55 = smul.addr 4, 53
    %s56 = scalar_lea.vmem %s0, %s55
    %v57 = vld [vmem:[%s56] sm:%s4]
    %s58 = scalar_lea.vmem [#allocation0], 424
    %59 = vst [vmem:[%s58] sm:%s4] %v57
    %s60 = smul.addr 4, 52
    %s61 = scalar_lea.vmem %s0, %s60
    %v62 = vld [vmem:[%s61] sm:%s4]
    %s63 = scalar_lea.vmem [#allocation0], 416
    %64 = vst [vmem:[%s63] sm:%s4] %v62
    %s65 = smul.addr 4, 51
    %s66 = scalar_lea.vmem %s0, %s65
    %v67 = vld [vmem:[%s66] sm:%s4]
    %s68 = scalar_lea.vmem [#allocation0], 408
    %69 = vst [vmem:[%s68] sm:%s4] %v67
    %s70 = smul.addr 4, 50
    %s71 = scalar_lea.vmem %s0, %s70
    %v72 = vld [vmem:[%s71] sm:%s4]
    %s73 = scalar_lea.vmem [#allocation0], 400
    %74 = vst [vmem:[%s73] sm:%s4] %v72
    %s75 = smul.addr 4, 49
    %s76 = scalar_lea.vmem %s0, %s75
    %v77 = vld [vmem:[%s76] sm:%s4]
    %s78 = scalar_lea.vmem [#allocation0], 392
    %79 = vst [vmem:[%s78] sm:%s4] %v77
    %s80 = smul.addr 4, 48
    %s81 = scalar_lea.vmem %s0, %s80
    %v82 = vld [vmem:[%s81] sm:%s4]
    %s83 = scalar_lea.vmem [#allocation0], 384
    %84 = vst [vmem:[%s83] sm:%s4] %v82
    %s85 = smul.addr 4, 47
    %s86 = scalar_lea.vmem %s0, %s85
    %v87 = vld [vmem:[%s86] sm:%s4]
    %s88 = scalar_lea.vmem [#allocation0], 376
    %89 = vst [vmem:[%s88] sm:%s4] %v87
    %s90 = smul.addr 4, 46
    %s91 = scalar_lea.vmem %s0, %s90
    %v92 = vld [vmem:[%s91] sm:%s4]
    %s93 = scalar_lea.vmem [#allocation0], 368
    %94 = vst [vmem:[%s93] sm:%s4] %v92
    %s95 = smul.addr 4, 45
    %s96 = scalar_lea.vmem %s0, %s95
    %v97 = vld [vmem:[%s96] sm:%s4]
    %s98 = scalar_lea.vmem [#allocation0], 360
    %99 = vst [vmem:[%s98] sm:%s4] %v97
    %s100 = smul.addr 4, 44
    %s101 = scalar_lea.vmem %s0, %s100
    %v102 = vld [vmem:[%s101] sm:%s4]
    %s103 = scalar_lea.vmem [#allocation0], 352
    %104 = vst [vmem:[%s103] sm:%s4] %v102
    %s105 = smul.addr 4, 43
    %s106 = scalar_lea.vmem %s0, %s105
    %v107 = vld [vmem:[%s106] sm:%s4]
    %s108 = scalar_lea.vmem [#allocation0], 344
    %109 = vst [vmem:[%s108] sm:%s4] %v107
    %s110 = smul.addr 4, 42
    %s111 = scalar_lea.vmem %s0, %s110
    %v112 = vld [vmem:[%s111] sm:%s4]
    %s113 = scalar_lea.vmem [#allocation0], 336
    %114 = vst [vmem:[%s113] sm:%s4] %v112
    %s115 = smul.addr 4, 41
    %s116 = scalar_lea.vmem %s0, %s115
    %v117 = vld [vmem:[%s116] sm:%s4]
    %s118 = scalar_lea.vmem [#allocation0], 328
    %119 = vst [vmem:[%s118] sm:%s4] %v117
    %s120 = smul.addr 4, 40
    %s121 = scalar_lea.vmem %s0, %s120
    %v122 = vld [vmem:[%s121] sm:%s4]
    %s123 = scalar_lea.vmem [#allocation0], 320
    %124 = vst [vmem:[%s123] sm:%s4] %v122
    %s125 = smul.addr 4, 39
    %s126 = scalar_lea.vmem %s0, %s125
    %v127 = vld [vmem:[%s126] sm:%s4]
    %s128 = scalar_lea.vmem [#allocation0], 312
    %129 = vst [vmem:[%s128] sm:%s4] %v127
    %s130 = smul.addr 4, 38
    %s131 = scalar_lea.vmem %s0, %s130
    %v132 = vld [vmem:[%s131] sm:%s4]
    %s133 = scalar_lea.vmem [#allocation0], 304
    %134 = vst [vmem:[%s133] sm:%s4] %v132
    %s135 = smul.addr 4, 37
    %s136 = scalar_lea.vmem %s0, %s135
    %v137 = vld [vmem:[%s136] sm:%s4]
    %s138 = scalar_lea.vmem [#allocation0], 296
    %139 = vst [vmem:[%s138] sm:%s4] %v137
    %s140 = smul.addr 4, 36
    %s141 = scalar_lea.vmem %s0, %s140
    %v142 = vld [vmem:[%s141] sm:%s4]
    %s143 = scalar_lea.vmem [#allocation0], 288
    %144 = vst [vmem:[%s143] sm:%s4] %v142
    %s145 = smul.addr 4, 35
    %s146 = scalar_lea.vmem %s0, %s145
    %v147 = vld [vmem:[%s146] sm:%s4]
    %s148 = scalar_lea.vmem [#allocation0], 280
    %149 = vst [vmem:[%s148] sm:%s4] %v147
    %s150 = smul.addr 4, 34
    %s151 = scalar_lea.vmem %s0, %s150
    %v152 = vld [vmem:[%s151] sm:%s4]
    %s153 = scalar_lea.vmem [#allocation0], 272
    %154 = vst [vmem:[%s153] sm:%s4] %v152
    %s155 = smul.addr 4, 33
    %s156 = scalar_lea.vmem %s0, %s155
    %v157 = vld [vmem:[%s156] sm:%s4]
    %s158 = scalar_lea.vmem [#allocation0], 264
    %159 = vst [vmem:[%s158] sm:%s4] %v157
    %s160 = smul.addr 4, 32
    %s161 = scalar_lea.vmem %s0, %s160
    %v162 = vld [vmem:[%s161] sm:%s4]
    %s163 = scalar_lea.vmem [#allocation0], 256
    %164 = vst [vmem:[%s163] sm:%s4] %v162
    %s165 = smul.addr 4, 31
    %s166 = scalar_lea.vmem %s0, %s165
    %v167 = vld [vmem:[%s166] sm:%s4]
    %s168 = scalar_lea.vmem [#allocation0], 248
    %169 = vst [vmem:[%s168] sm:%s4] %v167
    %s170 = smul.addr 4, 30
    %s171 = scalar_lea.vmem %s0, %s170
    %v172 = vld [vmem:[%s171] sm:%s4]
    %s173 = scalar_lea.vmem [#allocation0], 240
    %174 = vst [vmem:[%s173] sm:%s4] %v172
    %s175 = smul.addr 4, 29
    %s176 = scalar_lea.vmem %s0, %s175
    %v177 = vld [vmem:[%s176] sm:%s4]
    %s178 = scalar_lea.vmem [#allocation0], 232
    %179 = vst [vmem:[%s178] sm:%s4] %v177
    %s180 = smul.addr 4, 28
    %s181 = scalar_lea.vmem %s0, %s180
    %v182 = vld [vmem:[%s181] sm:%s4]
    %s183 = scalar_lea.vmem [#allocation0], 224
    %184 = vst [vmem:[%s183] sm:%s4] %v182
    %s185 = smul.addr 4, 27
    %s186 = scalar_lea.vmem %s0, %s185
    %v187 = vld [vmem:[%s186] sm:%s4]
    %s188 = scalar_lea.vmem [#allocation0], 216
    %189 = vst [vmem:[%s188] sm:%s4] %v187
    %s190 = smul.addr 4, 26
    %s191 = scalar_lea.vmem %s0, %s190
    %v192 = vld [vmem:[%s191] sm:%s4]
    %s193 = scalar_lea.vmem [#allocation0], 208
    %194 = vst [vmem:[%s193] sm:%s4] %v192
    %s195 = smul.addr 4, 25
    %s196 = scalar_lea.vmem %s0, %s195
    %v197 = vld [vmem:[%s196] sm:%s4]
    %s198 = scalar_lea.vmem [#allocation0], 200
    %199 = vst [vmem:[%s198] sm:%s4] %v197
    %s200 = smul.addr 4, 24
    %s201 = scalar_lea.vmem %s0, %s200
    %v202 = vld [vmem:[%s201] sm:%s4]
    %s203 = scalar_lea.vmem [#allocation0], 192
    %204 = vst [vmem:[%s203] sm:%s4] %v202
    %s205 = smul.addr 4, 23
    %s206 = scalar_lea.vmem %s0, %s205
    %v207 = vld [vmem:[%s206] sm:%s4]
    %s208 = scalar_lea.vmem [#allocation0], 184
    %209 = vst [vmem:[%s208] sm:%s4] %v207
    %s210 = smul.addr 4, 22
    %s211 = scalar_lea.vmem %s0, %s210
    %v212 = vld [vmem:[%s211] sm:%s4]
    %s213 = scalar_lea.vmem [#allocation0], 176
    %214 = vst [vmem:[%s213] sm:%s4] %v212
    %s215 = smul.addr 4, 21
    %s216 = scalar_lea.vmem %s0, %s215
    %v217 = vld [vmem:[%s216] sm:%s4]
    %s218 = scalar_lea.vmem [#allocation0], 168
    %219 = vst [vmem:[%s218] sm:%s4] %v217
    %s220 = smul.addr 4, 20
    %s221 = scalar_lea.vmem %s0, %s220
    %v222 = vld [vmem:[%s221] sm:%s4]
    %s223 = scalar_lea.vmem [#allocation0], 160
    %224 = vst [vmem:[%s223] sm:%s4] %v222
    %s225 = smul.addr 4, 19
    %s226 = scalar_lea.vmem %s0, %s225
    %v227 = vld [vmem:[%s226] sm:%s4]
    %s228 = scalar_lea.vmem [#allocation0], 152
    %229 = vst [vmem:[%s228] sm:%s4] %v227
    %s230 = smul.addr 4, 18
    %s231 = scalar_lea.vmem %s0, %s230
    %v232 = vld [vmem:[%s231] sm:%s4]
    %s233 = scalar_lea.vmem [#allocation0], 144
    %234 = vst [vmem:[%s233] sm:%s4] %v232
    %s235 = smul.addr 4, 17
    %s236 = scalar_lea.vmem %s0, %s235
    %v237 = vld [vmem:[%s236] sm:%s4]
    %s238 = scalar_lea.vmem [#allocation0], 136
    %239 = vst [vmem:[%s238] sm:%s4] %v237
    %s240 = smul.addr 4, 16
    %s241 = scalar_lea.vmem %s0, %s240
    %v242 = vld [vmem:[%s241] sm:%s4]
    %s243 = scalar_lea.vmem [#allocation0], 128
    %244 = vst [vmem:[%s243] sm:%s4] %v242
    %s245 = smul.addr 4, 15
    %s246 = scalar_lea.vmem %s0, %s245
    %v247 = vld [vmem:[%s246] sm:%s4]
    %s248 = scalar_lea.vmem [#allocation0], 120
    %249 = vst [vmem:[%s248] sm:%s4] %v247
    %s250 = smul.addr 4, 14
    %s251 = scalar_lea.vmem %s0, %s250
    %v252 = vld [vmem:[%s251] sm:%s4]
    %s253 = scalar_lea.vmem [#allocation0], 112
    %254 = vst [vmem:[%s253] sm:%s4] %v252
    %s255 = smul.addr 4, 13
    %s256 = scalar_lea.vmem %s0, %s255
    %v257 = vld [vmem:[%s256] sm:%s4]
    %s258 = scalar_lea.vmem [#allocation0], 104
    %259 = vst [vmem:[%s258] sm:%s4] %v257
    %s260 = smul.addr 4, 12
    %s261 = scalar_lea.vmem %s0, %s260
    %v262 = vld [vmem:[%s261] sm:%s4]
    %s263 = scalar_lea.vmem [#allocation0], 96
    %264 = vst [vmem:[%s263] sm:%s4] %v262
    %s265 = smul.addr 4, 11
    %s266 = scalar_lea.vmem %s0, %s265
    %v267 = vld [vmem:[%s266] sm:%s4]
    %s268 = scalar_lea.vmem [#allocation0], 88
    %269 = vst [vmem:[%s268] sm:%s4] %v267
    %s270 = smul.addr 4, 10
    %s271 = scalar_lea.vmem %s0, %s270
    %v272 = vld [vmem:[%s271] sm:%s4]
    %s273 = scalar_lea.vmem [#allocation0], 80
    %274 = vst [vmem:[%s273] sm:%s4] %v272
    %s275 = smul.addr 4, 9
    %s276 = scalar_lea.vmem %s0, %s275
    %v277 = vld [vmem:[%s276] sm:%s4]
    %s278 = scalar_lea.vmem [#allocation0], 72
    %279 = vst [vmem:[%s278] sm:%s4] %v277
    %s280 = smul.addr 4, 8
    %s281 = scalar_lea.vmem %s0, %s280
    %v282 = vld [vmem:[%s281] sm:%s4]
    %s283 = scalar_lea.vmem [#allocation0], 64
    %284 = vst [vmem:[%s283] sm:%s4] %v282
    %s285 = smul.addr 4, 7
    %s286 = scalar_lea.vmem %s0, %s285
    %v287 = vld [vmem:[%s286] sm:%s4]
    %s288 = scalar_lea.vmem [#allocation0], 56
    %289 = vst [vmem:[%s288] sm:%s4] %v287
    %s290 = smul.addr 4, 6
    %s291 = scalar_lea.vmem %s0, %s290
    %v292 = vld [vmem:[%s291] sm:%s4]
    %s293 = scalar_lea.vmem [#allocation0], 48
    %294 = vst [vmem:[%s293] sm:%s4] %v292
    %s295 = smul.addr 4, 5
    %s296 = scalar_lea.vmem %s0, %s295
    %v297 = vld [vmem:[%s296] sm:%s4]
    %s298 = scalar_lea.vmem [#allocation0], 40
    %299 = vst [vmem:[%s298] sm:%s4] %v297
    %s300 = smul.addr 4, 4
    %s301 = scalar_lea.vmem %s0, %s300
    %v302 = vld [vmem:[%s301] sm:%s4]
    %s303 = scalar_lea.vmem [#allocation0], 32
    %304 = vst [vmem:[%s303] sm:%s4] %v302
    %s305 = smul.addr 4, 3
    %s306 = scalar_lea.vmem %s0, %s305
    %v307 = vld [vmem:[%s306] sm:%s4]
    %s308 = scalar_lea.vmem [#allocation0], 24
    %309 = vst [vmem:[%s308] sm:%s4] %v307
    %s310 = smul.addr 4, 2
    %s311 = scalar_lea.vmem %s0, %s310
    %v312 = vld [vmem:[%s311] sm:%s4]
    %s313 = scalar_lea.vmem [#allocation0], 16
    %314 = vst [vmem:[%s313] sm:%s4] %v312
    %s315 = scalar_lea.vmem %s0, 4
    %v316 = vld [vmem:[%s315] sm:%s4]
    %s317 = scalar_lea.vmem [#allocation0], 8
    %318 = vst [vmem:[%s317] sm:%s4] %v316
    %v319 = vld [vmem:[%s0] sm:%s4]
    %320 = vst [vmem:[#allocation0] sm:%s4] %v319
    %s321 = smov 3
    %v322 = vld [vmem:[#allocation0] ss:$2 sm:%s321]
    %vm323 = vcmask 523264
    %324 = vst.msk [vmem:[%s1] ss:$8 sm:$0x3] %vm323, %v322
    %s325 = scalar_lea.vmem [#allocation0], 8
    %s326 = smov 3
    %v327 = vld [vmem:[%s325] ss:$2 sm:%s326]
    %vm328 = vcmask 523264
    %s329 = scalar_lea.vmem %s1, 1
    %330 = vst.msk [vmem:[%s329] ss:$8 sm:$0x3] %vm328, %v327
    %s331 = scalar_lea.vmem [#allocation0], 16
    %s332 = smov 3
    %v333 = vld [vmem:[%s331] ss:$2 sm:%s332]
    %vm334 = vcmask 523264
    %s335 = scalar_lea.vmem %s1, 2
    %336 = vst.msk [vmem:[%s335] ss:$8 sm:$0x3] %vm334, %v333
    %s337 = scalar_lea.vmem [#allocation0], 24
    %s338 = smov 3
    %v339 = vld [vmem:[%s337] ss:$2 sm:%s338]
    %vm340 = vcmask 523264
    %s341 = scalar_lea.vmem %s1, 3
    %342 = vst.msk [vmem:[%s341] ss:$8 sm:$0x3] %vm340, %v339
    %s343 = scalar_lea.vmem [#allocation0], 32
    %s344 = smov 3
    %v345 = vld [vmem:[%s343] ss:$2 sm:%s344]
    %vm346 = vcmask 523264
    %s347 = scalar_lea.vmem %s1, 4
    %348 = vst.msk [vmem:[%s347] ss:$8 sm:$0x3] %vm346, %v345
    %s349 = scalar_lea.vmem [#allocation0], 40
    %s350 = smov 3
    %v351 = vld [vmem:[%s349] ss:$2 sm:%s350]
    %vm352 = vcmask 523264
    %s353 = scalar_lea.vmem %s1, 5
    %354 = vst.msk [vmem:[%s353] ss:$8 sm:$0x3] %vm352, %v351
    %s355 = scalar_lea.vmem [#allocation0], 48
    %s356 = smov 3
    %v357 = vld [vmem:[%s355] ss:$2 sm:%s356]
    %vm358 = vcmask 523264
    %s359 = scalar_lea.vmem %s1, 6
    %360 = vst.msk [vmem:[%s359] ss:$8 sm:$0x3] %vm358, %v357
    %s361 = scalar_lea.vmem [#allocation0], 56
    %s362 = smov 3
    %v363 = vld [vmem:[%s361] ss:$2 sm:%s362]
    %vm364 = vcmask 523264
    %s365 = scalar_lea.vmem %s1, 7
    %366 = vst.msk [vmem:[%s365] ss:$8 sm:$0x3] %vm364, %v363
    %s367 = scalar_lea.vmem [#allocation0], 64
    %s368 = smov 3
    %v369 = vld [vmem:[%s367] ss:$2 sm:%s368]
    %vm370 = vcmask 523264
    %s371 = scalar_lea.vmem %s1, 16
    %372 = vst.msk [vmem:[%s371] ss:$8 sm:$0x3] %vm370, %v369
    %s373 = scalar_lea.vmem [#allocation0], 72
    %s374 = smov 3
    %v375 = vld [vmem:[%s373] ss:$2 sm:%s374]
    %vm376 = vcmask 523264
    %s377 = scalar_lea.vmem %s1, 17
    %378 = vst.msk [vmem:[%s377] ss:$8 sm:$0x3] %vm376, %v375
    %s379 = scalar_lea.vmem [#allocation0], 80
    %s380 = smov 3
    %v381 = vld [vmem:[%s379] ss:$2 sm:%s380]
    %vm382 = vcmask 523264
    %s383 = scalar_lea.vmem %s1, 18
    %384 = vst.msk [vmem:[%s383] ss:$8 sm:$0x3] %vm382, %v381
    %s385 = scalar_lea.vmem [#allocation0], 88
    %s386 = smov 3
    %v387 = vld [vmem:[%s385] ss:$2 sm:%s386]
    %vm388 = vcmask 523264
    %s389 = scalar_lea.vmem %s1, 19
    %390 = vst.msk [vmem:[%s389] ss:$8 sm:$0x3] %vm388, %v387
    %s391 = scalar_lea.vmem [#allocation0], 96
    %s392 = smov 3
    %v393 = vld [vmem:[%s391] ss:$2 sm:%s392]
    %vm394 = vcmask 523264
    %s395 = scalar_lea.vmem %s1, 20
    %396 = vst.msk [vmem:[%s395] ss:$8 sm:$0x3] %vm394, %v393
    %s397 = scalar_lea.vmem [#allocation0], 104
    %s398 = smov 3
    %v399 = vld [vmem:[%s397] ss:$2 sm:%s398]
    %vm400 = vcmask 523264
    %s401 = scalar_lea.vmem %s1, 21
    %402 = vst.msk [vmem:[%s401] ss:$8 sm:$0x3] %vm400, %v399
    %s403 = scalar_lea.vmem [#allocation0], 112
    %s404 = smov 3
    %v405 = vld [vmem:[%s403] ss:$2 sm:%s404]
    %vm406 = vcmask 523264
    %s407 = scalar_lea.vmem %s1, 22
    %408 = vst.msk [vmem:[%s407] ss:$8 sm:$0x3] %vm406, %v405
    %s409 = scalar_lea.vmem [#allocation0], 120
    %s410 = smov 3
    %v411 = vld [vmem:[%s409] ss:$2 sm:%s410]
    %vm412 = vcmask 523264
    %s413 = scalar_lea.vmem %s1, 23
    %414 = vst.msk [vmem:[%s413] ss:$8 sm:$0x3] %vm412, %v411
    %s415 = scalar_lea.vmem [#allocation0], 128
    %s416 = smov 3
    %v417 = vld [vmem:[%s415] ss:$2 sm:%s416]
    %vm418 = vcmask 523264
    %s419 = scalar_lea.vmem %s1, 32
    %420 = vst.msk [vmem:[%s419] ss:$8 sm:$0x3] %vm418, %v417
    %s421 = scalar_lea.vmem [#allocation0], 136
    %s422 = smov 3
    %v423 = vld [vmem:[%s421] ss:$2 sm:%s422]
    %vm424 = vcmask 523264
    %s425 = scalar_lea.vmem %s1, 33
    %426 = vst.msk [vmem:[%s425] ss:$8 sm:$0x3] %vm424, %v423
    %s427 = scalar_lea.vmem [#allocation0], 144
    %s428 = smov 3
    %v429 = vld [vmem:[%s427] ss:$2 sm:%s428]
    %vm430 = vcmask 523264
    %s431 = scalar_lea.vmem %s1, 34
    %432 = vst.msk [vmem:[%s431] ss:$8 sm:$0x3] %vm430, %v429
    %s433 = scalar_lea.vmem [#allocation0], 152
    %s434 = smov 3
    %v435 = vld [vmem:[%s433] ss:$2 sm:%s434]
    %vm436 = vcmask 523264
    %s437 = scalar_lea.vmem %s1, 35
    %438 = vst.msk [vmem:[%s437] ss:$8 sm:$0x3] %vm436, %v435
    %s439 = scalar_lea.vmem [#allocation0], 160
    %s440 = smov 3
    %v441 = vld [vmem:[%s439] ss:$2 sm:%s440]
    %vm442 = vcmask 523264
    %s443 = scalar_lea.vmem %s1, 36
    %444 = vst.msk [vmem:[%s443] ss:$8 sm:$0x3] %vm442, %v441
    %s445 = scalar_lea.vmem [#allocation0], 168
    %s446 = smov 3
    %v447 = vld [vmem:[%s445] ss:$2 sm:%s446]
    %vm448 = vcmask 523264
    %s449 = scalar_lea.vmem %s1, 37
    %450 = vst.msk [vmem:[%s449] ss:$8 sm:$0x3] %vm448, %v447
    %s451 = scalar_lea.vmem [#allocation0], 176
    %s452 = smov 3
    %v453 = vld [vmem:[%s451] ss:$2 sm:%s452]
    %vm454 = vcmask 523264
    %s455 = scalar_lea.vmem %s1, 38
    %456 = vst.msk [vmem:[%s455] ss:$8 sm:$0x3] %vm454, %v453
    %s457 = scalar_lea.vmem [#allocation0], 184
    %s458 = smov 3
    %v459 = vld [vmem:[%s457] ss:$2 sm:%s458]
    %vm460 = vcmask 523264
    %s461 = scalar_lea.vmem %s1, 39
    %462 = vst.msk [vmem:[%s461] ss:$8 sm:$0x3] %vm460, %v459
    %s463 = scalar_lea.vmem [#allocation0], 192
    %s464 = smov 3
    %v465 = vld [vmem:[%s463] ss:$2 sm:%s464]
    %vm466 = vcmask 523264
    %s467 = scalar_lea.vmem %s1, 48
    %468 = vst.msk [vmem:[%s467] ss:$8 sm:$0x3] %vm466, %v465
    %s469 = scalar_lea.vmem [#allocation0], 200
    %s470 = smov 3
    %v471 = vld [vmem:[%s469] ss:$2 sm:%s470]
    %vm472 = vcmask 523264
    %s473 = scalar_lea.vmem %s1, 49
    %474 = vst.msk [vmem:[%s473] ss:$8 sm:$0x3] %vm472, %v471
    %s475 = scalar_lea.vmem [#allocation0], 208
    %s476 = smov 3
    %v477 = vld [vmem:[%s475] ss:$2 sm:%s476]
    %vm478 = vcmask 523264
    %s479 = scalar_lea.vmem %s1, 50
    %480 = vst.msk [vmem:[%s479] ss:$8 sm:$0x3] %vm478, %v477
    %s481 = scalar_lea.vmem [#allocation0], 216
    %s482 = smov 3
    %v483 = vld [vmem:[%s481] ss:$2 sm:%s482]
    %vm484 = vcmask 523264
    %s485 = scalar_lea.vmem %s1, 51
    %486 = vst.msk [vmem:[%s485] ss:$8 sm:$0x3] %vm484, %v483
    %s487 = scalar_lea.vmem [#allocation0], 224
    %s488 = smov 3
    %v489 = vld [vmem:[%s487] ss:$2 sm:%s488]
    %vm490 = vcmask 523264
    %s491 = scalar_lea.vmem %s1, 52
    %492 = vst.msk [vmem:[%s491] ss:$8 sm:$0x3] %vm490, %v489
    %s493 = scalar_lea.vmem [#allocation0], 232
    %s494 = smov 3
    %v495 = vld [vmem:[%s493] ss:$2 sm:%s494]
    %vm496 = vcmask 523264
    %s497 = scalar_lea.vmem %s1, 53
    %498 = vst.msk [vmem:[%s497] ss:$8 sm:$0x3] %vm496, %v495
    %s499 = scalar_lea.vmem [#allocation0], 240
    %s500 = smov 3
    %v501 = vld [vmem:[%s499] ss:$2 sm:%s500]
    %vm502 = vcmask 523264
    %s503 = scalar_lea.vmem %s1, 54
    %504 = vst.msk [vmem:[%s503] ss:$8 sm:$0x3] %vm502, %v501
    %s505 = scalar_lea.vmem [#allocation0], 248
    %s506 = smov 3
    %v507 = vld [vmem:[%s505] ss:$2 sm:%s506]
    %vm508 = vcmask 523264
    %s509 = scalar_lea.vmem %s1, 55
    %510 = vst.msk [vmem:[%s509] ss:$8 sm:$0x3] %vm508, %v507
    %s511 = scalar_lea.vmem [#allocation0], 256
    %s512 = smov 3
    %v513 = vld [vmem:[%s511] ss:$2 sm:%s512]
    %vm514 = vcmask 523264
    %s515 = scalar_lea.vmem %s1, 64
    %516 = vst.msk [vmem:[%s515] ss:$8 sm:$0x3] %vm514, %v513
    %s517 = scalar_lea.vmem [#allocation0], 264
    %s518 = smov 3
    %v519 = vld [vmem:[%s517] ss:$2 sm:%s518]
    %vm520 = vcmask 523264
    %s521 = scalar_lea.vmem %s1, 65
    %522 = vst.msk [vmem:[%s521] ss:$8 sm:$0x3] %vm520, %v519
    %s523 = scalar_lea.vmem [#allocation0], 272
    %s524 = smov 3
    %v525 = vld [vmem:[%s523] ss:$2 sm:%s524]
    %vm526 = vcmask 523264
    %s527 = scalar_lea.vmem %s1, 66
    %528 = vst.msk [vmem:[%s527] ss:$8 sm:$0x3] %vm526, %v525
    %s529 = scalar_lea.vmem [#allocation0], 280
    %s530 = smov 3
    %v531 = vld [vmem:[%s529] ss:$2 sm:%s530]
    %vm532 = vcmask 523264
    %s533 = scalar_lea.vmem %s1, 67
    %534 = vst.msk [vmem:[%s533] ss:$8 sm:$0x3] %vm532, %v531
    %s535 = scalar_lea.vmem [#allocation0], 288
    %s536 = smov 3
    %v537 = vld [vmem:[%s535] ss:$2 sm:%s536]
    %vm538 = vcmask 523264
    %s539 = scalar_lea.vmem %s1, 68
    %540 = vst.msk [vmem:[%s539] ss:$8 sm:$0x3] %vm538, %v537
    %s541 = scalar_lea.vmem [#allocation0], 296
    %s542 = smov 3
    %v543 = vld [vmem:[%s541] ss:$2 sm:%s542]
    %vm544 = vcmask 523264
    %s545 = scalar_lea.vmem %s1, 69
    %546 = vst.msk [vmem:[%s545] ss:$8 sm:$0x3] %vm544, %v543
    %s547 = scalar_lea.vmem [#allocation0], 304
    %s548 = smov 3
    %v549 = vld [vmem:[%s547] ss:$2 sm:%s548]
    %vm550 = vcmask 523264
    %s551 = scalar_lea.vmem %s1, 70
    %552 = vst.msk [vmem:[%s551] ss:$8 sm:$0x3] %vm550, %v549
    %s553 = scalar_lea.vmem [#allocation0], 312
    %s554 = smov 3
    %v555 = vld [vmem:[%s553] ss:$2 sm:%s554]
    %vm556 = vcmask 523264
    %s557 = scalar_lea.vmem %s1, 71
    %558 = vst.msk [vmem:[%s557] ss:$8 sm:$0x3] %vm556, %v555
    %s559 = scalar_lea.vmem [#allocation0], 320
    %s560 = smov 3
    %v561 = vld [vmem:[%s559] ss:$2 sm:%s560]
    %vm562 = vcmask 523264
    %s563 = scalar_lea.vmem %s1, 80
    %564 = vst.msk [vmem:[%s563] ss:$8 sm:$0x3] %vm562, %v561
    %s565 = scalar_lea.vmem [#allocation0], 328
    %s566 = smov 3
    %v567 = vld [vmem:[%s565] ss:$2 sm:%s566]
    %vm568 = vcmask 523264
    %s569 = scalar_lea.vmem %s1, 81
    %570 = vst.msk [vmem:[%s569] ss:$8 sm:$0x3] %vm568, %v567
    %s571 = scalar_lea.vmem [#allocation0], 336
    %s572 = smov 3
    %v573 = vld [vmem:[%s571] ss:$2 sm:%s572]
    %vm574 = vcmask 523264
    %s575 = scalar_lea.vmem %s1, 82
    %576 = vst.msk [vmem:[%s575] ss:$8 sm:$0x3] %vm574, %v573
    %s577 = scalar_lea.vmem [#allocation0], 344
    %s578 = smov 3
    %v579 = vld [vmem:[%s577] ss:$2 sm:%s578]
    %vm580 = vcmask 523264
    %s581 = scalar_lea.vmem %s1, 83
    %582 = vst.msk [vmem:[%s581] ss:$8 sm:$0x3] %vm580, %v579
    %s583 = scalar_lea.vmem [#allocation0], 352
    %s584 = smov 3
    %v585 = vld [vmem:[%s583] ss:$2 sm:%s584]
    %vm586 = vcmask 523264
    %s587 = scalar_lea.vmem %s1, 84
    %588 = vst.msk [vmem:[%s587] ss:$8 sm:$0x3] %vm586, %v585
    %s589 = scalar_lea.vmem [#allocation0], 360
    %s590 = smov 3
    %v591 = vld [vmem:[%s589] ss:$2 sm:%s590]
    %vm592 = vcmask 523264
    %s593 = scalar_lea.vmem %s1, 85
    %594 = vst.msk [vmem:[%s593] ss:$8 sm:$0x3] %vm592, %v591
    %s595 = scalar_lea.vmem [#allocation0], 368
    %s596 = smov 3
    %v597 = vld [vmem:[%s595] ss:$2 sm:%s596]
    %vm598 = vcmask 523264
    %s599 = scalar_lea.vmem %s1, 86
    %600 = vst.msk [vmem:[%s599] ss:$8 sm:$0x3] %vm598, %v597
    %s601 = scalar_lea.vmem [#allocation0], 376
    %s602 = smov 3
    %v603 = vld [vmem:[%s601] ss:$2 sm:%s602]
    %vm604 = vcmask 523264
    %s605 = scalar_lea.vmem %s1, 87
    %606 = vst.msk [vmem:[%s605] ss:$8 sm:$0x3] %vm604, %v603
    %s607 = scalar_lea.vmem [#allocation0], 384
    %s608 = smov 3
    %v609 = vld [vmem:[%s607] ss:$2 sm:%s608]
    %vm610 = vcmask 523264
    %s611 = scalar_lea.vmem %s1, 96
    %612 = vst.msk [vmem:[%s611] ss:$8 sm:$0x3] %vm610, %v609
    %s613 = scalar_lea.vmem [#allocation0], 392
    %s614 = smov 3
    %v615 = vld [vmem:[%s613] ss:$2 sm:%s614]
    %vm616 = vcmask 523264
    %s617 = scalar_lea.vmem %s1, 97
    %618 = vst.msk [vmem:[%s617] ss:$8 sm:$0x3] %vm616, %v615
    %s619 = scalar_lea.vmem [#allocation0], 400
    %s620 = smov 3
    %v621 = vld [vmem:[%s619] ss:$2 sm:%s620]
    %vm622 = vcmask 523264
    %s623 = scalar_lea.vmem %s1, 98
    %624 = vst.msk [vmem:[%s623] ss:$8 sm:$0x3] %vm622, %v621
    %s625 = scalar_lea.vmem [#allocation0], 408
    %s626 = smov 3
    %v627 = vld [vmem:[%s625] ss:$2 sm:%s626]
    %vm628 = vcmask 523264
    %s629 = scalar_lea.vmem %s1, 99
    %630 = vst.msk [vmem:[%s629] ss:$8 sm:$0x3] %vm628, %v627
    %s631 = scalar_lea.vmem [#allocation0], 416
    %s632 = smov 3
    %v633 = vld [vmem:[%s631] ss:$2 sm:%s632]
    %vm634 = vcmask 523264
    %s635 = scalar_lea.vmem %s1, 100
    %636 = vst.msk [vmem:[%s635] ss:$8 sm:$0x3] %vm634, %v633
    %s637 = scalar_lea.vmem [#allocation0], 424
    %s638 = smov 3
    %v639 = vld [vmem:[%s637] ss:$2 sm:%s638]
    %vm640 = vcmask 523264
    %s641 = scalar_lea.vmem %s1, 101
    %642 = vst.msk [vmem:[%s641] ss:$8 sm:$0x3] %vm640, %v639
    %s643 = scalar_lea.vmem [#allocation0], 432
    %s644 = smov 3
    %v645 = vld [vmem:[%s643] ss:$2 sm:%s644]
    %vm646 = vcmask 523264
    %s647 = scalar_lea.vmem %s1, 102
    %648 = vst.msk [vmem:[%s647] ss:$8 sm:$0x3] %vm646, %v645
    %s649 = scalar_lea.vmem [#allocation0], 440
    %s650 = smov 3
    %v651 = vld [vmem:[%s649] ss:$2 sm:%s650]
    %vm652 = vcmask 523264
    %s653 = scalar_lea.vmem %s1, 103
    %654 = vst.msk [vmem:[%s653] ss:$8 sm:$0x3] %vm652, %v651
    %s655 = scalar_lea.vmem [#allocation0], 448
    %s656 = smov 3
    %v657 = vld [vmem:[%s655] ss:$2 sm:%s656]
    %vm658 = vcmask 523264
    %s659 = scalar_lea.vmem %s1, 112
    %660 = vst.msk [vmem:[%s659] ss:$8 sm:$0x3] %vm658, %v657
    %s661 = scalar_lea.vmem [#allocation0], 456
    %s662 = smov 3
    %v663 = vld [vmem:[%s661] ss:$2 sm:%s662]
    %vm664 = vcmask 523264
    %s665 = scalar_lea.vmem %s1, 113
    %666 = vst.msk [vmem:[%s665] ss:$8 sm:$0x3] %vm664, %v663
    %s667 = scalar_lea.vmem [#allocation0], 464
    %s668 = smov 3
    %v669 = vld [vmem:[%s667] ss:$2 sm:%s668]
    %vm670 = vcmask 523264
    %s671 = scalar_lea.vmem %s1, 114
    %672 = vst.msk [vmem:[%s671] ss:$8 sm:$0x3] %vm670, %v669
    %s673 = scalar_lea.vmem [#allocation0], 472
    %s674 = smov 3
    %v675 = vld [vmem:[%s673] ss:$2 sm:%s674]
    %vm676 = vcmask 523264
    %s677 = scalar_lea.vmem %s1, 115
    %678 = vst.msk [vmem:[%s677] ss:$8 sm:$0x3] %vm676, %v675
    %s679 = scalar_lea.vmem [#allocation0], 480
    %s680 = smov 3
    %v681 = vld [vmem:[%s679] ss:$2 sm:%s680]
    %vm682 = vcmask 523264
    %s683 = scalar_lea.vmem %s1, 116
    %684 = vst.msk [vmem:[%s683] ss:$8 sm:$0x3] %vm682, %v681
    %s685 = scalar_lea.vmem [#allocation0], 488
    %s686 = smov 3
    %v687 = vld [vmem:[%s685] ss:$2 sm:%s686]
    %vm688 = vcmask 523264
    %s689 = scalar_lea.vmem %s1, 117
    %690 = vst.msk [vmem:[%s689] ss:$8 sm:$0x3] %vm688, %v687
    %s691 = scalar_lea.vmem [#allocation0], 496
    %s692 = smov 3
    %v693 = vld [vmem:[%s691] ss:$2 sm:%s692]
    %vm694 = vcmask 523264
    %s695 = scalar_lea.vmem %s1, 118
    %696 = vst.msk [vmem:[%s695] ss:$8 sm:$0x3] %vm694, %v693
    %s697 = scalar_lea.vmem [#allocation0], 504
    %s698 = smov 3
    %v699 = vld [vmem:[%s697] ss:$2 sm:%s698]
    %vm700 = vcmask 523264
    %s701 = scalar_lea.vmem %s1, 119
    %702 = vst.msk [vmem:[%s701] ss:$8 sm:$0x3] %vm700, %v699
    %s703 = scalar_lea.vmem [#allocation0], 1
    %v704 = vld [vmem:[%s703] ss:$8 sm:$0xf]
    %s705 = scalar_lea.vmem [#allocation0], 1
    %v706 = vld [vmem:[%s705] ss:$8 sm:$0xf0]
    %vm707 = vcmask 1047556
    %v708 = vsel %vm707, %v706, %v704
    %709 = vrot.lane.b32.xlu0 %v708, 64
    %v710 = vpop.permute.xlu0 %709
    %vm711 = vcmask 1048064
    %712 = vst.msk [vmem:[%s1] sm:$0xff] %vm711, %v710
    %s713 = scalar_lea.vmem [#allocation0], 129
    %v714 = vld [vmem:[%s713] ss:$8 sm:$0xf]
    %s715 = scalar_lea.vmem [#allocation0], 129
    %v716 = vld [vmem:[%s715] ss:$8 sm:$0xf0]
    %vm717 = vcmask 1047556
    %v718 = vsel %vm717, %v716, %v714
    %719 = vrot.lane.b32.xlu0 %v718, 64
    %v720 = vpop.permute.xlu0 %719
    %vm721 = vcmask 1048064
    %s722 = scalar_lea.vmem %s1, 32
    %723 = vst.msk [vmem:[%s722] sm:$0xff] %vm721, %v720
    %s724 = scalar_lea.vmem [#allocation0], 257
    %v725 = vld [vmem:[%s724] ss:$8 sm:$0xf]
    %s726 = scalar_lea.vmem [#allocation0], 257
    %v727 = vld [vmem:[%s726] ss:$8 sm:$0xf0]
    %vm728 = vcmask 1047556
    %v729 = vsel %vm728, %v727, %v725
    %730 = vrot.lane.b32.xlu0 %v729, 64
    %v731 = vpop.permute.xlu0 %730
    %vm732 = vcmask 1048064
    %s733 = scalar_lea.vmem %s1, 64
    %734 = vst.msk [vmem:[%s733] sm:$0xff] %vm732, %v731
    %s735 = scalar_lea.vmem [#allocation0], 385
    %v736 = vld [vmem:[%s735] ss:$8 sm:$0xf]
    %s737 = scalar_lea.vmem [#allocation0], 385
    %v738 = vld [vmem:[%s737] ss:$8 sm:$0xf0]
    %vm739 = vcmask 1047556
    %v740 = vsel %vm739, %v738, %v736
    %741 = vrot.lane.b32.xlu0 %v740, 64
    %v742 = vpop.permute.xlu0 %741
    %vm743 = vcmask 1048064
    %s744 = scalar_lea.vmem %s1, 96
    %745 = vst.msk [vmem:[%s744] sm:$0xff] %vm743, %v742
    %s746 = scalar_lea.vmem [#allocation0], 3
    %v747 = vld [vmem:[%s746] ss:$8 sm:$0xf]
    %s748 = scalar_lea.vmem [#allocation0], 3
    %v749 = vld [vmem:[%s748] ss:$8 sm:$0xf0]
    %vm750 = vcmask 1047556
    %v751 = vsel %vm750, %v749, %v747
    %752 = vrot.lane.b32.xlu0 %v751, 64
    %v753 = vpop.permute.xlu0 %752
    %vm754 = vcmask 1048064
    %s755 = scalar_lea.vmem %s1, 8
    %756 = vst.msk [vmem:[%s755] sm:$0xff] %vm754, %v753
    %s757 = scalar_lea.vmem [#allocation0], 131
    %v758 = vld [vmem:[%s757] ss:$8 sm:$0xf]
    %s759 = scalar_lea.vmem [#allocation0], 131
    %v760 = vld [vmem:[%s759] ss:$8 sm:$0xf0]
    %vm761 = vcmask 1047556
    %v762 = vsel %vm761, %v760, %v758
    %763 = vrot.lane.b32.xlu0 %v762, 64
    %v764 = vpop.permute.xlu0 %763
    %vm765 = vcmask 1048064
    %s766 = scalar_lea.vmem %s1, 40
    %767 = vst.msk [vmem:[%s766] sm:$0xff] %vm765, %v764
    %s768 = scalar_lea.vmem [#allocation0], 259
    %v769 = vld [vmem:[%s768] ss:$8 sm:$0xf]
    %s770 = scalar_lea.vmem [#allocation0], 259
    %v771 = vld [vmem:[%s770] ss:$8 sm:$0xf0]
    %vm772 = vcmask 1047556
    %v773 = vsel %vm772, %v771, %v769
    %774 = vrot.lane.b32.xlu0 %v773, 64
    %v775 = vpop.permute.xlu0 %774
    %vm776 = vcmask 1048064
    %s777 = scalar_lea.vmem %s1, 72
    %778 = vst.msk [vmem:[%s777] sm:$0xff] %vm776, %v775
    %s779 = scalar_lea.vmem [#allocation0], 387
    %v780 = vld [vmem:[%s779] ss:$8 sm:$0xf]
    %s781 = scalar_lea.vmem [#allocation0], 387
    %v782 = vld [vmem:[%s781] ss:$8 sm:$0xf0]
    %vm783 = vcmask 1047556
    %v784 = vsel %vm783, %v782, %v780
    %785 = vrot.lane.b32.xlu0 %v784, 64
    %v786 = vpop.permute.xlu0 %785
    %vm787 = vcmask 1048064
    %s788 = scalar_lea.vmem %s1, 104
    %789 = vst.msk [vmem:[%s788] sm:$0xff] %vm787, %v786
    %s790 = scalar_lea.vmem [#allocation0], 65
    %v791 = vld [vmem:[%s790] ss:$8 sm:$0xf]
    %s792 = scalar_lea.vmem [#allocation0], 65
    %v793 = vld [vmem:[%s792] ss:$8 sm:$0xf0]
    %vm794 = vcmask 1047556
    %v795 = vsel %vm794, %v793, %v791
    %796 = vrot.lane.b32.xlu0 %v795, 64
    %v797 = vpop.permute.xlu0 %796
    %vm798 = vcmask 1048064
    %s799 = scalar_lea.vmem %s1, 16
    %800 = vst.msk [vmem:[%s799] sm:$0xff] %vm798, %v797
    %s801 = scalar_lea.vmem [#allocation0], 193
    %v802 = vld [vmem:[%s801] ss:$8 sm:$0xf]
    %s803 = scalar_lea.vmem [#allocation0], 193
    %v804 = vld [vmem:[%s803] ss:$8 sm:$0xf0]
    %vm805 = vcmask 1047556
    %v806 = vsel %vm805, %v804, %v802
    %807 = vrot.lane.b32.xlu0 %v806, 64
    %v808 = vpop.permute.xlu0 %807
    %vm809 = vcmask 1048064
    %s810 = scalar_lea.vmem %s1, 48
    %811 = vst.msk [vmem:[%s810] sm:$0xff] %vm809, %v808
    %s812 = scalar_lea.vmem [#allocation0], 321
    %v813 = vld [vmem:[%s812] ss:$8 sm:$0xf]
    %s814 = scalar_lea.vmem [#allocation0], 321
    %v815 = vld [vmem:[%s814] ss:$8 sm:$0xf0]
    %vm816 = vcmask 1047556
    %v817 = vsel %vm816, %v815, %v813
    %818 = vrot.lane.b32.xlu0 %v817, 64
    %v819 = vpop.permute.xlu0 %818
    %vm820 = vcmask 1048064
    %s821 = scalar_lea.vmem %s1, 80
    %822 = vst.msk [vmem:[%s821] sm:$0xff] %vm820, %v819
    %s823 = scalar_lea.vmem [#allocation0], 449
    %v824 = vld [vmem:[%s823] ss:$8 sm:$0xf]
    %s825 = scalar_lea.vmem [#allocation0], 449
    %v826 = vld [vmem:[%s825] ss:$8 sm:$0xf0]
    %vm827 = vcmask 1047556
    %v828 = vsel %vm827, %v826, %v824
    %829 = vrot.lane.b32.xlu0 %v828, 64
    %v830 = vpop.permute.xlu0 %829
    %vm831 = vcmask 1048064
    %s832 = scalar_lea.vmem %s1, 112
    %833 = vst.msk [vmem:[%s832] sm:$0xff] %vm831, %v830
    %s834 = scalar_lea.vmem [#allocation0], 67
    %v835 = vld [vmem:[%s834] ss:$8 sm:$0xf]
    %s836 = scalar_lea.vmem [#allocation0], 67
    %v837 = vld [vmem:[%s836] ss:$8 sm:$0xf0]
    %vm838 = vcmask 1047556
    %v839 = vsel %vm838, %v837, %v835
    %840 = vrot.lane.b32.xlu0 %v839, 64
    %v841 = vpop.permute.xlu0 %840
    %vm842 = vcmask 1048064
    %s843 = scalar_lea.vmem %s1, 24
    %844 = vst.msk [vmem:[%s843] sm:$0xff] %vm842, %v841
    %s845 = scalar_lea.vmem [#allocation0], 195
    %v846 = vld [vmem:[%s845] ss:$8 sm:$0xf]
    %s847 = scalar_lea.vmem [#allocation0], 195
    %v848 = vld [vmem:[%s847] ss:$8 sm:$0xf0]
    %vm849 = vcmask 1047556
    %v850 = vsel %vm849, %v848, %v846
    %851 = vrot.lane.b32.xlu0 %v850, 64
    %v852 = vpop.permute.xlu0 %851
    %vm853 = vcmask 1048064
    %s854 = scalar_lea.vmem %s1, 56
    %855 = vst.msk [vmem:[%s854] sm:$0xff] %vm853, %v852
    %s856 = scalar_lea.vmem [#allocation0], 323
    %v857 = vld [vmem:[%s856] ss:$8 sm:$0xf]
    %s858 = scalar_lea.vmem [#allocation0], 323
    %v859 = vld [vmem:[%s858] ss:$8 sm:$0xf0]
    %vm860 = vcmask 1047556
    %v861 = vsel %vm860, %v859, %v857
    %862 = vrot.lane.b32.xlu0 %v861, 64
    %v863 = vpop.permute.xlu0 %862
    %vm864 = vcmask 1048064
    %s865 = scalar_lea.vmem %s1, 88
    %866 = vst.msk [vmem:[%s865] sm:$0xff] %vm864, %v863
    %s867 = scalar_lea.vmem [#allocation0], 451
    %v868 = vld [vmem:[%s867] ss:$8 sm:$0xf]
    %s869 = scalar_lea.vmem [#allocation0], 451
    %v870 = vld [vmem:[%s869] ss:$8 sm:$0xf0]
    %vm871 = vcmask 1047556
    %v872 = vsel %vm871, %v870, %v868
    %873 = vrot.lane.b32.xlu0 %v872, 64
    %v874 = vpop.permute.xlu0 %873
    %vm875 = vcmask 1048064
    %s876 = scalar_lea.vmem %s1, 120
    %877 = vst.msk [vmem:[%s876] sm:$0xff] %vm875, %v874

// kernel: discriminator_forward.1
$region0: #{discriminator_forward.1}
  #allocation0 [shape = 'u32[]', space=smem, size = 0x4, offset = 0x4, fixed_abs, tag = 'smem constant byte address 0x4 - core index']
  #allocation1 [shape = 'u32[144,128]{1,0:T(1,128)}', space=vmem, size = 0x12000, scoped, tag = 'internal scratch']
  %s0 = inlined_call_operand.vmem [shape: f32[128,192], index: 0, kind: input, shape index: {}]
  %s1 = inlined_call_operand.vmem [shape: f32[4,64,128], index: 1, kind: input, shape index: {}]
  %s2 = inlined_call_operand.vmem [shape: f32[4,192,256], index: 2, kind: input, shape index: {}]
  %s3 = inlined_call_operand.vmem [shape: f32[4,32,64], index: 3, kind: input, shape index: {}]
  %s4 = inlined_call_operand.vmem [shape: f32[4,256,256], index: 4, kind: input, shape index: {}]
  %s5 = inlined_call_operand.vmem [shape: f32[256,16], index: 5, kind: input, shape index: {}]
  %s6 = inlined_call_operand.vmem [shape: f32[16,256], index: 6, kind: input, shape index: {}]
  %s7 = inlined_call_operand.vmem [shape: f32[1,16], index: 7, kind: input, shape index: {}]
  %s8 = inlined_call_operand.vmem [shape: f32[1,16], index: 8, kind: input, shape index: {}]
  %s9 = inlined_call_operand.vmem [shape: f32[4,16,32], index: 9, kind: input, shape index: {}]
  %s10 = inlined_call_operand.vmem [shape: f32[4,256,256], index: 10, kind: input, shape index: {}]
  %s11 = inlined_call_operand.vmem [shape: f32[256,32], index: 11, kind: input, shape index: {}]
  %s12 = inlined_call_operand.vmem [shape: f32[32,256], index: 12, kind: input, shape index: {}]
  %s13 = inlined_call_operand.vmem [shape: f32[1,32], index: 13, kind: input, shape index: {}]
  %s14 = inlined_call_operand.vmem [shape: f32[1,32], index: 14, kind: input, shape index: {}]
  %s15 = inlined_call_operand.vmem [shape: f32[4,8,16], index: 15, kind: input, shape index: {}]
  %s16 = inlined_call_operand.vmem [shape: f32[4,256,256], index: 16, kind: input, shape index: {}]
  %s17 = inlined_call_operand.vmem [shape: f32[256,64], index: 17, kind: input, shape index: {}]
  %s18 = inlined_call_operand.vmem [shape: f32[64,256], index: 18, kind: input, shape index: {}]
  %s19 = inlined_call_operand.vmem [shape: f32[1,64], index: 19, kind: input, shape index: {}]
  %s20 = inlined_call_operand.vmem [shape: f32[1,64], index: 20, kind: input, shape index: {}]
  %s21 = inlined_call_operand.vmem [shape: f32[4,2,8], index: 21, kind: input, shape index: {}]
  %s22 = inlined_call_operand.vmem [shape: f32[4,256,2], index: 22, kind: input, shape index: {}]
  %s23 = inlined_call_operand.hbm [shape: f32[2,2], index: 23, kind: output, shape index: {}]
  %s24 = sld [smem:[#allocation0]]
  $region102: #{discriminator_forward.1} parent=0
    _
  %s26 = ssub.s32 1, %s24
  %s27 = scalar_select 0, %s26, %s24
  $region1: #{discriminator_forward.1} parent=0
    #allocation2 [shape = 'u8[1024]{0}', space=vmem, size = 0x400, scoped, tag = 'output window, operand 0, single buffered']
    #allocation3 [shape = 's32[1]{0}', space=sflag, size = 0x4, scoped, tag = 'scoped memory for discriminator_forward.1']
    %28 = vsyncpa [#allocation3], 0
    // Predicated region
    $region2: #{discriminator_forward.1} parent=1 // pred_check
      _
    $region3: #{discriminator_forward.1} parent=1 // pred_check_branch
      %30 = sbr.rel (0) target = $region5
    $region4: #{discriminator_forward.1} parent=1 // pred_region
      _
    $region5: #{discriminator_forward.1} parent=1 // pred_fallthru
      _
    // Predicated region
    $region6: #{discriminator_forward.1} parent=1 // pred_check
      _
    $region7: #{discriminator_forward.1} parent=1 // pred_check_branch
      %32 = sbr.rel (0) target = $region9
    $region8: #{discriminator_forward.1} parent=1 // pred_region
      _
    $region9: #{discriminator_forward.1} parent=1 // pred_fallthru
      _
    // Predicated region
    $region10: #{discriminator_forward.1} parent=1 // pred_check
      _
    $region11: #{discriminator_forward.1} parent=1 // pred_check_branch
      %34 = sbr.rel (0) target = $region13
    $region12: #{discriminator_forward.1} parent=1 // pred_region
      _
    $region13: #{discriminator_forward.1} parent=1 // pred_fallthru
      _
    // Predicated region
    $region14: #{discriminator_forward.1} parent=1 // pred_check
      _
    $region15: #{discriminator_forward.1} parent=1 // pred_check_branch
      %36 = sbr.rel (0) target = $region17
    $region16: #{discriminator_forward.1} parent=1 // pred_region
      _
    $region17: #{discriminator_forward.1} parent=1 // pred_fallthru
      _
    // Predicated region
    $region18: #{discriminator_forward.1} parent=1 // pred_check
      _
    $region19: #{discriminator_forward.1} parent=1 // pred_check_branch
      %38 = sbr.rel (0) target = $region21
    $region20: #{discriminator_forward.1} parent=1 // pred_region
      _
    $region21: #{discriminator_forward.1} parent=1 // pred_fallthru
      _
    // Predicated region
    $region22: #{discriminator_forward.1} parent=1 // pred_check
      _
    $region23: #{discriminator_forward.1} parent=1 // pred_check_branch
      %40 = sbr.rel (0) target = $region25
    $region24: #{discriminator_forward.1} parent=1 // pred_region
      _
    $region25: #{discriminator_forward.1} parent=1 // pred_fallthru
      _
    // Predicated region
    $region26: #{discriminator_forward.1} parent=1 // pred_check
      _
    $region27: #{discriminator_forward.1} parent=1 // pred_check_branch
      %42 = sbr.rel (0) target = $region29
    $region28: #{discriminator_forward.1} parent=1 // pred_region
      _
    $region29: #{discriminator_forward.1} parent=1 // pred_fallthru
      _
    // Predicated region
    $region30: #{discriminator_forward.1} parent=1 // pred_check
      _
    $region31: #{discriminator_forward.1} parent=1 // pred_check_branch
      %44 = sbr.rel (0) target = $region33
    $region32: #{discriminator_forward.1} parent=1 // pred_region
      _
    $region33: #{discriminator_forward.1} parent=1 // pred_fallthru
      _
    // Predicated region
    $region34: #{discriminator_forward.1} parent=1 // pred_check
      _
    $region35: #{discriminator_forward.1} parent=1 // pred_check_branch
      %46 = sbr.rel (0) target = $region37
    $region36: #{discriminator_forward.1} parent=1 // pred_region
      _
    $region37: #{discriminator_forward.1} parent=1 // pred_fallthru
      _
    // Predicated region
    $region38: #{discriminator_forward.1} parent=1 // pred_check
      _
    $region39: #{discriminator_forward.1} parent=1 // pred_check_branch
      %48 = sbr.rel (0) target = $region41
    $region40: #{discriminator_forward.1} parent=1 // pred_region
      _
    $region41: #{discriminator_forward.1} parent=1 // pred_fallthru
      _
    // Predicated region
    $region42: #{discriminator_forward.1} parent=1 // pred_check
      _
    $region43: #{discriminator_forward.1} parent=1 // pred_check_branch
      %50 = sbr.rel (0) target = $region45
    $region44: #{discriminator_forward.1} parent=1 // pred_region
      _
    $region45: #{discriminator_forward.1} parent=1 // pred_fallthru
      _
    // Predicated region
    $region46: #{discriminator_forward.1} parent=1 // pred_check
      _
    $region47: #{discriminator_forward.1} parent=1 // pred_check_branch
      %52 = sbr.rel (0) target = $region49
    $region48: #{discriminator_forward.1} parent=1 // pred_region
      _
    $region49: #{discriminator_forward.1} parent=1 // pred_fallthru
      _
    // Predicated region
    $region50: #{discriminator_forward.1} parent=1 // pred_check
      _
    $region51: #{discriminator_forward.1} parent=1 // pred_check_branch
      %54 = sbr.rel (0) target = $region53
    $region52: #{discriminator_forward.1} parent=1 // pred_region
      _
    $region53: #{discriminator_forward.1} parent=1 // pred_fallthru
      _
    // Predicated region
    $region54: #{discriminator_forward.1} parent=1 // pred_check
      _
    $region55: #{discriminator_forward.1} parent=1 // pred_check_branch
      %56 = sbr.rel (0) target = $region57
    $region56: #{discriminator_forward.1} parent=1 // pred_region
      _
    $region57: #{discriminator_forward.1} parent=1 // pred_fallthru
      _
    // Predicated region
    $region58: #{discriminator_forward.1} parent=1 // pred_check
      _
    $region59: #{discriminator_forward.1} parent=1 // pred_check_branch
      %58 = sbr.rel (0) target = $region61
    $region60: #{discriminator_forward.1} parent=1 // pred_region
      _
    $region61: #{discriminator_forward.1} parent=1 // pred_fallthru
      _
    // Predicated region
    $region62: #{discriminator_forward.1} parent=1 // pred_check
      _
    $region63: #{discriminator_forward.1} parent=1 // pred_check_branch
      %60 = sbr.rel (0) target = $region65
    $region64: #{discriminator_forward.1} parent=1 // pred_region
      _
    $region65: #{discriminator_forward.1} parent=1 // pred_fallthru
      _
    // Predicated region
    $region66: #{discriminator_forward.1} parent=1 // pred_check
      _
    $region67: #{discriminator_forward.1} parent=1 // pred_check_branch
      %62 = sbr.rel (0) target = $region69
    $region68: #{discriminator_forward.1} parent=1 // pred_region
      _
    $region69: #{discriminator_forward.1} parent=1 // pred_fallthru
      _
    // Predicated region
    $region70: #{discriminator_forward.1} parent=1 // pred_check
      _
    $region71: #{discriminator_forward.1} parent=1 // pred_check_branch
      %64 = sbr.rel (0) target = $region73
    $region72: #{discriminator_forward.1} parent=1 // pred_region
      _
    $region73: #{discriminator_forward.1} parent=1 // pred_fallthru
      _
    // Predicated region
    $region74: #{discriminator_forward.1} parent=1 // pred_check
      _
    $region75: #{discriminator_forward.1} parent=1 // pred_check_branch
      %66 = sbr.rel (0) target = $region77
    $region76: #{discriminator_forward.1} parent=1 // pred_region
      _
    $region77: #{discriminator_forward.1} parent=1 // pred_fallthru
      _
    // Predicated region
    $region78: #{discriminator_forward.1} parent=1 // pred_check
      _
    $region79: #{discriminator_forward.1} parent=1 // pred_check_branch
      %68 = sbr.rel (0) target = $region81
    $region80: #{discriminator_forward.1} parent=1 // pred_region
      _
    $region81: #{discriminator_forward.1} parent=1 // pred_fallthru
      _
    // Predicated region
    $region82: #{discriminator_forward.1} parent=1 // pred_check
      _
    $region83: #{discriminator_forward.1} parent=1 // pred_check_branch
      %70 = sbr.rel (0) target = $region85
    $region84: #{discriminator_forward.1} parent=1 // pred_region
      _
    $region85: #{discriminator_forward.1} parent=1 // pred_fallthru
      _
    // Predicated region
    $region86: #{discriminator_forward.1} parent=1 // pred_check
      _
    $region87: #{discriminator_forward.1} parent=1 // pred_check_branch
      %72 = sbr.rel (0) target = $region89
    $region88: #{discriminator_forward.1} parent=1 // pred_region
      _
    $region89: #{discriminator_forward.1} parent=1 // pred_fallthru
      _
    // Predicated region
    $region90: #{discriminator_forward.1} parent=1 // pred_check
      _
    $region91: #{discriminator_forward.1} parent=1 // pred_check_branch
      %74 = sbr.rel (0) target = $region93
    $region92: #{discriminator_forward.1} parent=1 // pred_region
      _
    $region93: #{discriminator_forward.1} parent=1 // pred_fallthru
      _
    %v75 = vld [vmem:[%s0] sm:$0xff]
    %v76 = vld [vmem:[%s0 + $0x8] sm:$0xff]
    %v77 = vld [vmem:[%s0 + $0x10] sm:$0xff]
    %v78 = vld [vmem:[%s0 + $0x18] sm:$0xff]
    %v79 = vld [vmem:[%s0 + $0x20] sm:$0xff]
    %v80 = vld [vmem:[%s0 + $0x28] sm:$0xff]
    %v81 = vld [vmem:[%s0 + $0x30] sm:$0xff]
    %v82 = vld [vmem:[%s0 + $0x38] sm:$0xff]
    %v83 = vld [vmem:[%s0 + $0x40] sm:$0xff]
    %v84 = vld [vmem:[%s0 + $0x48] sm:$0xff]
    %v85 = vld [vmem:[%s0 + $0x50] sm:$0xff]
    %v86 = vld [vmem:[%s0 + $0x58] sm:$0xff]
    %v87 = vld [vmem:[%s0 + $0x60] sm:$0xff]
    %v88 = vld [vmem:[%s0 + $0x68] sm:$0xff]
    %v89 = vld [vmem:[%s0 + $0x70] sm:$0xff]
    %v90 = vld [vmem:[%s0 + $0x78] sm:$0xff]
    %v91 = vld [vmem:[%s0 + $0x80] sm:$0xff]
    %v92 = vld [vmem:[%s0 + $0x88] sm:$0xff]
    %v93 = vld [vmem:[%s0 + $0x90] sm:$0xff]
    %v94 = vld [vmem:[%s0 + $0x98] sm:$0xff]
    %v95 = vld [vmem:[%s0 + $0xa0] sm:$0xff]
    %v96 = vld [vmem:[%s0 + $0xa8] sm:$0xff]
    %v97 = vld [vmem:[%s0 + $0xb0] sm:$0xff]
    %v98 = vld [vmem:[%s0 + $0xb8] sm:$0xff]
    %v99 = vld [vmem:[%s0 + $0xc0] sm:$0xff]
    %v100 = vld [vmem:[%s0 + $0xc8] sm:$0xff]
    %v101 = vld [vmem:[%s0 + $0xd0] sm:$0xff]
    %v102 = vld [vmem:[%s0 + $0xd8] sm:$0xff]
    %v103 = vld [vmem:[%s0 + $0xe0] sm:$0xff]
    %v104 = vld [vmem:[%s0 + $0xe8] sm:$0xff]
    %v105 = vld [vmem:[%s0 + $0xf0] sm:$0xff]
    %v106 = vld [vmem:[%s0 + $0xf8] sm:$0xff]
    %v107 = vld [vmem:[%s1] sm:$0xff]
    %v108 = vld [vmem:[%s1 + $0x8] sm:$0xff]
    %v109 = vld [vmem:[%s1 + $0x10] sm:$0xff]
    %v110 = vld [vmem:[%s1 + $0x18] sm:$0xff]
    %v111 = vld [vmem:[%s1 + $0x20] sm:$0xff]
    %v112 = vld [vmem:[%s1 + $0x28] sm:$0xff]
    %v113 = vld [vmem:[%s1 + $0x30] sm:$0xff]
    %v114 = vld [vmem:[%s1 + $0x38] sm:$0xff]
    %115 = vmatprep.subr.mxu0 %v106
    %116 = vmatpush1.msra.mxu0 %v105
    %117 = vmatprep.subr.mxu0 %v104
    %118 = vmatpush1.msra.mxu0 %v103
    %119 = vmatprep.subr.mxu0 %v102
    %120 = vmatpush1.msra.mxu0 %v101
    %121 = vmatprep.subr.mxu0 %v100
    %122 = vmatpush1.msra.mxu0 %v99
    %123 = vmatprep.subr.mxu0 %v98
    %124 = vmatpush1.msra.mxu0 %v97
    %125 = vmatprep.subr.mxu0 %v96
    %126 = vmatpush1.msra.mxu0 %v95
    %127 = vmatprep.subr.mxu0 %v94
    %128 = vmatpush1.msra.mxu0 %v93
    %129 = vmatprep.subr.mxu0 %v92
    %130 = vmatpush1.msra.mxu0 %v91
    %131 = vmatprep.subr.mxu0 %v90
    %132 = vmatpush1.msra.mxu0 %v89
    %133 = vmatprep.subr.mxu0 %v88
    %134 = vmatpush1.msra.mxu0 %v87
    %135 = vmatprep.subr.mxu0 %v86
    %136 = vmatpush1.msra.mxu0 %v85
    %137 = vmatprep.subr.mxu0 %v84
    %138 = vmatpush1.msra.mxu0 %v83
    %139 = vmatprep.subr.mxu0 %v82
    %140 = vmatpush1.msra.mxu0 %v81
    %141 = vmatprep.subr.mxu0 %v80
    %142 = vmatpush1.msra.mxu0 %v79
    %143 = vmatprep.subr.mxu0 %v78
    %144 = vmatpush1.msra.mxu0 %v77
    %145 = vmatprep.subr.mxu0 %v76
    %146 = vmatpush1.msra.mxu0 %v75
    %147 = vmatprep.subr.mxu0 0.0
    %148 = vmatpush2.msra.mxu0 0.0
    %149 = vmatprep.subr.mxu0 0.0
    %150 = vmatpush2.msra.mxu0 0.0
    %151 = vmatprep.subr.mxu0 0.0
    %152 = vmatpush2.msra.mxu0 0.0
    %153 = vmatprep.subr.mxu0 0.0
    %154 = vmatpush2.msra.mxu0 0.0
    %155 = vmatprep.subr.mxu0 0.0
    %156 = vmatpush2.msra.mxu0 0.0
    %157 = vmatprep.subr.mxu0 0.0
    %158 = vmatpush2.msra.mxu0 0.0
    %159 = vmatprep.subr.mxu0 0.0
    %160 = vmatpush2.msra.mxu0 0.0
    %161 = vmatprep.subr.mxu0 0.0
    %162 = vmatpush2.msra.mxu0 0.0
    %163 = vmatprep.subr.mxu0 0.0
    %164 = vmatpush2.msra.mxu0 0.0
    %165 = vmatprep.subr.mxu0 0.0
    %166 = vmatpush2.msra.mxu0 0.0
    %167 = vmatprep.subr.mxu0 0.0
    %168 = vmatpush2.msra.mxu0 0.0
    %169 = vmatprep.subr.mxu0 0.0
    %170 = vmatpush2.msra.mxu0 0.0
    %171 = vmatprep.subr.mxu0 0.0
    %172 = vmatpush2.msra.mxu0 0.0
    %173 = vmatprep.subr.mxu0 0.0
    %174 = vmatpush2.msra.mxu0 0.0
    %175 = vmatprep.subr.mxu0 0.0
    %176 = vmatpush2.msra.mxu0 0.0
    %177 = vmatprep.subr.mxu0 0.0
    %178 = vmatpush2.msra.mxu0 0.0
    %179 = vmatprep.mubr.f32.mxu0 0.0
    %180 = vmatmul.mubr.f32.gmra.mxu0 %v107
    %v181 = vpop.f32.mrf.mxu0
    %v182 = vadd.f32 0.0, %v181
    %v183 = vpop.f32.mrf.mxu0
    %v184 = vadd.f32 0.0, %v183
    %185 = vmatprep.mubr.f32.mxu0 0.0
    %186 = vmatmul.mubr.f32.gmra.mxu0 %v108
    %v187 = vpop.f32.mrf.mxu0
    %v188 = vadd.f32 0.0, %v187
    %v189 = vpop.f32.mrf.mxu0
    %v190 = vadd.f32 0.0, %v189
    %191 = vmatprep.mubr.f32.mxu0 0.0
    %192 = vmatmul.mubr.f32.gmra.mxu0 %v109
    %v193 = vpop.f32.mrf.mxu0
    %v194 = vadd.f32 0.0, %v193
    %v195 = vpop.f32.mrf.mxu0
    %v196 = vadd.f32 0.0, %v195
    %197 = vmatprep.mubr.f32.mxu0 0.0
    %198 = vmatmul.mubr.f32.gmra.mxu0 %v110
    %v199 = vpop.f32.mrf.mxu0
    %v200 = vadd.f32 0.0, %v199
    %v201 = vpop.f32.mrf.mxu0
    %v202 = vadd.f32 0.0, %v201
    %203 = vmatprep.mubr.f32.mxu0 0.0
    %204 = vmatmul.mubr.f32.gmra.mxu0 %v111
    %v205 = vpop.f32.mrf.mxu0
    %v206 = vadd.f32 0.0, %v205
    %v207 = vpop.f32.mrf.mxu0
    %v208 = vadd.f32 0.0, %v207
    %209 = vmatprep.mubr.f32.mxu0 0.0
    %210 = vmatmul.mubr.f32.gmra.mxu0 %v112
    %v211 = vpop.f32.mrf.mxu0
    %v212 = vadd.f32 0.0, %v211
    %v213 = vpop.f32.mrf.mxu0
    %v214 = vadd.f32 0.0, %v213
    %215 = vmatprep.mubr.f32.mxu0 0.0
    %216 = vmatmul.mubr.f32.gmra.mxu0 %v113
    %v217 = vpop.f32.mrf.mxu0
    %v218 = vadd.f32 0.0, %v217
    %v219 = vpop.f32.mrf.mxu0
    %v220 = vadd.f32 0.0, %v219
    %221 = vmatprep.mubr.f32.mxu0 0.0
    %222 = vmatmul.mubr.f32.gmra.mxu0 %v114
    %v223 = vpop.f32.mrf.mxu0
    %v224 = vadd.f32 0.0, %v223
    %v225 = vpop.f32.mrf.mxu0
    %v226 = vadd.f32 0.0, %v225
    %227 = vdwg.mxu0
    %v228 = vld [vmem:[%s2] sm:$0xff]
    %v229 = vld [vmem:[%s2 + $0x8] sm:$0xff]
    %v230 = vld [vmem:[%s2 + $0x10] sm:$0xff]
    %v231 = vld [vmem:[%s2 + $0x18] sm:$0xff]
    %v232 = vld [vmem:[%s2 + $0x20] sm:$0xff]
    %v233 = vld [vmem:[%s2 + $0x28] sm:$0xff]
    %v234 = vld [vmem:[%s2 + $0x30] sm:$0xff]
    %v235 = vld [vmem:[%s2 + $0x38] sm:$0xff]
    %v236 = vld [vmem:[%s2 + $0x40] sm:$0xff]
    %v237 = vld [vmem:[%s2 + $0x48] sm:$0xff]
    %v238 = vld [vmem:[%s2 + $0x50] sm:$0xff]
    %v239 = vld [vmem:[%s2 + $0x58] sm:$0xff]
    %v240 = vld [vmem:[%s2 + $0x60] sm:$0xff]
    %v241 = vld [vmem:[%s2 + $0x68] sm:$0xff]
    %v242 = vld [vmem:[%s2 + $0x70] sm:$0xff]
    %v243 = vld [vmem:[%s2 + $0x78] sm:$0xff]
    %v244 = vld [vmem:[%s2 + $0x80] sm:$0xff]
    %v245 = vld [vmem:[%s2 + $0x88] sm:$0xff]
    %v246 = vld [vmem:[%s2 + $0x90] sm:$0xff]
    %v247 = vld [vmem:[%s2 + $0x98] sm:$0xff]
    %v248 = vld [vmem:[%s2 + $0xa0] sm:$0xff]
    %v249 = vld [vmem:[%s2 + $0xa8] sm:$0xff]
    %v250 = vld [vmem:[%s2 + $0xb0] sm:$0xff]
    %v251 = vld [vmem:[%s2 + $0xb8] sm:$0xff]
    %v252 = vld [vmem:[%s2 + $0xc0] sm:$0xff]
    %v253 = vld [vmem:[%s2 + $0xc8] sm:$0xff]
    %v254 = vld [vmem:[%s2 + $0xd0] sm:$0xff]
    %v255 = vld [vmem:[%s2 + $0xd8] sm:$0xff]
    %v256 = vld [vmem:[%s2 + $0xe0] sm:$0xff]
    %v257 = vld [vmem:[%s2 + $0xe8] sm:$0xff]
    %v258 = vld [vmem:[%s2 + $0xf0] sm:$0xff]
    %v259 = vld [vmem:[%s2 + $0xf8] sm:$0xff]
    %v260 = vld [vmem:[%s2 + $0x100] sm:$0xff]
    %v261 = vld [vmem:[%s2 + $0x108] sm:$0xff]
    %v262 = vld [vmem:[%s2 + $0x110] sm:$0xff]
    %v263 = vld [vmem:[%s2 + $0x118] sm:$0xff]
    %v264 = vld [vmem:[%s2 + $0x120] sm:$0xff]
    %v265 = vld [vmem:[%s2 + $0x128] sm:$0xff]
    %v266 = vld [vmem:[%s2 + $0x130] sm:$0xff]
    %v267 = vld [vmem:[%s2 + $0x138] sm:$0xff]
    %v268 = vld [vmem:[%s2 + $0x140] sm:$0xff]
    %v269 = vld [vmem:[%s2 + $0x148] sm:$0xff]
    %v270 = vld [vmem:[%s2 + $0x150] sm:$0xff]
    %v271 = vld [vmem:[%s2 + $0x158] sm:$0xff]
    %v272 = vld [vmem:[%s2 + $0x160] sm:$0xff]
    %v273 = vld [vmem:[%s2 + $0x168] sm:$0xff]
    %v274 = vld [vmem:[%s2 + $0x170] sm:$0xff]
    %v275 = vld [vmem:[%s2 + $0x178] sm:$0xff]
    %s276 = scalar_lea.vmem %s1, 64
    %v277 = vld [vmem:[%s276] sm:$0xff]
    %v278 = vld [vmem:[%s276 + $0x8] sm:$0xff]
    %v279 = vld [vmem:[%s276 + $0x10] sm:$0xff]
    %v280 = vld [vmem:[%s276 + $0x18] sm:$0xff]
    %v281 = vld [vmem:[%s276 + $0x20] sm:$0xff]
    %v282 = vld [vmem:[%s276 + $0x28] sm:$0xff]
    %v283 = vld [vmem:[%s276 + $0x30] sm:$0xff]
    %v284 = vld [vmem:[%s276 + $0x38] sm:$0xff]
    %285 = vmatprep.subr.mxu0 %v106
    %286 = vmatpush1.msra.mxu0 %v105
    %287 = vmatprep.subr.mxu0 %v104
    %288 = vmatpush1.msra.mxu0 %v103
    %289 = vmatprep.subr.mxu0 %v102
    %290 = vmatpush1.msra.mxu0 %v101
    %291 = vmatprep.subr.mxu0 %v100
    %292 = vmatpush1.msra.mxu0 %v99
    %293 = vmatprep.subr.mxu0 %v98
    %294 = vmatpush1.msra.mxu0 %v97
    %295 = vmatprep.subr.mxu0 %v96
    %296 = vmatpush1.msra.mxu0 %v95
    %297 = vmatprep.subr.mxu0 %v94
    %298 = vmatpush1.msra.mxu0 %v93
    %299 = vmatprep.subr.mxu0 %v92
    %300 = vmatpush1.msra.mxu0 %v91
    %301 = vmatprep.subr.mxu0 %v90
    %302 = vmatpush1.msra.mxu0 %v89
    %303 = vmatprep.subr.mxu0 %v88
    %304 = vmatpush1.msra.mxu0 %v87
    %305 = vmatprep.subr.mxu0 %v86
    %306 = vmatpush1.msra.mxu0 %v85
    %307 = vmatprep.subr.mxu0 %v84
    %308 = vmatpush1.msra.mxu0 %v83
    %309 = vmatprep.subr.mxu0 %v82
    %310 = vmatpush1.msra.mxu0 %v81
    %311 = vmatprep.subr.mxu0 %v80
    %312 = vmatpush1.msra.mxu0 %v79
    %313 = vmatprep.subr.mxu0 %v78
    %314 = vmatpush1.msra.mxu0 %v77
    %315 = vmatprep.subr.mxu0 %v76
    %316 = vmatpush1.msra.mxu0 %v75
    %317 = vmatprep.subr.mxu0 0.0
    %318 = vmatpush2.msra.mxu0 0.0
    %319 = vmatprep.subr.mxu0 0.0
    %320 = vmatpush2.msra.mxu0 0.0
    %321 = vmatprep.subr.mxu0 0.0
    %322 = vmatpush2.msra.mxu0 0.0
    %323 = vmatprep.subr.mxu0 0.0
    %324 = vmatpush2.msra.mxu0 0.0
    %325 = vmatprep.subr.mxu0 0.0
    %326 = vmatpush2.msra.mxu0 0.0
    %327 = vmatprep.subr.mxu0 0.0
    %328 = vmatpush2.msra.mxu0 0.0
    %329 = vmatprep.subr.mxu0 0.0
    %330 = vmatpush2.msra.mxu0 0.0
    %331 = vmatprep.subr.mxu0 0.0
    %332 = vmatpush2.msra.mxu0 0.0
    %333 = vmatprep.subr.mxu0 0.0
    %334 = vmatpush2.msra.mxu0 0.0
    %335 = vmatprep.subr.mxu0 0.0
    %336 = vmatpush2.msra.mxu0 0.0
    %337 = vmatprep.subr.mxu0 0.0
    %338 = vmatpush2.msra.mxu0 0.0
    %339 = vmatprep.subr.mxu0 0.0
    %340 = vmatpush2.msra.mxu0 0.0
    %341 = vmatprep.subr.mxu0 0.0
    %342 = vmatpush2.msra.mxu0 0.0
    %343 = vmatprep.subr.mxu0 0.0
    %344 = vmatpush2.msra.mxu0 0.0
    %345 = vmatprep.subr.mxu0 0.0
    %346 = vmatpush2.msra.mxu0 0.0
    %347 = vmatprep.subr.mxu0 0.0
    %348 = vmatpush2.msra.mxu0 0.0
    %349 = vmatprep.mubr.f32.mxu0 0.0
    %350 = vmatmul.mubr.f32.gmra.mxu0 %v277
    %v351 = vpop.f32.mrf.mxu0
    %v352 = vadd.f32 0.0, %v351
    %v353 = vpop.f32.mrf.mxu0
    %v354 = vadd.f32 0.0, %v353
    %355 = vmatprep.mubr.f32.mxu0 0.0
    %356 = vmatmul.mubr.f32.gmra.mxu0 %v278
    %v357 = vpop.f32.mrf.mxu0
    %v358 = vadd.f32 0.0, %v357
    %v359 = vpop.f32.mrf.mxu0
    %v360 = vadd.f32 0.0, %v359
    %361 = vmatprep.mubr.f32.mxu0 0.0
    %362 = vmatmul.mubr.f32.gmra.mxu0 %v279
    %v363 = vpop.f32.mrf.mxu0
    %v364 = vadd.f32 0.0, %v363
    %v365 = vpop.f32.mrf.mxu0
    %v366 = vadd.f32 0.0, %v365
    %367 = vmatprep.mubr.f32.mxu0 0.0
    %368 = vmatmul.mubr.f32.gmra.mxu0 %v280
    %v369 = vpop.f32.mrf.mxu0
    %v370 = vadd.f32 0.0, %v369
    %v371 = vpop.f32.mrf.mxu0
    %v372 = vadd.f32 0.0, %v371
    %373 = vmatprep.mubr.f32.mxu0 0.0
    %374 = vmatmul.mubr.f32.gmra.mxu0 %v281
    %v375 = vpop.f32.mrf.mxu0
    %v376 = vadd.f32 0.0, %v375
    %v377 = vpop.f32.mrf.mxu0
    %v378 = vadd.f32 0.0, %v377
    %379 = vmatprep.mubr.f32.mxu0 0.0
    %380 = vmatmul.mubr.f32.gmra.mxu0 %v282
    %v381 = vpop.f32.mrf.mxu0
    %v382 = vadd.f32 0.0, %v381
    %v383 = vpop.f32.mrf.mxu0
    %v384 = vadd.f32 0.0, %v383
    %385 = vmatprep.mubr.f32.mxu0 0.0
    %386 = vmatmul.mubr.f32.gmra.mxu0 %v283
    %v387 = vpop.f32.mrf.mxu0
    %v388 = vadd.f32 0.0, %v387
    %v389 = vpop.f32.mrf.mxu0
    %v390 = vadd.f32 0.0, %v389
    %391 = vmatprep.mubr.f32.mxu0 0.0
    %392 = vmatmul.mubr.f32.gmra.mxu0 %v284
    %v393 = vpop.f32.mrf.mxu0
    %v394 = vadd.f32 0.0, %v393
    %v395 = vpop.f32.mrf.mxu0
    %v396 = vadd.f32 0.0, %v395
    %397 = vdwg.mxu0
    %s398 = scalar_lea.vmem %s2, 384
    %v399 = vld [vmem:[%s398] sm:$0xff]
    %v400 = vld [vmem:[%s398 + $0x8] sm:$0xff]
    %v401 = vld [vmem:[%s398 + $0x10] sm:$0xff]
    %v402 = vld [vmem:[%s398 + $0x18] sm:$0xff]
    %v403 = vld [vmem:[%s398 + $0x20] sm:$0xff]
    %v404 = vld [vmem:[%s398 + $0x28] sm:$0xff]
    %v405 = vld [vmem:[%s398 + $0x30] sm:$0xff]
    %v406 = vld [vmem:[%s398 + $0x38] sm:$0xff]
    %v407 = vld [vmem:[%s398 + $0x40] sm:$0xff]
    %v408 = vld [vmem:[%s398 + $0x48] sm:$0xff]
    %v409 = vld [vmem:[%s398 + $0x50] sm:$0xff]
    %v410 = vld [vmem:[%s398 + $0x58] sm:$0xff]
    %v411 = vld [vmem:[%s398 + $0x60] sm:$0xff]
    %v412 = vld [vmem:[%s398 + $0x68] sm:$0xff]
    %v413 = vld [vmem:[%s398 + $0x70] sm:$0xff]
    %v414 = vld [vmem:[%s398 + $0x78] sm:$0xff]
    %v415 = vld [vmem:[%s398 + $0x80] sm:$0xff]
    %v416 = vld [vmem:[%s398 + $0x88] sm:$0xff]
    %v417 = vld [vmem:[%s398 + $0x90] sm:$0xff]
    %v418 = vld [vmem:[%s398 + $0x98] sm:$0xff]
    %v419 = vld [vmem:[%s398 + $0xa0] sm:$0xff]
    %v420 = vld [vmem:[%s398 + $0xa8] sm:$0xff]
    %v421 = vld [vmem:[%s398 + $0xb0] sm:$0xff]
    %v422 = vld [vmem:[%s398 + $0xb8] sm:$0xff]
    %v423 = vld [vmem:[%s398 + $0xc0] sm:$0xff]
    %v424 = vld [vmem:[%s398 + $0xc8] sm:$0xff]
    %v425 = vld [vmem:[%s398 + $0xd0] sm:$0xff]
    %v426 = vld [vmem:[%s398 + $0xd8] sm:$0xff]
    %v427 = vld [vmem:[%s398 + $0xe0] sm:$0xff]
    %v428 = vld [vmem:[%s398 + $0xe8] sm:$0xff]
    %v429 = vld [vmem:[%s398 + $0xf0] sm:$0xff]
    %v430 = vld [vmem:[%s398 + $0xf8] sm:$0xff]
    %v431 = vld [vmem:[%s398 + $0x100] sm:$0xff]
    %v432 = vld [vmem:[%s398 + $0x108] sm:$0xff]
    %v433 = vld [vmem:[%s398 + $0x110] sm:$0xff]
    %v434 = vld [vmem:[%s398 + $0x118] sm:$0xff]
    %v435 = vld [vmem:[%s398 + $0x120] sm:$0xff]
    %v436 = vld [vmem:[%s398 + $0x128] sm:$0xff]
    %v437 = vld [vmem:[%s398 + $0x130] sm:$0xff]
    %v438 = vld [vmem:[%s398 + $0x138] sm:$0xff]
    %v439 = vld [vmem:[%s398 + $0x140] sm:$0xff]
    %v440 = vld [vmem:[%s398 + $0x148] sm:$0xff]
    %v441 = vld [vmem:[%s398 + $0x150] sm:$0xff]
    %v442 = vld [vmem:[%s398 + $0x158] sm:$0xff]
    %v443 = vld [vmem:[%s398 + $0x160] sm:$0xff]
    %v444 = vld [vmem:[%s398 + $0x168] sm:$0xff]
    %v445 = vld [vmem:[%s398 + $0x170] sm:$0xff]
    %v446 = vld [vmem:[%s398 + $0x178] sm:$0xff]
    %vm447 = vcmask 523264
    %v449 = vsel %vm447, %v354, 0
    %v452 = vsel %vm447, %v360, 0
    %v455 = vsel %vm447, %v366, 0
    %v458 = vsel %vm447, %v372, 0
    %v461 = vsel %vm447, %v378, 0
    %v464 = vsel %vm447, %v384, 0
    %v467 = vsel %vm447, %v390, 0
    %v470 = vsel %vm447, %v396, 0
    %472 = vmatprep.subr.mxu0 %v430
    %473 = vmatpush1.msra.mxu0 %v429
    %474 = vmatprep.subr.mxu0 %v428
    %475 = vmatpush1.msra.mxu0 %v427
    %476 = vmatprep.subr.mxu0 %v426
    %477 = vmatpush1.msra.mxu0 %v425
    %478 = vmatprep.subr.mxu0 %v424
    %479 = vmatpush1.msra.mxu0 %v423
    %480 = vmatprep.subr.mxu0 %v422
    %481 = vmatpush1.msra.mxu0 %v421
    %482 = vmatprep.subr.mxu0 %v420
    %483 = vmatpush1.msra.mxu0 %v419
    %484 = vmatprep.subr.mxu0 %v418
    %485 = vmatpush1.msra.mxu0 %v417
    %486 = vmatprep.subr.mxu0 %v416
    %487 = vmatpush1.msra.mxu0 %v415
    %488 = vmatprep.subr.mxu0 %v414
    %489 = vmatpush1.msra.mxu0 %v413
    %490 = vmatprep.subr.mxu0 %v412
    %491 = vmatpush1.msra.mxu0 %v411
    %492 = vmatprep.subr.mxu0 %v410
    %493 = vmatpush1.msra.mxu0 %v409
    %494 = vmatprep.subr.mxu0 %v408
    %495 = vmatpush1.msra.mxu0 %v407
    %496 = vmatprep.subr.mxu0 %v406
    %497 = vmatpush1.msra.mxu0 %v405
    %498 = vmatprep.subr.mxu0 %v404
    %499 = vmatpush1.msra.mxu0 %v403
    %500 = vmatprep.subr.mxu0 %v402
    %501 = vmatpush1.msra.mxu0 %v401
    %502 = vmatprep.subr.mxu0 %v400
    %503 = vmatpush1.msra.mxu0 %v399
    %504 = vmatprep.subr.mxu0 0.0
    %505 = vmatpush2.msra.mxu0 0.0
    %506 = vmatprep.subr.mxu0 0.0
    %507 = vmatpush2.msra.mxu0 0.0
    %508 = vmatprep.subr.mxu0 0.0
    %509 = vmatpush2.msra.mxu0 0.0
    %510 = vmatprep.subr.mxu0 0.0
    %511 = vmatpush2.msra.mxu0 0.0
    %512 = vmatprep.subr.mxu0 0.0
    %513 = vmatpush2.msra.mxu0 0.0
    %514 = vmatprep.subr.mxu0 0.0
    %515 = vmatpush2.msra.mxu0 0.0
    %516 = vmatprep.subr.mxu0 0.0
    %517 = vmatpush2.msra.mxu0 0.0
    %518 = vmatprep.subr.mxu0 0.0
    %519 = vmatpush2.msra.mxu0 0.0
    %520 = vmatprep.subr.mxu0 %v446
    %521 = vmatpush2.msra.mxu0 %v445
    %522 = vmatprep.subr.mxu0 %v444
    %523 = vmatpush2.msra.mxu0 %v443
    %524 = vmatprep.subr.mxu0 %v442
    %525 = vmatpush2.msra.mxu0 %v441
    %526 = vmatprep.subr.mxu0 %v440
    %527 = vmatpush2.msra.mxu0 %v439
    %528 = vmatprep.subr.mxu0 %v438
    %529 = vmatpush2.msra.mxu0 %v437
    %530 = vmatprep.subr.mxu0 %v436
    %531 = vmatpush2.msra.mxu0 %v435
    %532 = vmatprep.subr.mxu0 %v434
    %533 = vmatpush2.msra.mxu0 %v433
    %534 = vmatprep.subr.mxu0 %v432
    %535 = vmatpush2.msra.mxu0 %v431
    %536 = vmatprep.mubr.f32.mxu0 %v449
    %537 = vmatmul.mubr.f32.gmra.mxu0 %v352
    %v538 = vpop.f32.mrf.mxu0
    %v539 = vadd.f32 0.0, %v538
    %v540 = vpop.f32.mrf.mxu0
    %v541 = vadd.f32 0.0, %v540
    %542 = vmatprep.mubr.f32.mxu0 %v452
    %543 = vmatmul.mubr.f32.gmra.mxu0 %v358
    %v544 = vpop.f32.mrf.mxu0
    %v545 = vadd.f32 0.0, %v544
    %v546 = vpop.f32.mrf.mxu0
    %v547 = vadd.f32 0.0, %v546
    %548 = vmatprep.mubr.f32.mxu0 %v455
    %549 = vmatmul.mubr.f32.gmra.mxu0 %v364
    %v550 = vpop.f32.mrf.mxu0
    %v551 = vadd.f32 0.0, %v550
    %v552 = vpop.f32.mrf.mxu0
    %v553 = vadd.f32 0.0, %v552
    %554 = vmatprep.mubr.f32.mxu0 %v458
    %555 = vmatmul.mubr.f32.gmra.mxu0 %v370
    %v556 = vpop.f32.mrf.mxu0
    %v557 = vadd.f32 0.0, %v556
    %v558 = vpop.f32.mrf.mxu0
    %v559 = vadd.f32 0.0, %v558
    %560 = vmatprep.mubr.f32.mxu0 %v461
    %561 = vmatmul.mubr.f32.gmra.mxu0 %v376
    %v562 = vpop.f32.mrf.mxu0
    %v563 = vadd.f32 0.0, %v562
    %v564 = vpop.f32.mrf.mxu0
    %v565 = vadd.f32 0.0, %v564
    %566 = vmatprep.mubr.f32.mxu0 %v464
    %567 = vmatmul.mubr.f32.gmra.mxu0 %v382
    %v568 = vpop.f32.mrf.mxu0
    %v569 = vadd.f32 0.0, %v568
    %v570 = vpop.f32.mrf.mxu0
    %v571 = vadd.f32 0.0, %v570
    %572 = vmatprep.mubr.f32.mxu0 %v467
    %573 = vmatmul.mubr.f32.gmra.mxu0 %v388
    %v574 = vpop.f32.mrf.mxu0
    %v575 = vadd.f32 0.0, %v574
    %v576 = vpop.f32.mrf.mxu0
    %v577 = vadd.f32 0.0, %v576
    %578 = vmatprep.mubr.f32.mxu0 %v470
    %579 = vmatmul.mubr.f32.gmra.mxu0 %v394
    %v580 = vpop.f32.mrf.mxu0
    %v581 = vadd.f32 0.0, %v580
    %v582 = vpop.f32.mrf.mxu0
    %v583 = vadd.f32 0.0, %v582
    %584 = vdwg.mxu0
    %v586 = vsel %vm447, %v184, 0
    %v589 = vsel %vm447, %v190, 0
    %v592 = vsel %vm447, %v196, 0
    %v595 = vsel %vm447, %v202, 0
    %v598 = vsel %vm447, %v208, 0
    %v601 = vsel %vm447, %v214, 0
    %v604 = vsel %vm447, %v220, 0
    %v607 = vsel %vm447, %v226, 0
    %609 = vmatprep.subr.mxu0 %v259
    %610 = vmatpush1.msra.mxu0 %v258
    %611 = vmatprep.subr.mxu0 %v257
    %612 = vmatpush1.msra.mxu0 %v256
    %613 = vmatprep.subr.mxu0 %v255
    %614 = vmatpush1.msra.mxu0 %v254
    %615 = vmatprep.subr.mxu0 %v253
    %616 = vmatpush1.msra.mxu0 %v252
    %617 = vmatprep.subr.mxu0 %v251
    %618 = vmatpush1.msra.mxu0 %v250
    %619 = vmatprep.subr.mxu0 %v249
    %620 = vmatpush1.msra.mxu0 %v248
    %621 = vmatprep.subr.mxu0 %v247
    %622 = vmatpush1.msra.mxu0 %v246
    %623 = vmatprep.subr.mxu0 %v245
    %624 = vmatpush1.msra.mxu0 %v244
    %625 = vmatprep.subr.mxu0 %v243
    %626 = vmatpush1.msra.mxu0 %v242
    %627 = vmatprep.subr.mxu0 %v241
    %628 = vmatpush1.msra.mxu0 %v240
    %629 = vmatprep.subr.mxu0 %v239
    %630 = vmatpush1.msra.mxu0 %v238
    %631 = vmatprep.subr.mxu0 %v237
    %632 = vmatpush1.msra.mxu0 %v236
    %633 = vmatprep.subr.mxu0 %v235
    %634 = vmatpush1.msra.mxu0 %v234
    %635 = vmatprep.subr.mxu0 %v233
    %636 = vmatpush1.msra.mxu0 %v232
    %637 = vmatprep.subr.mxu0 %v231
    %638 = vmatpush1.msra.mxu0 %v230
    %639 = vmatprep.subr.mxu0 %v229
    %640 = vmatpush1.msra.mxu0 %v228
    %641 = vmatprep.subr.mxu0 0.0
    %642 = vmatpush2.msra.mxu0 0.0
    %643 = vmatprep.subr.mxu0 0.0
    %644 = vmatpush2.msra.mxu0 0.0
    %645 = vmatprep.subr.mxu0 0.0
    %646 = vmatpush2.msra.mxu0 0.0
    %647 = vmatprep.subr.mxu0 0.0
    %648 = vmatpush2.msra.mxu0 0.0
    %649 = vmatprep.subr.mxu0 0.0
    %650 = vmatpush2.msra.mxu0 0.0
    %651 = vmatprep.subr.mxu0 0.0
    %652 = vmatpush2.msra.mxu0 0.0
    %653 = vmatprep.subr.mxu0 0.0
    %654 = vmatpush2.msra.mxu0 0.0
    %655 = vmatprep.subr.mxu0 0.0
    %656 = vmatpush2.msra.mxu0 0.0
    %657 = vmatprep.subr.mxu0 %v275
    %658 = vmatpush2.msra.mxu0 %v274
    %659 = vmatprep.subr.mxu0 %v273
    %660 = vmatpush2.msra.mxu0 %v272
    %661 = vmatprep.subr.mxu0 %v271
    %662 = vmatpush2.msra.mxu0 %v270
    %663 = vmatprep.subr.mxu0 %v269
    %664 = vmatpush2.msra.mxu0 %v268
    %665 = vmatprep.subr.mxu0 %v267
    %666 = vmatpush2.msra.mxu0 %v266
    %667 = vmatprep.subr.mxu0 %v265
    %668 = vmatpush2.msra.mxu0 %v264
    %669 = vmatprep.subr.mxu0 %v263
    %670 = vmatpush2.msra.mxu0 %v262
    %671 = vmatprep.subr.mxu0 %v261
    %672 = vmatpush2.msra.mxu0 %v260
    %673 = vmatprep.mubr.f32.mxu0 %v586
    %674 = vmatmul.mubr.f32.gmra.mxu0 %v182
    %v675 = vpop.f32.mrf.mxu0
    %v676 = vadd.f32 %v539, %v675
    %v677 = vpop.f32.mrf.mxu0
    %v678 = vadd.f32 %v541, %v677
    %679 = vmatprep.mubr.f32.mxu0 %v589
    %680 = vmatmul.mubr.f32.gmra.mxu0 %v188
    %v681 = vpop.f32.mrf.mxu0
    %v682 = vadd.f32 %v545, %v681
    %v683 = vpop.f32.mrf.mxu0
    %v684 = vadd.f32 %v547, %v683
    %685 = vmatprep.mubr.f32.mxu0 %v592
    %686 = vmatmul.mubr.f32.gmra.mxu0 %v194
    %v687 = vpop.f32.mrf.mxu0
    %v688 = vadd.f32 %v551, %v687
    %v689 = vpop.f32.mrf.mxu0
    %v690 = vadd.f32 %v553, %v689
    %691 = vmatprep.mubr.f32.mxu0 %v595
    %692 = vmatmul.mubr.f32.gmra.mxu0 %v200
    %v693 = vpop.f32.mrf.mxu0
    %v694 = vadd.f32 %v557, %v693
    %v695 = vpop.f32.mrf.mxu0
    %v696 = vadd.f32 %v559, %v695
    %697 = vmatprep.mubr.f32.mxu0 %v598
    %698 = vmatmul.mubr.f32.gmra.mxu0 %v206
    %v699 = vpop.f32.mrf.mxu0
    %v700 = vadd.f32 %v563, %v699
    %v701 = vpop.f32.mrf.mxu0
    %v702 = vadd.f32 %v565, %v701
    %703 = vmatprep.mubr.f32.mxu0 %v601
    %704 = vmatmul.mubr.f32.gmra.mxu0 %v212
    %v705 = vpop.f32.mrf.mxu0
    %v706 = vadd.f32 %v569, %v705
    %v707 = vpop.f32.mrf.mxu0
    %v708 = vadd.f32 %v571, %v707
    %709 = vmatprep.mubr.f32.mxu0 %v604
    %710 = vmatmul.mubr.f32.gmra.mxu0 %v218
    %v711 = vpop.f32.mrf.mxu0
    %v712 = vadd.f32 %v575, %v711
    %v713 = vpop.f32.mrf.mxu0
    %v714 = vadd.f32 %v577, %v713
    %715 = vmatprep.mubr.f32.mxu0 %v607
    %716 = vmatmul.mubr.f32.gmra.mxu0 %v224
    %v717 = vpop.f32.mrf.mxu0
    %v718 = vadd.f32 %v581, %v717
    %v719 = vpop.f32.mrf.mxu0
    %v720 = vadd.f32 %v583, %v719
    %721 = vdwg.mxu0
    %s722 = scalar_lea.vmem %s1, 128
    %v723 = vld [vmem:[%s722] sm:$0xff]
    %v724 = vld [vmem:[%s722 + $0x8] sm:$0xff]
    %v725 = vld [vmem:[%s722 + $0x10] sm:$0xff]
    %v726 = vld [vmem:[%s722 + $0x18] sm:$0xff]
    %v727 = vld [vmem:[%s722 + $0x20] sm:$0xff]
    %v728 = vld [vmem:[%s722 + $0x28] sm:$0xff]
    %v729 = vld [vmem:[%s722 + $0x30] sm:$0xff]
    %v730 = vld [vmem:[%s722 + $0x38] sm:$0xff]
    %731 = vmatprep.subr.mxu0 %v106
    %732 = vmatpush1.msra.mxu0 %v105
    %733 = vmatprep.subr.mxu0 %v104
    %734 = vmatpush1.msra.mxu0 %v103
    %735 = vmatprep.subr.mxu0 %v102
    %736 = vmatpush1.msra.mxu0 %v101
    %737 = vmatprep.subr.mxu0 %v100
    %738 = vmatpush1.msra.mxu0 %v99
    %739 = vmatprep.subr.mxu0 %v98
    %740 = vmatpush1.msra.mxu0 %v97
    %741 = vmatprep.subr.mxu0 %v96
    %742 = vmatpush1.msra.mxu0 %v95
    %743 = vmatprep.subr.mxu0 %v94
    %744 = vmatpush1.msra.mxu0 %v93
    %745 = vmatprep.subr.mxu0 %v92
    %746 = vmatpush1.msra.mxu0 %v91
    %747 = vmatprep.subr.mxu0 %v90
    %748 = vmatpush1.msra.mxu0 %v89
    %749 = vmatprep.subr.mxu0 %v88
    %750 = vmatpush1.msra.mxu0 %v87
    %751 = vmatprep.subr.mxu0 %v86
    %752 = vmatpush1.msra.mxu0 %v85
    %753 = vmatprep.subr.mxu0 %v84
    %754 = vmatpush1.msra.mxu0 %v83
    %755 = vmatprep.subr.mxu0 %v82
    %756 = vmatpush1.msra.mxu0 %v81
    %757 = vmatprep.subr.mxu0 %v80
    %758 = vmatpush1.msra.mxu0 %v79
    %759 = vmatprep.subr.mxu0 %v78
    %760 = vmatpush1.msra.mxu0 %v77
    %761 = vmatprep.subr.mxu0 %v76
    %762 = vmatpush1.msra.mxu0 %v75
    %763 = vmatprep.subr.mxu0 0.0
    %764 = vmatpush2.msra.mxu0 0.0
    %765 = vmatprep.subr.mxu0 0.0
    %766 = vmatpush2.msra.mxu0 0.0
    %767 = vmatprep.subr.mxu0 0.0
    %768 = vmatpush2.msra.mxu0 0.0
    %769 = vmatprep.subr.mxu0 0.0
    %770 = vmatpush2.msra.mxu0 0.0
    %771 = vmatprep.subr.mxu0 0.0
    %772 = vmatpush2.msra.mxu0 0.0
    %773 = vmatprep.subr.mxu0 0.0
    %774 = vmatpush2.msra.mxu0 0.0
    %775 = vmatprep.subr.mxu0 0.0
    %776 = vmatpush2.msra.mxu0 0.0
    %777 = vmatprep.subr.mxu0 0.0
    %778 = vmatpush2.msra.mxu0 0.0
    %779 = vmatprep.subr.mxu0 0.0
    %780 = vmatpush2.msra.mxu0 0.0
    %781 = vmatprep.subr.mxu0 0.0
    %782 = vmatpush2.msra.mxu0 0.0
    %783 = vmatprep.subr.mxu0 0.0
    %784 = vmatpush2.msra.mxu0 0.0
    %785 = vmatprep.subr.mxu0 0.0
    %786 = vmatpush2.msra.mxu0 0.0
    %787 = vmatprep.subr.mxu0 0.0
    %788 = vmatpush2.msra.mxu0 0.0
    %789 = vmatprep.subr.mxu0 0.0
    %790 = vmatpush2.msra.mxu0 0.0
    %791 = vmatprep.subr.mxu0 0.0
    %792 = vmatpush2.msra.mxu0 0.0
    %793 = vmatprep.subr.mxu0 0.0
    %794 = vmatpush2.msra.mxu0 0.0
    %795 = vmatprep.mubr.f32.mxu0 0.0
    %796 = vmatmul.mubr.f32.gmra.mxu0 %v723
    %v797 = vpop.f32.mrf.mxu0
    %v798 = vadd.f32 0.0, %v797
    %v799 = vpop.f32.mrf.mxu0
    %v800 = vadd.f32 0.0, %v799
    %801 = vmatprep.mubr.f32.mxu0 0.0
    %802 = vmatmul.mubr.f32.gmra.mxu0 %v724
    %v803 = vpop.f32.mrf.mxu0
    %v804 = vadd.f32 0.0, %v803
    %v805 = vpop.f32.mrf.mxu0
    %v806 = vadd.f32 0.0, %v805
    %807 = vmatprep.mubr.f32.mxu0 0.0
    %808 = vmatmul.mubr.f32.gmra.mxu0 %v725
    %v809 = vpop.f32.mrf.mxu0
    %v810 = vadd.f32 0.0, %v809
    %v811 = vpop.f32.mrf.mxu0
    %v812 = vadd.f32 0.0, %v811
    %813 = vmatprep.mubr.f32.mxu0 0.0
    %814 = vmatmul.mubr.f32.gmra.mxu0 %v726
    %v815 = vpop.f32.mrf.mxu0
    %v816 = vadd.f32 0.0, %v815
    %v817 = vpop.f32.mrf.mxu0
    %v818 = vadd.f32 0.0, %v817
    %819 = vmatprep.mubr.f32.mxu0 0.0
    %820 = vmatmul.mubr.f32.gmra.mxu0 %v727
    %v821 = vpop.f32.mrf.mxu0
    %v822 = vadd.f32 0.0, %v821
    %v823 = vpop.f32.mrf.mxu0
    %v824 = vadd.f32 0.0, %v823
    %825 = vmatprep.mubr.f32.mxu0 0.0
    %826 = vmatmul.mubr.f32.gmra.mxu0 %v728
    %v827 = vpop.f32.mrf.mxu0
    %v828 = vadd.f32 0.0, %v827
    %v829 = vpop.f32.mrf.mxu0
    %v830 = vadd.f32 0.0, %v829
    %831 = vmatprep.mubr.f32.mxu0 0.0
    %832 = vmatmul.mubr.f32.gmra.mxu0 %v729
    %v833 = vpop.f32.mrf.mxu0
    %v834 = vadd.f32 0.0, %v833
    %v835 = vpop.f32.mrf.mxu0
    %v836 = vadd.f32 0.0, %v835
    %837 = vmatprep.mubr.f32.mxu0 0.0
    %838 = vmatmul.mubr.f32.gmra.mxu0 %v730
    %v839 = vpop.f32.mrf.mxu0
    %v840 = vadd.f32 0.0, %v839
    %v841 = vpop.f32.mrf.mxu0
    %v842 = vadd.f32 0.0, %v841
    %843 = vdwg.mxu0
    %s844 = scalar_lea.vmem %s2, 768
    %v845 = vld [vmem:[%s844] sm:$0xff]
    %v846 = vld [vmem:[%s844 + $0x8] sm:$0xff]
    %v847 = vld [vmem:[%s844 + $0x10] sm:$0xff]
    %v848 = vld [vmem:[%s844 + $0x18] sm:$0xff]
    %v849 = vld [vmem:[%s844 + $0x20] sm:$0xff]
    %v850 = vld [vmem:[%s844 + $0x28] sm:$0xff]
    %v851 = vld [vmem:[%s844 + $0x30] sm:$0xff]
    %v852 = vld [vmem:[%s844 + $0x38] sm:$0xff]
    %v853 = vld [vmem:[%s844 + $0x40] sm:$0xff]
    %v854 = vld [vmem:[%s844 + $0x48] sm:$0xff]
    %v855 = vld [vmem:[%s844 + $0x50] sm:$0xff]
    %v856 = vld [vmem:[%s844 + $0x58] sm:$0xff]
    %v857 = vld [vmem:[%s844 + $0x60] sm:$0xff]
    %v858 = vld [vmem:[%s844 + $0x68] sm:$0xff]
    %v859 = vld [vmem:[%s844 + $0x70] sm:$0xff]
    %v860 = vld [vmem:[%s844 + $0x78] sm:$0xff]
    %v861 = vld [vmem:[%s844 + $0x80] sm:$0xff]
    %v862 = vld [vmem:[%s844 + $0x88] sm:$0xff]
    %v863 = vld [vmem:[%s844 + $0x90] sm:$0xff]
    %v864 = vld [vmem:[%s844 + $0x98] sm:$0xff]
    %v865 = vld [vmem:[%s844 + $0xa0] sm:$0xff]
    %v866 = vld [vmem:[%s844 + $0xa8] sm:$0xff]
    %v867 = vld [vmem:[%s844 + $0xb0] sm:$0xff]
    %v868 = vld [vmem:[%s844 + $0xb8] sm:$0xff]
    %v869 = vld [vmem:[%s844 + $0xc0] sm:$0xff]
    %v870 = vld [vmem:[%s844 + $0xc8] sm:$0xff]
    %v871 = vld [vmem:[%s844 + $0xd0] sm:$0xff]
    %v872 = vld [vmem:[%s844 + $0xd8] sm:$0xff]
    %v873 = vld [vmem:[%s844 + $0xe0] sm:$0xff]
    %v874 = vld [vmem:[%s844 + $0xe8] sm:$0xff]
    %v875 = vld [vmem:[%s844 + $0xf0] sm:$0xff]
    %v876 = vld [vmem:[%s844 + $0xf8] sm:$0xff]
    %v877 = vld [vmem:[%s844 + $0x100] sm:$0xff]
    %v878 = vld [vmem:[%s844 + $0x108] sm:$0xff]
    %v879 = vld [vmem:[%s844 + $0x110] sm:$0xff]
    %v880 = vld [vmem:[%s844 + $0x118] sm:$0xff]
    %v881 = vld [vmem:[%s844 + $0x120] sm:$0xff]
    %v882 = vld [vmem:[%s844 + $0x128] sm:$0xff]
    %v883 = vld [vmem:[%s844 + $0x130] sm:$0xff]
    %v884 = vld [vmem:[%s844 + $0x138] sm:$0xff]
    %v885 = vld [vmem:[%s844 + $0x140] sm:$0xff]
    %v886 = vld [vmem:[%s844 + $0x148] sm:$0xff]
    %v887 = vld [vmem:[%s844 + $0x150] sm:$0xff]
    %v888 = vld [vmem:[%s844 + $0x158] sm:$0xff]
    %v889 = vld [vmem:[%s844 + $0x160] sm:$0xff]
    %v890 = vld [vmem:[%s844 + $0x168] sm:$0xff]
    %v891 = vld [vmem:[%s844 + $0x170] sm:$0xff]
    %v892 = vld [vmem:[%s844 + $0x178] sm:$0xff]
    %v894 = vsel %vm447, %v800, 0
    %v897 = vsel %vm447, %v806, 0
    %v900 = vsel %vm447, %v812, 0
    %v903 = vsel %vm447, %v818, 0
    %v906 = vsel %vm447, %v824, 0
    %v909 = vsel %vm447, %v830, 0
    %v912 = vsel %vm447, %v836, 0
    %v915 = vsel %vm447, %v842, 0
    %917 = vmatprep.subr.mxu0 %v876
    %918 = vmatpush1.msra.mxu0 %v875
    %919 = vmatprep.subr.mxu0 %v874
    %920 = vmatpush1.msra.mxu0 %v873
    %921 = vmatprep.subr.mxu0 %v872
    %922 = vmatpush1.msra.mxu0 %v871
    %923 = vmatprep.subr.mxu0 %v870
    %924 = vmatpush1.msra.mxu0 %v869
    %925 = vmatprep.subr.mxu0 %v868
    %926 = vmatpush1.msra.mxu0 %v867
    %927 = vmatprep.subr.mxu0 %v866
    %928 = vmatpush1.msra.mxu0 %v865
    %929 = vmatprep.subr.mxu0 %v864
    %930 = vmatpush1.msra.mxu0 %v863
    %931 = vmatprep.subr.mxu0 %v862
    %932 = vmatpush1.msra.mxu0 %v861
    %933 = vmatprep.subr.mxu0 %v860
    %934 = vmatpush1.msra.mxu0 %v859
    %935 = vmatprep.subr.mxu0 %v858
    %936 = vmatpush1.msra.mxu0 %v857
    %937 = vmatprep.subr.mxu0 %v856
    %938 = vmatpush1.msra.mxu0 %v855
    %939 = vmatprep.subr.mxu0 %v854
    %940 = vmatpush1.msra.mxu0 %v853
    %941 = vmatprep.subr.mxu0 %v852
    %942 = vmatpush1.msra.mxu0 %v851
    %943 = vmatprep.subr.mxu0 %v850
    %944 = vmatpush1.msra.mxu0 %v849
    %945 = vmatprep.subr.mxu0 %v848
    %946 = vmatpush1.msra.mxu0 %v847
    %947 = vmatprep.subr.mxu0 %v846
    %948 = vmatpush1.msra.mxu0 %v845
    %949 = vmatprep.subr.mxu0 0.0
    %950 = vmatpush2.msra.mxu0 0.0
    %951 = vmatprep.subr.mxu0 0.0
    %952 = vmatpush2.msra.mxu0 0.0
    %953 = vmatprep.subr.mxu0 0.0
    %954 = vmatpush2.msra.mxu0 0.0
    %955 = vmatprep.subr.mxu0 0.0
    %956 = vmatpush2.msra.mxu0 0.0
    %957 = vmatprep.subr.mxu0 0.0
    %958 = vmatpush2.msra.mxu0 0.0
    %959 = vmatprep.subr.mxu0 0.0
    %960 = vmatpush2.msra.mxu0 0.0
    %961 = vmatprep.subr.mxu0 0.0
    %962 = vmatpush2.msra.mxu0 0.0
    %963 = vmatprep.subr.mxu0 0.0
    %964 = vmatpush2.msra.mxu0 0.0
    %965 = vmatprep.subr.mxu0 %v892
    %966 = vmatpush2.msra.mxu0 %v891
    %967 = vmatprep.subr.mxu0 %v890
    %968 = vmatpush2.msra.mxu0 %v889
    %969 = vmatprep.subr.mxu0 %v888
    %970 = vmatpush2.msra.mxu0 %v887
    %971 = vmatprep.subr.mxu0 %v886
    %972 = vmatpush2.msra.mxu0 %v885
    %973 = vmatprep.subr.mxu0 %v884
    %974 = vmatpush2.msra.mxu0 %v883
    %975 = vmatprep.subr.mxu0 %v882
    %976 = vmatpush2.msra.mxu0 %v881
    %977 = vmatprep.subr.mxu0 %v880
    %978 = vmatpush2.msra.mxu0 %v879
    %979 = vmatprep.subr.mxu0 %v878
    %980 = vmatpush2.msra.mxu0 %v877
    %981 = vmatprep.mubr.f32.mxu0 %v894
    %982 = vmatmul.mubr.f32.gmra.mxu0 %v798
    %v983 = vpop.f32.mrf.mxu0
    %v984 = vadd.f32 0.0, %v983
    %v985 = vpop.f32.mrf.mxu0
    %v986 = vadd.f32 0.0, %v985
    %987 = vmatprep.mubr.f32.mxu0 %v897
    %988 = vmatmul.mubr.f32.gmra.mxu0 %v804
    %v989 = vpop.f32.mrf.mxu0
    %v990 = vadd.f32 0.0, %v989
    %v991 = vpop.f32.mrf.mxu0
    %v992 = vadd.f32 0.0, %v991
    %993 = vmatprep.mubr.f32.mxu0 %v900
    %994 = vmatmul.mubr.f32.gmra.mxu0 %v810
    %v995 = vpop.f32.mrf.mxu0
    %v996 = vadd.f32 0.0, %v995
    %v997 = vpop.f32.mrf.mxu0
    %v998 = vadd.f32 0.0, %v997
    %999 = vmatprep.mubr.f32.mxu0 %v903
    %1000 = vmatmul.mubr.f32.gmra.mxu0 %v816
    %v1001 = vpop.f32.mrf.mxu0
    %v1002 = vadd.f32 0.0, %v1001
    %v1003 = vpop.f32.mrf.mxu0
    %v1004 = vadd.f32 0.0, %v1003
    %1005 = vmatprep.mubr.f32.mxu0 %v906
    %1006 = vmatmul.mubr.f32.gmra.mxu0 %v822
    %v1007 = vpop.f32.mrf.mxu0
    %v1008 = vadd.f32 0.0, %v1007
    %v1009 = vpop.f32.mrf.mxu0
    %v1010 = vadd.f32 0.0, %v1009
    %1011 = vmatprep.mubr.f32.mxu0 %v909
    %1012 = vmatmul.mubr.f32.gmra.mxu0 %v828
    %v1013 = vpop.f32.mrf.mxu0
    %v1014 = vadd.f32 0.0, %v1013
    %v1015 = vpop.f32.mrf.mxu0
    %v1016 = vadd.f32 0.0, %v1015
    %1017 = vmatprep.mubr.f32.mxu0 %v912
    %1018 = vmatmul.mubr.f32.gmra.mxu0 %v834
    %v1019 = vpop.f32.mrf.mxu0
    %v1020 = vadd.f32 0.0, %v1019
    %v1021 = vpop.f32.mrf.mxu0
    %v1022 = vadd.f32 0.0, %v1021
    %1023 = vmatprep.mubr.f32.mxu0 %v915
    %1024 = vmatmul.mubr.f32.gmra.mxu0 %v840
    %v1025 = vpop.f32.mrf.mxu0
    %v1026 = vadd.f32 0.0, %v1025
    %v1027 = vpop.f32.mrf.mxu0
    %v1028 = vadd.f32 0.0, %v1027
    %1029 = vdwg.mxu0
    %v1030 = vadd.f32 %v676, %v984
    %v1031 = vadd.f32 %v678, %v986
    %v1032 = vadd.f32 %v682, %v990
    %v1033 = vadd.f32 %v684, %v992
    %v1034 = vadd.f32 %v688, %v996
    %v1035 = vadd.f32 %v690, %v998
    %v1036 = vadd.f32 %v694, %v1002
    %v1037 = vadd.f32 %v696, %v1004
    %v1038 = vadd.f32 %v700, %v1008
    %v1039 = vadd.f32 %v702, %v1010
    %v1040 = vadd.f32 %v706, %v1014
    %v1041 = vadd.f32 %v708, %v1016
    %v1042 = vadd.f32 %v712, %v1020
    %v1043 = vadd.f32 %v714, %v1022
    %v1044 = vadd.f32 %v718, %v1026
    %v1045 = vadd.f32 %v720, %v1028
    %s1046 = scalar_lea.vmem %s1, 192
    %v1047 = vld [vmem:[%s1046] sm:$0xff]
    %v1048 = vld [vmem:[%s1046 + $0x8] sm:$0xff]
    %v1049 = vld [vmem:[%s1046 + $0x10] sm:$0xff]
    %v1050 = vld [vmem:[%s1046 + $0x18] sm:$0xff]
    %v1051 = vld [vmem:[%s1046 + $0x20] sm:$0xff]
    %v1052 = vld [vmem:[%s1046 + $0x28] sm:$0xff]
    %v1053 = vld [vmem:[%s1046 + $0x30] sm:$0xff]
    %v1054 = vld [vmem:[%s1046 + $0x38] sm:$0xff]
    %1055 = vmatprep.subr.mxu0 %v106
    %1056 = vmatpush1.msra.mxu0 %v105
    %1057 = vmatprep.subr.mxu0 %v104
    %1058 = vmatpush1.msra.mxu0 %v103
    %1059 = vmatprep.subr.mxu0 %v102
    %1060 = vmatpush1.msra.mxu0 %v101
    %1061 = vmatprep.subr.mxu0 %v100
    %1062 = vmatpush1.msra.mxu0 %v99
    %1063 = vmatprep.subr.mxu0 %v98
    %1064 = vmatpush1.msra.mxu0 %v97
    %1065 = vmatprep.subr.mxu0 %v96
    %1066 = vmatpush1.msra.mxu0 %v95
    %1067 = vmatprep.subr.mxu0 %v94
    %1068 = vmatpush1.msra.mxu0 %v93
    %1069 = vmatprep.subr.mxu0 %v92
    %1070 = vmatpush1.msra.mxu0 %v91
    %1071 = vmatprep.subr.mxu0 %v90
    %1072 = vmatpush1.msra.mxu0 %v89
    %1073 = vmatprep.subr.mxu0 %v88
    %1074 = vmatpush1.msra.mxu0 %v87
    %1075 = vmatprep.subr.mxu0 %v86
    %1076 = vmatpush1.msra.mxu0 %v85
    %1077 = vmatprep.subr.mxu0 %v84
    %1078 = vmatpush1.msra.mxu0 %v83
    %1079 = vmatprep.subr.mxu0 %v82
    %1080 = vmatpush1.msra.mxu0 %v81
    %1081 = vmatprep.subr.mxu0 %v80
    %1082 = vmatpush1.msra.mxu0 %v79
    %1083 = vmatprep.subr.mxu0 %v78
    %1084 = vmatpush1.msra.mxu0 %v77
    %1085 = vmatprep.subr.mxu0 %v76
    %1086 = vmatpush1.msra.mxu0 %v75
    %1087 = vmatprep.subr.mxu0 0.0
    %1088 = vmatpush2.msra.mxu0 0.0
    %1089 = vmatprep.subr.mxu0 0.0
    %1090 = vmatpush2.msra.mxu0 0.0
    %1091 = vmatprep.subr.mxu0 0.0
    %1092 = vmatpush2.msra.mxu0 0.0
    %1093 = vmatprep.subr.mxu0 0.0
    %1094 = vmatpush2.msra.mxu0 0.0
    %1095 = vmatprep.subr.mxu0 0.0
    %1096 = vmatpush2.msra.mxu0 0.0
    %1097 = vmatprep.subr.mxu0 0.0
    %1098 = vmatpush2.msra.mxu0 0.0
    %1099 = vmatprep.subr.mxu0 0.0
    %1100 = vmatpush2.msra.mxu0 0.0
    %1101 = vmatprep.subr.mxu0 0.0
    %1102 = vmatpush2.msra.mxu0 0.0
    %1103 = vmatprep.subr.mxu0 0.0
    %1104 = vmatpush2.msra.mxu0 0.0
    %1105 = vmatprep.subr.mxu0 0.0
    %1106 = vmatpush2.msra.mxu0 0.0
    %1107 = vmatprep.subr.mxu0 0.0
    %1108 = vmatpush2.msra.mxu0 0.0
    %1109 = vmatprep.subr.mxu0 0.0
    %1110 = vmatpush2.msra.mxu0 0.0
    %1111 = vmatprep.subr.mxu0 0.0
    %1112 = vmatpush2.msra.mxu0 0.0
    %1113 = vmatprep.subr.mxu0 0.0
    %1114 = vmatpush2.msra.mxu0 0.0
    %1115 = vmatprep.subr.mxu0 0.0
    %1116 = vmatpush2.msra.mxu0 0.0
    %1117 = vmatprep.subr.mxu0 0.0
    %1118 = vmatpush2.msra.mxu0 0.0
    %1119 = vmatprep.mubr.f32.mxu0 0.0
    %1120 = vmatmul.mubr.f32.gmra.mxu0 %v1047
    %v1121 = vpop.f32.mrf.mxu0
    %v1122 = vadd.f32 0.0, %v1121
    %v1123 = vpop.f32.mrf.mxu0
    %v1124 = vadd.f32 0.0, %v1123
    %1125 = vmatprep.mubr.f32.mxu0 0.0
    %1126 = vmatmul.mubr.f32.gmra.mxu0 %v1048
    %v1127 = vpop.f32.mrf.mxu0
    %v1128 = vadd.f32 0.0, %v1127
    %v1129 = vpop.f32.mrf.mxu0
    %v1130 = vadd.f32 0.0, %v1129
    %1131 = vmatprep.mubr.f32.mxu0 0.0
    %1132 = vmatmul.mubr.f32.gmra.mxu0 %v1049
    %v1133 = vpop.f32.mrf.mxu0
    %v1134 = vadd.f32 0.0, %v1133
    %v1135 = vpop.f32.mrf.mxu0
    %v1136 = vadd.f32 0.0, %v1135
    %1137 = vmatprep.mubr.f32.mxu0 0.0
    %1138 = vmatmul.mubr.f32.gmra.mxu0 %v1050
    %v1139 = vpop.f32.mrf.mxu0
    %v1140 = vadd.f32 0.0, %v1139
    %v1141 = vpop.f32.mrf.mxu0
    %v1142 = vadd.f32 0.0, %v1141
    %1143 = vmatprep.mubr.f32.mxu0 0.0
    %1144 = vmatmul.mubr.f32.gmra.mxu0 %v1051
    %v1145 = vpop.f32.mrf.mxu0
    %v1146 = vadd.f32 0.0, %v1145
    %v1147 = vpop.f32.mrf.mxu0
    %v1148 = vadd.f32 0.0, %v1147
    %1149 = vmatprep.mubr.f32.mxu0 0.0
    %1150 = vmatmul.mubr.f32.gmra.mxu0 %v1052
    %v1151 = vpop.f32.mrf.mxu0
    %v1152 = vadd.f32 0.0, %v1151
    %v1153 = vpop.f32.mrf.mxu0
    %v1154 = vadd.f32 0.0, %v1153
    %1155 = vmatprep.mubr.f32.mxu0 0.0
    %1156 = vmatmul.mubr.f32.gmra.mxu0 %v1053
    %v1157 = vpop.f32.mrf.mxu0
    %v1158 = vadd.f32 0.0, %v1157
    %v1159 = vpop.f32.mrf.mxu0
    %v1160 = vadd.f32 0.0, %v1159
    %1161 = vmatprep.mubr.f32.mxu0 0.0
    %1162 = vmatmul.mubr.f32.gmra.mxu0 %v1054
    %v1163 = vpop.f32.mrf.mxu0
    %v1164 = vadd.f32 0.0, %v1163
    %v1165 = vpop.f32.mrf.mxu0
    %v1166 = vadd.f32 0.0, %v1165
    %1167 = vdwg.mxu0
    %s1168 = scalar_lea.vmem %s2, 1152
    %v1169 = vld [vmem:[%s1168] sm:$0xff]
    %v1170 = vld [vmem:[%s1168 + $0x8] sm:$0xff]
    %v1171 = vld [vmem:[%s1168 + $0x10] sm:$0xff]
    %v1172 = vld [vmem:[%s1168 + $0x18] sm:$0xff]
    %v1173 = vld [vmem:[%s1168 + $0x20] sm:$0xff]
    %v1174 = vld [vmem:[%s1168 + $0x28] sm:$0xff]
    %v1175 = vld [vmem:[%s1168 + $0x30] sm:$0xff]
    %v1176 = vld [vmem:[%s1168 + $0x38] sm:$0xff]
    %v1177 = vld [vmem:[%s1168 + $0x40] sm:$0xff]
    %v1178 = vld [vmem:[%s1168 + $0x48] sm:$0xff]
    %v1179 = vld [vmem:[%s1168 + $0x50] sm:$0xff]
    %v1180 = vld [vmem:[%s1168 + $0x58] sm:$0xff]
    %v1181 = vld [vmem:[%s1168 + $0x60] sm:$0xff]
    %v1182 = vld [vmem:[%s1168 + $0x68] sm:$0xff]
    %v1183 = vld [vmem:[%s1168 + $0x70] sm:$0xff]
    %v1184 = vld [vmem:[%s1168 + $0x78] sm:$0xff]
    %v1185 = vld [vmem:[%s1168 + $0x80] sm:$0xff]
    %v1186 = vld [vmem:[%s1168 + $0x88] sm:$0xff]
    %v1187 = vld [vmem:[%s1168 + $0x90] sm:$0xff]
    %v1188 = vld [vmem:[%s1168 + $0x98] sm:$0xff]
    %v1189 = vld [vmem:[%s1168 + $0xa0] sm:$0xff]
    %v1190 = vld [vmem:[%s1168 + $0xa8] sm:$0xff]
    %v1191 = vld [vmem:[%s1168 + $0xb0] sm:$0xff]
    %v1192 = vld [vmem:[%s1168 + $0xb8] sm:$0xff]
    %v1193 = vld [vmem:[%s1168 + $0xc0] sm:$0xff]
    %v1194 = vld [vmem:[%s1168 + $0xc8] sm:$0xff]
    %v1195 = vld [vmem:[%s1168 + $0xd0] sm:$0xff]
    %v1196 = vld [vmem:[%s1168 + $0xd8] sm:$0xff]
    %v1197 = vld [vmem:[%s1168 + $0xe0] sm:$0xff]
    %v1198 = vld [vmem:[%s1168 + $0xe8] sm:$0xff]
    %v1199 = vld [vmem:[%s1168 + $0xf0] sm:$0xff]
    %v1200 = vld [vmem:[%s1168 + $0xf8] sm:$0xff]
    %v1201 = vld [vmem:[%s1168 + $0x100] sm:$0xff]
    %v1202 = vld [vmem:[%s1168 + $0x108] sm:$0xff]
    %v1203 = vld [vmem:[%s1168 + $0x110] sm:$0xff]
    %v1204 = vld [vmem:[%s1168 + $0x118] sm:$0xff]
    %v1205 = vld [vmem:[%s1168 + $0x120] sm:$0xff]
    %v1206 = vld [vmem:[%s1168 + $0x128] sm:$0xff]
    %v1207 = vld [vmem:[%s1168 + $0x130] sm:$0xff]
    %v1208 = vld [vmem:[%s1168 + $0x138] sm:$0xff]
    %v1209 = vld [vmem:[%s1168 + $0x140] sm:$0xff]
    %v1210 = vld [vmem:[%s1168 + $0x148] sm:$0xff]
    %v1211 = vld [vmem:[%s1168 + $0x150] sm:$0xff]
    %v1212 = vld [vmem:[%s1168 + $0x158] sm:$0xff]
    %v1213 = vld [vmem:[%s1168 + $0x160] sm:$0xff]
    %v1214 = vld [vmem:[%s1168 + $0x168] sm:$0xff]
    %v1215 = vld [vmem:[%s1168 + $0x170] sm:$0xff]
    %v1216 = vld [vmem:[%s1168 + $0x178] sm:$0xff]
    %v1218 = vsel %vm447, %v1124, 0
    %v1221 = vsel %vm447, %v1130, 0
    %v1224 = vsel %vm447, %v1136, 0
    %v1227 = vsel %vm447, %v1142, 0
    %v1230 = vsel %vm447, %v1148, 0
    %v1233 = vsel %vm447, %v1154, 0
    %v1236 = vsel %vm447, %v1160, 0
    %v1239 = vsel %vm447, %v1166, 0
    %1241 = vmatprep.subr.mxu0 %v1200
    %1242 = vmatpush1.msra.mxu0 %v1199
    %1243 = vmatprep.subr.mxu0 %v1198
    %1244 = vmatpush1.msra.mxu0 %v1197
    %1245 = vmatprep.subr.mxu0 %v1196
    %1246 = vmatpush1.msra.mxu0 %v1195
    %1247 = vmatprep.subr.mxu0 %v1194
    %1248 = vmatpush1.msra.mxu0 %v1193
    %1249 = vmatprep.subr.mxu0 %v1192
    %1250 = vmatpush1.msra.mxu0 %v1191
    %1251 = vmatprep.subr.mxu0 %v1190
    %1252 = vmatpush1.msra.mxu0 %v1189
    %1253 = vmatprep.subr.mxu0 %v1188
    %1254 = vmatpush1.msra.mxu0 %v1187
    %1255 = vmatprep.subr.mxu0 %v1186
    %1256 = vmatpush1.msra.mxu0 %v1185
    %1257 = vmatprep.subr.mxu0 %v1184
    %1258 = vmatpush1.msra.mxu0 %v1183
    %1259 = vmatprep.subr.mxu0 %v1182
    %1260 = vmatpush1.msra.mxu0 %v1181
    %1261 = vmatprep.subr.mxu0 %v1180
    %1262 = vmatpush1.msra.mxu0 %v1179
    %1263 = vmatprep.subr.mxu0 %v1178
    %1264 = vmatpush1.msra.mxu0 %v1177
    %1265 = vmatprep.subr.mxu0 %v1176
    %1266 = vmatpush1.msra.mxu0 %v1175
    %1267 = vmatprep.subr.mxu0 %v1174
    %1268 = vmatpush1.msra.mxu0 %v1173
    %1269 = vmatprep.subr.mxu0 %v1172
    %1270 = vmatpush1.msra.mxu0 %v1171
    %1271 = vmatprep.subr.mxu0 %v1170
    %1272 = vmatpush1.msra.mxu0 %v1169
    %1273 = vmatprep.subr.mxu0 0.0
    %1274 = vmatpush2.msra.mxu0 0.0
    %1275 = vmatprep.subr.mxu0 0.0
    %1276 = vmatpush2.msra.mxu0 0.0
    %1277 = vmatprep.subr.mxu0 0.0
    %1278 = vmatpush2.msra.mxu0 0.0
    %1279 = vmatprep.subr.mxu0 0.0
    %1280 = vmatpush2.msra.mxu0 0.0
    %1281 = vmatprep.subr.mxu0 0.0
    %1282 = vmatpush2.msra.mxu0 0.0
    %1283 = vmatprep.subr.mxu0 0.0
    %1284 = vmatpush2.msra.mxu0 0.0
    %1285 = vmatprep.subr.mxu0 0.0
    %1286 = vmatpush2.msra.mxu0 0.0
    %1287 = vmatprep.subr.mxu0 0.0
    %1288 = vmatpush2.msra.mxu0 0.0
    %1289 = vmatprep.subr.mxu0 %v1216
    %1290 = vmatpush2.msra.mxu0 %v1215
    %1291 = vmatprep.subr.mxu0 %v1214
    %1292 = vmatpush2.msra.mxu0 %v1213
    %1293 = vmatprep.subr.mxu0 %v1212
    %1294 = vmatpush2.msra.mxu0 %v1211
    %1295 = vmatprep.subr.mxu0 %v1210
    %1296 = vmatpush2.msra.mxu0 %v1209
    %1297 = vmatprep.subr.mxu0 %v1208
    %1298 = vmatpush2.msra.mxu0 %v1207
    %1299 = vmatprep.subr.mxu0 %v1206
    %1300 = vmatpush2.msra.mxu0 %v1205
    %1301 = vmatprep.subr.mxu0 %v1204
    %1302 = vmatpush2.msra.mxu0 %v1203
    %1303 = vmatprep.subr.mxu0 %v1202
    %1304 = vmatpush2.msra.mxu0 %v1201
    %1305 = vmatprep.mubr.f32.mxu0 %v1218
    %1306 = vmatmul.mubr.f32.gmra.mxu0 %v1122
    %v1307 = vpop.f32.mrf.mxu0
    %v1308 = vadd.f32 0.0, %v1307
    %v1309 = vpop.f32.mrf.mxu0
    %v1310 = vadd.f32 0.0, %v1309
    %1311 = vmatprep.mubr.f32.mxu0 %v1221
    %1312 = vmatmul.mubr.f32.gmra.mxu0 %v1128
    %v1313 = vpop.f32.mrf.mxu0
    %v1314 = vadd.f32 0.0, %v1313
    %v1315 = vpop.f32.mrf.mxu0
    %v1316 = vadd.f32 0.0, %v1315
    %1317 = vmatprep.mubr.f32.mxu0 %v1224
    %1318 = vmatmul.mubr.f32.gmra.mxu0 %v1134
    %v1319 = vpop.f32.mrf.mxu0
    %v1320 = vadd.f32 0.0, %v1319
    %v1321 = vpop.f32.mrf.mxu0
    %v1322 = vadd.f32 0.0, %v1321
    %1323 = vmatprep.mubr.f32.mxu0 %v1227
    %1324 = vmatmul.mubr.f32.gmra.mxu0 %v1140
    %v1325 = vpop.f32.mrf.mxu0
    %v1326 = vadd.f32 0.0, %v1325
    %v1327 = vpop.f32.mrf.mxu0
    %v1328 = vadd.f32 0.0, %v1327
    %1329 = vmatprep.mubr.f32.mxu0 %v1230
    %1330 = vmatmul.mubr.f32.gmra.mxu0 %v1146
    %v1331 = vpop.f32.mrf.mxu0
    %v1332 = vadd.f32 0.0, %v1331
    %v1333 = vpop.f32.mrf.mxu0
    %v1334 = vadd.f32 0.0, %v1333
    %1335 = vmatprep.mubr.f32.mxu0 %v1233
    %1336 = vmatmul.mubr.f32.gmra.mxu0 %v1152
    %v1337 = vpop.f32.mrf.mxu0
    %v1338 = vadd.f32 0.0, %v1337
    %v1339 = vpop.f32.mrf.mxu0
    %v1340 = vadd.f32 0.0, %v1339
    %1341 = vmatprep.mubr.f32.mxu0 %v1236
    %1342 = vmatmul.mubr.f32.gmra.mxu0 %v1158
    %v1343 = vpop.f32.mrf.mxu0
    %v1344 = vadd.f32 0.0, %v1343
    %v1345 = vpop.f32.mrf.mxu0
    %v1346 = vadd.f32 0.0, %v1345
    %1347 = vmatprep.mubr.f32.mxu0 %v1239
    %1348 = vmatmul.mubr.f32.gmra.mxu0 %v1164
    %v1349 = vpop.f32.mrf.mxu0
    %v1350 = vadd.f32 0.0, %v1349
    %v1351 = vpop.f32.mrf.mxu0
    %v1352 = vadd.f32 0.0, %v1351
    %1353 = vdwg.mxu0
    %v1354 = vadd.f32 %v1030, %v1308
    %v1355 = vadd.f32 %v1031, %v1310
    %v1356 = vadd.f32 %v1032, %v1314
    %v1357 = vadd.f32 %v1033, %v1316
    %v1358 = vadd.f32 %v1034, %v1320
    %v1359 = vadd.f32 %v1035, %v1322
    %v1360 = vadd.f32 %v1036, %v1326
    %v1361 = vadd.f32 %v1037, %v1328
    %v1362 = vadd.f32 %v1038, %v1332
    %v1363 = vadd.f32 %v1039, %v1334
    %v1364 = vadd.f32 %v1040, %v1338
    %v1365 = vadd.f32 %v1041, %v1340
    %v1366 = vadd.f32 %v1042, %v1344
    %v1367 = vadd.f32 %v1043, %v1346
    %v1368 = vadd.f32 %v1044, %v1350
    %v1369 = vadd.f32 %v1045, %v1352
    %vm1370 = vcmp.ge.f32.partialorder %v1354, 0.0
    %vm1371 = vcmp.ge.f32.partialorder %v1355, 0.0
    %vm1372 = vcmp.ge.f32.partialorder %v1356, 0.0
    %vm1373 = vcmp.ge.f32.partialorder %v1357, 0.0
    %vm1374 = vcmp.ge.f32.partialorder %v1358, 0.0
    %vm1375 = vcmp.ge.f32.partialorder %v1359, 0.0
    %vm1376 = vcmp.ge.f32.partialorder %v1360, 0.0
    %vm1377 = vcmp.ge.f32.partialorder %v1361, 0.0
    %vm1378 = vcmp.ge.f32.partialorder %v1362, 0.0
    %vm1379 = vcmp.ge.f32.partialorder %v1363, 0.0
    %vm1380 = vcmp.ge.f32.partialorder %v1364, 0.0
    %vm1381 = vcmp.ge.f32.partialorder %v1365, 0.0
    %vm1382 = vcmp.ge.f32.partialorder %v1366, 0.0
    %vm1383 = vcmp.ge.f32.partialorder %v1367, 0.0
    %vm1384 = vcmp.ge.f32.partialorder %v1368, 0.0
    %vm1385 = vcmp.ge.f32.partialorder %v1369, 0.0
    %v1386 = vmul.f32 %v1354, 0.2
    %v1387 = vmul.f32 %v1355, 0.2
    %v1388 = vmul.f32 %v1356, 0.2
    %v1389 = vmul.f32 %v1357, 0.2
    %v1390 = vmul.f32 %v1358, 0.2
    %v1391 = vmul.f32 %v1359, 0.2
    %v1392 = vmul.f32 %v1360, 0.2
    %v1393 = vmul.f32 %v1361, 0.2
    %v1394 = vmul.f32 %v1362, 0.2
    %v1395 = vmul.f32 %v1363, 0.2
    %v1396 = vmul.f32 %v1364, 0.2
    %v1397 = vmul.f32 %v1365, 0.2
    %v1398 = vmul.f32 %v1366, 0.2
    %v1399 = vmul.f32 %v1367, 0.2
    %v1400 = vmul.f32 %v1368, 0.2
    %v1401 = vmul.f32 %v1369, 0.2
    %v1402 = vsel %vm1370, %v1354, %v1386
    %v1403 = vsel %vm1371, %v1355, %v1387
    %v1404 = vsel %vm1372, %v1356, %v1388
    %v1405 = vsel %vm1373, %v1357, %v1389
    %v1406 = vsel %vm1374, %v1358, %v1390
    %v1407 = vsel %vm1375, %v1359, %v1391
    %v1408 = vsel %vm1376, %v1360, %v1392
    %v1409 = vsel %vm1377, %v1361, %v1393
    %v1410 = vsel %vm1378, %v1362, %v1394
    %v1411 = vsel %vm1379, %v1363, %v1395
    %v1412 = vsel %vm1380, %v1364, %v1396
    %v1413 = vsel %vm1381, %v1365, %v1397
    %v1414 = vsel %vm1382, %v1366, %v1398
    %v1415 = vsel %vm1383, %v1367, %v1399
    %v1416 = vsel %vm1384, %v1368, %v1400
    %v1417 = vsel %vm1385, %v1369, %v1401
    %v1418 = vld [vmem:[%s3] sm:$0xff]
    %v1419 = vld [vmem:[%s3 + $0x8] sm:$0xff]
    %v1420 = vld [vmem:[%s3 + $0x10] sm:$0xff]
    %v1421 = vld [vmem:[%s3 + $0x18] sm:$0xff]
    %v1423 = vsel %vm447, %v1418, 0
    %v1426 = vsel %vm447, %v1419, 0
    %v1429 = vsel %vm447, %v1420, 0
    %v1432 = vsel %vm447, %v1421, 0
    %1434 = vmatprep.subr.mxu0 0.0
    %1435 = vmatpush1.msra.mxu0 0.0
    %1436 = vmatprep.subr.mxu0 0.0
    %1437 = vmatpush1.msra.mxu0 0.0
    %1438 = vmatprep.subr.mxu0 0.0
    %1439 = vmatpush1.msra.mxu0 0.0
    %1440 = vmatprep.subr.mxu0 0.0
    %1441 = vmatpush1.msra.mxu0 0.0
    %1442 = vmatprep.subr.mxu0 0.0
    %1443 = vmatpush1.msra.mxu0 0.0
    %1444 = vmatprep.subr.mxu0 0.0
    %1445 = vmatpush1.msra.mxu0 0.0
    %1446 = vmatprep.subr.mxu0 0.0
    %1447 = vmatpush1.msra.mxu0 0.0
    %1448 = vmatprep.subr.mxu0 0.0
    %1449 = vmatpush1.msra.mxu0 0.0
    %1450 = vmatprep.subr.mxu0 %v1417
    %1451 = vmatpush1.msra.mxu0 %v1416
    %1452 = vmatprep.subr.mxu0 %v1415
    %1453 = vmatpush1.msra.mxu0 %v1414
    %1454 = vmatprep.subr.mxu0 %v1413
    %1455 = vmatpush1.msra.mxu0 %v1412
    %1456 = vmatprep.subr.mxu0 %v1411
    %1457 = vmatpush1.msra.mxu0 %v1410
    %1458 = vmatprep.subr.mxu0 %v1409
    %1459 = vmatpush1.msra.mxu0 %v1408
    %1460 = vmatprep.subr.mxu0 %v1407
    %1461 = vmatpush1.msra.mxu0 %v1406
    %1462 = vmatprep.subr.mxu0 %v1405
    %1463 = vmatpush1.msra.mxu0 %v1404
    %1464 = vmatprep.subr.mxu0 %v1403
    %1465 = vmatpush1.msra.mxu0 %v1402
    %1466 = vmatprep.subr.mxu0 0.0
    %1467 = vmatpush2.msra.mxu0 0.0
    %1468 = vmatprep.subr.mxu0 0.0
    %1469 = vmatpush2.msra.mxu0 0.0
    %1470 = vmatprep.subr.mxu0 0.0
    %1471 = vmatpush2.msra.mxu0 0.0
    %1472 = vmatprep.subr.mxu0 0.0
    %1473 = vmatpush2.msra.mxu0 0.0
    %1474 = vmatprep.subr.mxu0 0.0
    %1475 = vmatpush2.msra.mxu0 0.0
    %1476 = vmatprep.subr.mxu0 0.0
    %1477 = vmatpush2.msra.mxu0 0.0
    %1478 = vmatprep.subr.mxu0 0.0
    %1479 = vmatpush2.msra.mxu0 0.0
    %1480 = vmatprep.subr.mxu0 0.0
    %1481 = vmatpush2.msra.mxu0 0.0
    %1482 = vmatprep.subr.mxu0 0.0
    %1483 = vmatpush2.msra.mxu0 0.0
    %1484 = vmatprep.subr.mxu0 0.0
    %1485 = vmatpush2.msra.mxu0 0.0
    %1486 = vmatprep.subr.mxu0 0.0
    %1487 = vmatpush2.msra.mxu0 0.0
    %1488 = vmatprep.subr.mxu0 0.0
    %1489 = vmatpush2.msra.mxu0 0.0
    %1490 = vmatprep.subr.mxu0 0.0
    %1491 = vmatpush2.msra.mxu0 0.0
    %1492 = vmatprep.subr.mxu0 0.0
    %1493 = vmatpush2.msra.mxu0 0.0
    %1494 = vmatprep.subr.mxu0 0.0
    %1495 = vmatpush2.msra.mxu0 0.0
    %1496 = vmatprep.subr.mxu0 0.0
    %1497 = vmatpush2.msra.mxu0 0.0
    %1498 = vmatprep.mubr.f32.mxu0 0.0
    %1499 = vmatmul.mubr.f32.gmra.mxu0 %v1423
    %v1500 = vpop.f32.mrf.mxu0
    %v1501 = vadd.f32 0.0, %v1500
    %v1502 = vpop.f32.mrf.mxu0
    %v1503 = vadd.f32 0.0, %v1502
    %1504 = vmatprep.mubr.f32.mxu0 0.0
    %1505 = vmatmul.mubr.f32.gmra.mxu0 %v1426
    %v1506 = vpop.f32.mrf.mxu0
    %v1507 = vadd.f32 0.0, %v1506
    %v1508 = vpop.f32.mrf.mxu0
    %v1509 = vadd.f32 0.0, %v1508
    %1510 = vmatprep.mubr.f32.mxu0 0.0
    %1511 = vmatmul.mubr.f32.gmra.mxu0 %v1429
    %v1512 = vpop.f32.mrf.mxu0
    %v1513 = vadd.f32 0.0, %v1512
    %v1514 = vpop.f32.mrf.mxu0
    %v1515 = vadd.f32 0.0, %v1514
    %1516 = vmatprep.mubr.f32.mxu0 0.0
    %1517 = vmatmul.mubr.f32.gmra.mxu0 %v1432
    %v1518 = vpop.f32.mrf.mxu0
    %v1519 = vadd.f32 0.0, %v1518
    %v1520 = vpop.f32.mrf.mxu0
    %v1521 = vadd.f32 0.0, %v1520
    %1522 = vdwg.mxu0
    %v1523 = vld [vmem:[%s4] sm:$0xff]
    %v1524 = vld [vmem:[%s4 + $0x8] sm:$0xff]
    %v1525 = vld [vmem:[%s4 + $0x10] sm:$0xff]
    %v1526 = vld [vmem:[%s4 + $0x18] sm:$0xff]
    %v1527 = vld [vmem:[%s4 + $0x20] sm:$0xff]
    %v1528 = vld [vmem:[%s4 + $0x28] sm:$0xff]
    %v1529 = vld [vmem:[%s4 + $0x30] sm:$0xff]
    %v1530 = vld [vmem:[%s4 + $0x38] sm:$0xff]
    %v1531 = vld [vmem:[%s4 + $0x40] sm:$0xff]
    %v1532 = vld [vmem:[%s4 + $0x48] sm:$0xff]
    %v1533 = vld [vmem:[%s4 + $0x50] sm:$0xff]
    %v1534 = vld [vmem:[%s4 + $0x58] sm:$0xff]
    %v1535 = vld [vmem:[%s4 + $0x60] sm:$0xff]
    %v1536 = vld [vmem:[%s4 + $0x68] sm:$0xff]
    %v1537 = vld [vmem:[%s4 + $0x70] sm:$0xff]
    %v1538 = vld [vmem:[%s4 + $0x78] sm:$0xff]
    %v1539 = vld [vmem:[%s4 + $0x80] sm:$0xff]
    %v1540 = vld [vmem:[%s4 + $0x88] sm:$0xff]
    %v1541 = vld [vmem:[%s4 + $0x90] sm:$0xff]
    %v1542 = vld [vmem:[%s4 + $0x98] sm:$0xff]
    %v1543 = vld [vmem:[%s4 + $0xa0] sm:$0xff]
    %v1544 = vld [vmem:[%s4 + $0xa8] sm:$0xff]
    %v1545 = vld [vmem:[%s4 + $0xb0] sm:$0xff]
    %v1546 = vld [vmem:[%s4 + $0xb8] sm:$0xff]
    %v1547 = vld [vmem:[%s4 + $0xc0] sm:$0xff]
    %v1548 = vld [vmem:[%s4 + $0xc8] sm:$0xff]
    %v1549 = vld [vmem:[%s4 + $0xd0] sm:$0xff]
    %v1550 = vld [vmem:[%s4 + $0xd8] sm:$0xff]
    %v1551 = vld [vmem:[%s4 + $0xe0] sm:$0xff]
    %v1552 = vld [vmem:[%s4 + $0xe8] sm:$0xff]
    %v1553 = vld [vmem:[%s4 + $0xf0] sm:$0xff]
    %v1554 = vld [vmem:[%s4 + $0xf8] sm:$0xff]
    %v1555 = vld [vmem:[%s4 + $0x100] sm:$0xff]
    %v1556 = vld [vmem:[%s4 + $0x108] sm:$0xff]
    %v1557 = vld [vmem:[%s4 + $0x110] sm:$0xff]
    %v1558 = vld [vmem:[%s4 + $0x118] sm:$0xff]
    %v1559 = vld [vmem:[%s4 + $0x120] sm:$0xff]
    %v1560 = vld [vmem:[%s4 + $0x128] sm:$0xff]
    %v1561 = vld [vmem:[%s4 + $0x130] sm:$0xff]
    %v1562 = vld [vmem:[%s4 + $0x138] sm:$0xff]
    %v1563 = vld [vmem:[%s4 + $0x140] sm:$0xff]
    %v1564 = vld [vmem:[%s4 + $0x148] sm:$0xff]
    %v1565 = vld [vmem:[%s4 + $0x150] sm:$0xff]
    %v1566 = vld [vmem:[%s4 + $0x158] sm:$0xff]
    %v1567 = vld [vmem:[%s4 + $0x160] sm:$0xff]
    %v1568 = vld [vmem:[%s4 + $0x168] sm:$0xff]
    %v1569 = vld [vmem:[%s4 + $0x170] sm:$0xff]
    %v1570 = vld [vmem:[%s4 + $0x178] sm:$0xff]
    %v1571 = vld [vmem:[%s4 + $0x180] sm:$0xff]
    %v1572 = vld [vmem:[%s4 + $0x188] sm:$0xff]
    %v1573 = vld [vmem:[%s4 + $0x190] sm:$0xff]
    %v1574 = vld [vmem:[%s4 + $0x198] sm:$0xff]
    %v1575 = vld [vmem:[%s4 + $0x1a0] sm:$0xff]
    %v1576 = vld [vmem:[%s4 + $0x1a8] sm:$0xff]
    %v1577 = vld [vmem:[%s4 + $0x1b0] sm:$0xff]
    %v1578 = vld [vmem:[%s4 + $0x1b8] sm:$0xff]
    %v1579 = vld [vmem:[%s4 + $0x1c0] sm:$0xff]
    %v1580 = vld [vmem:[%s4 + $0x1c8] sm:$0xff]
    %v1581 = vld [vmem:[%s4 + $0x1d0] sm:$0xff]
    %v1582 = vld [vmem:[%s4 + $0x1d8] sm:$0xff]
    %v1583 = vld [vmem:[%s4 + $0x1e0] sm:$0xff]
    %v1584 = vld [vmem:[%s4 + $0x1e8] sm:$0xff]
    %v1585 = vld [vmem:[%s4 + $0x1f0] sm:$0xff]
    %v1586 = vld [vmem:[%s4 + $0x1f8] sm:$0xff]
    %s1587 = scalar_lea.vmem %s3, 32
    %v1588 = vld [vmem:[%s1587] sm:$0xff]
    %v1589 = vld [vmem:[%s1587 + $0x8] sm:$0xff]
    %v1590 = vld [vmem:[%s1587 + $0x10] sm:$0xff]
    %v1591 = vld [vmem:[%s1587 + $0x18] sm:$0xff]
    %v1593 = vsel %vm447, %v1588, 0
    %v1596 = vsel %vm447, %v1589, 0
    %v1599 = vsel %vm447, %v1590, 0
    %v1602 = vsel %vm447, %v1591, 0
    %1604 = vmatprep.subr.mxu0 0.0
    %1605 = vmatpush1.msra.mxu0 0.0
    %1606 = vmatprep.subr.mxu0 0.0
    %1607 = vmatpush1.msra.mxu0 0.0
    %1608 = vmatprep.subr.mxu0 0.0
    %1609 = vmatpush1.msra.mxu0 0.0
    %1610 = vmatprep.subr.mxu0 0.0
    %1611 = vmatpush1.msra.mxu0 0.0
    %1612 = vmatprep.subr.mxu0 0.0
    %1613 = vmatpush1.msra.mxu0 0.0
    %1614 = vmatprep.subr.mxu0 0.0
    %1615 = vmatpush1.msra.mxu0 0.0
    %1616 = vmatprep.subr.mxu0 0.0
    %1617 = vmatpush1.msra.mxu0 0.0
    %1618 = vmatprep.subr.mxu0 0.0
    %1619 = vmatpush1.msra.mxu0 0.0
    %1620 = vmatprep.subr.mxu0 %v1417
    %1621 = vmatpush1.msra.mxu0 %v1416
    %1622 = vmatprep.subr.mxu0 %v1415
    %1623 = vmatpush1.msra.mxu0 %v1414
    %1624 = vmatprep.subr.mxu0 %v1413
    %1625 = vmatpush1.msra.mxu0 %v1412
    %1626 = vmatprep.subr.mxu0 %v1411
    %1627 = vmatpush1.msra.mxu0 %v1410
    %1628 = vmatprep.subr.mxu0 %v1409
    %1629 = vmatpush1.msra.mxu0 %v1408
    %1630 = vmatprep.subr.mxu0 %v1407
    %1631 = vmatpush1.msra.mxu0 %v1406
    %1632 = vmatprep.subr.mxu0 %v1405
    %1633 = vmatpush1.msra.mxu0 %v1404
    %1634 = vmatprep.subr.mxu0 %v1403
    %1635 = vmatpush1.msra.mxu0 %v1402
    %1636 = vmatprep.subr.mxu0 0.0
    %1637 = vmatpush2.msra.mxu0 0.0
    %1638 = vmatprep.subr.mxu0 0.0
    %1639 = vmatpush2.msra.mxu0 0.0
    %1640 = vmatprep.subr.mxu0 0.0
    %1641 = vmatpush2.msra.mxu0 0.0
    %1642 = vmatprep.subr.mxu0 0.0
    %1643 = vmatpush2.msra.mxu0 0.0
    %1644 = vmatprep.subr.mxu0 0.0
    %1645 = vmatpush2.msra.mxu0 0.0
    %1646 = vmatprep.subr.mxu0 0.0
    %1647 = vmatpush2.msra.mxu0 0.0
    %1648 = vmatprep.subr.mxu0 0.0
    %1649 = vmatpush2.msra.mxu0 0.0
    %1650 = vmatprep.subr.mxu0 0.0
    %1651 = vmatpush2.msra.mxu0 0.0
    %1652 = vmatprep.subr.mxu0 0.0
    %1653 = vmatpush2.msra.mxu0 0.0
    %1654 = vmatprep.subr.mxu0 0.0
    %1655 = vmatpush2.msra.mxu0 0.0
    %1656 = vmatprep.subr.mxu0 0.0
    %1657 = vmatpush2.msra.mxu0 0.0
    %1658 = vmatprep.subr.mxu0 0.0
    %1659 = vmatpush2.msra.mxu0 0.0
    %1660 = vmatprep.subr.mxu0 0.0
    %1661 = vmatpush2.msra.mxu0 0.0
    %1662 = vmatprep.subr.mxu0 0.0
    %1663 = vmatpush2.msra.mxu0 0.0
    %1664 = vmatprep.subr.mxu0 0.0
    %1665 = vmatpush2.msra.mxu0 0.0
    %1666 = vmatprep.subr.mxu0 0.0
    %1667 = vmatpush2.msra.mxu0 0.0
    %1668 = vmatprep.mubr.f32.mxu0 0.0
    %1669 = vmatmul.mubr.f32.gmra.mxu0 %v1593
    %v1670 = vpop.f32.mrf.mxu0
    %v1671 = vadd.f32 0.0, %v1670
    %v1672 = vpop.f32.mrf.mxu0
    %v1673 = vadd.f32 0.0, %v1672
    %1674 = vmatprep.mubr.f32.mxu0 0.0
    %1675 = vmatmul.mubr.f32.gmra.mxu0 %v1596
    %v1676 = vpop.f32.mrf.mxu0
    %v1677 = vadd.f32 0.0, %v1676
    %v1678 = vpop.f32.mrf.mxu0
    %v1679 = vadd.f32 0.0, %v1678
    %1680 = vmatprep.mubr.f32.mxu0 0.0
    %1681 = vmatmul.mubr.f32.gmra.mxu0 %v1599
    %v1682 = vpop.f32.mrf.mxu0
    %v1683 = vadd.f32 0.0, %v1682
    %v1684 = vpop.f32.mrf.mxu0
    %v1685 = vadd.f32 0.0, %v1684
    %1686 = vmatprep.mubr.f32.mxu0 0.0
    %1687 = vmatmul.mubr.f32.gmra.mxu0 %v1602
    %v1688 = vpop.f32.mrf.mxu0
    %v1689 = vadd.f32 0.0, %v1688
    %v1690 = vpop.f32.mrf.mxu0
    %v1691 = vadd.f32 0.0, %v1690
    %1692 = vdwg.mxu0
    %s1693 = scalar_lea.vmem %s4, 512
    %v1694 = vld [vmem:[%s1693] sm:$0xff]
    %v1695 = vld [vmem:[%s1693 + $0x8] sm:$0xff]
    %v1696 = vld [vmem:[%s1693 + $0x10] sm:$0xff]
    %v1697 = vld [vmem:[%s1693 + $0x18] sm:$0xff]
    %v1698 = vld [vmem:[%s1693 + $0x20] sm:$0xff]
    %v1699 = vld [vmem:[%s1693 + $0x28] sm:$0xff]
    %v1700 = vld [vmem:[%s1693 + $0x30] sm:$0xff]
    %v1701 = vld [vmem:[%s1693 + $0x38] sm:$0xff]
    %v1702 = vld [vmem:[%s1693 + $0x40] sm:$0xff]
    %v1703 = vld [vmem:[%s1693 + $0x48] sm:$0xff]
    %v1704 = vld [vmem:[%s1693 + $0x50] sm:$0xff]
    %v1705 = vld [vmem:[%s1693 + $0x58] sm:$0xff]
    %v1706 = vld [vmem:[%s1693 + $0x60] sm:$0xff]
    %v1707 = vld [vmem:[%s1693 + $0x68] sm:$0xff]
    %v1708 = vld [vmem:[%s1693 + $0x70] sm:$0xff]
    %v1709 = vld [vmem:[%s1693 + $0x78] sm:$0xff]
    %v1710 = vld [vmem:[%s1693 + $0x80] sm:$0xff]
    %v1711 = vld [vmem:[%s1693 + $0x88] sm:$0xff]
    %v1712 = vld [vmem:[%s1693 + $0x90] sm:$0xff]
    %v1713 = vld [vmem:[%s1693 + $0x98] sm:$0xff]
    %v1714 = vld [vmem:[%s1693 + $0xa0] sm:$0xff]
    %v1715 = vld [vmem:[%s1693 + $0xa8] sm:$0xff]
    %v1716 = vld [vmem:[%s1693 + $0xb0] sm:$0xff]
    %v1717 = vld [vmem:[%s1693 + $0xb8] sm:$0xff]
    %v1718 = vld [vmem:[%s1693 + $0xc0] sm:$0xff]
    %v1719 = vld [vmem:[%s1693 + $0xc8] sm:$0xff]
    %v1720 = vld [vmem:[%s1693 + $0xd0] sm:$0xff]
    %v1721 = vld [vmem:[%s1693 + $0xd8] sm:$0xff]
    %v1722 = vld [vmem:[%s1693 + $0xe0] sm:$0xff]
    %v1723 = vld [vmem:[%s1693 + $0xe8] sm:$0xff]
    %v1724 = vld [vmem:[%s1693 + $0xf0] sm:$0xff]
    %v1725 = vld [vmem:[%s1693 + $0xf8] sm:$0xff]
    %v1726 = vld [vmem:[%s1693 + $0x100] sm:$0xff]
    %v1727 = vld [vmem:[%s1693 + $0x108] sm:$0xff]
    %v1728 = vld [vmem:[%s1693 + $0x110] sm:$0xff]
    %v1729 = vld [vmem:[%s1693 + $0x118] sm:$0xff]
    %v1730 = vld [vmem:[%s1693 + $0x120] sm:$0xff]
    %v1731 = vld [vmem:[%s1693 + $0x128] sm:$0xff]
    %v1732 = vld [vmem:[%s1693 + $0x130] sm:$0xff]
    %v1733 = vld [vmem:[%s1693 + $0x138] sm:$0xff]
    %v1734 = vld [vmem:[%s1693 + $0x140] sm:$0xff]
    %v1735 = vld [vmem:[%s1693 + $0x148] sm:$0xff]
    %v1736 = vld [vmem:[%s1693 + $0x150] sm:$0xff]
    %v1737 = vld [vmem:[%s1693 + $0x158] sm:$0xff]
    %v1738 = vld [vmem:[%s1693 + $0x160] sm:$0xff]
    %v1739 = vld [vmem:[%s1693 + $0x168] sm:$0xff]
    %v1740 = vld [vmem:[%s1693 + $0x170] sm:$0xff]
    %v1741 = vld [vmem:[%s1693 + $0x178] sm:$0xff]
    %v1742 = vld [vmem:[%s1693 + $0x180] sm:$0xff]
    %v1743 = vld [vmem:[%s1693 + $0x188] sm:$0xff]
    %v1744 = vld [vmem:[%s1693 + $0x190] sm:$0xff]
    %v1745 = vld [vmem:[%s1693 + $0x198] sm:$0xff]
    %v1746 = vld [vmem:[%s1693 + $0x1a0] sm:$0xff]
    %v1747 = vld [vmem:[%s1693 + $0x1a8] sm:$0xff]
    %v1748 = vld [vmem:[%s1693 + $0x1b0] sm:$0xff]
    %v1749 = vld [vmem:[%s1693 + $0x1b8] sm:$0xff]
    %v1750 = vld [vmem:[%s1693 + $0x1c0] sm:$0xff]
    %v1751 = vld [vmem:[%s1693 + $0x1c8] sm:$0xff]
    %v1752 = vld [vmem:[%s1693 + $0x1d0] sm:$0xff]
    %v1753 = vld [vmem:[%s1693 + $0x1d8] sm:$0xff]
    %v1754 = vld [vmem:[%s1693 + $0x1e0] sm:$0xff]
    %v1755 = vld [vmem:[%s1693 + $0x1e8] sm:$0xff]
    %v1756 = vld [vmem:[%s1693 + $0x1f0] sm:$0xff]
    %v1757 = vld [vmem:[%s1693 + $0x1f8] sm:$0xff]
    %1758 = vmatprep.subr.mxu0 %v1725
    %1759 = vmatpush1.msra.mxu0 %v1724
    %1760 = vmatprep.subr.mxu0 %v1723
    %1761 = vmatpush1.msra.mxu0 %v1722
    %1762 = vmatprep.subr.mxu0 %v1721
    %1763 = vmatpush1.msra.mxu0 %v1720
    %1764 = vmatprep.subr.mxu0 %v1719
    %1765 = vmatpush1.msra.mxu0 %v1718
    %1766 = vmatprep.subr.mxu0 %v1717
    %1767 = vmatpush1.msra.mxu0 %v1716
    %1768 = vmatprep.subr.mxu0 %v1715
    %1769 = vmatpush1.msra.mxu0 %v1714
    %1770 = vmatprep.subr.mxu0 %v1713
    %1771 = vmatpush1.msra.mxu0 %v1712
    %1772 = vmatprep.subr.mxu0 %v1711
    %1773 = vmatpush1.msra.mxu0 %v1710
    %1774 = vmatprep.subr.mxu0 %v1709
    %1775 = vmatpush1.msra.mxu0 %v1708
    %1776 = vmatprep.subr.mxu0 %v1707
    %1777 = vmatpush1.msra.mxu0 %v1706
    %1778 = vmatprep.subr.mxu0 %v1705
    %1779 = vmatpush1.msra.mxu0 %v1704
    %1780 = vmatprep.subr.mxu0 %v1703
    %1781 = vmatpush1.msra.mxu0 %v1702
    %1782 = vmatprep.subr.mxu0 %v1701
    %1783 = vmatpush1.msra.mxu0 %v1700
    %1784 = vmatprep.subr.mxu0 %v1699
    %1785 = vmatpush1.msra.mxu0 %v1698
    %1786 = vmatprep.subr.mxu0 %v1697
    %1787 = vmatpush1.msra.mxu0 %v1696
    %1788 = vmatprep.subr.mxu0 %v1695
    %1789 = vmatpush1.msra.mxu0 %v1694
    %1790 = vmatprep.subr.mxu0 %v1757
    %1791 = vmatpush2.msra.mxu0 %v1756
    %1792 = vmatprep.subr.mxu0 %v1755
    %1793 = vmatpush2.msra.mxu0 %v1754
    %1794 = vmatprep.subr.mxu0 %v1753
    %1795 = vmatpush2.msra.mxu0 %v1752
    %1796 = vmatprep.subr.mxu0 %v1751
    %1797 = vmatpush2.msra.mxu0 %v1750
    %1798 = vmatprep.subr.mxu0 %v1749
    %1799 = vmatpush2.msra.mxu0 %v1748
    %1800 = vmatprep.subr.mxu0 %v1747
    %1801 = vmatpush2.msra.mxu0 %v1746
    %1802 = vmatprep.subr.mxu0 %v1745
    %1803 = vmatpush2.msra.mxu0 %v1744
    %1804 = vmatprep.subr.mxu0 %v1743
    %1805 = vmatpush2.msra.mxu0 %v1742
    %1806 = vmatprep.subr.mxu0 %v1741
    %1807 = vmatpush2.msra.mxu0 %v1740
    %1808 = vmatprep.subr.mxu0 %v1739
    %1809 = vmatpush2.msra.mxu0 %v1738
    %1810 = vmatprep.subr.mxu0 %v1737
    %1811 = vmatpush2.msra.mxu0 %v1736
    %1812 = vmatprep.subr.mxu0 %v1735
    %1813 = vmatpush2.msra.mxu0 %v1734
    %1814 = vmatprep.subr.mxu0 %v1733
    %1815 = vmatpush2.msra.mxu0 %v1732
    %1816 = vmatprep.subr.mxu0 %v1731
    %1817 = vmatpush2.msra.mxu0 %v1730
    %1818 = vmatprep.subr.mxu0 %v1729
    %1819 = vmatpush2.msra.mxu0 %v1728
    %1820 = vmatprep.subr.mxu0 %v1727
    %1821 = vmatpush2.msra.mxu0 %v1726
    %1822 = vmatprep.mubr.f32.mxu0 %v1673
    %1823 = vmatmul.mubr.f32.gmra.mxu0 %v1671
    %v1824 = vpop.f32.mrf.mxu0
    %v1825 = vadd.f32 0.0, %v1824
    %v1826 = vpop.f32.mrf.mxu0
    %v1827 = vadd.f32 0.0, %v1826
    %1828 = vmatprep.mubr.f32.mxu0 %v1679
    %1829 = vmatmul.mubr.f32.gmra.mxu0 %v1677
    %v1830 = vpop.f32.mrf.mxu0
    %v1831 = vadd.f32 0.0, %v1830
    %v1832 = vpop.f32.mrf.mxu0
    %v1833 = vadd.f32 0.0, %v1832
    %1834 = vmatprep.mubr.f32.mxu0 %v1685
    %1835 = vmatmul.mubr.f32.gmra.mxu0 %v1683
    %v1836 = vpop.f32.mrf.mxu0
    %v1837 = vadd.f32 0.0, %v1836
    %v1838 = vpop.f32.mrf.mxu0
    %v1839 = vadd.f32 0.0, %v1838
    %1840 = vmatprep.mubr.f32.mxu0 %v1691
    %1841 = vmatmul.mubr.f32.gmra.mxu0 %v1689
    %v1842 = vpop.f32.mrf.mxu0
    %v1843 = vadd.f32 0.0, %v1842
    %v1844 = vpop.f32.mrf.mxu0
    %v1845 = vadd.f32 0.0, %v1844
    %1846 = vdwg.mxu0
    %1847 = vmatprep.subr.mxu0 %v1554
    %1848 = vmatpush1.msra.mxu0 %v1553
    %1849 = vmatprep.subr.mxu0 %v1552
    %1850 = vmatpush1.msra.mxu0 %v1551
    %1851 = vmatprep.subr.mxu0 %v1550
    %1852 = vmatpush1.msra.mxu0 %v1549
    %1853 = vmatprep.subr.mxu0 %v1548
    %1854 = vmatpush1.msra.mxu0 %v1547
    %1855 = vmatprep.subr.mxu0 %v1546
    %1856 = vmatpush1.msra.mxu0 %v1545
    %1857 = vmatprep.subr.mxu0 %v1544
    %1858 = vmatpush1.msra.mxu0 %v1543
    %1859 = vmatprep.subr.mxu0 %v1542
    %1860 = vmatpush1.msra.mxu0 %v1541
    %1861 = vmatprep.subr.mxu0 %v1540
    %1862 = vmatpush1.msra.mxu0 %v1539
    %1863 = vmatprep.subr.mxu0 %v1538
    %1864 = vmatpush1.msra.mxu0 %v1537
    %1865 = vmatprep.subr.mxu0 %v1536
    %1866 = vmatpush1.msra.mxu0 %v1535
    %1867 = vmatprep.subr.mxu0 %v1534
    %1868 = vmatpush1.msra.mxu0 %v1533
    %1869 = vmatprep.subr.mxu0 %v1532
    %1870 = vmatpush1.msra.mxu0 %v1531
    %1871 = vmatprep.subr.mxu0 %v1530
    %1872 = vmatpush1.msra.mxu0 %v1529
    %1873 = vmatprep.subr.mxu0 %v1528
    %1874 = vmatpush1.msra.mxu0 %v1527
    %1875 = vmatprep.subr.mxu0 %v1526
    %1876 = vmatpush1.msra.mxu0 %v1525
    %1877 = vmatprep.subr.mxu0 %v1524
    %1878 = vmatpush1.msra.mxu0 %v1523
    %1879 = vmatprep.subr.mxu0 %v1586
    %1880 = vmatpush2.msra.mxu0 %v1585
    %1881 = vmatprep.subr.mxu0 %v1584
    %1882 = vmatpush2.msra.mxu0 %v1583
    %1883 = vmatprep.subr.mxu0 %v1582
    %1884 = vmatpush2.msra.mxu0 %v1581
    %1885 = vmatprep.subr.mxu0 %v1580
    %1886 = vmatpush2.msra.mxu0 %v1579
    %1887 = vmatprep.subr.mxu0 %v1578
    %1888 = vmatpush2.msra.mxu0 %v1577
    %1889 = vmatprep.subr.mxu0 %v1576
    %1890 = vmatpush2.msra.mxu0 %v1575
    %1891 = vmatprep.subr.mxu0 %v1574
    %1892 = vmatpush2.msra.mxu0 %v1573
    %1893 = vmatprep.subr.mxu0 %v1572
    %1894 = vmatpush2.msra.mxu0 %v1571
    %1895 = vmatprep.subr.mxu0 %v1570
    %1896 = vmatpush2.msra.mxu0 %v1569
    %1897 = vmatprep.subr.mxu0 %v1568
    %1898 = vmatpush2.msra.mxu0 %v1567
    %1899 = vmatprep.subr.mxu0 %v1566
    %1900 = vmatpush2.msra.mxu0 %v1565
    %1901 = vmatprep.subr.mxu0 %v1564
    %1902 = vmatpush2.msra.mxu0 %v1563
    %1903 = vmatprep.subr.mxu0 %v1562
    %1904 = vmatpush2.msra.mxu0 %v1561
    %1905 = vmatprep.subr.mxu0 %v1560
    %1906 = vmatpush2.msra.mxu0 %v1559
    %1907 = vmatprep.subr.mxu0 %v1558
    %1908 = vmatpush2.msra.mxu0 %v1557
    %1909 = vmatprep.subr.mxu0 %v1556
    %1910 = vmatpush2.msra.mxu0 %v1555
    %1911 = vmatprep.mubr.f32.mxu0 %v1503
    %1912 = vmatmul.mubr.f32.gmra.mxu0 %v1501
    %v1913 = vpop.f32.mrf.mxu0
    %v1914 = vadd.f32 %v1825, %v1913
    %v1915 = vpop.f32.mrf.mxu0
    %v1916 = vadd.f32 %v1827, %v1915
    %1917 = vmatprep.mubr.f32.mxu0 %v1509
    %1918 = vmatmul.mubr.f32.gmra.mxu0 %v1507
    %v1919 = vpop.f32.mrf.mxu0
    %v1920 = vadd.f32 %v1831, %v1919
    %v1921 = vpop.f32.mrf.mxu0
    %v1922 = vadd.f32 %v1833, %v1921
    %1923 = vmatprep.mubr.f32.mxu0 %v1515
    %1924 = vmatmul.mubr.f32.gmra.mxu0 %v1513
    %v1925 = vpop.f32.mrf.mxu0
    %v1926 = vadd.f32 %v1837, %v1925
    %v1927 = vpop.f32.mrf.mxu0
    %v1928 = vadd.f32 %v1839, %v1927
    %1929 = vmatprep.mubr.f32.mxu0 %v1521
    %1930 = vmatmul.mubr.f32.gmra.mxu0 %v1519
    %v1931 = vpop.f32.mrf.mxu0
    %v1932 = vadd.f32 %v1843, %v1931
    %v1933 = vpop.f32.mrf.mxu0
    %v1934 = vadd.f32 %v1845, %v1933
    %1935 = vdwg.mxu0
    %s1936 = scalar_lea.vmem %s3, 64
    %v1937 = vld [vmem:[%s1936] sm:$0xff]
    %v1938 = vld [vmem:[%s1936 + $0x8] sm:$0xff]
    %v1939 = vld [vmem:[%s1936 + $0x10] sm:$0xff]
    %v1940 = vld [vmem:[%s1936 + $0x18] sm:$0xff]
    %v1942 = vsel %vm447, %v1937, 0
    %v1945 = vsel %vm447, %v1938, 0
    %v1948 = vsel %vm447, %v1939, 0
    %v1951 = vsel %vm447, %v1940, 0
    %1953 = vmatprep.subr.mxu0 0.0
    %1954 = vmatpush1.msra.mxu0 0.0
    %1955 = vmatprep.subr.mxu0 0.0
    %1956 = vmatpush1.msra.mxu0 0.0
    %1957 = vmatprep.subr.mxu0 0.0
    %1958 = vmatpush1.msra.mxu0 0.0
    %1959 = vmatprep.subr.mxu0 0.0
    %1960 = vmatpush1.msra.mxu0 0.0
    %1961 = vmatprep.subr.mxu0 0.0
    %1962 = vmatpush1.msra.mxu0 0.0
    %1963 = vmatprep.subr.mxu0 0.0
    %1964 = vmatpush1.msra.mxu0 0.0
    %1965 = vmatprep.subr.mxu0 0.0
    %1966 = vmatpush1.msra.mxu0 0.0
    %1967 = vmatprep.subr.mxu0 0.0
    %1968 = vmatpush1.msra.mxu0 0.0
    %1969 = vmatprep.subr.mxu0 %v1417
    %1970 = vmatpush1.msra.mxu0 %v1416
    %1971 = vmatprep.subr.mxu0 %v1415
    %1972 = vmatpush1.msra.mxu0 %v1414
    %1973 = vmatprep.subr.mxu0 %v1413
    %1974 = vmatpush1.msra.mxu0 %v1412
    %1975 = vmatprep.subr.mxu0 %v1411
    %1976 = vmatpush1.msra.mxu0 %v1410
    %1977 = vmatprep.subr.mxu0 %v1409
    %1978 = vmatpush1.msra.mxu0 %v1408
    %1979 = vmatprep.subr.mxu0 %v1407
    %1980 = vmatpush1.msra.mxu0 %v1406
    %1981 = vmatprep.subr.mxu0 %v1405
    %1982 = vmatpush1.msra.mxu0 %v1404
    %1983 = vmatprep.subr.mxu0 %v1403
    %1984 = vmatpush1.msra.mxu0 %v1402
    %1985 = vmatprep.subr.mxu0 0.0
    %1986 = vmatpush2.msra.mxu0 0.0
    %1987 = vmatprep.subr.mxu0 0.0
    %1988 = vmatpush2.msra.mxu0 0.0
    %1989 = vmatprep.subr.mxu0 0.0
    %1990 = vmatpush2.msra.mxu0 0.0
    %1991 = vmatprep.subr.mxu0 0.0
    %1992 = vmatpush2.msra.mxu0 0.0
    %1993 = vmatprep.subr.mxu0 0.0
    %1994 = vmatpush2.msra.mxu0 0.0
    %1995 = vmatprep.subr.mxu0 0.0
    %1996 = vmatpush2.msra.mxu0 0.0
    %1997 = vmatprep.subr.mxu0 0.0
    %1998 = vmatpush2.msra.mxu0 0.0
    %1999 = vmatprep.subr.mxu0 0.0
    %2000 = vmatpush2.msra.mxu0 0.0
    %2001 = vmatprep.subr.mxu0 0.0
    %2002 = vmatpush2.msra.mxu0 0.0
    %2003 = vmatprep.subr.mxu0 0.0
    %2004 = vmatpush2.msra.mxu0 0.0
    %2005 = vmatprep.subr.mxu0 0.0
    %2006 = vmatpush2.msra.mxu0 0.0
    %2007 = vmatprep.subr.mxu0 0.0
    %2008 = vmatpush2.msra.mxu0 0.0
    %2009 = vmatprep.subr.mxu0 0.0
    %2010 = vmatpush2.msra.mxu0 0.0
    %2011 = vmatprep.subr.mxu0 0.0
    %2012 = vmatpush2.msra.mxu0 0.0
    %2013 = vmatprep.subr.mxu0 0.0
    %2014 = vmatpush2.msra.mxu0 0.0
    %2015 = vmatprep.subr.mxu0 0.0
    %2016 = vmatpush2.msra.mxu0 0.0
    %2017 = vmatprep.mubr.f32.mxu0 0.0
    %2018 = vmatmul.mubr.f32.gmra.mxu0 %v1942
    %v2019 = vpop.f32.mrf.mxu0
    %v2020 = vadd.f32 0.0, %v2019
    %v2021 = vpop.f32.mrf.mxu0
    %v2022 = vadd.f32 0.0, %v2021
    %2023 = vmatprep.mubr.f32.mxu0 0.0
    %2024 = vmatmul.mubr.f32.gmra.mxu0 %v1945
    %v2025 = vpop.f32.mrf.mxu0
    %v2026 = vadd.f32 0.0, %v2025
    %v2027 = vpop.f32.mrf.mxu0
    %v2028 = vadd.f32 0.0, %v2027
    %2029 = vmatprep.mubr.f32.mxu0 0.0
    %2030 = vmatmul.mubr.f32.gmra.mxu0 %v1948
    %v2031 = vpop.f32.mrf.mxu0
    %v2032 = vadd.f32 0.0, %v2031
    %v2033 = vpop.f32.mrf.mxu0
    %v2034 = vadd.f32 0.0, %v2033
    %2035 = vmatprep.mubr.f32.mxu0 0.0
    %2036 = vmatmul.mubr.f32.gmra.mxu0 %v1951
    %v2037 = vpop.f32.mrf.mxu0
    %v2038 = vadd.f32 0.0, %v2037
    %v2039 = vpop.f32.mrf.mxu0
    %v2040 = vadd.f32 0.0, %v2039
    %2041 = vdwg.mxu0
    %s2042 = scalar_lea.vmem %s4, 1024
    %v2043 = vld [vmem:[%s2042] sm:$0xff]
    %v2044 = vld [vmem:[%s2042 + $0x8] sm:$0xff]
    %v2045 = vld [vmem:[%s2042 + $0x10] sm:$0xff]
    %v2046 = vld [vmem:[%s2042 + $0x18] sm:$0xff]
    %v2047 = vld [vmem:[%s2042 + $0x20] sm:$0xff]
    %v2048 = vld [vmem:[%s2042 + $0x28] sm:$0xff]
    %v2049 = vld [vmem:[%s2042 + $0x30] sm:$0xff]
    %v2050 = vld [vmem:[%s2042 + $0x38] sm:$0xff]
    %v2051 = vld [vmem:[%s2042 + $0x40] sm:$0xff]
    %v2052 = vld [vmem:[%s2042 + $0x48] sm:$0xff]
    %v2053 = vld [vmem:[%s2042 + $0x50] sm:$0xff]
    %v2054 = vld [vmem:[%s2042 + $0x58] sm:$0xff]
    %v2055 = vld [vmem:[%s2042 + $0x60] sm:$0xff]
    %v2056 = vld [vmem:[%s2042 + $0x68] sm:$0xff]
    %v2057 = vld [vmem:[%s2042 + $0x70] sm:$0xff]
    %v2058 = vld [vmem:[%s2042 + $0x78] sm:$0xff]
    %v2059 = vld [vmem:[%s2042 + $0x80] sm:$0xff]
    %v2060 = vld [vmem:[%s2042 + $0x88] sm:$0xff]
    %v2061 = vld [vmem:[%s2042 + $0x90] sm:$0xff]
    %v2062 = vld [vmem:[%s2042 + $0x98] sm:$0xff]
    %v2063 = vld [vmem:[%s2042 + $0xa0] sm:$0xff]
    %v2064 = vld [vmem:[%s2042 + $0xa8] sm:$0xff]
    %v2065 = vld [vmem:[%s2042 + $0xb0] sm:$0xff]
    %v2066 = vld [vmem:[%s2042 + $0xb8] sm:$0xff]
    %v2067 = vld [vmem:[%s2042 + $0xc0] sm:$0xff]
    %v2068 = vld [vmem:[%s2042 + $0xc8] sm:$0xff]
    %v2069 = vld [vmem:[%s2042 + $0xd0] sm:$0xff]
    %v2070 = vld [vmem:[%s2042 + $0xd8] sm:$0xff]
    %v2071 = vld [vmem:[%s2042 + $0xe0] sm:$0xff]
    %v2072 = vld [vmem:[%s2042 + $0xe8] sm:$0xff]
    %v2073 = vld [vmem:[%s2042 + $0xf0] sm:$0xff]
    %v2074 = vld [vmem:[%s2042 + $0xf8] sm:$0xff]
    %v2075 = vld [vmem:[%s2042 + $0x100] sm:$0xff]
    %v2076 = vld [vmem:[%s2042 + $0x108] sm:$0xff]
    %v2077 = vld [vmem:[%s2042 + $0x110] sm:$0xff]
    %v2078 = vld [vmem:[%s2042 + $0x118] sm:$0xff]
    %v2079 = vld [vmem:[%s2042 + $0x120] sm:$0xff]
    %v2080 = vld [vmem:[%s2042 + $0x128] sm:$0xff]
    %v2081 = vld [vmem:[%s2042 + $0x130] sm:$0xff]
    %v2082 = vld [vmem:[%s2042 + $0x138] sm:$0xff]
    %v2083 = vld [vmem:[%s2042 + $0x140] sm:$0xff]
    %v2084 = vld [vmem:[%s2042 + $0x148] sm:$0xff]
    %v2085 = vld [vmem:[%s2042 + $0x150] sm:$0xff]
    %v2086 = vld [vmem:[%s2042 + $0x158] sm:$0xff]
    %v2087 = vld [vmem:[%s2042 + $0x160] sm:$0xff]
    %v2088 = vld [vmem:[%s2042 + $0x168] sm:$0xff]
    %v2089 = vld [vmem:[%s2042 + $0x170] sm:$0xff]
    %v2090 = vld [vmem:[%s2042 + $0x178] sm:$0xff]
    %v2091 = vld [vmem:[%s2042 + $0x180] sm:$0xff]
    %v2092 = vld [vmem:[%s2042 + $0x188] sm:$0xff]
    %v2093 = vld [vmem:[%s2042 + $0x190] sm:$0xff]
    %v2094 = vld [vmem:[%s2042 + $0x198] sm:$0xff]
    %v2095 = vld [vmem:[%s2042 + $0x1a0] sm:$0xff]
    %v2096 = vld [vmem:[%s2042 + $0x1a8] sm:$0xff]
    %v2097 = vld [vmem:[%s2042 + $0x1b0] sm:$0xff]
    %v2098 = vld [vmem:[%s2042 + $0x1b8] sm:$0xff]
    %v2099 = vld [vmem:[%s2042 + $0x1c0] sm:$0xff]
    %v2100 = vld [vmem:[%s2042 + $0x1c8] sm:$0xff]
    %v2101 = vld [vmem:[%s2042 + $0x1d0] sm:$0xff]
    %v2102 = vld [vmem:[%s2042 + $0x1d8] sm:$0xff]
    %v2103 = vld [vmem:[%s2042 + $0x1e0] sm:$0xff]
    %v2104 = vld [vmem:[%s2042 + $0x1e8] sm:$0xff]
    %v2105 = vld [vmem:[%s2042 + $0x1f0] sm:$0xff]
    %v2106 = vld [vmem:[%s2042 + $0x1f8] sm:$0xff]
    %2107 = vmatprep.subr.mxu0 %v2074
    %2108 = vmatpush1.msra.mxu0 %v2073
    %2109 = vmatprep.subr.mxu0 %v2072
    %2110 = vmatpush1.msra.mxu0 %v2071
    %2111 = vmatprep.subr.mxu0 %v2070
    %2112 = vmatpush1.msra.mxu0 %v2069
    %2113 = vmatprep.subr.mxu0 %v2068
    %2114 = vmatpush1.msra.mxu0 %v2067
    %2115 = vmatprep.subr.mxu0 %v2066
    %2116 = vmatpush1.msra.mxu0 %v2065
    %2117 = vmatprep.subr.mxu0 %v2064
    %2118 = vmatpush1.msra.mxu0 %v2063
    %2119 = vmatprep.subr.mxu0 %v2062
    %2120 = vmatpush1.msra.mxu0 %v2061
    %2121 = vmatprep.subr.mxu0 %v2060
    %2122 = vmatpush1.msra.mxu0 %v2059
    %2123 = vmatprep.subr.mxu0 %v2058
    %2124 = vmatpush1.msra.mxu0 %v2057
    %2125 = vmatprep.subr.mxu0 %v2056
    %2126 = vmatpush1.msra.mxu0 %v2055
    %2127 = vmatprep.subr.mxu0 %v2054
    %2128 = vmatpush1.msra.mxu0 %v2053
    %2129 = vmatprep.subr.mxu0 %v2052
    %2130 = vmatpush1.msra.mxu0 %v2051
    %2131 = vmatprep.subr.mxu0 %v2050
    %2132 = vmatpush1.msra.mxu0 %v2049
    %2133 = vmatprep.subr.mxu0 %v2048
    %2134 = vmatpush1.msra.mxu0 %v2047
    %2135 = vmatprep.subr.mxu0 %v2046
    %2136 = vmatpush1.msra.mxu0 %v2045
    %2137 = vmatprep.subr.mxu0 %v2044
    %2138 = vmatpush1.msra.mxu0 %v2043
    %2139 = vmatprep.subr.mxu0 %v2106
    %2140 = vmatpush2.msra.mxu0 %v2105
    %2141 = vmatprep.subr.mxu0 %v2104
    %2142 = vmatpush2.msra.mxu0 %v2103
    %2143 = vmatprep.subr.mxu0 %v2102
    %2144 = vmatpush2.msra.mxu0 %v2101
    %2145 = vmatprep.subr.mxu0 %v2100
    %2146 = vmatpush2.msra.mxu0 %v2099
    %2147 = vmatprep.subr.mxu0 %v2098
    %2148 = vmatpush2.msra.mxu0 %v2097
    %2149 = vmatprep.subr.mxu0 %v2096
    %2150 = vmatpush2.msra.mxu0 %v2095
    %2151 = vmatprep.subr.mxu0 %v2094
    %2152 = vmatpush2.msra.mxu0 %v2093
    %2153 = vmatprep.subr.mxu0 %v2092
    %2154 = vmatpush2.msra.mxu0 %v2091
    %2155 = vmatprep.subr.mxu0 %v2090
    %2156 = vmatpush2.msra.mxu0 %v2089
    %2157 = vmatprep.subr.mxu0 %v2088
    %2158 = vmatpush2.msra.mxu0 %v2087
    %2159 = vmatprep.subr.mxu0 %v2086
    %2160 = vmatpush2.msra.mxu0 %v2085
    %2161 = vmatprep.subr.mxu0 %v2084
    %2162 = vmatpush2.msra.mxu0 %v2083
    %2163 = vmatprep.subr.mxu0 %v2082
    %2164 = vmatpush2.msra.mxu0 %v2081
    %2165 = vmatprep.subr.mxu0 %v2080
    %2166 = vmatpush2.msra.mxu0 %v2079
    %2167 = vmatprep.subr.mxu0 %v2078
    %2168 = vmatpush2.msra.mxu0 %v2077
    %2169 = vmatprep.subr.mxu0 %v2076
    %2170 = vmatpush2.msra.mxu0 %v2075
    %2171 = vmatprep.mubr.f32.mxu0 %v2022
    %2172 = vmatmul.mubr.f32.gmra.mxu0 %v2020
    %v2173 = vpop.f32.mrf.mxu0
    %v2174 = vadd.f32 0.0, %v2173
    %v2175 = vpop.f32.mrf.mxu0
    %v2176 = vadd.f32 0.0, %v2175
    %2177 = vmatprep.mubr.f32.mxu0 %v2028
    %2178 = vmatmul.mubr.f32.gmra.mxu0 %v2026
    %v2179 = vpop.f32.mrf.mxu0
    %v2180 = vadd.f32 0.0, %v2179
    %v2181 = vpop.f32.mrf.mxu0
    %v2182 = vadd.f32 0.0, %v2181
    %2183 = vmatprep.mubr.f32.mxu0 %v2034
    %2184 = vmatmul.mubr.f32.gmra.mxu0 %v2032
    %v2185 = vpop.f32.mrf.mxu0
    %v2186 = vadd.f32 0.0, %v2185
    %v2187 = vpop.f32.mrf.mxu0
    %v2188 = vadd.f32 0.0, %v2187
    %2189 = vmatprep.mubr.f32.mxu0 %v2040
    %2190 = vmatmul.mubr.f32.gmra.mxu0 %v2038
    %v2191 = vpop.f32.mrf.mxu0
    %v2192 = vadd.f32 0.0, %v2191
    %v2193 = vpop.f32.mrf.mxu0
    %v2194 = vadd.f32 0.0, %v2193
    %2195 = vdwg.mxu0
    %v2196 = vadd.f32 %v1914, %v2174
    %v2197 = vadd.f32 %v1916, %v2176
    %v2198 = vadd.f32 %v1920, %v2180
    %v2199 = vadd.f32 %v1922, %v2182
    %v2200 = vadd.f32 %v1926, %v2186
    %v2201 = vadd.f32 %v1928, %v2188
    %v2202 = vadd.f32 %v1932, %v2192
    %v2203 = vadd.f32 %v1934, %v2194
    %s2204 = scalar_lea.vmem %s3, 96
    %v2205 = vld [vmem:[%s2204] sm:$0xff]
    %v2206 = vld [vmem:[%s2204 + $0x8] sm:$0xff]
    %v2207 = vld [vmem:[%s2204 + $0x10] sm:$0xff]
    %v2208 = vld [vmem:[%s2204 + $0x18] sm:$0xff]
    %v2210 = vsel %vm447, %v2205, 0
    %v2213 = vsel %vm447, %v2206, 0
    %v2216 = vsel %vm447, %v2207, 0
    %v2219 = vsel %vm447, %v2208, 0
    %2221 = vmatprep.subr.mxu0 0.0
    %2222 = vmatpush1.msra.mxu0 0.0
    %2223 = vmatprep.subr.mxu0 0.0
    %2224 = vmatpush1.msra.mxu0 0.0
    %2225 = vmatprep.subr.mxu0 0.0
    %2226 = vmatpush1.msra.mxu0 0.0
    %2227 = vmatprep.subr.mxu0 0.0
    %2228 = vmatpush1.msra.mxu0 0.0
    %2229 = vmatprep.subr.mxu0 0.0
    %2230 = vmatpush1.msra.mxu0 0.0
    %2231 = vmatprep.subr.mxu0 0.0
    %2232 = vmatpush1.msra.mxu0 0.0
    %2233 = vmatprep.subr.mxu0 0.0
    %2234 = vmatpush1.msra.mxu0 0.0
    %2235 = vmatprep.subr.mxu0 0.0
    %2236 = vmatpush1.msra.mxu0 0.0
    %2237 = vmatprep.subr.mxu0 %v1417
    %2238 = vmatpush1.msra.mxu0 %v1416
    %2239 = vmatprep.subr.mxu0 %v1415
    %2240 = vmatpush1.msra.mxu0 %v1414
    %2241 = vmatprep.subr.mxu0 %v1413
    %2242 = vmatpush1.msra.mxu0 %v1412
    %2243 = vmatprep.subr.mxu0 %v1411
    %2244 = vmatpush1.msra.mxu0 %v1410
    %2245 = vmatprep.subr.mxu0 %v1409
    %2246 = vmatpush1.msra.mxu0 %v1408
    %2247 = vmatprep.subr.mxu0 %v1407
    %2248 = vmatpush1.msra.mxu0 %v1406
    %2249 = vmatprep.subr.mxu0 %v1405
    %2250 = vmatpush1.msra.mxu0 %v1404
    %2251 = vmatprep.subr.mxu0 %v1403
    %2252 = vmatpush1.msra.mxu0 %v1402
    %2253 = vmatprep.subr.mxu0 0.0
    %2254 = vmatpush2.msra.mxu0 0.0
    %2255 = vmatprep.subr.mxu0 0.0
    %2256 = vmatpush2.msra.mxu0 0.0
    %2257 = vmatprep.subr.mxu0 0.0
    %2258 = vmatpush2.msra.mxu0 0.0
    %2259 = vmatprep.subr.mxu0 0.0
    %2260 = vmatpush2.msra.mxu0 0.0
    %2261 = vmatprep.subr.mxu0 0.0
    %2262 = vmatpush2.msra.mxu0 0.0
    %2263 = vmatprep.subr.mxu0 0.0
    %2264 = vmatpush2.msra.mxu0 0.0
    %2265 = vmatprep.subr.mxu0 0.0
    %2266 = vmatpush2.msra.mxu0 0.0
    %2267 = vmatprep.subr.mxu0 0.0
    %2268 = vmatpush2.msra.mxu0 0.0
    %2269 = vmatprep.subr.mxu0 0.0
    %2270 = vmatpush2.msra.mxu0 0.0
    %2271 = vmatprep.subr.mxu0 0.0
    %2272 = vmatpush2.msra.mxu0 0.0
    %2273 = vmatprep.subr.mxu0 0.0
    %2274 = vmatpush2.msra.mxu0 0.0
    %2275 = vmatprep.subr.mxu0 0.0
    %2276 = vmatpush2.msra.mxu0 0.0
    %2277 = vmatprep.subr.mxu0 0.0
    %2278 = vmatpush2.msra.mxu0 0.0
    %2279 = vmatprep.subr.mxu0 0.0
    %2280 = vmatpush2.msra.mxu0 0.0
    %2281 = vmatprep.subr.mxu0 0.0
    %2282 = vmatpush2.msra.mxu0 0.0
    %2283 = vmatprep.subr.mxu0 0.0
    %2284 = vmatpush2.msra.mxu0 0.0
    %2285 = vmatprep.mubr.f32.mxu0 0.0
    %2286 = vmatmul.mubr.f32.gmra.mxu0 %v2210
    %v2287 = vpop.f32.mrf.mxu0
    %v2288 = vadd.f32 0.0, %v2287
    %v2289 = vpop.f32.mrf.mxu0
    %v2290 = vadd.f32 0.0, %v2289
    %2291 = vmatprep.mubr.f32.mxu0 0.0
    %2292 = vmatmul.mubr.f32.gmra.mxu0 %v2213
    %v2293 = vpop.f32.mrf.mxu0
    %v2294 = vadd.f32 0.0, %v2293
    %v2295 = vpop.f32.mrf.mxu0
    %v2296 = vadd.f32 0.0, %v2295
    %2297 = vmatprep.mubr.f32.mxu0 0.0
    %2298 = vmatmul.mubr.f32.gmra.mxu0 %v2216
    %v2299 = vpop.f32.mrf.mxu0
    %v2300 = vadd.f32 0.0, %v2299
    %v2301 = vpop.f32.mrf.mxu0
    %v2302 = vadd.f32 0.0, %v2301
    %2303 = vmatprep.mubr.f32.mxu0 0.0
    %2304 = vmatmul.mubr.f32.gmra.mxu0 %v2219
    %v2305 = vpop.f32.mrf.mxu0
    %v2306 = vadd.f32 0.0, %v2305
    %v2307 = vpop.f32.mrf.mxu0
    %v2308 = vadd.f32 0.0, %v2307
    %2309 = vdwg.mxu0
    %s2310 = scalar_lea.vmem %s4, 1536
    %v2311 = vld [vmem:[%s2310] sm:$0xff]
    %v2312 = vld [vmem:[%s2310 + $0x8] sm:$0xff]
    %v2313 = vld [vmem:[%s2310 + $0x10] sm:$0xff]
    %v2314 = vld [vmem:[%s2310 + $0x18] sm:$0xff]
    %v2315 = vld [vmem:[%s2310 + $0x20] sm:$0xff]
    %v2316 = vld [vmem:[%s2310 + $0x28] sm:$0xff]
    %v2317 = vld [vmem:[%s2310 + $0x30] sm:$0xff]
    %v2318 = vld [vmem:[%s2310 + $0x38] sm:$0xff]
    %v2319 = vld [vmem:[%s2310 + $0x40] sm:$0xff]
    %v2320 = vld [vmem:[%s2310 + $0x48] sm:$0xff]
    %v2321 = vld [vmem:[%s2310 + $0x50] sm:$0xff]
    %v2322 = vld [vmem:[%s2310 + $0x58] sm:$0xff]
    %v2323 = vld [vmem:[%s2310 + $0x60] sm:$0xff]
    %v2324 = vld [vmem:[%s2310 + $0x68] sm:$0xff]
    %v2325 = vld [vmem:[%s2310 + $0x70] sm:$0xff]
    %v2326 = vld [vmem:[%s2310 + $0x78] sm:$0xff]
    %v2327 = vld [vmem:[%s2310 + $0x80] sm:$0xff]
    %v2328 = vld [vmem:[%s2310 + $0x88] sm:$0xff]
    %v2329 = vld [vmem:[%s2310 + $0x90] sm:$0xff]
    %v2330 = vld [vmem:[%s2310 + $0x98] sm:$0xff]
    %v2331 = vld [vmem:[%s2310 + $0xa0] sm:$0xff]
    %v2332 = vld [vmem:[%s2310 + $0xa8] sm:$0xff]
    %v2333 = vld [vmem:[%s2310 + $0xb0] sm:$0xff]
    %v2334 = vld [vmem:[%s2310 + $0xb8] sm:$0xff]
    %v2335 = vld [vmem:[%s2310 + $0xc0] sm:$0xff]
    %v2336 = vld [vmem:[%s2310 + $0xc8] sm:$0xff]
    %v2337 = vld [vmem:[%s2310 + $0xd0] sm:$0xff]
    %v2338 = vld [vmem:[%s2310 + $0xd8] sm:$0xff]
    %v2339 = vld [vmem:[%s2310 + $0xe0] sm:$0xff]
    %v2340 = vld [vmem:[%s2310 + $0xe8] sm:$0xff]
    %v2341 = vld [vmem:[%s2310 + $0xf0] sm:$0xff]
    %v2342 = vld [vmem:[%s2310 + $0xf8] sm:$0xff]
    %v2343 = vld [vmem:[%s2310 + $0x100] sm:$0xff]
    %v2344 = vld [vmem:[%s2310 + $0x108] sm:$0xff]
    %v2345 = vld [vmem:[%s2310 + $0x110] sm:$0xff]
    %v2346 = vld [vmem:[%s2310 + $0x118] sm:$0xff]
    %v2347 = vld [vmem:[%s2310 + $0x120] sm:$0xff]
    %v2348 = vld [vmem:[%s2310 + $0x128] sm:$0xff]
    %v2349 = vld [vmem:[%s2310 + $0x130] sm:$0xff]
    %v2350 = vld [vmem:[%s2310 + $0x138] sm:$0xff]
    %v2351 = vld [vmem:[%s2310 + $0x140] sm:$0xff]
    %v2352 = vld [vmem:[%s2310 + $0x148] sm:$0xff]
    %v2353 = vld [vmem:[%s2310 + $0x150] sm:$0xff]
    %v2354 = vld [vmem:[%s2310 + $0x158] sm:$0xff]
    %v2355 = vld [vmem:[%s2310 + $0x160] sm:$0xff]
    %v2356 = vld [vmem:[%s2310 + $0x168] sm:$0xff]
    %v2357 = vld [vmem:[%s2310 + $0x170] sm:$0xff]
    %v2358 = vld [vmem:[%s2310 + $0x178] sm:$0xff]
    %v2359 = vld [vmem:[%s2310 + $0x180] sm:$0xff]
    %v2360 = vld [vmem:[%s2310 + $0x188] sm:$0xff]
    %v2361 = vld [vmem:[%s2310 + $0x190] sm:$0xff]
    %v2362 = vld [vmem:[%s2310 + $0x198] sm:$0xff]
    %v2363 = vld [vmem:[%s2310 + $0x1a0] sm:$0xff]
    %v2364 = vld [vmem:[%s2310 + $0x1a8] sm:$0xff]
    %v2365 = vld [vmem:[%s2310 + $0x1b0] sm:$0xff]
    %v2366 = vld [vmem:[%s2310 + $0x1b8] sm:$0xff]
    %v2367 = vld [vmem:[%s2310 + $0x1c0] sm:$0xff]
    %v2368 = vld [vmem:[%s2310 + $0x1c8] sm:$0xff]
    %v2369 = vld [vmem:[%s2310 + $0x1d0] sm:$0xff]
    %v2370 = vld [vmem:[%s2310 + $0x1d8] sm:$0xff]
    %v2371 = vld [vmem:[%s2310 + $0x1e0] sm:$0xff]
    %v2372 = vld [vmem:[%s2310 + $0x1e8] sm:$0xff]
    %v2373 = vld [vmem:[%s2310 + $0x1f0] sm:$0xff]
    %v2374 = vld [vmem:[%s2310 + $0x1f8] sm:$0xff]
    %2375 = vmatprep.subr.mxu0 %v2342
    %2376 = vmatpush1.msra.mxu0 %v2341
    %2377 = vmatprep.subr.mxu0 %v2340
    %2378 = vmatpush1.msra.mxu0 %v2339
    %2379 = vmatprep.subr.mxu0 %v2338
    %2380 = vmatpush1.msra.mxu0 %v2337
    %2381 = vmatprep.subr.mxu0 %v2336
    %2382 = vmatpush1.msra.mxu0 %v2335
    %2383 = vmatprep.subr.mxu0 %v2334
    %2384 = vmatpush1.msra.mxu0 %v2333
    %2385 = vmatprep.subr.mxu0 %v2332
    %2386 = vmatpush1.msra.mxu0 %v2331
    %2387 = vmatprep.subr.mxu0 %v2330
    %2388 = vmatpush1.msra.mxu0 %v2329
    %2389 = vmatprep.subr.mxu0 %v2328
    %2390 = vmatpush1.msra.mxu0 %v2327
    %2391 = vmatprep.subr.mxu0 %v2326
    %2392 = vmatpush1.msra.mxu0 %v2325
    %2393 = vmatprep.subr.mxu0 %v2324
    %2394 = vmatpush1.msra.mxu0 %v2323
    %2395 = vmatprep.subr.mxu0 %v2322
    %2396 = vmatpush1.msra.mxu0 %v2321
    %2397 = vmatprep.subr.mxu0 %v2320
    %2398 = vmatpush1.msra.mxu0 %v2319
    %2399 = vmatprep.subr.mxu0 %v2318
    %2400 = vmatpush1.msra.mxu0 %v2317
    %2401 = vmatprep.subr.mxu0 %v2316
    %2402 = vmatpush1.msra.mxu0 %v2315
    %2403 = vmatprep.subr.mxu0 %v2314
    %2404 = vmatpush1.msra.mxu0 %v2313
    %2405 = vmatprep.subr.mxu0 %v2312
    %2406 = vmatpush1.msra.mxu0 %v2311
    %2407 = vmatprep.subr.mxu0 %v2374
    %2408 = vmatpush2.msra.mxu0 %v2373
    %2409 = vmatprep.subr.mxu0 %v2372
    %2410 = vmatpush2.msra.mxu0 %v2371
    %2411 = vmatprep.subr.mxu0 %v2370
    %2412 = vmatpush2.msra.mxu0 %v2369
    %2413 = vmatprep.subr.mxu0 %v2368
    %2414 = vmatpush2.msra.mxu0 %v2367
    %2415 = vmatprep.subr.mxu0 %v2366
    %2416 = vmatpush2.msra.mxu0 %v2365
    %2417 = vmatprep.subr.mxu0 %v2364
    %2418 = vmatpush2.msra.mxu0 %v2363
    %2419 = vmatprep.subr.mxu0 %v2362
    %2420 = vmatpush2.msra.mxu0 %v2361
    %2421 = vmatprep.subr.mxu0 %v2360
    %2422 = vmatpush2.msra.mxu0 %v2359
    %2423 = vmatprep.subr.mxu0 %v2358
    %2424 = vmatpush2.msra.mxu0 %v2357
    %2425 = vmatprep.subr.mxu0 %v2356
    %2426 = vmatpush2.msra.mxu0 %v2355
    %2427 = vmatprep.subr.mxu0 %v2354
    %2428 = vmatpush2.msra.mxu0 %v2353
    %2429 = vmatprep.subr.mxu0 %v2352
    %2430 = vmatpush2.msra.mxu0 %v2351
    %2431 = vmatprep.subr.mxu0 %v2350
    %2432 = vmatpush2.msra.mxu0 %v2349
    %2433 = vmatprep.subr.mxu0 %v2348
    %2434 = vmatpush2.msra.mxu0 %v2347
    %2435 = vmatprep.subr.mxu0 %v2346
    %2436 = vmatpush2.msra.mxu0 %v2345
    %2437 = vmatprep.subr.mxu0 %v2344
    %2438 = vmatpush2.msra.mxu0 %v2343
    %2439 = vmatprep.mubr.f32.mxu0 %v2290
    %2440 = vmatmul.mubr.f32.gmra.mxu0 %v2288
    %v2441 = vpop.f32.mrf.mxu0
    %v2442 = vadd.f32 0.0, %v2441
    %v2443 = vpop.f32.mrf.mxu0
    %v2444 = vadd.f32 0.0, %v2443
    %2445 = vmatprep.mubr.f32.mxu0 %v2296
    %2446 = vmatmul.mubr.f32.gmra.mxu0 %v2294
    %v2447 = vpop.f32.mrf.mxu0
    %v2448 = vadd.f32 0.0, %v2447
    %v2449 = vpop.f32.mrf.mxu0
    %v2450 = vadd.f32 0.0, %v2449
    %2451 = vmatprep.mubr.f32.mxu0 %v2302
    %2452 = vmatmul.mubr.f32.gmra.mxu0 %v2300
    %v2453 = vpop.f32.mrf.mxu0
    %v2454 = vadd.f32 0.0, %v2453
    %v2455 = vpop.f32.mrf.mxu0
    %v2456 = vadd.f32 0.0, %v2455
    %2457 = vmatprep.mubr.f32.mxu0 %v2308
    %2458 = vmatmul.mubr.f32.gmra.mxu0 %v2306
    %v2459 = vpop.f32.mrf.mxu0
    %v2460 = vadd.f32 0.0, %v2459
    %v2461 = vpop.f32.mrf.mxu0
    %v2462 = vadd.f32 0.0, %v2461
    %2463 = vdwg.mxu0
    %v2464 = vadd.f32 %v2196, %v2442
    %v2465 = vadd.f32 %v2197, %v2444
    %v2466 = vadd.f32 %v2198, %v2448
    %v2467 = vadd.f32 %v2199, %v2450
    %v2468 = vadd.f32 %v2200, %v2454
    %v2469 = vadd.f32 %v2201, %v2456
    %v2470 = vadd.f32 %v2202, %v2460
    %v2471 = vadd.f32 %v2203, %v2462
    %v2472 = vld [vmem:[%s5] sm:$0xff]
    %v2473 = vld [vmem:[%s5 + $0x8] sm:$0xff]
    %v2474 = vld [vmem:[%s5 + $0x10] sm:$0xff]
    %v2475 = vld [vmem:[%s5 + $0x18] sm:$0xff]
    %v2476 = vld [vmem:[%s5 + $0x20] sm:$0xff]
    %v2477 = vld [vmem:[%s5 + $0x28] sm:$0xff]
    %v2478 = vld [vmem:[%s5 + $0x30] sm:$0xff]
    %v2479 = vld [vmem:[%s5 + $0x38] sm:$0xff]
    %v2480 = vld [vmem:[%s5 + $0x40] sm:$0xff]
    %v2481 = vld [vmem:[%s5 + $0x48] sm:$0xff]
    %v2482 = vld [vmem:[%s5 + $0x50] sm:$0xff]
    %v2483 = vld [vmem:[%s5 + $0x58] sm:$0xff]
    %v2484 = vld [vmem:[%s5 + $0x60] sm:$0xff]
    %v2485 = vld [vmem:[%s5 + $0x68] sm:$0xff]
    %v2486 = vld [vmem:[%s5 + $0x70] sm:$0xff]
    %v2487 = vld [vmem:[%s5 + $0x78] sm:$0xff]
    %v2488 = vld [vmem:[%s5 + $0x80] sm:$0xff]
    %v2489 = vld [vmem:[%s5 + $0x88] sm:$0xff]
    %v2490 = vld [vmem:[%s5 + $0x90] sm:$0xff]
    %v2491 = vld [vmem:[%s5 + $0x98] sm:$0xff]
    %v2492 = vld [vmem:[%s5 + $0xa0] sm:$0xff]
    %v2493 = vld [vmem:[%s5 + $0xa8] sm:$0xff]
    %v2494 = vld [vmem:[%s5 + $0xb0] sm:$0xff]
    %v2495 = vld [vmem:[%s5 + $0xb8] sm:$0xff]
    %v2496 = vld [vmem:[%s5 + $0xc0] sm:$0xff]
    %v2497 = vld [vmem:[%s5 + $0xc8] sm:$0xff]
    %v2498 = vld [vmem:[%s5 + $0xd0] sm:$0xff]
    %v2499 = vld [vmem:[%s5 + $0xd8] sm:$0xff]
    %v2500 = vld [vmem:[%s5 + $0xe0] sm:$0xff]
    %v2501 = vld [vmem:[%s5 + $0xe8] sm:$0xff]
    %v2502 = vld [vmem:[%s5 + $0xf0] sm:$0xff]
    %v2503 = vld [vmem:[%s5 + $0xf8] sm:$0xff]
    %v2504 = vld [vmem:[%s6] sm:$0xff]
    %v2505 = vld [vmem:[%s6 + $0x8] sm:$0xff]
    %v2506 = vld [vmem:[%s6 + $0x10] sm:$0xff]
    %v2507 = vld [vmem:[%s6 + $0x18] sm:$0xff]
    %v2508 = vld [vmem:[%s7] sm:$0x1]
    %v2509 = vld [vmem:[%s8] sm:$0x1]
    %v2510 = vadd.f32 %v2464, %v2466
    %v2511 = vadd.f32 %v2510, %v2468
    %v2512 = vadd.f32 %v2511, %v2470
    %v2513 = vrot.slane %v2512, 4
    %v2514 = vadd.f32 %v2512, %v2513
    %v2515 = vrot.slane %v2514, 2
    %v2516 = vadd.f32 %v2514, %v2515
    %v2517 = vrot.slane %v2516, 1
    %v2518 = vadd.f32 %v2516, %v2517
    %v2519 = vadd.f32 %v2465, %v2467
    %v2520 = vadd.f32 %v2519, %v2469
    %v2521 = vadd.f32 %v2520, %v2471
    %v2522 = vrot.slane %v2521, 4
    %v2523 = vadd.f32 %v2521, %v2522
    %v2524 = vrot.slane %v2523, 2
    %v2525 = vadd.f32 %v2523, %v2524
    %v2526 = vrot.slane %v2525, 1
    %v2527 = vadd.f32 %v2525, %v2526
    %2528 = vmatprep.subr.mxu0 0.0
    %2529 = vmatpush1.msra.mxu0 %v2487
    %2530 = vmatprep.subr.mxu0 0.0
    %2531 = vmatpush1.msra.mxu0 %v2486
    %2532 = vmatprep.subr.mxu0 0.0
    %2533 = vmatpush1.msra.mxu0 %v2485
    %2534 = vmatprep.subr.mxu0 0.0
    %2535 = vmatpush1.msra.mxu0 %v2484
    %2536 = vmatprep.subr.mxu0 0.0
    %2537 = vmatpush1.msra.mxu0 %v2483
    %2538 = vmatprep.subr.mxu0 0.0
    %2539 = vmatpush1.msra.mxu0 %v2482
    %2540 = vmatprep.subr.mxu0 0.0
    %2541 = vmatpush1.msra.mxu0 %v2481
    %2542 = vmatprep.subr.mxu0 0.0
    %2543 = vmatpush1.msra.mxu0 %v2480
    %2544 = vmatprep.subr.mxu0 0.0
    %2545 = vmatpush1.msra.mxu0 %v2479
    %2546 = vmatprep.subr.mxu0 0.0
    %2547 = vmatpush1.msra.mxu0 %v2478
    %2548 = vmatprep.subr.mxu0 0.0
    %2549 = vmatpush1.msra.mxu0 %v2477
    %2550 = vmatprep.subr.mxu0 0.0
    %2551 = vmatpush1.msra.mxu0 %v2476
    %2552 = vmatprep.subr.mxu0 0.0
    %2553 = vmatpush1.msra.mxu0 %v2475
    %2554 = vmatprep.subr.mxu0 0.0
    %2555 = vmatpush1.msra.mxu0 %v2474
    %2556 = vmatprep.subr.mxu0 0.0
    %2557 = vmatpush1.msra.mxu0 %v2473
    %2558 = vmatprep.subr.mxu0 0.0
    %2559 = vmatpush1.msra.mxu0 %v2472
    %2560 = vmatprep.subr.mxu0 0.0
    %2561 = vmatpush2.msra.mxu0 %v2503
    %2562 = vmatprep.subr.mxu0 0.0
    %2563 = vmatpush2.msra.mxu0 %v2502
    %2564 = vmatprep.subr.mxu0 0.0
    %2565 = vmatpush2.msra.mxu0 %v2501
    %2566 = vmatprep.subr.mxu0 0.0
    %2567 = vmatpush2.msra.mxu0 %v2500
    %2568 = vmatprep.subr.mxu0 0.0
    %2569 = vmatpush2.msra.mxu0 %v2499
    %2570 = vmatprep.subr.mxu0 0.0
    %2571 = vmatpush2.msra.mxu0 %v2498
    %2572 = vmatprep.subr.mxu0 0.0
    %2573 = vmatpush2.msra.mxu0 %v2497
    %2574 = vmatprep.subr.mxu0 0.0
    %2575 = vmatpush2.msra.mxu0 %v2496
    %2576 = vmatprep.subr.mxu0 0.0
    %2577 = vmatpush2.msra.mxu0 %v2495
    %2578 = vmatprep.subr.mxu0 0.0
    %2579 = vmatpush2.msra.mxu0 %v2494
    %2580 = vmatprep.subr.mxu0 0.0
    %2581 = vmatpush2.msra.mxu0 %v2493
    %2582 = vmatprep.subr.mxu0 0.0
    %2583 = vmatpush2.msra.mxu0 %v2492
    %2584 = vmatprep.subr.mxu0 0.0
    %2585 = vmatpush2.msra.mxu0 %v2491
    %2586 = vmatprep.subr.mxu0 0.0
    %2587 = vmatpush2.msra.mxu0 %v2490
    %2588 = vmatprep.subr.mxu0 0.0
    %2589 = vmatpush2.msra.mxu0 %v2489
    %2590 = vmatprep.subr.mxu0 0.0
    %2591 = vmatpush2.msra.mxu0 %v2488
    %2592 = vmatprep.mubr.f32.mxu0 %v2527
    %2593 = vmatmul.mubr.f32.gmra.mxu0 %v2518
    %v2594 = vpop.f32.mrf.mxu0
    %v2595 = vadd.f32 0.0, %v2594
    %v2596 = vpop.f32.mrf.mxu0
    %2597 = vdwg.mxu0
    %v2598 = vmul.f32 %v2464, %v2464
    %v2599 = vmul.f32 %v2465, %v2465
    %v2600 = vmul.f32 %v2466, %v2466
    %v2601 = vmul.f32 %v2467, %v2467
    %v2602 = vmul.f32 %v2468, %v2468
    %v2603 = vmul.f32 %v2469, %v2469
    %v2604 = vmul.f32 %v2470, %v2470
    %v2605 = vmul.f32 %v2471, %v2471
    %v2606 = vadd.f32 %v2598, %v2600
    %v2607 = vadd.f32 %v2606, %v2602
    %v2608 = vadd.f32 %v2607, %v2604
    %v2609 = vrot.slane %v2608, 4
    %v2610 = vadd.f32 %v2608, %v2609
    %v2611 = vrot.slane %v2610, 2
    %v2612 = vadd.f32 %v2610, %v2611
    %v2613 = vrot.slane %v2612, 1
    %v2614 = vadd.f32 %v2612, %v2613
    %v2615 = vadd.f32 %v2599, %v2601
    %v2616 = vadd.f32 %v2615, %v2603
    %v2617 = vadd.f32 %v2616, %v2605
    %v2618 = vrot.slane %v2617, 4
    %v2619 = vadd.f32 %v2617, %v2618
    %v2620 = vrot.slane %v2619, 2
    %v2621 = vadd.f32 %v2619, %v2620
    %v2622 = vrot.slane %v2621, 1
    %v2623 = vadd.f32 %v2621, %v2622
    %2624 = vmatprep.subr.mxu0 0.0
    %2625 = vmatpush1.msra.mxu0 %v2487
    %2626 = vmatprep.subr.mxu0 0.0
    %2627 = vmatpush1.msra.mxu0 %v2486
    %2628 = vmatprep.subr.mxu0 0.0
    %2629 = vmatpush1.msra.mxu0 %v2485
    %2630 = vmatprep.subr.mxu0 0.0
    %2631 = vmatpush1.msra.mxu0 %v2484
    %2632 = vmatprep.subr.mxu0 0.0
    %2633 = vmatpush1.msra.mxu0 %v2483
    %2634 = vmatprep.subr.mxu0 0.0
    %2635 = vmatpush1.msra.mxu0 %v2482
    %2636 = vmatprep.subr.mxu0 0.0
    %2637 = vmatpush1.msra.mxu0 %v2481
    %2638 = vmatprep.subr.mxu0 0.0
    %2639 = vmatpush1.msra.mxu0 %v2480
    %2640 = vmatprep.subr.mxu0 0.0
    %2641 = vmatpush1.msra.mxu0 %v2479
    %2642 = vmatprep.subr.mxu0 0.0
    %2643 = vmatpush1.msra.mxu0 %v2478
    %2644 = vmatprep.subr.mxu0 0.0
    %2645 = vmatpush1.msra.mxu0 %v2477
    %2646 = vmatprep.subr.mxu0 0.0
    %2647 = vmatpush1.msra.mxu0 %v2476
    %2648 = vmatprep.subr.mxu0 0.0
    %2649 = vmatpush1.msra.mxu0 %v2475
    %2650 = vmatprep.subr.mxu0 0.0
    %2651 = vmatpush1.msra.mxu0 %v2474
    %2652 = vmatprep.subr.mxu0 0.0
    %2653 = vmatpush1.msra.mxu0 %v2473
    %2654 = vmatprep.subr.mxu0 0.0
    %2655 = vmatpush1.msra.mxu0 %v2472
    %2656 = vmatprep.subr.mxu0 0.0
    %2657 = vmatpush2.msra.mxu0 %v2503
    %2658 = vmatprep.subr.mxu0 0.0
    %2659 = vmatpush2.msra.mxu0 %v2502
    %2660 = vmatprep.subr.mxu0 0.0
    %2661 = vmatpush2.msra.mxu0 %v2501
    %2662 = vmatprep.subr.mxu0 0.0
    %2663 = vmatpush2.msra.mxu0 %v2500
    %2664 = vmatprep.subr.mxu0 0.0
    %2665 = vmatpush2.msra.mxu0 %v2499
    %2666 = vmatprep.subr.mxu0 0.0
    %2667 = vmatpush2.msra.mxu0 %v2498
    %2668 = vmatprep.subr.mxu0 0.0
    %2669 = vmatpush2.msra.mxu0 %v2497
    %2670 = vmatprep.subr.mxu0 0.0
    %2671 = vmatpush2.msra.mxu0 %v2496
    %2672 = vmatprep.subr.mxu0 0.0
    %2673 = vmatpush2.msra.mxu0 %v2495
    %2674 = vmatprep.subr.mxu0 0.0
    %2675 = vmatpush2.msra.mxu0 %v2494
    %2676 = vmatprep.subr.mxu0 0.0
    %2677 = vmatpush2.msra.mxu0 %v2493
    %2678 = vmatprep.subr.mxu0 0.0
    %2679 = vmatpush2.msra.mxu0 %v2492
    %2680 = vmatprep.subr.mxu0 0.0
    %2681 = vmatpush2.msra.mxu0 %v2491
    %2682 = vmatprep.subr.mxu0 0.0
    %2683 = vmatpush2.msra.mxu0 %v2490
    %2684 = vmatprep.subr.mxu0 0.0
    %2685 = vmatpush2.msra.mxu0 %v2489
    %2686 = vmatprep.subr.mxu0 0.0
    %2687 = vmatpush2.msra.mxu0 %v2488
    %2688 = vmatprep.mubr.f32.mxu0 %v2623
    %2689 = vmatmul.mubr.f32.gmra.mxu0 %v2614
    %v2690 = vpop.f32.mrf.mxu0
    %v2691 = vadd.f32 0.0, %v2690
    %v2692 = vpop.f32.mrf.mxu0
    %2693 = vdwg.mxu0
    %v2694 = vmul.f32 %v2595, 0.001953125
    %v2695 = vmul.f32 %v2691, 0.001953125
    %v2696 = vmul.f32 %v2694, %v2694
    %v2697 = vsub.f32 %v2695, %v2696
    %v2698 = vadd.f32 %v2697, 1e-05
    %v2699 = vrsqrt.pop %v2698
    %v2700 = vmul.f32 %v2508, %v2699
    %v2701 = vmul.f32 %v2694, %v2700
    %v2702 = vsub.f32 %v2509, %v2701
    %vm2703 = vcmask 130048
    %v2705 = vsel %vm2703, %v2700, 0
    %2707 = vmatprep.subr.mxu0 0.0
    %2708 = vmatpush1.msra.mxu0 0.0
    %2709 = vmatprep.subr.mxu0 0.0
    %2710 = vmatpush1.msra.mxu0 0.0
    %2711 = vmatprep.subr.mxu0 0.0
    %2712 = vmatpush1.msra.mxu0 0.0
    %2713 = vmatprep.subr.mxu0 0.0
    %2714 = vmatpush1.msra.mxu0 0.0
    %2715 = vmatprep.subr.mxu0 0.0
    %2716 = vmatpush1.msra.mxu0 0.0
    %2717 = vmatprep.subr.mxu0 0.0
    %2718 = vmatpush1.msra.mxu0 0.0
    %2719 = vmatprep.subr.mxu0 0.0
    %2720 = vmatpush1.msra.mxu0 0.0
    %2721 = vmatprep.subr.mxu0 0.0
    %2722 = vmatpush1.msra.mxu0 0.0
    %2723 = vmatprep.subr.mxu0 0.0
    %2724 = vmatpush1.msra.mxu0 0.0
    %2725 = vmatprep.subr.mxu0 0.0
    %2726 = vmatpush1.msra.mxu0 0.0
    %2727 = vmatprep.subr.mxu0 0.0
    %2728 = vmatpush1.msra.mxu0 0.0
    %2729 = vmatprep.subr.mxu0 0.0
    %2730 = vmatpush1.msra.mxu0 0.0
    %2731 = vmatprep.subr.mxu0 0.0
    %2732 = vmatpush1.msra.mxu0 0.0
    %2733 = vmatprep.subr.mxu0 0.0
    %2734 = vmatpush1.msra.mxu0 0.0
    %2735 = vmatprep.subr.mxu0 %v2507
    %2736 = vmatpush1.msra.mxu0 %v2506
    %2737 = vmatprep.subr.mxu0 %v2505
    %2738 = vmatpush1.msra.mxu0 %v2504
    %2739 = vmatprep.subr.mxu0 0.0
    %2740 = vmatpush2.msra.mxu0 0.0
    %2741 = vmatprep.subr.mxu0 0.0
    %2742 = vmatpush2.msra.mxu0 0.0
    %2743 = vmatprep.subr.mxu0 0.0
    %2744 = vmatpush2.msra.mxu0 0.0
    %2745 = vmatprep.subr.mxu0 0.0
    %2746 = vmatpush2.msra.mxu0 0.0
    %2747 = vmatprep.subr.mxu0 0.0
    %2748 = vmatpush2.msra.mxu0 0.0
    %2749 = vmatprep.subr.mxu0 0.0
    %2750 = vmatpush2.msra.mxu0 0.0
    %2751 = vmatprep.subr.mxu0 0.0
    %2752 = vmatpush2.msra.mxu0 0.0
    %2753 = vmatprep.subr.mxu0 0.0
    %2754 = vmatpush2.msra.mxu0 0.0
    %2755 = vmatprep.subr.mxu0 0.0
    %2756 = vmatpush2.msra.mxu0 0.0
    %2757 = vmatprep.subr.mxu0 0.0
    %2758 = vmatpush2.msra.mxu0 0.0
    %2759 = vmatprep.subr.mxu0 0.0
    %2760 = vmatpush2.msra.mxu0 0.0
    %2761 = vmatprep.subr.mxu0 0.0
    %2762 = vmatpush2.msra.mxu0 0.0
    %2763 = vmatprep.subr.mxu0 0.0
    %2764 = vmatpush2.msra.mxu0 0.0
    %2765 = vmatprep.subr.mxu0 0.0
    %2766 = vmatpush2.msra.mxu0 0.0
    %2767 = vmatprep.subr.mxu0 0.0
    %2768 = vmatpush2.msra.mxu0 0.0
    %2769 = vmatprep.subr.mxu0 0.0
    %2770 = vmatpush2.msra.mxu0 0.0
    %2771 = vmatprep.mubr.f32.mxu0 0.0
    %2772 = vmatmul.mubr.f32.gmra.mxu0 %v2705
    %v2773 = vpop.f32.mrf.mxu0
    %v2774 = vadd.f32 0.0, %v2773
    %v2775 = vpop.f32.mrf.mxu0
    %v2776 = vadd.f32 0.0, %v2775
    %2777 = vdwg.mxu0
    %v2778 = vlaneseq
    %v2779 = vshrl.u32 %v2778, 7
    %v2780 = vsub.s32 0, %v2779
    %v2781 = vrot.slane %v2774, %v2780
    %v2782 = vlaneseq
    %v2783 = vshrl.u32 %v2782, 7
    %v2784 = vsub.s32 0, %v2783
    %v2785 = vrot.slane %v2776, %v2784
    %v2786 = vmul.f32 %v2464, %v2781
    %v2787 = vmul.f32 %v2465, %v2785
    %v2788 = vmul.f32 %v2466, %v2781
    %v2789 = vmul.f32 %v2467, %v2785
    %v2790 = vmul.f32 %v2468, %v2781
    %v2791 = vmul.f32 %v2469, %v2785
    %v2792 = vmul.f32 %v2470, %v2781
    %v2793 = vmul.f32 %v2471, %v2785
    %v2795 = vsel %vm2703, %v2702, 0
    %2797 = vmatprep.subr.mxu0 0.0
    %2798 = vmatpush1.msra.mxu0 0.0
    %2799 = vmatprep.subr.mxu0 0.0
    %2800 = vmatpush1.msra.mxu0 0.0
    %2801 = vmatprep.subr.mxu0 0.0
    %2802 = vmatpush1.msra.mxu0 0.0
    %2803 = vmatprep.subr.mxu0 0.0
    %2804 = vmatpush1.msra.mxu0 0.0
    %2805 = vmatprep.subr.mxu0 0.0
    %2806 = vmatpush1.msra.mxu0 0.0
    %2807 = vmatprep.subr.mxu0 0.0
    %2808 = vmatpush1.msra.mxu0 0.0
    %2809 = vmatprep.subr.mxu0 0.0
    %2810 = vmatpush1.msra.mxu0 0.0
    %2811 = vmatprep.subr.mxu0 0.0
    %2812 = vmatpush1.msra.mxu0 0.0
    %2813 = vmatprep.subr.mxu0 0.0
    %2814 = vmatpush1.msra.mxu0 0.0
    %2815 = vmatprep.subr.mxu0 0.0
    %2816 = vmatpush1.msra.mxu0 0.0
    %2817 = vmatprep.subr.mxu0 0.0
    %2818 = vmatpush1.msra.mxu0 0.0
    %2819 = vmatprep.subr.mxu0 0.0
    %2820 = vmatpush1.msra.mxu0 0.0
    %2821 = vmatprep.subr.mxu0 0.0
    %2822 = vmatpush1.msra.mxu0 0.0
    %2823 = vmatprep.subr.mxu0 0.0
    %2824 = vmatpush1.msra.mxu0 0.0
    %2825 = vmatprep.subr.mxu0 %v2507
    %2826 = vmatpush1.msra.mxu0 %v2506
    %2827 = vmatprep.subr.mxu0 %v2505
    %2828 = vmatpush1.msra.mxu0 %v2504
    %2829 = vmatprep.subr.mxu0 0.0
    %2830 = vmatpush2.msra.mxu0 0.0
    %2831 = vmatprep.subr.mxu0 0.0
    %2832 = vmatpush2.msra.mxu0 0.0
    %2833 = vmatprep.subr.mxu0 0.0
    %2834 = vmatpush2.msra.mxu0 0.0
    %2835 = vmatprep.subr.mxu0 0.0
    %2836 = vmatpush2.msra.mxu0 0.0
    %2837 = vmatprep.subr.mxu0 0.0
    %2838 = vmatpush2.msra.mxu0 0.0
    %2839 = vmatprep.subr.mxu0 0.0
    %2840 = vmatpush2.msra.mxu0 0.0
    %2841 = vmatprep.subr.mxu0 0.0
    %2842 = vmatpush2.msra.mxu0 0.0
    %2843 = vmatprep.subr.mxu0 0.0
    %2844 = vmatpush2.msra.mxu0 0.0
    %2845 = vmatprep.subr.mxu0 0.0
    %2846 = vmatpush2.msra.mxu0 0.0
    %2847 = vmatprep.subr.mxu0 0.0
    %2848 = vmatpush2.msra.mxu0 0.0
    %2849 = vmatprep.subr.mxu0 0.0
    %2850 = vmatpush2.msra.mxu0 0.0
    %2851 = vmatprep.subr.mxu0 0.0
    %2852 = vmatpush2.msra.mxu0 0.0
    %2853 = vmatprep.subr.mxu0 0.0
    %2854 = vmatpush2.msra.mxu0 0.0
    %2855 = vmatprep.subr.mxu0 0.0
    %2856 = vmatpush2.msra.mxu0 0.0
    %2857 = vmatprep.subr.mxu0 0.0
    %2858 = vmatpush2.msra.mxu0 0.0
    %2859 = vmatprep.subr.mxu0 0.0
    %2860 = vmatpush2.msra.mxu0 0.0
    %2861 = vmatprep.mubr.f32.mxu0 0.0
    %2862 = vmatmul.mubr.f32.gmra.mxu0 %v2795
    %v2863 = vpop.f32.mrf.mxu0
    %v2864 = vadd.f32 0.0, %v2863
    %v2865 = vpop.f32.mrf.mxu0
    %v2866 = vadd.f32 0.0, %v2865
    %2867 = vdwg.mxu0
    %v2868 = vlaneseq
    %v2869 = vshrl.u32 %v2868, 7
    %v2870 = vsub.s32 0, %v2869
    %v2871 = vrot.slane %v2864, %v2870
    %v2872 = vlaneseq
    %v2873 = vshrl.u32 %v2872, 7
    %v2874 = vsub.s32 0, %v2873
    %v2875 = vrot.slane %v2866, %v2874
    %v2876 = vadd.f32 %v2786, %v2871
    %v2877 = vadd.f32 %v2787, %v2875
    %v2878 = vadd.f32 %v2788, %v2871
    %v2879 = vadd.f32 %v2789, %v2875
    %v2880 = vadd.f32 %v2790, %v2871
    %v2881 = vadd.f32 %v2791, %v2875
    %v2882 = vadd.f32 %v2792, %v2871
    %v2883 = vadd.f32 %v2793, %v2875
    %vm2884 = vcmp.ge.f32.partialorder %v2876, 0.0
    %vm2885 = vcmp.ge.f32.partialorder %v2877, 0.0
    %vm2886 = vcmp.ge.f32.partialorder %v2878, 0.0
    %vm2887 = vcmp.ge.f32.partialorder %v2879, 0.0
    %vm2888 = vcmp.ge.f32.partialorder %v2880, 0.0
    %vm2889 = vcmp.ge.f32.partialorder %v2881, 0.0
    %vm2890 = vcmp.ge.f32.partialorder %v2882, 0.0
    %vm2891 = vcmp.ge.f32.partialorder %v2883, 0.0
    %v2892 = vmul.f32 %v2876, 0.2
    %v2893 = vmul.f32 %v2877, 0.2
    %v2894 = vmul.f32 %v2878, 0.2
    %v2895 = vmul.f32 %v2879, 0.2
    %v2896 = vmul.f32 %v2880, 0.2
    %v2897 = vmul.f32 %v2881, 0.2
    %v2898 = vmul.f32 %v2882, 0.2
    %v2899 = vmul.f32 %v2883, 0.2
    %v2900 = vsel %vm2884, %v2876, %v2892
    %v2901 = vsel %vm2885, %v2877, %v2893
    %v2902 = vsel %vm2886, %v2878, %v2894
    %v2903 = vsel %vm2887, %v2879, %v2895
    %v2904 = vsel %vm2888, %v2880, %v2896
    %v2905 = vsel %vm2889, %v2881, %v2897
    %v2906 = vsel %vm2890, %v2882, %v2898
    %v2907 = vsel %vm2891, %v2883, %v2899
    %v2908 = vld [vmem:[%s9] sm:$0xff]
    %v2909 = vld [vmem:[%s9 + $0x8] sm:$0xff]
    %vm2910 = vcmask 261120
    %v2912 = vsel %vm2910, %v2908, 0
    %v2915 = vsel %vm2910, %v2909, 0
    %2917 = vmatprep.subr.mxu0 0.0
    %2918 = vmatpush1.msra.mxu0 0.0
    %2919 = vmatprep.subr.mxu0 0.0
    %2920 = vmatpush1.msra.mxu0 0.0
    %2921 = vmatprep.subr.mxu0 0.0
    %2922 = vmatpush1.msra.mxu0 0.0
    %2923 = vmatprep.subr.mxu0 0.0
    %2924 = vmatpush1.msra.mxu0 0.0
    %2925 = vmatprep.subr.mxu0 0.0
    %2926 = vmatpush1.msra.mxu0 0.0
    %2927 = vmatprep.subr.mxu0 0.0
    %2928 = vmatpush1.msra.mxu0 0.0
    %2929 = vmatprep.subr.mxu0 0.0
    %2930 = vmatpush1.msra.mxu0 0.0
    %2931 = vmatprep.subr.mxu0 0.0
    %2932 = vmatpush1.msra.mxu0 0.0
    %2933 = vmatprep.subr.mxu0 0.0
    %2934 = vmatpush1.msra.mxu0 0.0
    %2935 = vmatprep.subr.mxu0 0.0
    %2936 = vmatpush1.msra.mxu0 0.0
    %2937 = vmatprep.subr.mxu0 0.0
    %2938 = vmatpush1.msra.mxu0 0.0
    %2939 = vmatprep.subr.mxu0 0.0
    %2940 = vmatpush1.msra.mxu0 0.0
    %2941 = vmatprep.subr.mxu0 %v2907
    %2942 = vmatpush1.msra.mxu0 %v2906
    %2943 = vmatprep.subr.mxu0 %v2905
    %2944 = vmatpush1.msra.mxu0 %v2904
    %2945 = vmatprep.subr.mxu0 %v2903
    %2946 = vmatpush1.msra.mxu0 %v2902
    %2947 = vmatprep.subr.mxu0 %v2901
    %2948 = vmatpush1.msra.mxu0 %v2900
    %2949 = vmatprep.subr.mxu0 0.0
    %2950 = vmatpush2.msra.mxu0 0.0
    %2951 = vmatprep.subr.mxu0 0.0
    %2952 = vmatpush2.msra.mxu0 0.0
    %2953 = vmatprep.subr.mxu0 0.0
    %2954 = vmatpush2.msra.mxu0 0.0
    %2955 = vmatprep.subr.mxu0 0.0
    %2956 = vmatpush2.msra.mxu0 0.0
    %2957 = vmatprep.subr.mxu0 0.0
    %2958 = vmatpush2.msra.mxu0 0.0
    %2959 = vmatprep.subr.mxu0 0.0
    %2960 = vmatpush2.msra.mxu0 0.0
    %2961 = vmatprep.subr.mxu0 0.0
    %2962 = vmatpush2.msra.mxu0 0.0
    %2963 = vmatprep.subr.mxu0 0.0
    %2964 = vmatpush2.msra.mxu0 0.0
    %2965 = vmatprep.subr.mxu0 0.0
    %2966 = vmatpush2.msra.mxu0 0.0
    %2967 = vmatprep.subr.mxu0 0.0
    %2968 = vmatpush2.msra.mxu0 0.0
    %2969 = vmatprep.subr.mxu0 0.0
    %2970 = vmatpush2.msra.mxu0 0.0
    %2971 = vmatprep.subr.mxu0 0.0
    %2972 = vmatpush2.msra.mxu0 0.0
    %2973 = vmatprep.subr.mxu0 0.0
    %2974 = vmatpush2.msra.mxu0 0.0
    %2975 = vmatprep.subr.mxu0 0.0
    %2976 = vmatpush2.msra.mxu0 0.0
    %2977 = vmatprep.subr.mxu0 0.0
    %2978 = vmatpush2.msra.mxu0 0.0
    %2979 = vmatprep.subr.mxu0 0.0
    %2980 = vmatpush2.msra.mxu0 0.0
    %2981 = vmatprep.mubr.f32.mxu0 0.0
    %2982 = vmatmul.mubr.f32.gmra.mxu0 %v2912
    %v2983 = vpop.f32.mrf.mxu0
    %v2984 = vadd.f32 0.0, %v2983
    %v2985 = vpop.f32.mrf.mxu0
    %v2986 = vadd.f32 0.0, %v2985
    %2987 = vmatprep.mubr.f32.mxu0 0.0
    %2988 = vmatmul.mubr.f32.gmra.mxu0 %v2915
    %v2989 = vpop.f32.mrf.mxu0
    %v2990 = vadd.f32 0.0, %v2989
    %v2991 = vpop.f32.mrf.mxu0
    %v2992 = vadd.f32 0.0, %v2991
    %2993 = vdwg.mxu0
    %v2994 = vld [vmem:[%s10] sm:$0xff]
    %v2995 = vld [vmem:[%s10 + $0x8] sm:$0xff]
    %v2996 = vld [vmem:[%s10 + $0x10] sm:$0xff]
    %v2997 = vld [vmem:[%s10 + $0x18] sm:$0xff]
    %v2998 = vld [vmem:[%s10 + $0x20] sm:$0xff]
    %v2999 = vld [vmem:[%s10 + $0x28] sm:$0xff]
    %v3000 = vld [vmem:[%s10 + $0x30] sm:$0xff]
    %v3001 = vld [vmem:[%s10 + $0x38] sm:$0xff]
    %v3002 = vld [vmem:[%s10 + $0x40] sm:$0xff]
    %v3003 = vld [vmem:[%s10 + $0x48] sm:$0xff]
    %v3004 = vld [vmem:[%s10 + $0x50] sm:$0xff]
    %v3005 = vld [vmem:[%s10 + $0x58] sm:$0xff]
    %v3006 = vld [vmem:[%s10 + $0x60] sm:$0xff]
    %v3007 = vld [vmem:[%s10 + $0x68] sm:$0xff]
    %v3008 = vld [vmem:[%s10 + $0x70] sm:$0xff]
    %v3009 = vld [vmem:[%s10 + $0x78] sm:$0xff]
    %v3010 = vld [vmem:[%s10 + $0x80] sm:$0xff]
    %v3011 = vld [vmem:[%s10 + $0x88] sm:$0xff]
    %v3012 = vld [vmem:[%s10 + $0x90] sm:$0xff]
    %v3013 = vld [vmem:[%s10 + $0x98] sm:$0xff]
    %v3014 = vld [vmem:[%s10 + $0xa0] sm:$0xff]
    %v3015 = vld [vmem:[%s10 + $0xa8] sm:$0xff]
    %v3016 = vld [vmem:[%s10 + $0xb0] sm:$0xff]
    %v3017 = vld [vmem:[%s10 + $0xb8] sm:$0xff]
    %v3018 = vld [vmem:[%s10 + $0xc0] sm:$0xff]
    %v3019 = vld [vmem:[%s10 + $0xc8] sm:$0xff]
    %v3020 = vld [vmem:[%s10 + $0xd0] sm:$0xff]
    %v3021 = vld [vmem:[%s10 + $0xd8] sm:$0xff]
    %v3022 = vld [vmem:[%s10 + $0xe0] sm:$0xff]
    %v3023 = vld [vmem:[%s10 + $0xe8] sm:$0xff]
    %v3024 = vld [vmem:[%s10 + $0xf0] sm:$0xff]
    %v3025 = vld [vmem:[%s10 + $0xf8] sm:$0xff]
    %v3026 = vld [vmem:[%s10 + $0x100] sm:$0xff]
    %v3027 = vld [vmem:[%s10 + $0x108] sm:$0xff]
    %v3028 = vld [vmem:[%s10 + $0x110] sm:$0xff]
    %v3029 = vld [vmem:[%s10 + $0x118] sm:$0xff]
    %v3030 = vld [vmem:[%s10 + $0x120] sm:$0xff]
    %v3031 = vld [vmem:[%s10 + $0x128] sm:$0xff]
    %v3032 = vld [vmem:[%s10 + $0x130] sm:$0xff]
    %v3033 = vld [vmem:[%s10 + $0x138] sm:$0xff]
    %v3034 = vld [vmem:[%s10 + $0x140] sm:$0xff]
    %v3035 = vld [vmem:[%s10 + $0x148] sm:$0xff]
    %v3036 = vld [vmem:[%s10 + $0x150] sm:$0xff]
    %v3037 = vld [vmem:[%s10 + $0x158] sm:$0xff]
    %v3038 = vld [vmem:[%s10 + $0x160] sm:$0xff]
    %v3039 = vld [vmem:[%s10 + $0x168] sm:$0xff]
    %v3040 = vld [vmem:[%s10 + $0x170] sm:$0xff]
    %v3041 = vld [vmem:[%s10 + $0x178] sm:$0xff]
    %v3042 = vld [vmem:[%s10 + $0x180] sm:$0xff]
    %v3043 = vld [vmem:[%s10 + $0x188] sm:$0xff]
    %v3044 = vld [vmem:[%s10 + $0x190] sm:$0xff]
    %v3045 = vld [vmem:[%s10 + $0x198] sm:$0xff]
    %v3046 = vld [vmem:[%s10 + $0x1a0] sm:$0xff]
    %v3047 = vld [vmem:[%s10 + $0x1a8] sm:$0xff]
    %v3048 = vld [vmem:[%s10 + $0x1b0] sm:$0xff]
    %v3049 = vld [vmem:[%s10 + $0x1b8] sm:$0xff]
    %v3050 = vld [vmem:[%s10 + $0x1c0] sm:$0xff]
    %v3051 = vld [vmem:[%s10 + $0x1c8] sm:$0xff]
    %v3052 = vld [vmem:[%s10 + $0x1d0] sm:$0xff]
    %v3053 = vld [vmem:[%s10 + $0x1d8] sm:$0xff]
    %v3054 = vld [vmem:[%s10 + $0x1e0] sm:$0xff]
    %v3055 = vld [vmem:[%s10 + $0x1e8] sm:$0xff]
    %v3056 = vld [vmem:[%s10 + $0x1f0] sm:$0xff]
    %v3057 = vld [vmem:[%s10 + $0x1f8] sm:$0xff]
    %s3058 = scalar_lea.vmem %s9, 16
    %v3059 = vld [vmem:[%s3058] sm:$0xff]
    %v3060 = vld [vmem:[%s3058 + $0x8] sm:$0xff]
    %v3062 = vsel %vm2910, %v3059, 0
    %v3065 = vsel %vm2910, %v3060, 0
    %3067 = vmatprep.subr.mxu0 0.0
    %3068 = vmatpush1.msra.mxu0 0.0
    %3069 = vmatprep.subr.mxu0 0.0
    %3070 = vmatpush1.msra.mxu0 0.0
    %3071 = vmatprep.subr.mxu0 0.0
    %3072 = vmatpush1.msra.mxu0 0.0
    %3073 = vmatprep.subr.mxu0 0.0
    %3074 = vmatpush1.msra.mxu0 0.0
    %3075 = vmatprep.subr.mxu0 0.0
    %3076 = vmatpush1.msra.mxu0 0.0
    %3077 = vmatprep.subr.mxu0 0.0
    %3078 = vmatpush1.msra.mxu0 0.0
    %3079 = vmatprep.subr.mxu0 0.0
    %3080 = vmatpush1.msra.mxu0 0.0
    %3081 = vmatprep.subr.mxu0 0.0
    %3082 = vmatpush1.msra.mxu0 0.0
    %3083 = vmatprep.subr.mxu0 0.0
    %3084 = vmatpush1.msra.mxu0 0.0
    %3085 = vmatprep.subr.mxu0 0.0
    %3086 = vmatpush1.msra.mxu0 0.0
    %3087 = vmatprep.subr.mxu0 0.0
    %3088 = vmatpush1.msra.mxu0 0.0
    %3089 = vmatprep.subr.mxu0 0.0
    %3090 = vmatpush1.msra.mxu0 0.0
    %3091 = vmatprep.subr.mxu0 %v2907
    %3092 = vmatpush1.msra.mxu0 %v2906
    %3093 = vmatprep.subr.mxu0 %v2905
    %3094 = vmatpush1.msra.mxu0 %v2904
    %3095 = vmatprep.subr.mxu0 %v2903
    %3096 = vmatpush1.msra.mxu0 %v2902
    %3097 = vmatprep.subr.mxu0 %v2901
    %3098 = vmatpush1.msra.mxu0 %v2900
    %3099 = vmatprep.subr.mxu0 0.0
    %3100 = vmatpush2.msra.mxu0 0.0
    %3101 = vmatprep.subr.mxu0 0.0
    %3102 = vmatpush2.msra.mxu0 0.0
    %3103 = vmatprep.subr.mxu0 0.0
    %3104 = vmatpush2.msra.mxu0 0.0
    %3105 = vmatprep.subr.mxu0 0.0
    %3106 = vmatpush2.msra.mxu0 0.0
    %3107 = vmatprep.subr.mxu0 0.0
    %3108 = vmatpush2.msra.mxu0 0.0
    %3109 = vmatprep.subr.mxu0 0.0
    %3110 = vmatpush2.msra.mxu0 0.0
    %3111 = vmatprep.subr.mxu0 0.0
    %3112 = vmatpush2.msra.mxu0 0.0
    %3113 = vmatprep.subr.mxu0 0.0
    %3114 = vmatpush2.msra.mxu0 0.0
    %3115 = vmatprep.subr.mxu0 0.0
    %3116 = vmatpush2.msra.mxu0 0.0
    %3117 = vmatprep.subr.mxu0 0.0
    %3118 = vmatpush2.msra.mxu0 0.0
    %3119 = vmatprep.subr.mxu0 0.0
    %3120 = vmatpush2.msra.mxu0 0.0
    %3121 = vmatprep.subr.mxu0 0.0
    %3122 = vmatpush2.msra.mxu0 0.0
    %3123 = vmatprep.subr.mxu0 0.0
    %3124 = vmatpush2.msra.mxu0 0.0
    %3125 = vmatprep.subr.mxu0 0.0
    %3126 = vmatpush2.msra.mxu0 0.0
    %3127 = vmatprep.subr.mxu0 0.0
    %3128 = vmatpush2.msra.mxu0 0.0
    %3129 = vmatprep.subr.mxu0 0.0
    %3130 = vmatpush2.msra.mxu0 0.0
    %3131 = vmatprep.mubr.f32.mxu0 0.0
    %3132 = vmatmul.mubr.f32.gmra.mxu0 %v3062
    %v3133 = vpop.f32.mrf.mxu0
    %v3134 = vadd.f32 0.0, %v3133
    %v3135 = vpop.f32.mrf.mxu0
    %v3136 = vadd.f32 0.0, %v3135
    %3137 = vmatprep.mubr.f32.mxu0 0.0
    %3138 = vmatmul.mubr.f32.gmra.mxu0 %v3065
    %v3139 = vpop.f32.mrf.mxu0
    %v3140 = vadd.f32 0.0, %v3139
    %v3141 = vpop.f32.mrf.mxu0
    %v3142 = vadd.f32 0.0, %v3141
    %3143 = vdwg.mxu0
    %s3144 = scalar_lea.vmem %s10, 512
    %v3145 = vld [vmem:[%s3144] sm:$0xff]
    %v3146 = vld [vmem:[%s3144 + $0x8] sm:$0xff]
    %v3147 = vld [vmem:[%s3144 + $0x10] sm:$0xff]
    %v3148 = vld [vmem:[%s3144 + $0x18] sm:$0xff]
    %v3149 = vld [vmem:[%s3144 + $0x20] sm:$0xff]
    %v3150 = vld [vmem:[%s3144 + $0x28] sm:$0xff]
    %v3151 = vld [vmem:[%s3144 + $0x30] sm:$0xff]
    %v3152 = vld [vmem:[%s3144 + $0x38] sm:$0xff]
    %v3153 = vld [vmem:[%s3144 + $0x40] sm:$0xff]
    %v3154 = vld [vmem:[%s3144 + $0x48] sm:$0xff]
    %v3155 = vld [vmem:[%s3144 + $0x50] sm:$0xff]
    %v3156 = vld [vmem:[%s3144 + $0x58] sm:$0xff]
    %v3157 = vld [vmem:[%s3144 + $0x60] sm:$0xff]
    %v3158 = vld [vmem:[%s3144 + $0x68] sm:$0xff]
    %v3159 = vld [vmem:[%s3144 + $0x70] sm:$0xff]
    %v3160 = vld [vmem:[%s3144 + $0x78] sm:$0xff]
    %v3161 = vld [vmem:[%s3144 + $0x80] sm:$0xff]
    %v3162 = vld [vmem:[%s3144 + $0x88] sm:$0xff]
    %v3163 = vld [vmem:[%s3144 + $0x90] sm:$0xff]
    %v3164 = vld [vmem:[%s3144 + $0x98] sm:$0xff]
    %v3165 = vld [vmem:[%s3144 + $0xa0] sm:$0xff]
    %v3166 = vld [vmem:[%s3144 + $0xa8] sm:$0xff]
    %v3167 = vld [vmem:[%s3144 + $0xb0] sm:$0xff]
    %v3168 = vld [vmem:[%s3144 + $0xb8] sm:$0xff]
    %v3169 = vld [vmem:[%s3144 + $0xc0] sm:$0xff]
    %v3170 = vld [vmem:[%s3144 + $0xc8] sm:$0xff]
    %v3171 = vld [vmem:[%s3144 + $0xd0] sm:$0xff]
    %v3172 = vld [vmem:[%s3144 + $0xd8] sm:$0xff]
    %v3173 = vld [vmem:[%s3144 + $0xe0] sm:$0xff]
    %v3174 = vld [vmem:[%s3144 + $0xe8] sm:$0xff]
    %v3175 = vld [vmem:[%s3144 + $0xf0] sm:$0xff]
    %v3176 = vld [vmem:[%s3144 + $0xf8] sm:$0xff]
    %v3177 = vld [vmem:[%s3144 + $0x100] sm:$0xff]
    %v3178 = vld [vmem:[%s3144 + $0x108] sm:$0xff]
    %v3179 = vld [vmem:[%s3144 + $0x110] sm:$0xff]
    %v3180 = vld [vmem:[%s3144 + $0x118] sm:$0xff]
    %v3181 = vld [vmem:[%s3144 + $0x120] sm:$0xff]
    %v3182 = vld [vmem:[%s3144 + $0x128] sm:$0xff]
    %v3183 = vld [vmem:[%s3144 + $0x130] sm:$0xff]
    %v3184 = vld [vmem:[%s3144 + $0x138] sm:$0xff]
    %v3185 = vld [vmem:[%s3144 + $0x140] sm:$0xff]
    %v3186 = vld [vmem:[%s3144 + $0x148] sm:$0xff]
    %v3187 = vld [vmem:[%s3144 + $0x150] sm:$0xff]
    %v3188 = vld [vmem:[%s3144 + $0x158] sm:$0xff]
    %v3189 = vld [vmem:[%s3144 + $0x160] sm:$0xff]
    %v3190 = vld [vmem:[%s3144 + $0x168] sm:$0xff]
    %v3191 = vld [vmem:[%s3144 + $0x170] sm:$0xff]
    %v3192 = vld [vmem:[%s3144 + $0x178] sm:$0xff]
    %v3193 = vld [vmem:[%s3144 + $0x180] sm:$0xff]
    %v3194 = vld [vmem:[%s3144 + $0x188] sm:$0xff]
    %v3195 = vld [vmem:[%s3144 + $0x190] sm:$0xff]
    %v3196 = vld [vmem:[%s3144 + $0x198] sm:$0xff]
    %v3197 = vld [vmem:[%s3144 + $0x1a0] sm:$0xff]
    %v3198 = vld [vmem:[%s3144 + $0x1a8] sm:$0xff]
    %v3199 = vld [vmem:[%s3144 + $0x1b0] sm:$0xff]
    %v3200 = vld [vmem:[%s3144 + $0x1b8] sm:$0xff]
    %v3201 = vld [vmem:[%s3144 + $0x1c0] sm:$0xff]
    %v3202 = vld [vmem:[%s3144 + $0x1c8] sm:$0xff]
    %v3203 = vld [vmem:[%s3144 + $0x1d0] sm:$0xff]
    %v3204 = vld [vmem:[%s3144 + $0x1d8] sm:$0xff]
    %v3205 = vld [vmem:[%s3144 + $0x1e0] sm:$0xff]
    %v3206 = vld [vmem:[%s3144 + $0x1e8] sm:$0xff]
    %v3207 = vld [vmem:[%s3144 + $0x1f0] sm:$0xff]
    %v3208 = vld [vmem:[%s3144 + $0x1f8] sm:$0xff]
    %3209 = vmatprep.subr.mxu0 %v3176
    %3210 = vmatpush1.msra.mxu0 %v3175
    %3211 = vmatprep.subr.mxu0 %v3174
    %3212 = vmatpush1.msra.mxu0 %v3173
    %3213 = vmatprep.subr.mxu0 %v3172
    %3214 = vmatpush1.msra.mxu0 %v3171
    %3215 = vmatprep.subr.mxu0 %v3170
    %3216 = vmatpush1.msra.mxu0 %v3169
    %3217 = vmatprep.subr.mxu0 %v3168
    %3218 = vmatpush1.msra.mxu0 %v3167
    %3219 = vmatprep.subr.mxu0 %v3166
    %3220 = vmatpush1.msra.mxu0 %v3165
    %3221 = vmatprep.subr.mxu0 %v3164
    %3222 = vmatpush1.msra.mxu0 %v3163
    %3223 = vmatprep.subr.mxu0 %v3162
    %3224 = vmatpush1.msra.mxu0 %v3161
    %3225 = vmatprep.subr.mxu0 %v3160
    %3226 = vmatpush1.msra.mxu0 %v3159
    %3227 = vmatprep.subr.mxu0 %v3158
    %3228 = vmatpush1.msra.mxu0 %v3157
    %3229 = vmatprep.subr.mxu0 %v3156
    %3230 = vmatpush1.msra.mxu0 %v3155
    %3231 = vmatprep.subr.mxu0 %v3154
    %3232 = vmatpush1.msra.mxu0 %v3153
    %3233 = vmatprep.subr.mxu0 %v3152
    %3234 = vmatpush1.msra.mxu0 %v3151
    %3235 = vmatprep.subr.mxu0 %v3150
    %3236 = vmatpush1.msra.mxu0 %v3149
    %3237 = vmatprep.subr.mxu0 %v3148
    %3238 = vmatpush1.msra.mxu0 %v3147
    %3239 = vmatprep.subr.mxu0 %v3146
    %3240 = vmatpush1.msra.mxu0 %v3145
    %3241 = vmatprep.subr.mxu0 %v3208
    %3242 = vmatpush2.msra.mxu0 %v3207
    %3243 = vmatprep.subr.mxu0 %v3206
    %3244 = vmatpush2.msra.mxu0 %v3205
    %3245 = vmatprep.subr.mxu0 %v3204
    %3246 = vmatpush2.msra.mxu0 %v3203
    %3247 = vmatprep.subr.mxu0 %v3202
    %3248 = vmatpush2.msra.mxu0 %v3201
    %3249 = vmatprep.subr.mxu0 %v3200
    %3250 = vmatpush2.msra.mxu0 %v3199
    %3251 = vmatprep.subr.mxu0 %v3198
    %3252 = vmatpush2.msra.mxu0 %v3197
    %3253 = vmatprep.subr.mxu0 %v3196
    %3254 = vmatpush2.msra.mxu0 %v3195
    %3255 = vmatprep.subr.mxu0 %v3194
    %3256 = vmatpush2.msra.mxu0 %v3193
    %3257 = vmatprep.subr.mxu0 %v3192
    %3258 = vmatpush2.msra.mxu0 %v3191
    %3259 = vmatprep.subr.mxu0 %v3190
    %3260 = vmatpush2.msra.mxu0 %v3189
    %3261 = vmatprep.subr.mxu0 %v3188
    %3262 = vmatpush2.msra.mxu0 %v3187
    %3263 = vmatprep.subr.mxu0 %v3186
    %3264 = vmatpush2.msra.mxu0 %v3185
    %3265 = vmatprep.subr.mxu0 %v3184
    %3266 = vmatpush2.msra.mxu0 %v3183
    %3267 = vmatprep.subr.mxu0 %v3182
    %3268 = vmatpush2.msra.mxu0 %v3181
    %3269 = vmatprep.subr.mxu0 %v3180
    %3270 = vmatpush2.msra.mxu0 %v3179
    %3271 = vmatprep.subr.mxu0 %v3178
    %3272 = vmatpush2.msra.mxu0 %v3177
    %3273 = vmatprep.mubr.f32.mxu0 %v3136
    %3274 = vmatmul.mubr.f32.gmra.mxu0 %v3134
    %v3275 = vpop.f32.mrf.mxu0
    %v3276 = vadd.f32 0.0, %v3275
    %v3277 = vpop.f32.mrf.mxu0
    %v3278 = vadd.f32 0.0, %v3277
    %3279 = vmatprep.mubr.f32.mxu0 %v3142
    %3280 = vmatmul.mubr.f32.gmra.mxu0 %v3140
    %v3281 = vpop.f32.mrf.mxu0
    %v3282 = vadd.f32 0.0, %v3281
    %v3283 = vpop.f32.mrf.mxu0
    %v3284 = vadd.f32 0.0, %v3283
    %3285 = vdwg.mxu0
    %3286 = vmatprep.subr.mxu0 %v3025
    %3287 = vmatpush1.msra.mxu0 %v3024
    %3288 = vmatprep.subr.mxu0 %v3023
    %3289 = vmatpush1.msra.mxu0 %v3022
    %3290 = vmatprep.subr.mxu0 %v3021
    %3291 = vmatpush1.msra.mxu0 %v3020
    %3292 = vmatprep.subr.mxu0 %v3019
    %3293 = vmatpush1.msra.mxu0 %v3018
    %3294 = vmatprep.subr.mxu0 %v3017
    %3295 = vmatpush1.msra.mxu0 %v3016
    %3296 = vmatprep.subr.mxu0 %v3015
    %3297 = vmatpush1.msra.mxu0 %v3014
    %3298 = vmatprep.subr.mxu0 %v3013
    %3299 = vmatpush1.msra.mxu0 %v3012
    %3300 = vmatprep.subr.mxu0 %v3011
    %3301 = vmatpush1.msra.mxu0 %v3010
    %3302 = vmatprep.subr.mxu0 %v3009
    %3303 = vmatpush1.msra.mxu0 %v3008
    %3304 = vmatprep.subr.mxu0 %v3007
    %3305 = vmatpush1.msra.mxu0 %v3006
    %3306 = vmatprep.subr.mxu0 %v3005
    %3307 = vmatpush1.msra.mxu0 %v3004
    %3308 = vmatprep.subr.mxu0 %v3003
    %3309 = vmatpush1.msra.mxu0 %v3002
    %3310 = vmatprep.subr.mxu0 %v3001
    %3311 = vmatpush1.msra.mxu0 %v3000
    %3312 = vmatprep.subr.mxu0 %v2999
    %3313 = vmatpush1.msra.mxu0 %v2998
    %3314 = vmatprep.subr.mxu0 %v2997
    %3315 = vmatpush1.msra.mxu0 %v2996
    %3316 = vmatprep.subr.mxu0 %v2995
    %3317 = vmatpush1.msra.mxu0 %v2994
    %3318 = vmatprep.subr.mxu0 %v3057
    %3319 = vmatpush2.msra.mxu0 %v3056
    %3320 = vmatprep.subr.mxu0 %v3055
    %3321 = vmatpush2.msra.mxu0 %v3054
    %3322 = vmatprep.subr.mxu0 %v3053
    %3323 = vmatpush2.msra.mxu0 %v3052
    %3324 = vmatprep.subr.mxu0 %v3051
    %3325 = vmatpush2.msra.mxu0 %v3050
    %3326 = vmatprep.subr.mxu0 %v3049
    %3327 = vmatpush2.msra.mxu0 %v3048
    %3328 = vmatprep.subr.mxu0 %v3047
    %3329 = vmatpush2.msra.mxu0 %v3046
    %3330 = vmatprep.subr.mxu0 %v3045
    %3331 = vmatpush2.msra.mxu0 %v3044
    %3332 = vmatprep.subr.mxu0 %v3043
    %3333 = vmatpush2.msra.mxu0 %v3042
    %3334 = vmatprep.subr.mxu0 %v3041
    %3335 = vmatpush2.msra.mxu0 %v3040
    %3336 = vmatprep.subr.mxu0 %v3039
    %3337 = vmatpush2.msra.mxu0 %v3038
    %3338 = vmatprep.subr.mxu0 %v3037
    %3339 = vmatpush2.msra.mxu0 %v3036
    %3340 = vmatprep.subr.mxu0 %v3035
    %3341 = vmatpush2.msra.mxu0 %v3034
    %3342 = vmatprep.subr.mxu0 %v3033
    %3343 = vmatpush2.msra.mxu0 %v3032
    %3344 = vmatprep.subr.mxu0 %v3031
    %3345 = vmatpush2.msra.mxu0 %v3030
    %3346 = vmatprep.subr.mxu0 %v3029
    %3347 = vmatpush2.msra.mxu0 %v3028
    %3348 = vmatprep.subr.mxu0 %v3027
    %3349 = vmatpush2.msra.mxu0 %v3026
    %3350 = vmatprep.mubr.f32.mxu0 %v2986
    %3351 = vmatmul.mubr.f32.gmra.mxu0 %v2984
    %v3352 = vpop.f32.mrf.mxu0
    %v3353 = vadd.f32 %v3276, %v3352
    %v3354 = vpop.f32.mrf.mxu0
    %v3355 = vadd.f32 %v3278, %v3354
    %3356 = vmatprep.mubr.f32.mxu0 %v2992
    %3357 = vmatmul.mubr.f32.gmra.mxu0 %v2990
    %v3358 = vpop.f32.mrf.mxu0
    %v3359 = vadd.f32 %v3282, %v3358
    %v3360 = vpop.f32.mrf.mxu0
    %v3361 = vadd.f32 %v3284, %v3360
    %3362 = vdwg.mxu0
    %s3363 = scalar_lea.vmem %s9, 32
    %v3364 = vld [vmem:[%s3363] sm:$0xff]
    %v3365 = vld [vmem:[%s3363 + $0x8] sm:$0xff]
    %v3367 = vsel %vm2910, %v3364, 0
    %v3370 = vsel %vm2910, %v3365, 0
    %3372 = vmatprep.subr.mxu0 0.0
    %3373 = vmatpush1.msra.mxu0 0.0
    %3374 = vmatprep.subr.mxu0 0.0
    %3375 = vmatpush1.msra.mxu0 0.0
    %3376 = vmatprep.subr.mxu0 0.0
    %3377 = vmatpush1.msra.mxu0 0.0
    %3378 = vmatprep.subr.mxu0 0.0
    %3379 = vmatpush1.msra.mxu0 0.0
    %3380 = vmatprep.subr.mxu0 0.0
    %3381 = vmatpush1.msra.mxu0 0.0
    %3382 = vmatprep.subr.mxu0 0.0
    %3383 = vmatpush1.msra.mxu0 0.0
    %3384 = vmatprep.subr.mxu0 0.0
    %3385 = vmatpush1.msra.mxu0 0.0
    %3386 = vmatprep.subr.mxu0 0.0
    %3387 = vmatpush1.msra.mxu0 0.0
    %3388 = vmatprep.subr.mxu0 0.0
    %3389 = vmatpush1.msra.mxu0 0.0
    %3390 = vmatprep.subr.mxu0 0.0
    %3391 = vmatpush1.msra.mxu0 0.0
    %3392 = vmatprep.subr.mxu0 0.0
    %3393 = vmatpush1.msra.mxu0 0.0
    %3394 = vmatprep.subr.mxu0 0.0
    %3395 = vmatpush1.msra.mxu0 0.0
    %3396 = vmatprep.subr.mxu0 %v2907
    %3397 = vmatpush1.msra.mxu0 %v2906
    %3398 = vmatprep.subr.mxu0 %v2905
    %3399 = vmatpush1.msra.mxu0 %v2904
    %3400 = vmatprep.subr.mxu0 %v2903
    %3401 = vmatpush1.msra.mxu0 %v2902
    %3402 = vmatprep.subr.mxu0 %v2901
    %3403 = vmatpush1.msra.mxu0 %v2900
    %3404 = vmatprep.subr.mxu0 0.0
    %3405 = vmatpush2.msra.mxu0 0.0
    %3406 = vmatprep.subr.mxu0 0.0
    %3407 = vmatpush2.msra.mxu0 0.0
    %3408 = vmatprep.subr.mxu0 0.0
    %3409 = vmatpush2.msra.mxu0 0.0
    %3410 = vmatprep.subr.mxu0 0.0
    %3411 = vmatpush2.msra.mxu0 0.0
    %3412 = vmatprep.subr.mxu0 0.0
    %3413 = vmatpush2.msra.mxu0 0.0
    %3414 = vmatprep.subr.mxu0 0.0
    %3415 = vmatpush2.msra.mxu0 0.0
    %3416 = vmatprep.subr.mxu0 0.0
    %3417 = vmatpush2.msra.mxu0 0.0
    %3418 = vmatprep.subr.mxu0 0.0
    %3419 = vmatpush2.msra.mxu0 0.0
    %3420 = vmatprep.subr.mxu0 0.0
    %3421 = vmatpush2.msra.mxu0 0.0
    %3422 = vmatprep.subr.mxu0 0.0
    %3423 = vmatpush2.msra.mxu0 0.0
    %3424 = vmatprep.subr.mxu0 0.0
    %3425 = vmatpush2.msra.mxu0 0.0
    %3426 = vmatprep.subr.mxu0 0.0
    %3427 = vmatpush2.msra.mxu0 0.0
    %3428 = vmatprep.subr.mxu0 0.0
    %3429 = vmatpush2.msra.mxu0 0.0
    %3430 = vmatprep.subr.mxu0 0.0
    %3431 = vmatpush2.msra.mxu0 0.0
    %3432 = vmatprep.subr.mxu0 0.0
    %3433 = vmatpush2.msra.mxu0 0.0
    %3434 = vmatprep.subr.mxu0 0.0
    %3435 = vmatpush2.msra.mxu0 0.0
    %3436 = vmatprep.mubr.f32.mxu0 0.0
    %3437 = vmatmul.mubr.f32.gmra.mxu0 %v3367
    %v3438 = vpop.f32.mrf.mxu0
    %v3439 = vadd.f32 0.0, %v3438
    %v3440 = vpop.f32.mrf.mxu0
    %v3441 = vadd.f32 0.0, %v3440
    %3442 = vmatprep.mubr.f32.mxu0 0.0
    %3443 = vmatmul.mubr.f32.gmra.mxu0 %v3370
    %v3444 = vpop.f32.mrf.mxu0
    %v3445 = vadd.f32 0.0, %v3444
    %v3446 = vpop.f32.mrf.mxu0
    %v3447 = vadd.f32 0.0, %v3446
    %3448 = vdwg.mxu0
    %s3449 = scalar_lea.vmem %s10, 1024
    %v3450 = vld [vmem:[%s3449] sm:$0xff]
    %v3451 = vld [vmem:[%s3449 + $0x8] sm:$0xff]
    %v3452 = vld [vmem:[%s3449 + $0x10] sm:$0xff]
    %v3453 = vld [vmem:[%s3449 + $0x18] sm:$0xff]
    %v3454 = vld [vmem:[%s3449 + $0x20] sm:$0xff]
    %v3455 = vld [vmem:[%s3449 + $0x28] sm:$0xff]
    %v3456 = vld [vmem:[%s3449 + $0x30] sm:$0xff]
    %v3457 = vld [vmem:[%s3449 + $0x38] sm:$0xff]
    %v3458 = vld [vmem:[%s3449 + $0x40] sm:$0xff]
    %v3459 = vld [vmem:[%s3449 + $0x48] sm:$0xff]
    %v3460 = vld [vmem:[%s3449 + $0x50] sm:$0xff]
    %v3461 = vld [vmem:[%s3449 + $0x58] sm:$0xff]
    %v3462 = vld [vmem:[%s3449 + $0x60] sm:$0xff]
    %v3463 = vld [vmem:[%s3449 + $0x68] sm:$0xff]
    %v3464 = vld [vmem:[%s3449 + $0x70] sm:$0xff]
    %v3465 = vld [vmem:[%s3449 + $0x78] sm:$0xff]
    %v3466 = vld [vmem:[%s3449 + $0x80] sm:$0xff]
    %v3467 = vld [vmem:[%s3449 + $0x88] sm:$0xff]
    %v3468 = vld [vmem:[%s3449 + $0x90] sm:$0xff]
    %v3469 = vld [vmem:[%s3449 + $0x98] sm:$0xff]
    %v3470 = vld [vmem:[%s3449 + $0xa0] sm:$0xff]
    %v3471 = vld [vmem:[%s3449 + $0xa8] sm:$0xff]
    %v3472 = vld [vmem:[%s3449 + $0xb0] sm:$0xff]
    %v3473 = vld [vmem:[%s3449 + $0xb8] sm:$0xff]
    %v3474 = vld [vmem:[%s3449 + $0xc0] sm:$0xff]
    %v3475 = vld [vmem:[%s3449 + $0xc8] sm:$0xff]
    %v3476 = vld [vmem:[%s3449 + $0xd0] sm:$0xff]
    %v3477 = vld [vmem:[%s3449 + $0xd8] sm:$0xff]
    %v3478 = vld [vmem:[%s3449 + $0xe0] sm:$0xff]
    %v3479 = vld [vmem:[%s3449 + $0xe8] sm:$0xff]
    %v3480 = vld [vmem:[%s3449 + $0xf0] sm:$0xff]
    %v3481 = vld [vmem:[%s3449 + $0xf8] sm:$0xff]
    %v3482 = vld [vmem:[%s3449 + $0x100] sm:$0xff]
    %v3483 = vld [vmem:[%s3449 + $0x108] sm:$0xff]
    %v3484 = vld [vmem:[%s3449 + $0x110] sm:$0xff]
    %v3485 = vld [vmem:[%s3449 + $0x118] sm:$0xff]
    %v3486 = vld [vmem:[%s3449 + $0x120] sm:$0xff]
    %v3487 = vld [vmem:[%s3449 + $0x128] sm:$0xff]
    %v3488 = vld [vmem:[%s3449 + $0x130] sm:$0xff]
    %v3489 = vld [vmem:[%s3449 + $0x138] sm:$0xff]
    %v3490 = vld [vmem:[%s3449 + $0x140] sm:$0xff]
    %v3491 = vld [vmem:[%s3449 + $0x148] sm:$0xff]
    %v3492 = vld [vmem:[%s3449 + $0x150] sm:$0xff]
    %v3493 = vld [vmem:[%s3449 + $0x158] sm:$0xff]
    %v3494 = vld [vmem:[%s3449 + $0x160] sm:$0xff]
    %v3495 = vld [vmem:[%s3449 + $0x168] sm:$0xff]
    %v3496 = vld [vmem:[%s3449 + $0x170] sm:$0xff]
    %v3497 = vld [vmem:[%s3449 + $0x178] sm:$0xff]
    %v3498 = vld [vmem:[%s3449 + $0x180] sm:$0xff]
    %v3499 = vld [vmem:[%s3449 + $0x188] sm:$0xff]
    %v3500 = vld [vmem:[%s3449 + $0x190] sm:$0xff]
    %v3501 = vld [vmem:[%s3449 + $0x198] sm:$0xff]
    %v3502 = vld [vmem:[%s3449 + $0x1a0] sm:$0xff]
    %v3503 = vld [vmem:[%s3449 + $0x1a8] sm:$0xff]
    %v3504 = vld [vmem:[%s3449 + $0x1b0] sm:$0xff]
    %v3505 = vld [vmem:[%s3449 + $0x1b8] sm:$0xff]
    %v3506 = vld [vmem:[%s3449 + $0x1c0] sm:$0xff]
    %v3507 = vld [vmem:[%s3449 + $0x1c8] sm:$0xff]
    %v3508 = vld [vmem:[%s3449 + $0x1d0] sm:$0xff]
    %v3509 = vld [vmem:[%s3449 + $0x1d8] sm:$0xff]
    %v3510 = vld [vmem:[%s3449 + $0x1e0] sm:$0xff]
    %v3511 = vld [vmem:[%s3449 + $0x1e8] sm:$0xff]
    %v3512 = vld [vmem:[%s3449 + $0x1f0] sm:$0xff]
    %v3513 = vld [vmem:[%s3449 + $0x1f8] sm:$0xff]
    %3514 = vmatprep.subr.mxu0 %v3481
    %3515 = vmatpush1.msra.mxu0 %v3480
    %3516 = vmatprep.subr.mxu0 %v3479
    %3517 = vmatpush1.msra.mxu0 %v3478
    %3518 = vmatprep.subr.mxu0 %v3477
    %3519 = vmatpush1.msra.mxu0 %v3476
    %3520 = vmatprep.subr.mxu0 %v3475
    %3521 = vmatpush1.msra.mxu0 %v3474
    %3522 = vmatprep.subr.mxu0 %v3473
    %3523 = vmatpush1.msra.mxu0 %v3472
    %3524 = vmatprep.subr.mxu0 %v3471
    %3525 = vmatpush1.msra.mxu0 %v3470
    %3526 = vmatprep.subr.mxu0 %v3469
    %3527 = vmatpush1.msra.mxu0 %v3468
    %3528 = vmatprep.subr.mxu0 %v3467
    %3529 = vmatpush1.msra.mxu0 %v3466
    %3530 = vmatprep.subr.mxu0 %v3465
    %3531 = vmatpush1.msra.mxu0 %v3464
    %3532 = vmatprep.subr.mxu0 %v3463
    %3533 = vmatpush1.msra.mxu0 %v3462
    %3534 = vmatprep.subr.mxu0 %v3461
    %3535 = vmatpush1.msra.mxu0 %v3460
    %3536 = vmatprep.subr.mxu0 %v3459
    %3537 = vmatpush1.msra.mxu0 %v3458
    %3538 = vmatprep.subr.mxu0 %v3457
    %3539 = vmatpush1.msra.mxu0 %v3456
    %3540 = vmatprep.subr.mxu0 %v3455
    %3541 = vmatpush1.msra.mxu0 %v3454
    %3542 = vmatprep.subr.mxu0 %v3453
    %3543 = vmatpush1.msra.mxu0 %v3452
    %3544 = vmatprep.subr.mxu0 %v3451
    %3545 = vmatpush1.msra.mxu0 %v3450
    %3546 = vmatprep.subr.mxu0 %v3513
    %3547 = vmatpush2.msra.mxu0 %v3512
    %3548 = vmatprep.subr.mxu0 %v3511
    %3549 = vmatpush2.msra.mxu0 %v3510
    %3550 = vmatprep.subr.mxu0 %v3509
    %3551 = vmatpush2.msra.mxu0 %v3508
    %3552 = vmatprep.subr.mxu0 %v3507
    %3553 = vmatpush2.msra.mxu0 %v3506
    %3554 = vmatprep.subr.mxu0 %v3505
    %3555 = vmatpush2.msra.mxu0 %v3504
    %3556 = vmatprep.subr.mxu0 %v3503
    %3557 = vmatpush2.msra.mxu0 %v3502
    %3558 = vmatprep.subr.mxu0 %v3501
    %3559 = vmatpush2.msra.mxu0 %v3500
    %3560 = vmatprep.subr.mxu0 %v3499
    %3561 = vmatpush2.msra.mxu0 %v3498
    %3562 = vmatprep.subr.mxu0 %v3497
    %3563 = vmatpush2.msra.mxu0 %v3496
    %3564 = vmatprep.subr.mxu0 %v3495
    %3565 = vmatpush2.msra.mxu0 %v3494
    %3566 = vmatprep.subr.mxu0 %v3493
    %3567 = vmatpush2.msra.mxu0 %v3492
    %3568 = vmatprep.subr.mxu0 %v3491
    %3569 = vmatpush2.msra.mxu0 %v3490
    %3570 = vmatprep.subr.mxu0 %v3489
    %3571 = vmatpush2.msra.mxu0 %v3488
    %3572 = vmatprep.subr.mxu0 %v3487
    %3573 = vmatpush2.msra.mxu0 %v3486
    %3574 = vmatprep.subr.mxu0 %v3485
    %3575 = vmatpush2.msra.mxu0 %v3484
    %3576 = vmatprep.subr.mxu0 %v3483
    %3577 = vmatpush2.msra.mxu0 %v3482
    %3578 = vmatprep.mubr.f32.mxu0 %v3441
    %3579 = vmatmul.mubr.f32.gmra.mxu0 %v3439
    %v3580 = vpop.f32.mrf.mxu0
    %v3581 = vadd.f32 0.0, %v3580
    %v3582 = vpop.f32.mrf.mxu0
    %v3583 = vadd.f32 0.0, %v3582
    %3584 = vmatprep.mubr.f32.mxu0 %v3447
    %3585 = vmatmul.mubr.f32.gmra.mxu0 %v3445
    %v3586 = vpop.f32.mrf.mxu0
    %v3587 = vadd.f32 0.0, %v3586
    %v3588 = vpop.f32.mrf.mxu0
    %v3589 = vadd.f32 0.0, %v3588
    %3590 = vdwg.mxu0
    %v3591 = vadd.f32 %v3353, %v3581
    %v3592 = vadd.f32 %v3355, %v3583
    %v3593 = vadd.f32 %v3359, %v3587
    %v3594 = vadd.f32 %v3361, %v3589
    %s3595 = scalar_lea.vmem %s9, 48
    %v3596 = vld [vmem:[%s3595] sm:$0xff]
    %v3597 = vld [vmem:[%s3595 + $0x8] sm:$0xff]
    %v3599 = vsel %vm2910, %v3596, 0
    %v3602 = vsel %vm2910, %v3597, 0
    %3604 = vmatprep.subr.mxu0 0.0
    %3605 = vmatpush1.msra.mxu0 0.0
    %3606 = vmatprep.subr.mxu0 0.0
    %3607 = vmatpush1.msra.mxu0 0.0
    %3608 = vmatprep.subr.mxu0 0.0
    %3609 = vmatpush1.msra.mxu0 0.0
    %3610 = vmatprep.subr.mxu0 0.0
    %3611 = vmatpush1.msra.mxu0 0.0
    %3612 = vmatprep.subr.mxu0 0.0
    %3613 = vmatpush1.msra.mxu0 0.0
    %3614 = vmatprep.subr.mxu0 0.0
    %3615 = vmatpush1.msra.mxu0 0.0
    %3616 = vmatprep.subr.mxu0 0.0
    %3617 = vmatpush1.msra.mxu0 0.0
    %3618 = vmatprep.subr.mxu0 0.0
    %3619 = vmatpush1.msra.mxu0 0.0
    %3620 = vmatprep.subr.mxu0 0.0
    %3621 = vmatpush1.msra.mxu0 0.0
    %3622 = vmatprep.subr.mxu0 0.0
    %3623 = vmatpush1.msra.mxu0 0.0
    %3624 = vmatprep.subr.mxu0 0.0
    %3625 = vmatpush1.msra.mxu0 0.0
    %3626 = vmatprep.subr.mxu0 0.0
    %3627 = vmatpush1.msra.mxu0 0.0
    %3628 = vmatprep.subr.mxu0 %v2907
    %3629 = vmatpush1.msra.mxu0 %v2906
    %3630 = vmatprep.subr.mxu0 %v2905
    %3631 = vmatpush1.msra.mxu0 %v2904
    %3632 = vmatprep.subr.mxu0 %v2903
    %3633 = vmatpush1.msra.mxu0 %v2902
    %3634 = vmatprep.subr.mxu0 %v2901
    %3635 = vmatpush1.msra.mxu0 %v2900
    %3636 = vmatprep.subr.mxu0 0.0
    %3637 = vmatpush2.msra.mxu0 0.0
    %3638 = vmatprep.subr.mxu0 0.0
    %3639 = vmatpush2.msra.mxu0 0.0
    %3640 = vmatprep.subr.mxu0 0.0
    %3641 = vmatpush2.msra.mxu0 0.0
    %3642 = vmatprep.subr.mxu0 0.0
    %3643 = vmatpush2.msra.mxu0 0.0
    %3644 = vmatprep.subr.mxu0 0.0
    %3645 = vmatpush2.msra.mxu0 0.0
    %3646 = vmatprep.subr.mxu0 0.0
    %3647 = vmatpush2.msra.mxu0 0.0
    %3648 = vmatprep.subr.mxu0 0.0
    %3649 = vmatpush2.msra.mxu0 0.0
    %3650 = vmatprep.subr.mxu0 0.0
    %3651 = vmatpush2.msra.mxu0 0.0
    %3652 = vmatprep.subr.mxu0 0.0
    %3653 = vmatpush2.msra.mxu0 0.0
    %3654 = vmatprep.subr.mxu0 0.0
    %3655 = vmatpush2.msra.mxu0 0.0
    %3656 = vmatprep.subr.mxu0 0.0
    %3657 = vmatpush2.msra.mxu0 0.0
    %3658 = vmatprep.subr.mxu0 0.0
    %3659 = vmatpush2.msra.mxu0 0.0
    %3660 = vmatprep.subr.mxu0 0.0
    %3661 = vmatpush2.msra.mxu0 0.0
    %3662 = vmatprep.subr.mxu0 0.0
    %3663 = vmatpush2.msra.mxu0 0.0
    %3664 = vmatprep.subr.mxu0 0.0
    %3665 = vmatpush2.msra.mxu0 0.0
    %3666 = vmatprep.subr.mxu0 0.0
    %3667 = vmatpush2.msra.mxu0 0.0
    %3668 = vmatprep.mubr.f32.mxu0 0.0
    %3669 = vmatmul.mubr.f32.gmra.mxu0 %v3599
    %v3670 = vpop.f32.mrf.mxu0
    %v3671 = vadd.f32 0.0, %v3670
    %v3672 = vpop.f32.mrf.mxu0
    %v3673 = vadd.f32 0.0, %v3672
    %3674 = vmatprep.mubr.f32.mxu0 0.0
    %3675 = vmatmul.mubr.f32.gmra.mxu0 %v3602
    %v3676 = vpop.f32.mrf.mxu0
    %v3677 = vadd.f32 0.0, %v3676
    %v3678 = vpop.f32.mrf.mxu0
    %v3679 = vadd.f32 0.0, %v3678
    %3680 = vdwg.mxu0
    %s3681 = scalar_lea.vmem %s10, 1536
    %v3682 = vld [vmem:[%s3681] sm:$0xff]
    %v3683 = vld [vmem:[%s3681 + $0x8] sm:$0xff]
    %v3684 = vld [vmem:[%s3681 + $0x10] sm:$0xff]
    %v3685 = vld [vmem:[%s3681 + $0x18] sm:$0xff]
    %v3686 = vld [vmem:[%s3681 + $0x20] sm:$0xff]
    %v3687 = vld [vmem:[%s3681 + $0x28] sm:$0xff]
    %v3688 = vld [vmem:[%s3681 + $0x30] sm:$0xff]
    %v3689 = vld [vmem:[%s3681 + $0x38] sm:$0xff]
    %v3690 = vld [vmem:[%s3681 + $0x40] sm:$0xff]
    %v3691 = vld [vmem:[%s3681 + $0x48] sm:$0xff]
    %v3692 = vld [vmem:[%s3681 + $0x50] sm:$0xff]
    %v3693 = vld [vmem:[%s3681 + $0x58] sm:$0xff]
    %v3694 = vld [vmem:[%s3681 + $0x60] sm:$0xff]
    %v3695 = vld [vmem:[%s3681 + $0x68] sm:$0xff]
    %v3696 = vld [vmem:[%s3681 + $0x70] sm:$0xff]
    %v3697 = vld [vmem:[%s3681 + $0x78] sm:$0xff]
    %v3698 = vld [vmem:[%s3681 + $0x80] sm:$0xff]
    %v3699 = vld [vmem:[%s3681 + $0x88] sm:$0xff]
    %v3700 = vld [vmem:[%s3681 + $0x90] sm:$0xff]
    %v3701 = vld [vmem:[%s3681 + $0x98] sm:$0xff]
    %v3702 = vld [vmem:[%s3681 + $0xa0] sm:$0xff]
    %v3703 = vld [vmem:[%s3681 + $0xa8] sm:$0xff]
    %v3704 = vld [vmem:[%s3681 + $0xb0] sm:$0xff]
    %v3705 = vld [vmem:[%s3681 + $0xb8] sm:$0xff]
    %v3706 = vld [vmem:[%s3681 + $0xc0] sm:$0xff]
    %v3707 = vld [vmem:[%s3681 + $0xc8] sm:$0xff]
    %v3708 = vld [vmem:[%s3681 + $0xd0] sm:$0xff]
    %v3709 = vld [vmem:[%s3681 + $0xd8] sm:$0xff]
    %v3710 = vld [vmem:[%s3681 + $0xe0] sm:$0xff]
    %v3711 = vld [vmem:[%s3681 + $0xe8] sm:$0xff]
    %v3712 = vld [vmem:[%s3681 + $0xf0] sm:$0xff]
    %v3713 = vld [vmem:[%s3681 + $0xf8] sm:$0xff]
    %v3714 = vld [vmem:[%s3681 + $0x100] sm:$0xff]
    %v3715 = vld [vmem:[%s3681 + $0x108] sm:$0xff]
    %v3716 = vld [vmem:[%s3681 + $0x110] sm:$0xff]
    %v3717 = vld [vmem:[%s3681 + $0x118] sm:$0xff]
    %v3718 = vld [vmem:[%s3681 + $0x120] sm:$0xff]
    %v3719 = vld [vmem:[%s3681 + $0x128] sm:$0xff]
    %v3720 = vld [vmem:[%s3681 + $0x130] sm:$0xff]
    %v3721 = vld [vmem:[%s3681 + $0x138] sm:$0xff]
    %v3722 = vld [vmem:[%s3681 + $0x140] sm:$0xff]
    %v3723 = vld [vmem:[%s3681 + $0x148] sm:$0xff]
    %v3724 = vld [vmem:[%s3681 + $0x150] sm:$0xff]
    %v3725 = vld [vmem:[%s3681 + $0x158] sm:$0xff]
    %v3726 = vld [vmem:[%s3681 + $0x160] sm:$0xff]
    %v3727 = vld [vmem:[%s3681 + $0x168] sm:$0xff]
    %v3728 = vld [vmem:[%s3681 + $0x170] sm:$0xff]
    %v3729 = vld [vmem:[%s3681 + $0x178] sm:$0xff]
    %v3730 = vld [vmem:[%s3681 + $0x180] sm:$0xff]
    %v3731 = vld [vmem:[%s3681 + $0x188] sm:$0xff]
    %v3732 = vld [vmem:[%s3681 + $0x190] sm:$0xff]
    %v3733 = vld [vmem:[%s3681 + $0x198] sm:$0xff]
    %v3734 = vld [vmem:[%s3681 + $0x1a0] sm:$0xff]
    %v3735 = vld [vmem:[%s3681 + $0x1a8] sm:$0xff]
    %v3736 = vld [vmem:[%s3681 + $0x1b0] sm:$0xff]
    %v3737 = vld [vmem:[%s3681 + $0x1b8] sm:$0xff]
    %v3738 = vld [vmem:[%s3681 + $0x1c0] sm:$0xff]
    %v3739 = vld [vmem:[%s3681 + $0x1c8] sm:$0xff]
    %v3740 = vld [vmem:[%s3681 + $0x1d0] sm:$0xff]
    %v3741 = vld [vmem:[%s3681 + $0x1d8] sm:$0xff]
    %v3742 = vld [vmem:[%s3681 + $0x1e0] sm:$0xff]
    %v3743 = vld [vmem:[%s3681 + $0x1e8] sm:$0xff]
    %v3744 = vld [vmem:[%s3681 + $0x1f0] sm:$0xff]
    %v3745 = vld [vmem:[%s3681 + $0x1f8] sm:$0xff]
    %3746 = vmatprep.subr.mxu0 %v3713
    %3747 = vmatpush1.msra.mxu0 %v3712
    %3748 = vmatprep.subr.mxu0 %v3711
    %3749 = vmatpush1.msra.mxu0 %v3710
    %3750 = vmatprep.subr.mxu0 %v3709
    %3751 = vmatpush1.msra.mxu0 %v3708
    %3752 = vmatprep.subr.mxu0 %v3707
    %3753 = vmatpush1.msra.mxu0 %v3706
    %3754 = vmatprep.subr.mxu0 %v3705
    %3755 = vmatpush1.msra.mxu0 %v3704
    %3756 = vmatprep.subr.mxu0 %v3703
    %3757 = vmatpush1.msra.mxu0 %v3702
    %3758 = vmatprep.subr.mxu0 %v3701
    %3759 = vmatpush1.msra.mxu0 %v3700
    %3760 = vmatprep.subr.mxu0 %v3699
    %3761 = vmatpush1.msra.mxu0 %v3698
    %3762 = vmatprep.subr.mxu0 %v3697
    %3763 = vmatpush1.msra.mxu0 %v3696
    %3764 = vmatprep.subr.mxu0 %v3695
    %3765 = vmatpush1.msra.mxu0 %v3694
    %3766 = vmatprep.subr.mxu0 %v3693
    %3767 = vmatpush1.msra.mxu0 %v3692
    %3768 = vmatprep.subr.mxu0 %v3691
    %3769 = vmatpush1.msra.mxu0 %v3690
    %3770 = vmatprep.subr.mxu0 %v3689
    %3771 = vmatpush1.msra.mxu0 %v3688
    %3772 = vmatprep.subr.mxu0 %v3687
    %3773 = vmatpush1.msra.mxu0 %v3686
    %3774 = vmatprep.subr.mxu0 %v3685
    %3775 = vmatpush1.msra.mxu0 %v3684
    %3776 = vmatprep.subr.mxu0 %v3683
    %3777 = vmatpush1.msra.mxu0 %v3682
    %3778 = vmatprep.subr.mxu0 %v3745
    %3779 = vmatpush2.msra.mxu0 %v3744
    %3780 = vmatprep.subr.mxu0 %v3743
    %3781 = vmatpush2.msra.mxu0 %v3742
    %3782 = vmatprep.subr.mxu0 %v3741
    %3783 = vmatpush2.msra.mxu0 %v3740
    %3784 = vmatprep.subr.mxu0 %v3739
    %3785 = vmatpush2.msra.mxu0 %v3738
    %3786 = vmatprep.subr.mxu0 %v3737
    %3787 = vmatpush2.msra.mxu0 %v3736
    %3788 = vmatprep.subr.mxu0 %v3735
    %3789 = vmatpush2.msra.mxu0 %v3734
    %3790 = vmatprep.subr.mxu0 %v3733
    %3791 = vmatpush2.msra.mxu0 %v3732
    %3792 = vmatprep.subr.mxu0 %v3731
    %3793 = vmatpush2.msra.mxu0 %v3730
    %3794 = vmatprep.subr.mxu0 %v3729
    %3795 = vmatpush2.msra.mxu0 %v3728
    %3796 = vmatprep.subr.mxu0 %v3727
    %3797 = vmatpush2.msra.mxu0 %v3726
    %3798 = vmatprep.subr.mxu0 %v3725
    %3799 = vmatpush2.msra.mxu0 %v3724
    %3800 = vmatprep.subr.mxu0 %v3723
    %3801 = vmatpush2.msra.mxu0 %v3722
    %3802 = vmatprep.subr.mxu0 %v3721
    %3803 = vmatpush2.msra.mxu0 %v3720
    %3804 = vmatprep.subr.mxu0 %v3719
    %3805 = vmatpush2.msra.mxu0 %v3718
    %3806 = vmatprep.subr.mxu0 %v3717
    %3807 = vmatpush2.msra.mxu0 %v3716
    %3808 = vmatprep.subr.mxu0 %v3715
    %3809 = vmatpush2.msra.mxu0 %v3714
    %3810 = vmatprep.mubr.f32.mxu0 %v3673
    %3811 = vmatmul.mubr.f32.gmra.mxu0 %v3671
    %v3812 = vpop.f32.mrf.mxu0
    %v3813 = vadd.f32 0.0, %v3812
    %v3814 = vpop.f32.mrf.mxu0
    %v3815 = vadd.f32 0.0, %v3814
    %3816 = vmatprep.mubr.f32.mxu0 %v3679
    %3817 = vmatmul.mubr.f32.gmra.mxu0 %v3677
    %v3818 = vpop.f32.mrf.mxu0
    %v3819 = vadd.f32 0.0, %v3818
    %v3820 = vpop.f32.mrf.mxu0
    %v3821 = vadd.f32 0.0, %v3820
    %3822 = vdwg.mxu0
    %v3823 = vadd.f32 %v3591, %v3813
    %v3824 = vadd.f32 %v3592, %v3815
    %v3825 = vadd.f32 %v3593, %v3819
    %v3826 = vadd.f32 %v3594, %v3821
    %v3827 = vld [vmem:[%s11] sm:$0xff]
    %v3828 = vld [vmem:[%s11 + $0x8] sm:$0xff]
    %v3829 = vld [vmem:[%s11 + $0x10] sm:$0xff]
    %v3830 = vld [vmem:[%s11 + $0x18] sm:$0xff]
    %v3831 = vld [vmem:[%s11 + $0x20] sm:$0xff]
    %v3832 = vld [vmem:[%s11 + $0x28] sm:$0xff]
    %v3833 = vld [vmem:[%s11 + $0x30] sm:$0xff]
    %v3834 = vld [vmem:[%s11 + $0x38] sm:$0xff]
    %v3835 = vld [vmem:[%s11 + $0x40] sm:$0xff]
    %v3836 = vld [vmem:[%s11 + $0x48] sm:$0xff]
    %v3837 = vld [vmem:[%s11 + $0x50] sm:$0xff]
    %v3838 = vld [vmem:[%s11 + $0x58] sm:$0xff]
    %v3839 = vld [vmem:[%s11 + $0x60] sm:$0xff]
    %v3840 = vld [vmem:[%s11 + $0x68] sm:$0xff]
    %v3841 = vld [vmem:[%s11 + $0x70] sm:$0xff]
    %v3842 = vld [vmem:[%s11 + $0x78] sm:$0xff]
    %v3843 = vld [vmem:[%s11 + $0x80] sm:$0xff]
    %v3844 = vld [vmem:[%s11 + $0x88] sm:$0xff]
    %v3845 = vld [vmem:[%s11 + $0x90] sm:$0xff]
    %v3846 = vld [vmem:[%s11 + $0x98] sm:$0xff]
    %v3847 = vld [vmem:[%s11 + $0xa0] sm:$0xff]
    %v3848 = vld [vmem:[%s11 + $0xa8] sm:$0xff]
    %v3849 = vld [vmem:[%s11 + $0xb0] sm:$0xff]
    %v3850 = vld [vmem:[%s11 + $0xb8] sm:$0xff]
    %v3851 = vld [vmem:[%s11 + $0xc0] sm:$0xff]
    %v3852 = vld [vmem:[%s11 + $0xc8] sm:$0xff]
    %v3853 = vld [vmem:[%s11 + $0xd0] sm:$0xff]
    %v3854 = vld [vmem:[%s11 + $0xd8] sm:$0xff]
    %v3855 = vld [vmem:[%s11 + $0xe0] sm:$0xff]
    %v3856 = vld [vmem:[%s11 + $0xe8] sm:$0xff]
    %v3857 = vld [vmem:[%s11 + $0xf0] sm:$0xff]
    %v3858 = vld [vmem:[%s11 + $0xf8] sm:$0xff]
    %v3859 = vld [vmem:[%s12] sm:$0xff]
    %v3860 = vld [vmem:[%s12 + $0x8] sm:$0xff]
    %v3861 = vld [vmem:[%s12 + $0x10] sm:$0xff]
    %v3862 = vld [vmem:[%s12 + $0x18] sm:$0xff]
    %v3863 = vld [vmem:[%s12 + $0x20] sm:$0xff]
    %v3864 = vld [vmem:[%s12 + $0x28] sm:$0xff]
    %v3865 = vld [vmem:[%s12 + $0x30] sm:$0xff]
    %v3866 = vld [vmem:[%s12 + $0x38] sm:$0xff]
    %v3867 = vld [vmem:[%s13] sm:$0x1]
    %v3868 = vld [vmem:[%s14] sm:$0x1]
    %v3869 = vadd.f32 %v3823, %v3825
    %v3870 = vrot.slane %v3869, 4
    %v3871 = vadd.f32 %v3869, %v3870
    %v3872 = vrot.slane %v3871, 2
    %v3873 = vadd.f32 %v3871, %v3872
    %v3874 = vrot.slane %v3873, 1
    %v3875 = vadd.f32 %v3873, %v3874
    %v3876 = vadd.f32 %v3824, %v3826
    %v3877 = vrot.slane %v3876, 4
    %v3878 = vadd.f32 %v3876, %v3877
    %v3879 = vrot.slane %v3878, 2
    %v3880 = vadd.f32 %v3878, %v3879
    %v3881 = vrot.slane %v3880, 1
    %v3882 = vadd.f32 %v3880, %v3881
    %3883 = vmatprep.subr.mxu0 0.0
    %3884 = vmatpush1.msra.mxu0 %v3842
    %3885 = vmatprep.subr.mxu0 0.0
    %3886 = vmatpush1.msra.mxu0 %v3841
    %3887 = vmatprep.subr.mxu0 0.0
    %3888 = vmatpush1.msra.mxu0 %v3840
    %3889 = vmatprep.subr.mxu0 0.0
    %3890 = vmatpush1.msra.mxu0 %v3839
    %3891 = vmatprep.subr.mxu0 0.0
    %3892 = vmatpush1.msra.mxu0 %v3838
    %3893 = vmatprep.subr.mxu0 0.0
    %3894 = vmatpush1.msra.mxu0 %v3837
    %3895 = vmatprep.subr.mxu0 0.0
    %3896 = vmatpush1.msra.mxu0 %v3836
    %3897 = vmatprep.subr.mxu0 0.0
    %3898 = vmatpush1.msra.mxu0 %v3835
    %3899 = vmatprep.subr.mxu0 0.0
    %3900 = vmatpush1.msra.mxu0 %v3834
    %3901 = vmatprep.subr.mxu0 0.0
    %3902 = vmatpush1.msra.mxu0 %v3833
    %3903 = vmatprep.subr.mxu0 0.0
    %3904 = vmatpush1.msra.mxu0 %v3832
    %3905 = vmatprep.subr.mxu0 0.0
    %3906 = vmatpush1.msra.mxu0 %v3831
    %3907 = vmatprep.subr.mxu0 0.0
    %3908 = vmatpush1.msra.mxu0 %v3830
    %3909 = vmatprep.subr.mxu0 0.0
    %3910 = vmatpush1.msra.mxu0 %v3829
    %3911 = vmatprep.subr.mxu0 0.0
    %3912 = vmatpush1.msra.mxu0 %v3828
    %3913 = vmatprep.subr.mxu0 0.0
    %3914 = vmatpush1.msra.mxu0 %v3827
    %3915 = vmatprep.subr.mxu0 0.0
    %3916 = vmatpush2.msra.mxu0 %v3858
    %3917 = vmatprep.subr.mxu0 0.0
    %3918 = vmatpush2.msra.mxu0 %v3857
    %3919 = vmatprep.subr.mxu0 0.0
    %3920 = vmatpush2.msra.mxu0 %v3856
    %3921 = vmatprep.subr.mxu0 0.0
    %3922 = vmatpush2.msra.mxu0 %v3855
    %3923 = vmatprep.subr.mxu0 0.0
    %3924 = vmatpush2.msra.mxu0 %v3854
    %3925 = vmatprep.subr.mxu0 0.0
    %3926 = vmatpush2.msra.mxu0 %v3853
    %3927 = vmatprep.subr.mxu0 0.0
    %3928 = vmatpush2.msra.mxu0 %v3852
    %3929 = vmatprep.subr.mxu0 0.0
    %3930 = vmatpush2.msra.mxu0 %v3851
    %3931 = vmatprep.subr.mxu0 0.0
    %3932 = vmatpush2.msra.mxu0 %v3850
    %3933 = vmatprep.subr.mxu0 0.0
    %3934 = vmatpush2.msra.mxu0 %v3849
    %3935 = vmatprep.subr.mxu0 0.0
    %3936 = vmatpush2.msra.mxu0 %v3848
    %3937 = vmatprep.subr.mxu0 0.0
    %3938 = vmatpush2.msra.mxu0 %v3847
    %3939 = vmatprep.subr.mxu0 0.0
    %3940 = vmatpush2.msra.mxu0 %v3846
    %3941 = vmatprep.subr.mxu0 0.0
    %3942 = vmatpush2.msra.mxu0 %v3845
    %3943 = vmatprep.subr.mxu0 0.0
    %3944 = vmatpush2.msra.mxu0 %v3844
    %3945 = vmatprep.subr.mxu0 0.0
    %3946 = vmatpush2.msra.mxu0 %v3843
    %3947 = vmatprep.mubr.f32.mxu0 %v3882
    %3948 = vmatmul.mubr.f32.gmra.mxu0 %v3875
    %v3949 = vpop.f32.mrf.mxu0
    %v3950 = vadd.f32 0.0, %v3949
    %v3951 = vpop.f32.mrf.mxu0
    %3952 = vdwg.mxu0
    %v3953 = vmul.f32 %v3823, %v3823
    %v3954 = vmul.f32 %v3824, %v3824
    %v3955 = vmul.f32 %v3825, %v3825
    %v3956 = vmul.f32 %v3826, %v3826
    %v3957 = vadd.f32 %v3953, %v3955
    %v3958 = vrot.slane %v3957, 4
    %v3959 = vadd.f32 %v3957, %v3958
    %v3960 = vrot.slane %v3959, 2
    %v3961 = vadd.f32 %v3959, %v3960
    %v3962 = vrot.slane %v3961, 1
    %v3963 = vadd.f32 %v3961, %v3962
    %v3964 = vadd.f32 %v3954, %v3956
    %v3965 = vrot.slane %v3964, 4
    %v3966 = vadd.f32 %v3964, %v3965
    %v3967 = vrot.slane %v3966, 2
    %v3968 = vadd.f32 %v3966, %v3967
    %v3969 = vrot.slane %v3968, 1
    %v3970 = vadd.f32 %v3968, %v3969
    %3971 = vmatprep.subr.mxu0 0.0
    %3972 = vmatpush1.msra.mxu0 %v3842
    %3973 = vmatprep.subr.mxu0 0.0
    %3974 = vmatpush1.msra.mxu0 %v3841
    %3975 = vmatprep.subr.mxu0 0.0
    %3976 = vmatpush1.msra.mxu0 %v3840
    %3977 = vmatprep.subr.mxu0 0.0
    %3978 = vmatpush1.msra.mxu0 %v3839
    %3979 = vmatprep.subr.mxu0 0.0
    %3980 = vmatpush1.msra.mxu0 %v3838
    %3981 = vmatprep.subr.mxu0 0.0
    %3982 = vmatpush1.msra.mxu0 %v3837
    %3983 = vmatprep.subr.mxu0 0.0
    %3984 = vmatpush1.msra.mxu0 %v3836
    %3985 = vmatprep.subr.mxu0 0.0
    %3986 = vmatpush1.msra.mxu0 %v3835
    %3987 = vmatprep.subr.mxu0 0.0
    %3988 = vmatpush1.msra.mxu0 %v3834
    %3989 = vmatprep.subr.mxu0 0.0
    %3990 = vmatpush1.msra.mxu0 %v3833
    %3991 = vmatprep.subr.mxu0 0.0
    %3992 = vmatpush1.msra.mxu0 %v3832
    %3993 = vmatprep.subr.mxu0 0.0
    %3994 = vmatpush1.msra.mxu0 %v3831
    %3995 = vmatprep.subr.mxu0 0.0
    %3996 = vmatpush1.msra.mxu0 %v3830
    %3997 = vmatprep.subr.mxu0 0.0
    %3998 = vmatpush1.msra.mxu0 %v3829
    %3999 = vmatprep.subr.mxu0 0.0
    %4000 = vmatpush1.msra.mxu0 %v3828
    %4001 = vmatprep.subr.mxu0 0.0
    %4002 = vmatpush1.msra.mxu0 %v3827
    %4003 = vmatprep.subr.mxu0 0.0
    %4004 = vmatpush2.msra.mxu0 %v3858
    %4005 = vmatprep.subr.mxu0 0.0
    %4006 = vmatpush2.msra.mxu0 %v3857
    %4007 = vmatprep.subr.mxu0 0.0
    %4008 = vmatpush2.msra.mxu0 %v3856
    %4009 = vmatprep.subr.mxu0 0.0
    %4010 = vmatpush2.msra.mxu0 %v3855
    %4011 = vmatprep.subr.mxu0 0.0
    %4012 = vmatpush2.msra.mxu0 %v3854
    %4013 = vmatprep.subr.mxu0 0.0
    %4014 = vmatpush2.msra.mxu0 %v3853
    %4015 = vmatprep.subr.mxu0 0.0
    %4016 = vmatpush2.msra.mxu0 %v3852
    %4017 = vmatprep.subr.mxu0 0.0
    %4018 = vmatpush2.msra.mxu0 %v3851
    %4019 = vmatprep.subr.mxu0 0.0
    %4020 = vmatpush2.msra.mxu0 %v3850
    %4021 = vmatprep.subr.mxu0 0.0
    %4022 = vmatpush2.msra.mxu0 %v3849
    %4023 = vmatprep.subr.mxu0 0.0
    %4024 = vmatpush2.msra.mxu0 %v3848
    %4025 = vmatprep.subr.mxu0 0.0
    %4026 = vmatpush2.msra.mxu0 %v3847
    %4027 = vmatprep.subr.mxu0 0.0
    %4028 = vmatpush2.msra.mxu0 %v3846
    %4029 = vmatprep.subr.mxu0 0.0
    %4030 = vmatpush2.msra.mxu0 %v3845
    %4031 = vmatprep.subr.mxu0 0.0
    %4032 = vmatpush2.msra.mxu0 %v3844
    %4033 = vmatprep.subr.mxu0 0.0
    %4034 = vmatpush2.msra.mxu0 %v3843
    %4035 = vmatprep.mubr.f32.mxu0 %v3970
    %4036 = vmatmul.mubr.f32.gmra.mxu0 %v3963
    %v4037 = vpop.f32.mrf.mxu0
    %v4038 = vadd.f32 0.0, %v4037
    %v4039 = vpop.f32.mrf.mxu0
    %4040 = vdwg.mxu0
    %v4041 = vmul.f32 %v3950, 0.0078125
    %v4042 = vmul.f32 %v4038, 0.0078125
    %v4043 = vmul.f32 %v4041, %v4041
    %v4044 = vsub.f32 %v4042, %v4043
    %v4045 = vadd.f32 %v4044, 1e-05
    %v4046 = vrsqrt.pop %v4045
    %v4047 = vmul.f32 %v3867, %v4046
    %v4048 = vmul.f32 %v4041, %v4047
    %v4049 = vsub.f32 %v3868, %v4048
    %v4051 = vsel %vm2910, %v4047, 0
    %4053 = vmatprep.subr.mxu0 0.0
    %4054 = vmatpush1.msra.mxu0 0.0
    %4055 = vmatprep.subr.mxu0 0.0
    %4056 = vmatpush1.msra.mxu0 0.0
    %4057 = vmatprep.subr.mxu0 0.0
    %4058 = vmatpush1.msra.mxu0 0.0
    %4059 = vmatprep.subr.mxu0 0.0
    %4060 = vmatpush1.msra.mxu0 0.0
    %4061 = vmatprep.subr.mxu0 0.0
    %4062 = vmatpush1.msra.mxu0 0.0
    %4063 = vmatprep.subr.mxu0 0.0
    %4064 = vmatpush1.msra.mxu0 0.0
    %4065 = vmatprep.subr.mxu0 0.0
    %4066 = vmatpush1.msra.mxu0 0.0
    %4067 = vmatprep.subr.mxu0 0.0
    %4068 = vmatpush1.msra.mxu0 0.0
    %4069 = vmatprep.subr.mxu0 0.0
    %4070 = vmatpush1.msra.mxu0 0.0
    %4071 = vmatprep.subr.mxu0 0.0
    %4072 = vmatpush1.msra.mxu0 0.0
    %4073 = vmatprep.subr.mxu0 0.0
    %4074 = vmatpush1.msra.mxu0 0.0
    %4075 = vmatprep.subr.mxu0 0.0
    %4076 = vmatpush1.msra.mxu0 0.0
    %4077 = vmatprep.subr.mxu0 %v3866
    %4078 = vmatpush1.msra.mxu0 %v3865
    %4079 = vmatprep.subr.mxu0 %v3864
    %4080 = vmatpush1.msra.mxu0 %v3863
    %4081 = vmatprep.subr.mxu0 %v3862
    %4082 = vmatpush1.msra.mxu0 %v3861
    %4083 = vmatprep.subr.mxu0 %v3860
    %4084 = vmatpush1.msra.mxu0 %v3859
    %4085 = vmatprep.subr.mxu0 0.0
    %4086 = vmatpush2.msra.mxu0 0.0
    %4087 = vmatprep.subr.mxu0 0.0
    %4088 = vmatpush2.msra.mxu0 0.0
    %4089 = vmatprep.subr.mxu0 0.0
    %4090 = vmatpush2.msra.mxu0 0.0
    %4091 = vmatprep.subr.mxu0 0.0
    %4092 = vmatpush2.msra.mxu0 0.0
    %4093 = vmatprep.subr.mxu0 0.0
    %4094 = vmatpush2.msra.mxu0 0.0
    %4095 = vmatprep.subr.mxu0 0.0
    %4096 = vmatpush2.msra.mxu0 0.0
    %4097 = vmatprep.subr.mxu0 0.0
    %4098 = vmatpush2.msra.mxu0 0.0
    %4099 = vmatprep.subr.mxu0 0.0
    %4100 = vmatpush2.msra.mxu0 0.0
    %4101 = vmatprep.subr.mxu0 0.0
    %4102 = vmatpush2.msra.mxu0 0.0
    %4103 = vmatprep.subr.mxu0 0.0
    %4104 = vmatpush2.msra.mxu0 0.0
    %4105 = vmatprep.subr.mxu0 0.0
    %4106 = vmatpush2.msra.mxu0 0.0
    %4107 = vmatprep.subr.mxu0 0.0
    %4108 = vmatpush2.msra.mxu0 0.0
    %4109 = vmatprep.subr.mxu0 0.0
    %4110 = vmatpush2.msra.mxu0 0.0
    %4111 = vmatprep.subr.mxu0 0.0
    %4112 = vmatpush2.msra.mxu0 0.0
    %4113 = vmatprep.subr.mxu0 0.0
    %4114 = vmatpush2.msra.mxu0 0.0
    %4115 = vmatprep.subr.mxu0 0.0
    %4116 = vmatpush2.msra.mxu0 0.0
    %4117 = vmatprep.mubr.f32.mxu0 0.0
    %4118 = vmatmul.mubr.f32.gmra.mxu0 %v4051
    %v4119 = vpop.f32.mrf.mxu0
    %v4120 = vadd.f32 0.0, %v4119
    %v4121 = vpop.f32.mrf.mxu0
    %v4122 = vadd.f32 0.0, %v4121
    %4123 = vdwg.mxu0
    %v4124 = vlaneseq
    %v4125 = vshrl.u32 %v4124, 7
    %v4126 = vsub.s32 0, %v4125
    %v4127 = vrot.slane %v4120, %v4126
    %v4128 = vlaneseq
    %v4129 = vshrl.u32 %v4128, 7
    %v4130 = vsub.s32 0, %v4129
    %v4131 = vrot.slane %v4122, %v4130
    %v4132 = vmul.f32 %v3823, %v4127
    %v4133 = vmul.f32 %v3824, %v4131
    %v4134 = vmul.f32 %v3825, %v4127
    %v4135 = vmul.f32 %v3826, %v4131
    %v4137 = vsel %vm2910, %v4049, 0
    %4139 = vmatprep.subr.mxu0 0.0
    %4140 = vmatpush1.msra.mxu0 0.0
    %4141 = vmatprep.subr.mxu0 0.0
    %4142 = vmatpush1.msra.mxu0 0.0
    %4143 = vmatprep.subr.mxu0 0.0
    %4144 = vmatpush1.msra.mxu0 0.0
    %4145 = vmatprep.subr.mxu0 0.0
    %4146 = vmatpush1.msra.mxu0 0.0
    %4147 = vmatprep.subr.mxu0 0.0
    %4148 = vmatpush1.msra.mxu0 0.0
    %4149 = vmatprep.subr.mxu0 0.0
    %4150 = vmatpush1.msra.mxu0 0.0
    %4151 = vmatprep.subr.mxu0 0.0
    %4152 = vmatpush1.msra.mxu0 0.0
    %4153 = vmatprep.subr.mxu0 0.0
    %4154 = vmatpush1.msra.mxu0 0.0
    %4155 = vmatprep.subr.mxu0 0.0
    %4156 = vmatpush1.msra.mxu0 0.0
    %4157 = vmatprep.subr.mxu0 0.0
    %4158 = vmatpush1.msra.mxu0 0.0
    %4159 = vmatprep.subr.mxu0 0.0
    %4160 = vmatpush1.msra.mxu0 0.0
    %4161 = vmatprep.subr.mxu0 0.0
    %4162 = vmatpush1.msra.mxu0 0.0
    %4163 = vmatprep.subr.mxu0 %v3866
    %4164 = vmatpush1.msra.mxu0 %v3865
    %4165 = vmatprep.subr.mxu0 %v3864
    %4166 = vmatpush1.msra.mxu0 %v3863
    %4167 = vmatprep.subr.mxu0 %v3862
    %4168 = vmatpush1.msra.mxu0 %v3861
    %4169 = vmatprep.subr.mxu0 %v3860
    %4170 = vmatpush1.msra.mxu0 %v3859
    %4171 = vmatprep.subr.mxu0 0.0
    %4172 = vmatpush2.msra.mxu0 0.0
    %4173 = vmatprep.subr.mxu0 0.0
    %4174 = vmatpush2.msra.mxu0 0.0
    %4175 = vmatprep.subr.mxu0 0.0
    %4176 = vmatpush2.msra.mxu0 0.0
    %4177 = vmatprep.subr.mxu0 0.0
    %4178 = vmatpush2.msra.mxu0 0.0
    %4179 = vmatprep.subr.mxu0 0.0
    %4180 = vmatpush2.msra.mxu0 0.0
    %4181 = vmatprep.subr.mxu0 0.0
    %4182 = vmatpush2.msra.mxu0 0.0
    %4183 = vmatprep.subr.mxu0 0.0
    %4184 = vmatpush2.msra.mxu0 0.0
    %4185 = vmatprep.subr.mxu0 0.0
    %4186 = vmatpush2.msra.mxu0 0.0
    %4187 = vmatprep.subr.mxu0 0.0
    %4188 = vmatpush2.msra.mxu0 0.0
    %4189 = vmatprep.subr.mxu0 0.0
    %4190 = vmatpush2.msra.mxu0 0.0
    %4191 = vmatprep.subr.mxu0 0.0
    %4192 = vmatpush2.msra.mxu0 0.0
    %4193 = vmatprep.subr.mxu0 0.0
    %4194 = vmatpush2.msra.mxu0 0.0
    %4195 = vmatprep.subr.mxu0 0.0
    %4196 = vmatpush2.msra.mxu0 0.0
    %4197 = vmatprep.subr.mxu0 0.0
    %4198 = vmatpush2.msra.mxu0 0.0
    %4199 = vmatprep.subr.mxu0 0.0
    %4200 = vmatpush2.msra.mxu0 0.0
    %4201 = vmatprep.subr.mxu0 0.0
    %4202 = vmatpush2.msra.mxu0 0.0
    %4203 = vmatprep.mubr.f32.mxu0 0.0
    %4204 = vmatmul.mubr.f32.gmra.mxu0 %v4137
    %v4205 = vpop.f32.mrf.mxu0
    %v4206 = vadd.f32 0.0, %v4205
    %v4207 = vpop.f32.mrf.mxu0
    %v4208 = vadd.f32 0.0, %v4207
    %4209 = vdwg.mxu0
    %v4210 = vlaneseq
    %v4211 = vshrl.u32 %v4210, 7
    %v4212 = vsub.s32 0, %v4211
    %v4213 = vrot.slane %v4206, %v4212
    %v4214 = vlaneseq
    %v4215 = vshrl.u32 %v4214, 7
    %v4216 = vsub.s32 0, %v4215
    %v4217 = vrot.slane %v4208, %v4216
    %v4218 = vadd.f32 %v4132, %v4213
    %v4219 = vadd.f32 %v4133, %v4217
    %v4220 = vadd.f32 %v4134, %v4213
    %v4221 = vadd.f32 %v4135, %v4217
    %vm4222 = vcmp.ge.f32.partialorder %v4218, 0.0
    %vm4223 = vcmp.ge.f32.partialorder %v4219, 0.0
    %vm4224 = vcmp.ge.f32.partialorder %v4220, 0.0
    %vm4225 = vcmp.ge.f32.partialorder %v4221, 0.0
    %v4226 = vmul.f32 %v4218, 0.2
    %v4227 = vmul.f32 %v4219, 0.2
    %v4228 = vmul.f32 %v4220, 0.2
    %v4229 = vmul.f32 %v4221, 0.2
    %v4230 = vsel %vm4222, %v4218, %v4226
    %v4231 = vsel %vm4223, %v4219, %v4227
    %v4232 = vsel %vm4224, %v4220, %v4228
    %v4233 = vsel %vm4225, %v4221, %v4229
    %v4234 = vld [vmem:[%s15] sm:$0xff]
    %v4236 = vsel %vm2703, %v4234, 0
    %4238 = vmatprep.subr.mxu0 0.0
    %4239 = vmatpush1.msra.mxu0 0.0
    %4240 = vmatprep.subr.mxu0 0.0
    %4241 = vmatpush1.msra.mxu0 0.0
    %4242 = vmatprep.subr.mxu0 0.0
    %4243 = vmatpush1.msra.mxu0 0.0
    %4244 = vmatprep.subr.mxu0 0.0
    %4245 = vmatpush1.msra.mxu0 0.0
    %4246 = vmatprep.subr.mxu0 0.0
    %4247 = vmatpush1.msra.mxu0 0.0
    %4248 = vmatprep.subr.mxu0 0.0
    %4249 = vmatpush1.msra.mxu0 0.0
    %4250 = vmatprep.subr.mxu0 0.0
    %4251 = vmatpush1.msra.mxu0 0.0
    %4252 = vmatprep.subr.mxu0 0.0
    %4253 = vmatpush1.msra.mxu0 0.0
    %4254 = vmatprep.subr.mxu0 0.0
    %4255 = vmatpush1.msra.mxu0 0.0
    %4256 = vmatprep.subr.mxu0 0.0
    %4257 = vmatpush1.msra.mxu0 0.0
    %4258 = vmatprep.subr.mxu0 0.0
    %4259 = vmatpush1.msra.mxu0 0.0
    %4260 = vmatprep.subr.mxu0 0.0
    %4261 = vmatpush1.msra.mxu0 0.0
    %4262 = vmatprep.subr.mxu0 0.0
    %4263 = vmatpush1.msra.mxu0 0.0
    %4264 = vmatprep.subr.mxu0 0.0
    %4265 = vmatpush1.msra.mxu0 0.0
    %4266 = vmatprep.subr.mxu0 %v4233
    %4267 = vmatpush1.msra.mxu0 %v4232
    %4268 = vmatprep.subr.mxu0 %v4231
    %4269 = vmatpush1.msra.mxu0 %v4230
    %4270 = vmatprep.subr.mxu0 0.0
    %4271 = vmatpush2.msra.mxu0 0.0
    %4272 = vmatprep.subr.mxu0 0.0
    %4273 = vmatpush2.msra.mxu0 0.0
    %4274 = vmatprep.subr.mxu0 0.0
    %4275 = vmatpush2.msra.mxu0 0.0
    %4276 = vmatprep.subr.mxu0 0.0
    %4277 = vmatpush2.msra.mxu0 0.0
    %4278 = vmatprep.subr.mxu0 0.0
    %4279 = vmatpush2.msra.mxu0 0.0
    %4280 = vmatprep.subr.mxu0 0.0
    %4281 = vmatpush2.msra.mxu0 0.0
    %4282 = vmatprep.subr.mxu0 0.0
    %4283 = vmatpush2.msra.mxu0 0.0
    %4284 = vmatprep.subr.mxu0 0.0
    %4285 = vmatpush2.msra.mxu0 0.0
    %4286 = vmatprep.subr.mxu0 0.0
    %4287 = vmatpush2.msra.mxu0 0.0
    %4288 = vmatprep.subr.mxu0 0.0
    %4289 = vmatpush2.msra.mxu0 0.0
    %4290 = vmatprep.subr.mxu0 0.0
    %4291 = vmatpush2.msra.mxu0 0.0
    %4292 = vmatprep.subr.mxu0 0.0
    %4293 = vmatpush2.msra.mxu0 0.0
    %4294 = vmatprep.subr.mxu0 0.0
    %4295 = vmatpush2.msra.mxu0 0.0
    %4296 = vmatprep.subr.mxu0 0.0
    %4297 = vmatpush2.msra.mxu0 0.0
    %4298 = vmatprep.subr.mxu0 0.0
    %4299 = vmatpush2.msra.mxu0 0.0
    %4300 = vmatprep.subr.mxu0 0.0
    %4301 = vmatpush2.msra.mxu0 0.0
    %4302 = vmatprep.mubr.f32.mxu0 0.0
    %4303 = vmatmul.mubr.f32.gmra.mxu0 %v4236
    %v4304 = vpop.f32.mrf.mxu0
    %v4305 = vadd.f32 0.0, %v4304
    %v4306 = vpop.f32.mrf.mxu0
    %v4307 = vadd.f32 0.0, %v4306
    %4308 = vdwg.mxu0
    %v4309 = vld [vmem:[%s16] sm:$0xff]
    %v4310 = vld [vmem:[%s16 + $0x8] sm:$0xff]
    %v4311 = vld [vmem:[%s16 + $0x10] sm:$0xff]
    %v4312 = vld [vmem:[%s16 + $0x18] sm:$0xff]
    %v4313 = vld [vmem:[%s16 + $0x20] sm:$0xff]
    %v4314 = vld [vmem:[%s16 + $0x28] sm:$0xff]
    %v4315 = vld [vmem:[%s16 + $0x30] sm:$0xff]
    %v4316 = vld [vmem:[%s16 + $0x38] sm:$0xff]
    %v4317 = vld [vmem:[%s16 + $0x40] sm:$0xff]
    %v4318 = vld [vmem:[%s16 + $0x48] sm:$0xff]
    %v4319 = vld [vmem:[%s16 + $0x50] sm:$0xff]
    %v4320 = vld [vmem:[%s16 + $0x58] sm:$0xff]
    %v4321 = vld [vmem:[%s16 + $0x60] sm:$0xff]
    %v4322 = vld [vmem:[%s16 + $0x68] sm:$0xff]
    %v4323 = vld [vmem:[%s16 + $0x70] sm:$0xff]
    %v4324 = vld [vmem:[%s16 + $0x78] sm:$0xff]
    %v4325 = vld [vmem:[%s16 + $0x80] sm:$0xff]
    %v4326 = vld [vmem:[%s16 + $0x88] sm:$0xff]
    %v4327 = vld [vmem:[%s16 + $0x90] sm:$0xff]
    %v4328 = vld [vmem:[%s16 + $0x98] sm:$0xff]
    %v4329 = vld [vmem:[%s16 + $0xa0] sm:$0xff]
    %v4330 = vld [vmem:[%s16 + $0xa8] sm:$0xff]
    %v4331 = vld [vmem:[%s16 + $0xb0] sm:$0xff]
    %v4332 = vld [vmem:[%s16 + $0xb8] sm:$0xff]
    %v4333 = vld [vmem:[%s16 + $0xc0] sm:$0xff]
    %v4334 = vld [vmem:[%s16 + $0xc8] sm:$0xff]
    %v4335 = vld [vmem:[%s16 + $0xd0] sm:$0xff]
    %v4336 = vld [vmem:[%s16 + $0xd8] sm:$0xff]
    %v4337 = vld [vmem:[%s16 + $0xe0] sm:$0xff]
    %v4338 = vld [vmem:[%s16 + $0xe8] sm:$0xff]
    %v4339 = vld [vmem:[%s16 + $0xf0] sm:$0xff]
    %v4340 = vld [vmem:[%s16 + $0xf8] sm:$0xff]
    %v4341 = vld [vmem:[%s16 + $0x100] sm:$0xff]
    %v4342 = vld [vmem:[%s16 + $0x108] sm:$0xff]
    %v4343 = vld [vmem:[%s16 + $0x110] sm:$0xff]
    %v4344 = vld [vmem:[%s16 + $0x118] sm:$0xff]
    %v4345 = vld [vmem:[%s16 + $0x120] sm:$0xff]
    %v4346 = vld [vmem:[%s16 + $0x128] sm:$0xff]
    %v4347 = vld [vmem:[%s16 + $0x130] sm:$0xff]
    %v4348 = vld [vmem:[%s16 + $0x138] sm:$0xff]
    %v4349 = vld [vmem:[%s16 + $0x140] sm:$0xff]
    %v4350 = vld [vmem:[%s16 + $0x148] sm:$0xff]
    %v4351 = vld [vmem:[%s16 + $0x150] sm:$0xff]
    %v4352 = vld [vmem:[%s16 + $0x158] sm:$0xff]
    %v4353 = vld [vmem:[%s16 + $0x160] sm:$0xff]
    %v4354 = vld [vmem:[%s16 + $0x168] sm:$0xff]
    %v4355 = vld [vmem:[%s16 + $0x170] sm:$0xff]
    %v4356 = vld [vmem:[%s16 + $0x178] sm:$0xff]
    %v4357 = vld [vmem:[%s16 + $0x180] sm:$0xff]
    %v4358 = vld [vmem:[%s16 + $0x188] sm:$0xff]
    %v4359 = vld [vmem:[%s16 + $0x190] sm:$0xff]
    %v4360 = vld [vmem:[%s16 + $0x198] sm:$0xff]
    %v4361 = vld [vmem:[%s16 + $0x1a0] sm:$0xff]
    %v4362 = vld [vmem:[%s16 + $0x1a8] sm:$0xff]
    %v4363 = vld [vmem:[%s16 + $0x1b0] sm:$0xff]
    %v4364 = vld [vmem:[%s16 + $0x1b8] sm:$0xff]
    %v4365 = vld [vmem:[%s16 + $0x1c0] sm:$0xff]
    %v4366 = vld [vmem:[%s16 + $0x1c8] sm:$0xff]
    %v4367 = vld [vmem:[%s16 + $0x1d0] sm:$0xff]
    %v4368 = vld [vmem:[%s16 + $0x1d8] sm:$0xff]
    %v4369 = vld [vmem:[%s16 + $0x1e0] sm:$0xff]
    %v4370 = vld [vmem:[%s16 + $0x1e8] sm:$0xff]
    %v4371 = vld [vmem:[%s16 + $0x1f0] sm:$0xff]
    %v4372 = vld [vmem:[%s16 + $0x1f8] sm:$0xff]
    %s4373 = scalar_lea.vmem %s15, 8
    %v4374 = vld [vmem:[%s4373] sm:$0xff]
    %v4376 = vsel %vm2703, %v4374, 0
    %4378 = vmatprep.subr.mxu0 0.0
    %4379 = vmatpush1.msra.mxu0 0.0
    %4380 = vmatprep.subr.mxu0 0.0
    %4381 = vmatpush1.msra.mxu0 0.0
    %4382 = vmatprep.subr.mxu0 0.0
    %4383 = vmatpush1.msra.mxu0 0.0
    %4384 = vmatprep.subr.mxu0 0.0
    %4385 = vmatpush1.msra.mxu0 0.0
    %4386 = vmatprep.subr.mxu0 0.0
    %4387 = vmatpush1.msra.mxu0 0.0
    %4388 = vmatprep.subr.mxu0 0.0
    %4389 = vmatpush1.msra.mxu0 0.0
    %4390 = vmatprep.subr.mxu0 0.0
    %4391 = vmatpush1.msra.mxu0 0.0
    %4392 = vmatprep.subr.mxu0 0.0
    %4393 = vmatpush1.msra.mxu0 0.0
    %4394 = vmatprep.subr.mxu0 0.0
    %4395 = vmatpush1.msra.mxu0 0.0
    %4396 = vmatprep.subr.mxu0 0.0
    %4397 = vmatpush1.msra.mxu0 0.0
    %4398 = vmatprep.subr.mxu0 0.0
    %4399 = vmatpush1.msra.mxu0 0.0
    %4400 = vmatprep.subr.mxu0 0.0
    %4401 = vmatpush1.msra.mxu0 0.0
    %4402 = vmatprep.subr.mxu0 0.0
    %4403 = vmatpush1.msra.mxu0 0.0
    %4404 = vmatprep.subr.mxu0 0.0
    %4405 = vmatpush1.msra.mxu0 0.0
    %4406 = vmatprep.subr.mxu0 %v4233
    %4407 = vmatpush1.msra.mxu0 %v4232
    %4408 = vmatprep.subr.mxu0 %v4231
    %4409 = vmatpush1.msra.mxu0 %v4230
    %4410 = vmatprep.subr.mxu0 0.0
    %4411 = vmatpush2.msra.mxu0 0.0
    %4412 = vmatprep.subr.mxu0 0.0
    %4413 = vmatpush2.msra.mxu0 0.0
    %4414 = vmatprep.subr.mxu0 0.0
    %4415 = vmatpush2.msra.mxu0 0.0
    %4416 = vmatprep.subr.mxu0 0.0
    %4417 = vmatpush2.msra.mxu0 0.0
    %4418 = vmatprep.subr.mxu0 0.0
    %4419 = vmatpush2.msra.mxu0 0.0
    %4420 = vmatprep.subr.mxu0 0.0
    %4421 = vmatpush2.msra.mxu0 0.0
    %4422 = vmatprep.subr.mxu0 0.0
    %4423 = vmatpush2.msra.mxu0 0.0
    %4424 = vmatprep.subr.mxu0 0.0
    %4425 = vmatpush2.msra.mxu0 0.0
    %4426 = vmatprep.subr.mxu0 0.0
    %4427 = vmatpush2.msra.mxu0 0.0
    %4428 = vmatprep.subr.mxu0 0.0
    %4429 = vmatpush2.msra.mxu0 0.0
    %4430 = vmatprep.subr.mxu0 0.0
    %4431 = vmatpush2.msra.mxu0 0.0
    %4432 = vmatprep.subr.mxu0 0.0
    %4433 = vmatpush2.msra.mxu0 0.0
    %4434 = vmatprep.subr.mxu0 0.0
    %4435 = vmatpush2.msra.mxu0 0.0
    %4436 = vmatprep.subr.mxu0 0.0
    %4437 = vmatpush2.msra.mxu0 0.0
    %4438 = vmatprep.subr.mxu0 0.0
    %4439 = vmatpush2.msra.mxu0 0.0
    %4440 = vmatprep.subr.mxu0 0.0
    %4441 = vmatpush2.msra.mxu0 0.0
    %4442 = vmatprep.mubr.f32.mxu0 0.0
    %4443 = vmatmul.mubr.f32.gmra.mxu0 %v4376
    %v4444 = vpop.f32.mrf.mxu0
    %v4445 = vadd.f32 0.0, %v4444
    %v4446 = vpop.f32.mrf.mxu0
    %v4447 = vadd.f32 0.0, %v4446
    %4448 = vdwg.mxu0
    %s4449 = scalar_lea.vmem %s16, 512
    %v4450 = vld [vmem:[%s4449] sm:$0xff]
    %v4451 = vld [vmem:[%s4449 + $0x8] sm:$0xff]
    %v4452 = vld [vmem:[%s4449 + $0x10] sm:$0xff]
    %v4453 = vld [vmem:[%s4449 + $0x18] sm:$0xff]
    %v4454 = vld [vmem:[%s4449 + $0x20] sm:$0xff]
    %v4455 = vld [vmem:[%s4449 + $0x28] sm:$0xff]
    %v4456 = vld [vmem:[%s4449 + $0x30] sm:$0xff]
    %v4457 = vld [vmem:[%s4449 + $0x38] sm:$0xff]
    %v4458 = vld [vmem:[%s4449 + $0x40] sm:$0xff]
    %v4459 = vld [vmem:[%s4449 + $0x48] sm:$0xff]
    %v4460 = vld [vmem:[%s4449 + $0x50] sm:$0xff]
    %v4461 = vld [vmem:[%s4449 + $0x58] sm:$0xff]
    %v4462 = vld [vmem:[%s4449 + $0x60] sm:$0xff]
    %v4463 = vld [vmem:[%s4449 + $0x68] sm:$0xff]
    %v4464 = vld [vmem:[%s4449 + $0x70] sm:$0xff]
    %v4465 = vld [vmem:[%s4449 + $0x78] sm:$0xff]
    %v4466 = vld [vmem:[%s4449 + $0x80] sm:$0xff]
    %v4467 = vld [vmem:[%s4449 + $0x88] sm:$0xff]
    %v4468 = vld [vmem:[%s4449 + $0x90] sm:$0xff]
    %v4469 = vld [vmem:[%s4449 + $0x98] sm:$0xff]
    %v4470 = vld [vmem:[%s4449 + $0xa0] sm:$0xff]
    %v4471 = vld [vmem:[%s4449 + $0xa8] sm:$0xff]
    %v4472 = vld [vmem:[%s4449 + $0xb0] sm:$0xff]
    %v4473 = vld [vmem:[%s4449 + $0xb8] sm:$0xff]
    %v4474 = vld [vmem:[%s4449 + $0xc0] sm:$0xff]
    %v4475 = vld [vmem:[%s4449 + $0xc8] sm:$0xff]
    %v4476 = vld [vmem:[%s4449 + $0xd0] sm:$0xff]
    %v4477 = vld [vmem:[%s4449 + $0xd8] sm:$0xff]
    %v4478 = vld [vmem:[%s4449 + $0xe0] sm:$0xff]
    %v4479 = vld [vmem:[%s4449 + $0xe8] sm:$0xff]
    %v4480 = vld [vmem:[%s4449 + $0xf0] sm:$0xff]
    %v4481 = vld [vmem:[%s4449 + $0xf8] sm:$0xff]
    %v4482 = vld [vmem:[%s4449 + $0x100] sm:$0xff]
    %v4483 = vld [vmem:[%s4449 + $0x108] sm:$0xff]
    %v4484 = vld [vmem:[%s4449 + $0x110] sm:$0xff]
    %v4485 = vld [vmem:[%s4449 + $0x118] sm:$0xff]
    %v4486 = vld [vmem:[%s4449 + $0x120] sm:$0xff]
    %v4487 = vld [vmem:[%s4449 + $0x128] sm:$0xff]
    %v4488 = vld [vmem:[%s4449 + $0x130] sm:$0xff]
    %v4489 = vld [vmem:[%s4449 + $0x138] sm:$0xff]
    %v4490 = vld [vmem:[%s4449 + $0x140] sm:$0xff]
    %v4491 = vld [vmem:[%s4449 + $0x148] sm:$0xff]
    %v4492 = vld [vmem:[%s4449 + $0x150] sm:$0xff]
    %v4493 = vld [vmem:[%s4449 + $0x158] sm:$0xff]
    %v4494 = vld [vmem:[%s4449 + $0x160] sm:$0xff]
    %v4495 = vld [vmem:[%s4449 + $0x168] sm:$0xff]
    %v4496 = vld [vmem:[%s4449 + $0x170] sm:$0xff]
    %v4497 = vld [vmem:[%s4449 + $0x178] sm:$0xff]
    %v4498 = vld [vmem:[%s4449 + $0x180] sm:$0xff]
    %v4499 = vld [vmem:[%s4449 + $0x188] sm:$0xff]
    %v4500 = vld [vmem:[%s4449 + $0x190] sm:$0xff]
    %v4501 = vld [vmem:[%s4449 + $0x198] sm:$0xff]
    %v4502 = vld [vmem:[%s4449 + $0x1a0] sm:$0xff]
    %v4503 = vld [vmem:[%s4449 + $0x1a8] sm:$0xff]
    %v4504 = vld [vmem:[%s4449 + $0x1b0] sm:$0xff]
    %v4505 = vld [vmem:[%s4449 + $0x1b8] sm:$0xff]
    %v4506 = vld [vmem:[%s4449 + $0x1c0] sm:$0xff]
    %v4507 = vld [vmem:[%s4449 + $0x1c8] sm:$0xff]
    %v4508 = vld [vmem:[%s4449 + $0x1d0] sm:$0xff]
    %v4509 = vld [vmem:[%s4449 + $0x1d8] sm:$0xff]
    %v4510 = vld [vmem:[%s4449 + $0x1e0] sm:$0xff]
    %v4511 = vld [vmem:[%s4449 + $0x1e8] sm:$0xff]
    %v4512 = vld [vmem:[%s4449 + $0x1f0] sm:$0xff]
    %v4513 = vld [vmem:[%s4449 + $0x1f8] sm:$0xff]
    %4514 = vmatprep.subr.mxu0 %v4481
    %4515 = vmatpush1.msra.mxu0 %v4480
    %4516 = vmatprep.subr.mxu0 %v4479
    %4517 = vmatpush1.msra.mxu0 %v4478
    %4518 = vmatprep.subr.mxu0 %v4477
    %4519 = vmatpush1.msra.mxu0 %v4476
    %4520 = vmatprep.subr.mxu0 %v4475
    %4521 = vmatpush1.msra.mxu0 %v4474
    %4522 = vmatprep.subr.mxu0 %v4473
    %4523 = vmatpush1.msra.mxu0 %v4472
    %4524 = vmatprep.subr.mxu0 %v4471
    %4525 = vmatpush1.msra.mxu0 %v4470
    %4526 = vmatprep.subr.mxu0 %v4469
    %4527 = vmatpush1.msra.mxu0 %v4468
    %4528 = vmatprep.subr.mxu0 %v4467
    %4529 = vmatpush1.msra.mxu0 %v4466
    %4530 = vmatprep.subr.mxu0 %v4465
    %4531 = vmatpush1.msra.mxu0 %v4464
    %4532 = vmatprep.subr.mxu0 %v4463
    %4533 = vmatpush1.msra.mxu0 %v4462
    %4534 = vmatprep.subr.mxu0 %v4461
    %4535 = vmatpush1.msra.mxu0 %v4460
    %4536 = vmatprep.subr.mxu0 %v4459
    %4537 = vmatpush1.msra.mxu0 %v4458
    %4538 = vmatprep.subr.mxu0 %v4457
    %4539 = vmatpush1.msra.mxu0 %v4456
    %4540 = vmatprep.subr.mxu0 %v4455
    %4541 = vmatpush1.msra.mxu0 %v4454
    %4542 = vmatprep.subr.mxu0 %v4453
    %4543 = vmatpush1.msra.mxu0 %v4452
    %4544 = vmatprep.subr.mxu0 %v4451
    %4545 = vmatpush1.msra.mxu0 %v4450
    %4546 = vmatprep.subr.mxu0 %v4513
    %4547 = vmatpush2.msra.mxu0 %v4512
    %4548 = vmatprep.subr.mxu0 %v4511
    %4549 = vmatpush2.msra.mxu0 %v4510
    %4550 = vmatprep.subr.mxu0 %v4509
    %4551 = vmatpush2.msra.mxu0 %v4508
    %4552 = vmatprep.subr.mxu0 %v4507
    %4553 = vmatpush2.msra.mxu0 %v4506
    %4554 = vmatprep.subr.mxu0 %v4505
    %4555 = vmatpush2.msra.mxu0 %v4504
    %4556 = vmatprep.subr.mxu0 %v4503
    %4557 = vmatpush2.msra.mxu0 %v4502
    %4558 = vmatprep.subr.mxu0 %v4501
    %4559 = vmatpush2.msra.mxu0 %v4500
    %4560 = vmatprep.subr.mxu0 %v4499
    %4561 = vmatpush2.msra.mxu0 %v4498
    %4562 = vmatprep.subr.mxu0 %v4497
    %4563 = vmatpush2.msra.mxu0 %v4496
    %4564 = vmatprep.subr.mxu0 %v4495
    %4565 = vmatpush2.msra.mxu0 %v4494
    %4566 = vmatprep.subr.mxu0 %v4493
    %4567 = vmatpush2.msra.mxu0 %v4492
    %4568 = vmatprep.subr.mxu0 %v4491
    %4569 = vmatpush2.msra.mxu0 %v4490
    %4570 = vmatprep.subr.mxu0 %v4489
    %4571 = vmatpush2.msra.mxu0 %v4488
    %4572 = vmatprep.subr.mxu0 %v4487
    %4573 = vmatpush2.msra.mxu0 %v4486
    %4574 = vmatprep.subr.mxu0 %v4485
    %4575 = vmatpush2.msra.mxu0 %v4484
    %4576 = vmatprep.subr.mxu0 %v4483
    %4577 = vmatpush2.msra.mxu0 %v4482
    %4578 = vmatprep.mubr.f32.mxu0 %v4447
    %4579 = vmatmul.mubr.f32.gmra.mxu0 %v4445
    %v4580 = vpop.f32.mrf.mxu0
    %v4581 = vadd.f32 0.0, %v4580
    %v4582 = vpop.f32.mrf.mxu0
    %v4583 = vadd.f32 0.0, %v4582
    %4584 = vdwg.mxu0
    %4585 = vmatprep.subr.mxu0 %v4340
    %4586 = vmatpush1.msra.mxu0 %v4339
    %4587 = vmatprep.subr.mxu0 %v4338
    %4588 = vmatpush1.msra.mxu0 %v4337
    %4589 = vmatprep.subr.mxu0 %v4336
    %4590 = vmatpush1.msra.mxu0 %v4335
    %4591 = vmatprep.subr.mxu0 %v4334
    %4592 = vmatpush1.msra.mxu0 %v4333
    %4593 = vmatprep.subr.mxu0 %v4332
    %4594 = vmatpush1.msra.mxu0 %v4331
    %4595 = vmatprep.subr.mxu0 %v4330
    %4596 = vmatpush1.msra.mxu0 %v4329
    %4597 = vmatprep.subr.mxu0 %v4328
    %4598 = vmatpush1.msra.mxu0 %v4327
    %4599 = vmatprep.subr.mxu0 %v4326
    %4600 = vmatpush1.msra.mxu0 %v4325
    %4601 = vmatprep.subr.mxu0 %v4324
    %4602 = vmatpush1.msra.mxu0 %v4323
    %4603 = vmatprep.subr.mxu0 %v4322
    %4604 = vmatpush1.msra.mxu0 %v4321
    %4605 = vmatprep.subr.mxu0 %v4320
    %4606 = vmatpush1.msra.mxu0 %v4319
    %4607 = vmatprep.subr.mxu0 %v4318
    %4608 = vmatpush1.msra.mxu0 %v4317
    %4609 = vmatprep.subr.mxu0 %v4316
    %4610 = vmatpush1.msra.mxu0 %v4315
    %4611 = vmatprep.subr.mxu0 %v4314
    %4612 = vmatpush1.msra.mxu0 %v4313
    %4613 = vmatprep.subr.mxu0 %v4312
    %4614 = vmatpush1.msra.mxu0 %v4311
    %4615 = vmatprep.subr.mxu0 %v4310
    %4616 = vmatpush1.msra.mxu0 %v4309
    %4617 = vmatprep.subr.mxu0 %v4372
    %4618 = vmatpush2.msra.mxu0 %v4371
    %4619 = vmatprep.subr.mxu0 %v4370
    %4620 = vmatpush2.msra.mxu0 %v4369
    %4621 = vmatprep.subr.mxu0 %v4368
    %4622 = vmatpush2.msra.mxu0 %v4367
    %4623 = vmatprep.subr.mxu0 %v4366
    %4624 = vmatpush2.msra.mxu0 %v4365
    %4625 = vmatprep.subr.mxu0 %v4364
    %4626 = vmatpush2.msra.mxu0 %v4363
    %4627 = vmatprep.subr.mxu0 %v4362
    %4628 = vmatpush2.msra.mxu0 %v4361
    %4629 = vmatprep.subr.mxu0 %v4360
    %4630 = vmatpush2.msra.mxu0 %v4359
    %4631 = vmatprep.subr.mxu0 %v4358
    %4632 = vmatpush2.msra.mxu0 %v4357
    %4633 = vmatprep.subr.mxu0 %v4356
    %4634 = vmatpush2.msra.mxu0 %v4355
    %4635 = vmatprep.subr.mxu0 %v4354
    %4636 = vmatpush2.msra.mxu0 %v4353
    %4637 = vmatprep.subr.mxu0 %v4352
    %4638 = vmatpush2.msra.mxu0 %v4351
    %4639 = vmatprep.subr.mxu0 %v4350
    %4640 = vmatpush2.msra.mxu0 %v4349
    %4641 = vmatprep.subr.mxu0 %v4348
    %4642 = vmatpush2.msra.mxu0 %v4347
    %4643 = vmatprep.subr.mxu0 %v4346
    %4644 = vmatpush2.msra.mxu0 %v4345
    %4645 = vmatprep.subr.mxu0 %v4344
    %4646 = vmatpush2.msra.mxu0 %v4343
    %4647 = vmatprep.subr.mxu0 %v4342
    %4648 = vmatpush2.msra.mxu0 %v4341
    %4649 = vmatprep.mubr.f32.mxu0 %v4307
    %4650 = vmatmul.mubr.f32.gmra.mxu0 %v4305
    %v4651 = vpop.f32.mrf.mxu0
    %v4652 = vadd.f32 %v4581, %v4651
    %v4653 = vpop.f32.mrf.mxu0
    %v4654 = vadd.f32 %v4583, %v4653
    %4655 = vdwg.mxu0
    %s4656 = scalar_lea.vmem %s15, 16
    %v4657 = vld [vmem:[%s4656] sm:$0xff]
    %v4659 = vsel %vm2703, %v4657, 0
    %4661 = vmatprep.subr.mxu0 0.0
    %4662 = vmatpush1.msra.mxu0 0.0
    %4663 = vmatprep.subr.mxu0 0.0
    %4664 = vmatpush1.msra.mxu0 0.0
    %4665 = vmatprep.subr.mxu0 0.0
    %4666 = vmatpush1.msra.mxu0 0.0
    %4667 = vmatprep.subr.mxu0 0.0
    %4668 = vmatpush1.msra.mxu0 0.0
    %4669 = vmatprep.subr.mxu0 0.0
    %4670 = vmatpush1.msra.mxu0 0.0
    %4671 = vmatprep.subr.mxu0 0.0
    %4672 = vmatpush1.msra.mxu0 0.0
    %4673 = vmatprep.subr.mxu0 0.0
    %4674 = vmatpush1.msra.mxu0 0.0
    %4675 = vmatprep.subr.mxu0 0.0
    %4676 = vmatpush1.msra.mxu0 0.0
    %4677 = vmatprep.subr.mxu0 0.0
    %4678 = vmatpush1.msra.mxu0 0.0
    %4679 = vmatprep.subr.mxu0 0.0
    %4680 = vmatpush1.msra.mxu0 0.0
    %4681 = vmatprep.subr.mxu0 0.0
    %4682 = vmatpush1.msra.mxu0 0.0
    %4683 = vmatprep.subr.mxu0 0.0
    %4684 = vmatpush1.msra.mxu0 0.0
    %4685 = vmatprep.subr.mxu0 0.0
    %4686 = vmatpush1.msra.mxu0 0.0
    %4687 = vmatprep.subr.mxu0 0.0
    %4688 = vmatpush1.msra.mxu0 0.0
    %4689 = vmatprep.subr.mxu0 %v4233
    %4690 = vmatpush1.msra.mxu0 %v4232
    %4691 = vmatprep.subr.mxu0 %v4231
    %4692 = vmatpush1.msra.mxu0 %v4230
    %4693 = vmatprep.subr.mxu0 0.0
    %4694 = vmatpush2.msra.mxu0 0.0
    %4695 = vmatprep.subr.mxu0 0.0
    %4696 = vmatpush2.msra.mxu0 0.0
    %4697 = vmatprep.subr.mxu0 0.0
    %4698 = vmatpush2.msra.mxu0 0.0
    %4699 = vmatprep.subr.mxu0 0.0
    %4700 = vmatpush2.msra.mxu0 0.0
    %4701 = vmatprep.subr.mxu0 0.0
    %4702 = vmatpush2.msra.mxu0 0.0
    %4703 = vmatprep.subr.mxu0 0.0
    %4704 = vmatpush2.msra.mxu0 0.0
    %4705 = vmatprep.subr.mxu0 0.0
    %4706 = vmatpush2.msra.mxu0 0.0
    %4707 = vmatprep.subr.mxu0 0.0
    %4708 = vmatpush2.msra.mxu0 0.0
    %4709 = vmatprep.subr.mxu0 0.0
    %4710 = vmatpush2.msra.mxu0 0.0
    %4711 = vmatprep.subr.mxu0 0.0
    %4712 = vmatpush2.msra.mxu0 0.0
    %4713 = vmatprep.subr.mxu0 0.0
    %4714 = vmatpush2.msra.mxu0 0.0
    %4715 = vmatprep.subr.mxu0 0.0
    %4716 = vmatpush2.msra.mxu0 0.0
    %4717 = vmatprep.subr.mxu0 0.0
    %4718 = vmatpush2.msra.mxu0 0.0
    %4719 = vmatprep.subr.mxu0 0.0
    %4720 = vmatpush2.msra.mxu0 0.0
    %4721 = vmatprep.subr.mxu0 0.0
    %4722 = vmatpush2.msra.mxu0 0.0
    %4723 = vmatprep.subr.mxu0 0.0
    %4724 = vmatpush2.msra.mxu0 0.0
    %4725 = vmatprep.mubr.f32.mxu0 0.0
    %4726 = vmatmul.mubr.f32.gmra.mxu0 %v4659
    %v4727 = vpop.f32.mrf.mxu0
    %v4728 = vadd.f32 0.0, %v4727
    %v4729 = vpop.f32.mrf.mxu0
    %v4730 = vadd.f32 0.0, %v4729
    %4731 = vdwg.mxu0
    %s4732 = scalar_lea.vmem %s16, 1024
    %v4733 = vld [vmem:[%s4732] sm:$0xff]
    %v4734 = vld [vmem:[%s4732 + $0x8] sm:$0xff]
    %v4735 = vld [vmem:[%s4732 + $0x10] sm:$0xff]
    %v4736 = vld [vmem:[%s4732 + $0x18] sm:$0xff]
    %v4737 = vld [vmem:[%s4732 + $0x20] sm:$0xff]
    %v4738 = vld [vmem:[%s4732 + $0x28] sm:$0xff]
    %v4739 = vld [vmem:[%s4732 + $0x30] sm:$0xff]
    %v4740 = vld [vmem:[%s4732 + $0x38] sm:$0xff]
    %v4741 = vld [vmem:[%s4732 + $0x40] sm:$0xff]
    %v4742 = vld [vmem:[%s4732 + $0x48] sm:$0xff]
    %v4743 = vld [vmem:[%s4732 + $0x50] sm:$0xff]
    %v4744 = vld [vmem:[%s4732 + $0x58] sm:$0xff]
    %v4745 = vld [vmem:[%s4732 + $0x60] sm:$0xff]
    %v4746 = vld [vmem:[%s4732 + $0x68] sm:$0xff]
    %v4747 = vld [vmem:[%s4732 + $0x70] sm:$0xff]
    %v4748 = vld [vmem:[%s4732 + $0x78] sm:$0xff]
    %v4749 = vld [vmem:[%s4732 + $0x80] sm:$0xff]
    %v4750 = vld [vmem:[%s4732 + $0x88] sm:$0xff]
    %v4751 = vld [vmem:[%s4732 + $0x90] sm:$0xff]
    %v4752 = vld [vmem:[%s4732 + $0x98] sm:$0xff]
    %v4753 = vld [vmem:[%s4732 + $0xa0] sm:$0xff]
    %v4754 = vld [vmem:[%s4732 + $0xa8] sm:$0xff]
    %v4755 = vld [vmem:[%s4732 + $0xb0] sm:$0xff]
    %v4756 = vld [vmem:[%s4732 + $0xb8] sm:$0xff]
    %v4757 = vld [vmem:[%s4732 + $0xc0] sm:$0xff]
    %v4758 = vld [vmem:[%s4732 + $0xc8] sm:$0xff]
    %v4759 = vld [vmem:[%s4732 + $0xd0] sm:$0xff]
    %v4760 = vld [vmem:[%s4732 + $0xd8] sm:$0xff]
    %v4761 = vld [vmem:[%s4732 + $0xe0] sm:$0xff]
    %v4762 = vld [vmem:[%s4732 + $0xe8] sm:$0xff]
    %v4763 = vld [vmem:[%s4732 + $0xf0] sm:$0xff]
    %v4764 = vld [vmem:[%s4732 + $0xf8] sm:$0xff]
    %v4765 = vld [vmem:[%s4732 + $0x100] sm:$0xff]
    %v4766 = vld [vmem:[%s4732 + $0x108] sm:$0xff]
    %v4767 = vld [vmem:[%s4732 + $0x110] sm:$0xff]
    %v4768 = vld [vmem:[%s4732 + $0x118] sm:$0xff]
    %v4769 = vld [vmem:[%s4732 + $0x120] sm:$0xff]
    %v4770 = vld [vmem:[%s4732 + $0x128] sm:$0xff]
    %v4771 = vld [vmem:[%s4732 + $0x130] sm:$0xff]
    %v4772 = vld [vmem:[%s4732 + $0x138] sm:$0xff]
    %v4773 = vld [vmem:[%s4732 + $0x140] sm:$0xff]
    %v4774 = vld [vmem:[%s4732 + $0x148] sm:$0xff]
    %v4775 = vld [vmem:[%s4732 + $0x150] sm:$0xff]
    %v4776 = vld [vmem:[%s4732 + $0x158] sm:$0xff]
    %v4777 = vld [vmem:[%s4732 + $0x160] sm:$0xff]
    %v4778 = vld [vmem:[%s4732 + $0x168] sm:$0xff]
    %v4779 = vld [vmem:[%s4732 + $0x170] sm:$0xff]
    %v4780 = vld [vmem:[%s4732 + $0x178] sm:$0xff]
    %v4781 = vld [vmem:[%s4732 + $0x180] sm:$0xff]
    %v4782 = vld [vmem:[%s4732 + $0x188] sm:$0xff]
    %v4783 = vld [vmem:[%s4732 + $0x190] sm:$0xff]
    %v4784 = vld [vmem:[%s4732 + $0x198] sm:$0xff]
    %v4785 = vld [vmem:[%s4732 + $0x1a0] sm:$0xff]
    %v4786 = vld [vmem:[%s4732 + $0x1a8] sm:$0xff]
    %v4787 = vld [vmem:[%s4732 + $0x1b0] sm:$0xff]
    %v4788 = vld [vmem:[%s4732 + $0x1b8] sm:$0xff]
    %v4789 = vld [vmem:[%s4732 + $0x1c0] sm:$0xff]
    %v4790 = vld [vmem:[%s4732 + $0x1c8] sm:$0xff]
    %v4791 = vld [vmem:[%s4732 + $0x1d0] sm:$0xff]
    %v4792 = vld [vmem:[%s4732 + $0x1d8] sm:$0xff]
    %v4793 = vld [vmem:[%s4732 + $0x1e0] sm:$0xff]
    %v4794 = vld [vmem:[%s4732 + $0x1e8] sm:$0xff]
    %v4795 = vld [vmem:[%s4732 + $0x1f0] sm:$0xff]
    %v4796 = vld [vmem:[%s4732 + $0x1f8] sm:$0xff]
    %4797 = vmatprep.subr.mxu0 %v4764
    %4798 = vmatpush1.msra.mxu0 %v4763
    %4799 = vmatprep.subr.mxu0 %v4762
    %4800 = vmatpush1.msra.mxu0 %v4761
    %4801 = vmatprep.subr.mxu0 %v4760
    %4802 = vmatpush1.msra.mxu0 %v4759
    %4803 = vmatprep.subr.mxu0 %v4758
    %4804 = vmatpush1.msra.mxu0 %v4757
    %4805 = vmatprep.subr.mxu0 %v4756
    %4806 = vmatpush1.msra.mxu0 %v4755
    %4807 = vmatprep.subr.mxu0 %v4754
    %4808 = vmatpush1.msra.mxu0 %v4753
    %4809 = vmatprep.subr.mxu0 %v4752
    %4810 = vmatpush1.msra.mxu0 %v4751
    %4811 = vmatprep.subr.mxu0 %v4750
    %4812 = vmatpush1.msra.mxu0 %v4749
    %4813 = vmatprep.subr.mxu0 %v4748
    %4814 = vmatpush1.msra.mxu0 %v4747
    %4815 = vmatprep.subr.mxu0 %v4746
    %4816 = vmatpush1.msra.mxu0 %v4745
    %4817 = vmatprep.subr.mxu0 %v4744
    %4818 = vmatpush1.msra.mxu0 %v4743
    %4819 = vmatprep.subr.mxu0 %v4742
    %4820 = vmatpush1.msra.mxu0 %v4741
    %4821 = vmatprep.subr.mxu0 %v4740
    %4822 = vmatpush1.msra.mxu0 %v4739
    %4823 = vmatprep.subr.mxu0 %v4738
    %4824 = vmatpush1.msra.mxu0 %v4737
    %4825 = vmatprep.subr.mxu0 %v4736
    %4826 = vmatpush1.msra.mxu0 %v4735
    %4827 = vmatprep.subr.mxu0 %v4734
    %4828 = vmatpush1.msra.mxu0 %v4733
    %4829 = vmatprep.subr.mxu0 %v4796
    %4830 = vmatpush2.msra.mxu0 %v4795
    %4831 = vmatprep.subr.mxu0 %v4794
    %4832 = vmatpush2.msra.mxu0 %v4793
    %4833 = vmatprep.subr.mxu0 %v4792
    %4834 = vmatpush2.msra.mxu0 %v4791
    %4835 = vmatprep.subr.mxu0 %v4790
    %4836 = vmatpush2.msra.mxu0 %v4789
    %4837 = vmatprep.subr.mxu0 %v4788
    %4838 = vmatpush2.msra.mxu0 %v4787
    %4839 = vmatprep.subr.mxu0 %v4786
    %4840 = vmatpush2.msra.mxu0 %v4785
    %4841 = vmatprep.subr.mxu0 %v4784
    %4842 = vmatpush2.msra.mxu0 %v4783
    %4843 = vmatprep.subr.mxu0 %v4782
    %4844 = vmatpush2.msra.mxu0 %v4781
    %4845 = vmatprep.subr.mxu0 %v4780
    %4846 = vmatpush2.msra.mxu0 %v4779
    %4847 = vmatprep.subr.mxu0 %v4778
    %4848 = vmatpush2.msra.mxu0 %v4777
    %4849 = vmatprep.subr.mxu0 %v4776
    %4850 = vmatpush2.msra.mxu0 %v4775
    %4851 = vmatprep.subr.mxu0 %v4774
    %4852 = vmatpush2.msra.mxu0 %v4773
    %4853 = vmatprep.subr.mxu0 %v4772
    %4854 = vmatpush2.msra.mxu0 %v4771
    %4855 = vmatprep.subr.mxu0 %v4770
    %4856 = vmatpush2.msra.mxu0 %v4769
    %4857 = vmatprep.subr.mxu0 %v4768
    %4858 = vmatpush2.msra.mxu0 %v4767
    %4859 = vmatprep.subr.mxu0 %v4766
    %4860 = vmatpush2.msra.mxu0 %v4765
    %4861 = vmatprep.mubr.f32.mxu0 %v4730
    %4862 = vmatmul.mubr.f32.gmra.mxu0 %v4728
    %v4863 = vpop.f32.mrf.mxu0
    %v4864 = vadd.f32 0.0, %v4863
    %v4865 = vpop.f32.mrf.mxu0
    %v4866 = vadd.f32 0.0, %v4865
    %4867 = vdwg.mxu0
    %v4868 = vadd.f32 %v4652, %v4864
    %v4869 = vadd.f32 %v4654, %v4866
    %s4870 = scalar_lea.vmem %s15, 24
    %v4871 = vld [vmem:[%s4870] sm:$0xff]
    %v4873 = vsel %vm2703, %v4871, 0
    %4875 = vmatprep.subr.mxu0 0.0
    %4876 = vmatpush1.msra.mxu0 0.0
    %4877 = vmatprep.subr.mxu0 0.0
    %4878 = vmatpush1.msra.mxu0 0.0
    %4879 = vmatprep.subr.mxu0 0.0
    %4880 = vmatpush1.msra.mxu0 0.0
    %4881 = vmatprep.subr.mxu0 0.0
    %4882 = vmatpush1.msra.mxu0 0.0
    %4883 = vmatprep.subr.mxu0 0.0
    %4884 = vmatpush1.msra.mxu0 0.0
    %4885 = vmatprep.subr.mxu0 0.0
    %4886 = vmatpush1.msra.mxu0 0.0
    %4887 = vmatprep.subr.mxu0 0.0
    %4888 = vmatpush1.msra.mxu0 0.0
    %4889 = vmatprep.subr.mxu0 0.0
    %4890 = vmatpush1.msra.mxu0 0.0
    %4891 = vmatprep.subr.mxu0 0.0
    %4892 = vmatpush1.msra.mxu0 0.0
    %4893 = vmatprep.subr.mxu0 0.0
    %4894 = vmatpush1.msra.mxu0 0.0
    %4895 = vmatprep.subr.mxu0 0.0
    %4896 = vmatpush1.msra.mxu0 0.0
    %4897 = vmatprep.subr.mxu0 0.0
    %4898 = vmatpush1.msra.mxu0 0.0
    %4899 = vmatprep.subr.mxu0 0.0
    %4900 = vmatpush1.msra.mxu0 0.0
    %4901 = vmatprep.subr.mxu0 0.0
    %4902 = vmatpush1.msra.mxu0 0.0
    %4903 = vmatprep.subr.mxu0 %v4233
    %4904 = vmatpush1.msra.mxu0 %v4232
    %4905 = vmatprep.subr.mxu0 %v4231
    %4906 = vmatpush1.msra.mxu0 %v4230
    %4907 = vmatprep.subr.mxu0 0.0
    %4908 = vmatpush2.msra.mxu0 0.0
    %4909 = vmatprep.subr.mxu0 0.0
    %4910 = vmatpush2.msra.mxu0 0.0
    %4911 = vmatprep.subr.mxu0 0.0
    %4912 = vmatpush2.msra.mxu0 0.0
    %4913 = vmatprep.subr.mxu0 0.0
    %4914 = vmatpush2.msra.mxu0 0.0
    %4915 = vmatprep.subr.mxu0 0.0
    %4916 = vmatpush2.msra.mxu0 0.0
    %4917 = vmatprep.subr.mxu0 0.0
    %4918 = vmatpush2.msra.mxu0 0.0
    %4919 = vmatprep.subr.mxu0 0.0
    %4920 = vmatpush2.msra.mxu0 0.0
    %4921 = vmatprep.subr.mxu0 0.0
    %4922 = vmatpush2.msra.mxu0 0.0
    %4923 = vmatprep.subr.mxu0 0.0
    %4924 = vmatpush2.msra.mxu0 0.0
    %4925 = vmatprep.subr.mxu0 0.0
    %4926 = vmatpush2.msra.mxu0 0.0
    %4927 = vmatprep.subr.mxu0 0.0
    %4928 = vmatpush2.msra.mxu0 0.0
    %4929 = vmatprep.subr.mxu0 0.0
    %4930 = vmatpush2.msra.mxu0 0.0
    %4931 = vmatprep.subr.mxu0 0.0
    %4932 = vmatpush2.msra.mxu0 0.0
    %4933 = vmatprep.subr.mxu0 0.0
    %4934 = vmatpush2.msra.mxu0 0.0
    %4935 = vmatprep.subr.mxu0 0.0
    %4936 = vmatpush2.msra.mxu0 0.0
    %4937 = vmatprep.subr.mxu0 0.0
    %4938 = vmatpush2.msra.mxu0 0.0
    %4939 = vmatprep.mubr.f32.mxu0 0.0
    %4940 = vmatmul.mubr.f32.gmra.mxu0 %v4873
    %v4941 = vpop.f32.mrf.mxu0
    %v4942 = vadd.f32 0.0, %v4941
    %v4943 = vpop.f32.mrf.mxu0
    %v4944 = vadd.f32 0.0, %v4943
    %4945 = vdwg.mxu0
    %s4946 = scalar_lea.vmem %s16, 1536
    %v4947 = vld [vmem:[%s4946] sm:$0xff]
    %v4948 = vld [vmem:[%s4946 + $0x8] sm:$0xff]
    %v4949 = vld [vmem:[%s4946 + $0x10] sm:$0xff]
    %v4950 = vld [vmem:[%s4946 + $0x18] sm:$0xff]
    %v4951 = vld [vmem:[%s4946 + $0x20] sm:$0xff]
    %v4952 = vld [vmem:[%s4946 + $0x28] sm:$0xff]
    %v4953 = vld [vmem:[%s4946 + $0x30] sm:$0xff]
    %v4954 = vld [vmem:[%s4946 + $0x38] sm:$0xff]
    %v4955 = vld [vmem:[%s4946 + $0x40] sm:$0xff]
    %v4956 = vld [vmem:[%s4946 + $0x48] sm:$0xff]
    %v4957 = vld [vmem:[%s4946 + $0x50] sm:$0xff]
    %v4958 = vld [vmem:[%s4946 + $0x58] sm:$0xff]
    %v4959 = vld [vmem:[%s4946 + $0x60] sm:$0xff]
    %v4960 = vld [vmem:[%s4946 + $0x68] sm:$0xff]
    %v4961 = vld [vmem:[%s4946 + $0x70] sm:$0xff]
    %v4962 = vld [vmem:[%s4946 + $0x78] sm:$0xff]
    %v4963 = vld [vmem:[%s4946 + $0x80] sm:$0xff]
    %v4964 = vld [vmem:[%s4946 + $0x88] sm:$0xff]
    %v4965 = vld [vmem:[%s4946 + $0x90] sm:$0xff]
    %v4966 = vld [vmem:[%s4946 + $0x98] sm:$0xff]
    %v4967 = vld [vmem:[%s4946 + $0xa0] sm:$0xff]
    %v4968 = vld [vmem:[%s4946 + $0xa8] sm:$0xff]
    %v4969 = vld [vmem:[%s4946 + $0xb0] sm:$0xff]
    %v4970 = vld [vmem:[%s4946 + $0xb8] sm:$0xff]
    %v4971 = vld [vmem:[%s4946 + $0xc0] sm:$0xff]
    %v4972 = vld [vmem:[%s4946 + $0xc8] sm:$0xff]
    %v4973 = vld [vmem:[%s4946 + $0xd0] sm:$0xff]
    %v4974 = vld [vmem:[%s4946 + $0xd8] sm:$0xff]
    %v4975 = vld [vmem:[%s4946 + $0xe0] sm:$0xff]
    %v4976 = vld [vmem:[%s4946 + $0xe8] sm:$0xff]
    %v4977 = vld [vmem:[%s4946 + $0xf0] sm:$0xff]
    %v4978 = vld [vmem:[%s4946 + $0xf8] sm:$0xff]
    %v4979 = vld [vmem:[%s4946 + $0x100] sm:$0xff]
    %v4980 = vld [vmem:[%s4946 + $0x108] sm:$0xff]
    %v4981 = vld [vmem:[%s4946 + $0x110] sm:$0xff]
    %v4982 = vld [vmem:[%s4946 + $0x118] sm:$0xff]
    %v4983 = vld [vmem:[%s4946 + $0x120] sm:$0xff]
    %v4984 = vld [vmem:[%s4946 + $0x128] sm:$0xff]
    %v4985 = vld [vmem:[%s4946 + $0x130] sm:$0xff]
    %v4986 = vld [vmem:[%s4946 + $0x138] sm:$0xff]
    %v4987 = vld [vmem:[%s4946 + $0x140] sm:$0xff]
    %v4988 = vld [vmem:[%s4946 + $0x148] sm:$0xff]
    %v4989 = vld [vmem:[%s4946 + $0x150] sm:$0xff]
    %v4990 = vld [vmem:[%s4946 + $0x158] sm:$0xff]
    %v4991 = vld [vmem:[%s4946 + $0x160] sm:$0xff]
    %v4992 = vld [vmem:[%s4946 + $0x168] sm:$0xff]
    %v4993 = vld [vmem:[%s4946 + $0x170] sm:$0xff]
    %v4994 = vld [vmem:[%s4946 + $0x178] sm:$0xff]
    %v4995 = vld [vmem:[%s4946 + $0x180] sm:$0xff]
    %v4996 = vld [vmem:[%s4946 + $0x188] sm:$0xff]
    %v4997 = vld [vmem:[%s4946 + $0x190] sm:$0xff]
    %v4998 = vld [vmem:[%s4946 + $0x198] sm:$0xff]
    %v4999 = vld [vmem:[%s4946 + $0x1a0] sm:$0xff]
    %v5000 = vld [vmem:[%s4946 + $0x1a8] sm:$0xff]
    %v5001 = vld [vmem:[%s4946 + $0x1b0] sm:$0xff]
    %v5002 = vld [vmem:[%s4946 + $0x1b8] sm:$0xff]
    %v5003 = vld [vmem:[%s4946 + $0x1c0] sm:$0xff]
    %v5004 = vld [vmem:[%s4946 + $0x1c8] sm:$0xff]
    %v5005 = vld [vmem:[%s4946 + $0x1d0] sm:$0xff]
    %v5006 = vld [vmem:[%s4946 + $0x1d8] sm:$0xff]
    %v5007 = vld [vmem:[%s4946 + $0x1e0] sm:$0xff]
    %v5008 = vld [vmem:[%s4946 + $0x1e8] sm:$0xff]
    %v5009 = vld [vmem:[%s4946 + $0x1f0] sm:$0xff]
    %v5010 = vld [vmem:[%s4946 + $0x1f8] sm:$0xff]
    %5011 = vmatprep.subr.mxu0 %v4978
    %5012 = vmatpush1.msra.mxu0 %v4977
    %5013 = vmatprep.subr.mxu0 %v4976
    %5014 = vmatpush1.msra.mxu0 %v4975
    %5015 = vmatprep.subr.mxu0 %v4974
    %5016 = vmatpush1.msra.mxu0 %v4973
    %5017 = vmatprep.subr.mxu0 %v4972
    %5018 = vmatpush1.msra.mxu0 %v4971
    %5019 = vmatprep.subr.mxu0 %v4970
    %5020 = vmatpush1.msra.mxu0 %v4969
    %5021 = vmatprep.subr.mxu0 %v4968
    %5022 = vmatpush1.msra.mxu0 %v4967
    %5023 = vmatprep.subr.mxu0 %v4966
    %5024 = vmatpush1.msra.mxu0 %v4965
    %5025 = vmatprep.subr.mxu0 %v4964
    %5026 = vmatpush1.msra.mxu0 %v4963
    %5027 = vmatprep.subr.mxu0 %v4962
    %5028 = vmatpush1.msra.mxu0 %v4961
    %5029 = vmatprep.subr.mxu0 %v4960
    %5030 = vmatpush1.msra.mxu0 %v4959
    %5031 = vmatprep.subr.mxu0 %v4958
    %5032 = vmatpush1.msra.mxu0 %v4957
    %5033 = vmatprep.subr.mxu0 %v4956
    %5034 = vmatpush1.msra.mxu0 %v4955
    %5035 = vmatprep.subr.mxu0 %v4954
    %5036 = vmatpush1.msra.mxu0 %v4953
    %5037 = vmatprep.subr.mxu0 %v4952
    %5038 = vmatpush1.msra.mxu0 %v4951
    %5039 = vmatprep.subr.mxu0 %v4950
    %5040 = vmatpush1.msra.mxu0 %v4949
    %5041 = vmatprep.subr.mxu0 %v4948
    %5042 = vmatpush1.msra.mxu0 %v4947
    %5043 = vmatprep.subr.mxu0 %v5010
    %5044 = vmatpush2.msra.mxu0 %v5009
    %5045 = vmatprep.subr.mxu0 %v5008
    %5046 = vmatpush2.msra.mxu0 %v5007
    %5047 = vmatprep.subr.mxu0 %v5006
    %5048 = vmatpush2.msra.mxu0 %v5005
    %5049 = vmatprep.subr.mxu0 %v5004
    %5050 = vmatpush2.msra.mxu0 %v5003
    %5051 = vmatprep.subr.mxu0 %v5002
    %5052 = vmatpush2.msra.mxu0 %v5001
    %5053 = vmatprep.subr.mxu0 %v5000
    %5054 = vmatpush2.msra.mxu0 %v4999
    %5055 = vmatprep.subr.mxu0 %v4998
    %5056 = vmatpush2.msra.mxu0 %v4997
    %5057 = vmatprep.subr.mxu0 %v4996
    %5058 = vmatpush2.msra.mxu0 %v4995
    %5059 = vmatprep.subr.mxu0 %v4994
    %5060 = vmatpush2.msra.mxu0 %v4993
    %5061 = vmatprep.subr.mxu0 %v4992
    %5062 = vmatpush2.msra.mxu0 %v4991
    %5063 = vmatprep.subr.mxu0 %v4990
    %5064 = vmatpush2.msra.mxu0 %v4989
    %5065 = vmatprep.subr.mxu0 %v4988
    %5066 = vmatpush2.msra.mxu0 %v4987
    %5067 = vmatprep.subr.mxu0 %v4986
    %5068 = vmatpush2.msra.mxu0 %v4985
    %5069 = vmatprep.subr.mxu0 %v4984
    %5070 = vmatpush2.msra.mxu0 %v4983
    %5071 = vmatprep.subr.mxu0 %v4982
    %5072 = vmatpush2.msra.mxu0 %v4981
    %5073 = vmatprep.subr.mxu0 %v4980
    %5074 = vmatpush2.msra.mxu0 %v4979
    %5075 = vmatprep.mubr.f32.mxu0 %v4944
    %5076 = vmatmul.mubr.f32.gmra.mxu0 %v4942
    %v5077 = vpop.f32.mrf.mxu0
    %v5078 = vadd.f32 0.0, %v5077
    %v5079 = vpop.f32.mrf.mxu0
    %v5080 = vadd.f32 0.0, %v5079
    %5081 = vdwg.mxu0
    %v5082 = vadd.f32 %v4868, %v5078
    %v5083 = vadd.f32 %v4869, %v5080
    %v5084 = vld [vmem:[%s17] sm:$0xff]
    %v5085 = vld [vmem:[%s17 + $0x8] sm:$0xff]
    %v5086 = vld [vmem:[%s17 + $0x10] sm:$0xff]
    %v5087 = vld [vmem:[%s17 + $0x18] sm:$0xff]
    %v5088 = vld [vmem:[%s17 + $0x20] sm:$0xff]
    %v5089 = vld [vmem:[%s17 + $0x28] sm:$0xff]
    %v5090 = vld [vmem:[%s17 + $0x30] sm:$0xff]
    %v5091 = vld [vmem:[%s17 + $0x38] sm:$0xff]
    %v5092 = vld [vmem:[%s17 + $0x40] sm:$0xff]
    %v5093 = vld [vmem:[%s17 + $0x48] sm:$0xff]
    %v5094 = vld [vmem:[%s17 + $0x50] sm:$0xff]
    %v5095 = vld [vmem:[%s17 + $0x58] sm:$0xff]
    %v5096 = vld [vmem:[%s17 + $0x60] sm:$0xff]
    %v5097 = vld [vmem:[%s17 + $0x68] sm:$0xff]
    %v5098 = vld [vmem:[%s17 + $0x70] sm:$0xff]
    %v5099 = vld [vmem:[%s17 + $0x78] sm:$0xff]
    %v5100 = vld [vmem:[%s17 + $0x80] sm:$0xff]
    %v5101 = vld [vmem:[%s17 + $0x88] sm:$0xff]
    %v5102 = vld [vmem:[%s17 + $0x90] sm:$0xff]
    %v5103 = vld [vmem:[%s17 + $0x98] sm:$0xff]
    %v5104 = vld [vmem:[%s17 + $0xa0] sm:$0xff]
    %v5105 = vld [vmem:[%s17 + $0xa8] sm:$0xff]
    %v5106 = vld [vmem:[%s17 + $0xb0] sm:$0xff]
    %v5107 = vld [vmem:[%s17 + $0xb8] sm:$0xff]
    %v5108 = vld [vmem:[%s17 + $0xc0] sm:$0xff]
    %v5109 = vld [vmem:[%s17 + $0xc8] sm:$0xff]
    %v5110 = vld [vmem:[%s17 + $0xd0] sm:$0xff]
    %v5111 = vld [vmem:[%s17 + $0xd8] sm:$0xff]
    %v5112 = vld [vmem:[%s17 + $0xe0] sm:$0xff]
    %v5113 = vld [vmem:[%s17 + $0xe8] sm:$0xff]
    %v5114 = vld [vmem:[%s17 + $0xf0] sm:$0xff]
    %v5115 = vld [vmem:[%s17 + $0xf8] sm:$0xff]
    %v5116 = vld [vmem:[%s18] sm:$0xff]
    %v5117 = vld [vmem:[%s18 + $0x8] sm:$0xff]
    %v5118 = vld [vmem:[%s18 + $0x10] sm:$0xff]
    %v5119 = vld [vmem:[%s18 + $0x18] sm:$0xff]
    %v5120 = vld [vmem:[%s18 + $0x20] sm:$0xff]
    %v5121 = vld [vmem:[%s18 + $0x28] sm:$0xff]
    %v5122 = vld [vmem:[%s18 + $0x30] sm:$0xff]
    %v5123 = vld [vmem:[%s18 + $0x38] sm:$0xff]
    %v5124 = vld [vmem:[%s18 + $0x40] sm:$0xff]
    %v5125 = vld [vmem:[%s18 + $0x48] sm:$0xff]
    %v5126 = vld [vmem:[%s18 + $0x50] sm:$0xff]
    %v5127 = vld [vmem:[%s18 + $0x58] sm:$0xff]
    %v5128 = vld [vmem:[%s18 + $0x60] sm:$0xff]
    %v5129 = vld [vmem:[%s18 + $0x68] sm:$0xff]
    %v5130 = vld [vmem:[%s18 + $0x70] sm:$0xff]
    %v5131 = vld [vmem:[%s18 + $0x78] sm:$0xff]
    %v5132 = vld [vmem:[%s19] sm:$0x1]
    %v5133 = vld [vmem:[%s20] sm:$0x1]
    %v5134 = vrot.slane %v5082, 4
    %v5135 = vadd.f32 %v5082, %v5134
    %v5136 = vrot.slane %v5135, 2
    %v5137 = vadd.f32 %v5135, %v5136
    %v5138 = vrot.slane %v5137, 1
    %v5139 = vadd.f32 %v5137, %v5138
    %v5140 = vrot.slane %v5083, 4
    %v5141 = vadd.f32 %v5083, %v5140
    %v5142 = vrot.slane %v5141, 2
    %v5143 = vadd.f32 %v5141, %v5142
    %v5144 = vrot.slane %v5143, 1
    %v5145 = vadd.f32 %v5143, %v5144
    %5146 = vmatprep.subr.mxu0 0.0
    %5147 = vmatpush1.msra.mxu0 %v5099
    %5148 = vmatprep.subr.mxu0 0.0
    %5149 = vmatpush1.msra.mxu0 %v5098
    %5150 = vmatprep.subr.mxu0 0.0
    %5151 = vmatpush1.msra.mxu0 %v5097
    %5152 = vmatprep.subr.mxu0 0.0
    %5153 = vmatpush1.msra.mxu0 %v5096
    %5154 = vmatprep.subr.mxu0 0.0
    %5155 = vmatpush1.msra.mxu0 %v5095
    %5156 = vmatprep.subr.mxu0 0.0
    %5157 = vmatpush1.msra.mxu0 %v5094
    %5158 = vmatprep.subr.mxu0 0.0
    %5159 = vmatpush1.msra.mxu0 %v5093
    %5160 = vmatprep.subr.mxu0 0.0
    %5161 = vmatpush1.msra.mxu0 %v5092
    %5162 = vmatprep.subr.mxu0 0.0
    %5163 = vmatpush1.msra.mxu0 %v5091
    %5164 = vmatprep.subr.mxu0 0.0
    %5165 = vmatpush1.msra.mxu0 %v5090
    %5166 = vmatprep.subr.mxu0 0.0
    %5167 = vmatpush1.msra.mxu0 %v5089
    %5168 = vmatprep.subr.mxu0 0.0
    %5169 = vmatpush1.msra.mxu0 %v5088
    %5170 = vmatprep.subr.mxu0 0.0
    %5171 = vmatpush1.msra.mxu0 %v5087
    %5172 = vmatprep.subr.mxu0 0.0
    %5173 = vmatpush1.msra.mxu0 %v5086
    %5174 = vmatprep.subr.mxu0 0.0
    %5175 = vmatpush1.msra.mxu0 %v5085
    %5176 = vmatprep.subr.mxu0 0.0
    %5177 = vmatpush1.msra.mxu0 %v5084
    %5178 = vmatprep.subr.mxu0 0.0
    %5179 = vmatpush2.msra.mxu0 %v5115
    %5180 = vmatprep.subr.mxu0 0.0
    %5181 = vmatpush2.msra.mxu0 %v5114
    %5182 = vmatprep.subr.mxu0 0.0
    %5183 = vmatpush2.msra.mxu0 %v5113
    %5184 = vmatprep.subr.mxu0 0.0
    %5185 = vmatpush2.msra.mxu0 %v5112
    %5186 = vmatprep.subr.mxu0 0.0
    %5187 = vmatpush2.msra.mxu0 %v5111
    %5188 = vmatprep.subr.mxu0 0.0
    %5189 = vmatpush2.msra.mxu0 %v5110
    %5190 = vmatprep.subr.mxu0 0.0
    %5191 = vmatpush2.msra.mxu0 %v5109
    %5192 = vmatprep.subr.mxu0 0.0
    %5193 = vmatpush2.msra.mxu0 %v5108
    %5194 = vmatprep.subr.mxu0 0.0
    %5195 = vmatpush2.msra.mxu0 %v5107
    %5196 = vmatprep.subr.mxu0 0.0
    %5197 = vmatpush2.msra.mxu0 %v5106
    %5198 = vmatprep.subr.mxu0 0.0
    %5199 = vmatpush2.msra.mxu0 %v5105
    %5200 = vmatprep.subr.mxu0 0.0
    %5201 = vmatpush2.msra.mxu0 %v5104
    %5202 = vmatprep.subr.mxu0 0.0
    %5203 = vmatpush2.msra.mxu0 %v5103
    %5204 = vmatprep.subr.mxu0 0.0
    %5205 = vmatpush2.msra.mxu0 %v5102
    %5206 = vmatprep.subr.mxu0 0.0
    %5207 = vmatpush2.msra.mxu0 %v5101
    %5208 = vmatprep.subr.mxu0 0.0
    %5209 = vmatpush2.msra.mxu0 %v5100
    %5210 = vmatprep.mubr.f32.mxu0 %v5145
    %5211 = vmatmul.mubr.f32.gmra.mxu0 %v5139
    %v5212 = vpop.f32.mrf.mxu0
    %v5213 = vadd.f32 0.0, %v5212
    %v5214 = vpop.f32.mrf.mxu0
    %5215 = vdwg.mxu0
    %v5216 = vmul.f32 %v5082, %v5082
    %v5217 = vmul.f32 %v5083, %v5083
    %v5218 = vrot.slane %v5216, 4
    %v5219 = vadd.f32 %v5216, %v5218
    %v5220 = vrot.slane %v5219, 2
    %v5221 = vadd.f32 %v5219, %v5220
    %v5222 = vrot.slane %v5221, 1
    %v5223 = vadd.f32 %v5221, %v5222
    %v5224 = vrot.slane %v5217, 4
    %v5225 = vadd.f32 %v5217, %v5224
    %v5226 = vrot.slane %v5225, 2
    %v5227 = vadd.f32 %v5225, %v5226
    %v5228 = vrot.slane %v5227, 1
    %v5229 = vadd.f32 %v5227, %v5228
    %5230 = vmatprep.subr.mxu0 0.0
    %5231 = vmatpush1.msra.mxu0 %v5099
    %5232 = vmatprep.subr.mxu0 0.0
    %5233 = vmatpush1.msra.mxu0 %v5098
    %5234 = vmatprep.subr.mxu0 0.0
    %5235 = vmatpush1.msra.mxu0 %v5097
    %5236 = vmatprep.subr.mxu0 0.0
    %5237 = vmatpush1.msra.mxu0 %v5096
    %5238 = vmatprep.subr.mxu0 0.0
    %5239 = vmatpush1.msra.mxu0 %v5095
    %5240 = vmatprep.subr.mxu0 0.0
    %5241 = vmatpush1.msra.mxu0 %v5094
    %5242 = vmatprep.subr.mxu0 0.0
    %5243 = vmatpush1.msra.mxu0 %v5093
    %5244 = vmatprep.subr.mxu0 0.0
    %5245 = vmatpush1.msra.mxu0 %v5092
    %5246 = vmatprep.subr.mxu0 0.0
    %5247 = vmatpush1.msra.mxu0 %v5091
    %5248 = vmatprep.subr.mxu0 0.0
    %5249 = vmatpush1.msra.mxu0 %v5090
    %5250 = vmatprep.subr.mxu0 0.0
    %5251 = vmatpush1.msra.mxu0 %v5089
    %5252 = vmatprep.subr.mxu0 0.0
    %5253 = vmatpush1.msra.mxu0 %v5088
    %5254 = vmatprep.subr.mxu0 0.0
    %5255 = vmatpush1.msra.mxu0 %v5087
    %5256 = vmatprep.subr.mxu0 0.0
    %5257 = vmatpush1.msra.mxu0 %v5086
    %5258 = vmatprep.subr.mxu0 0.0
    %5259 = vmatpush1.msra.mxu0 %v5085
    %5260 = vmatprep.subr.mxu0 0.0
    %5261 = vmatpush1.msra.mxu0 %v5084
    %5262 = vmatprep.subr.mxu0 0.0
    %5263 = vmatpush2.msra.mxu0 %v5115
    %5264 = vmatprep.subr.mxu0 0.0
    %5265 = vmatpush2.msra.mxu0 %v5114
    %5266 = vmatprep.subr.mxu0 0.0
    %5267 = vmatpush2.msra.mxu0 %v5113
    %5268 = vmatprep.subr.mxu0 0.0
    %5269 = vmatpush2.msra.mxu0 %v5112
    %5270 = vmatprep.subr.mxu0 0.0
    %5271 = vmatpush2.msra.mxu0 %v5111
    %5272 = vmatprep.subr.mxu0 0.0
    %5273 = vmatpush2.msra.mxu0 %v5110
    %5274 = vmatprep.subr.mxu0 0.0
    %5275 = vmatpush2.msra.mxu0 %v5109
    %5276 = vmatprep.subr.mxu0 0.0
    %5277 = vmatpush2.msra.mxu0 %v5108
    %5278 = vmatprep.subr.mxu0 0.0
    %5279 = vmatpush2.msra.mxu0 %v5107
    %5280 = vmatprep.subr.mxu0 0.0
    %5281 = vmatpush2.msra.mxu0 %v5106
    %5282 = vmatprep.subr.mxu0 0.0
    %5283 = vmatpush2.msra.mxu0 %v5105
    %5284 = vmatprep.subr.mxu0 0.0
    %5285 = vmatpush2.msra.mxu0 %v5104
    %5286 = vmatprep.subr.mxu0 0.0
    %5287 = vmatpush2.msra.mxu0 %v5103
    %5288 = vmatprep.subr.mxu0 0.0
    %5289 = vmatpush2.msra.mxu0 %v5102
    %5290 = vmatprep.subr.mxu0 0.0
    %5291 = vmatpush2.msra.mxu0 %v5101
    %5292 = vmatprep.subr.mxu0 0.0
    %5293 = vmatpush2.msra.mxu0 %v5100
    %5294 = vmatprep.mubr.f32.mxu0 %v5229
    %5295 = vmatmul.mubr.f32.gmra.mxu0 %v5223
    %v5296 = vpop.f32.mrf.mxu0
    %v5297 = vadd.f32 0.0, %v5296
    %v5298 = vpop.f32.mrf.mxu0
    %5299 = vdwg.mxu0
    %v5300 = vmul.f32 %v5213, 0.03125
    %v5301 = vmul.f32 %v5297, 0.03125
    %v5302 = vmul.f32 %v5300, %v5300
    %v5303 = vsub.f32 %v5301, %v5302
    %v5304 = vadd.f32 %v5303, 1e-05
    %v5305 = vrsqrt.pop %v5304
    %v5306 = vmul.f32 %v5132, %v5305
    %v5307 = vmul.f32 %v5300, %v5306
    %v5308 = vsub.f32 %v5133, %v5307
    %v5310 = vsel %vm447, %v5306, 0
    %5312 = vmatprep.subr.mxu0 0.0
    %5313 = vmatpush1.msra.mxu0 0.0
    %5314 = vmatprep.subr.mxu0 0.0
    %5315 = vmatpush1.msra.mxu0 0.0
    %5316 = vmatprep.subr.mxu0 0.0
    %5317 = vmatpush1.msra.mxu0 0.0
    %5318 = vmatprep.subr.mxu0 0.0
    %5319 = vmatpush1.msra.mxu0 0.0
    %5320 = vmatprep.subr.mxu0 0.0
    %5321 = vmatpush1.msra.mxu0 0.0
    %5322 = vmatprep.subr.mxu0 0.0
    %5323 = vmatpush1.msra.mxu0 0.0
    %5324 = vmatprep.subr.mxu0 0.0
    %5325 = vmatpush1.msra.mxu0 0.0
    %5326 = vmatprep.subr.mxu0 0.0
    %5327 = vmatpush1.msra.mxu0 0.0
    %5328 = vmatprep.subr.mxu0 %v5131
    %5329 = vmatpush1.msra.mxu0 %v5130
    %5330 = vmatprep.subr.mxu0 %v5129
    %5331 = vmatpush1.msra.mxu0 %v5128
    %5332 = vmatprep.subr.mxu0 %v5127
    %5333 = vmatpush1.msra.mxu0 %v5126
    %5334 = vmatprep.subr.mxu0 %v5125
    %5335 = vmatpush1.msra.mxu0 %v5124
    %5336 = vmatprep.subr.mxu0 %v5123
    %5337 = vmatpush1.msra.mxu0 %v5122
    %5338 = vmatprep.subr.mxu0 %v5121
    %5339 = vmatpush1.msra.mxu0 %v5120
    %5340 = vmatprep.subr.mxu0 %v5119
    %5341 = vmatpush1.msra.mxu0 %v5118
    %5342 = vmatprep.subr.mxu0 %v5117
    %5343 = vmatpush1.msra.mxu0 %v5116
    %5344 = vmatprep.subr.mxu0 0.0
    %5345 = vmatpush2.msra.mxu0 0.0
    %5346 = vmatprep.subr.mxu0 0.0
    %5347 = vmatpush2.msra.mxu0 0.0
    %5348 = vmatprep.subr.mxu0 0.0
    %5349 = vmatpush2.msra.mxu0 0.0
    %5350 = vmatprep.subr.mxu0 0.0
    %5351 = vmatpush2.msra.mxu0 0.0
    %5352 = vmatprep.subr.mxu0 0.0
    %5353 = vmatpush2.msra.mxu0 0.0
    %5354 = vmatprep.subr.mxu0 0.0
    %5355 = vmatpush2.msra.mxu0 0.0
    %5356 = vmatprep.subr.mxu0 0.0
    %5357 = vmatpush2.msra.mxu0 0.0
    %5358 = vmatprep.subr.mxu0 0.0
    %5359 = vmatpush2.msra.mxu0 0.0
    %5360 = vmatprep.subr.mxu0 0.0
    %5361 = vmatpush2.msra.mxu0 0.0
    %5362 = vmatprep.subr.mxu0 0.0
    %5363 = vmatpush2.msra.mxu0 0.0
    %5364 = vmatprep.subr.mxu0 0.0
    %5365 = vmatpush2.msra.mxu0 0.0
    %5366 = vmatprep.subr.mxu0 0.0
    %5367 = vmatpush2.msra.mxu0 0.0
    %5368 = vmatprep.subr.mxu0 0.0
    %5369 = vmatpush2.msra.mxu0 0.0
    %5370 = vmatprep.subr.mxu0 0.0
    %5371 = vmatpush2.msra.mxu0 0.0
    %5372 = vmatprep.subr.mxu0 0.0
    %5373 = vmatpush2.msra.mxu0 0.0
    %5374 = vmatprep.subr.mxu0 0.0
    %5375 = vmatpush2.msra.mxu0 0.0
    %5376 = vmatprep.mubr.f32.mxu0 0.0
    %5377 = vmatmul.mubr.f32.gmra.mxu0 %v5310
    %v5378 = vpop.f32.mrf.mxu0
    %v5379 = vadd.f32 0.0, %v5378
    %v5380 = vpop.f32.mrf.mxu0
    %v5381 = vadd.f32 0.0, %v5380
    %5382 = vdwg.mxu0
    %v5383 = vlaneseq
    %v5384 = vshrl.u32 %v5383, 7
    %v5385 = vsub.s32 0, %v5384
    %v5386 = vrot.slane %v5379, %v5385
    %v5387 = vlaneseq
    %v5388 = vshrl.u32 %v5387, 7
    %v5389 = vsub.s32 0, %v5388
    %v5390 = vrot.slane %v5381, %v5389
    %v5391 = vmul.f32 %v5082, %v5386
    %v5392 = vmul.f32 %v5083, %v5390
    %v5394 = vsel %vm447, %v5308, 0
    %5396 = vmatprep.subr.mxu0 0.0
    %5397 = vmatpush1.msra.mxu0 0.0
    %5398 = vmatprep.subr.mxu0 0.0
    %5399 = vmatpush1.msra.mxu0 0.0
    %5400 = vmatprep.subr.mxu0 0.0
    %5401 = vmatpush1.msra.mxu0 0.0
    %5402 = vmatprep.subr.mxu0 0.0
    %5403 = vmatpush1.msra.mxu0 0.0
    %5404 = vmatprep.subr.mxu0 0.0
    %5405 = vmatpush1.msra.mxu0 0.0
    %5406 = vmatprep.subr.mxu0 0.0
    %5407 = vmatpush1.msra.mxu0 0.0
    %5408 = vmatprep.subr.mxu0 0.0
    %5409 = vmatpush1.msra.mxu0 0.0
    %5410 = vmatprep.subr.mxu0 0.0
    %5411 = vmatpush1.msra.mxu0 0.0
    %5412 = vmatprep.subr.mxu0 %v5131
    %5413 = vmatpush1.msra.mxu0 %v5130
    %5414 = vmatprep.subr.mxu0 %v5129
    %5415 = vmatpush1.msra.mxu0 %v5128
    %5416 = vmatprep.subr.mxu0 %v5127
    %5417 = vmatpush1.msra.mxu0 %v5126
    %5418 = vmatprep.subr.mxu0 %v5125
    %5419 = vmatpush1.msra.mxu0 %v5124
    %5420 = vmatprep.subr.mxu0 %v5123
    %5421 = vmatpush1.msra.mxu0 %v5122
    %5422 = vmatprep.subr.mxu0 %v5121
    %5423 = vmatpush1.msra.mxu0 %v5120
    %5424 = vmatprep.subr.mxu0 %v5119
    %5425 = vmatpush1.msra.mxu0 %v5118
    %5426 = vmatprep.subr.mxu0 %v5117
    %5427 = vmatpush1.msra.mxu0 %v5116
    %5428 = vmatprep.subr.mxu0 0.0
    %5429 = vmatpush2.msra.mxu0 0.0
    %5430 = vmatprep.subr.mxu0 0.0
    %5431 = vmatpush2.msra.mxu0 0.0
    %5432 = vmatprep.subr.mxu0 0.0
    %5433 = vmatpush2.msra.mxu0 0.0
    %5434 = vmatprep.subr.mxu0 0.0
    %5435 = vmatpush2.msra.mxu0 0.0
    %5436 = vmatprep.subr.mxu0 0.0
    %5437 = vmatpush2.msra.mxu0 0.0
    %5438 = vmatprep.subr.mxu0 0.0
    %5439 = vmatpush2.msra.mxu0 0.0
    %5440 = vmatprep.subr.mxu0 0.0
    %5441 = vmatpush2.msra.mxu0 0.0
    %5442 = vmatprep.subr.mxu0 0.0
    %5443 = vmatpush2.msra.mxu0 0.0
    %5444 = vmatprep.subr.mxu0 0.0
    %5445 = vmatpush2.msra.mxu0 0.0
    %5446 = vmatprep.subr.mxu0 0.0
    %5447 = vmatpush2.msra.mxu0 0.0
    %5448 = vmatprep.subr.mxu0 0.0
    %5449 = vmatpush2.msra.mxu0 0.0
    %5450 = vmatprep.subr.mxu0 0.0
    %5451 = vmatpush2.msra.mxu0 0.0
    %5452 = vmatprep.subr.mxu0 0.0
    %5453 = vmatpush2.msra.mxu0 0.0
    %5454 = vmatprep.subr.mxu0 0.0
    %5455 = vmatpush2.msra.mxu0 0.0
    %5456 = vmatprep.subr.mxu0 0.0
    %5457 = vmatpush2.msra.mxu0 0.0
    %5458 = vmatprep.subr.mxu0 0.0
    %5459 = vmatpush2.msra.mxu0 0.0
    %5460 = vmatprep.mubr.f32.mxu0 0.0
    %5461 = vmatmul.mubr.f32.gmra.mxu0 %v5394
    %v5462 = vpop.f32.mrf.mxu0
    %v5463 = vadd.f32 0.0, %v5462
    %v5464 = vpop.f32.mrf.mxu0
    %v5465 = vadd.f32 0.0, %v5464
    %5466 = vdwg.mxu0
    %v5467 = vlaneseq
    %v5468 = vshrl.u32 %v5467, 7
    %v5469 = vsub.s32 0, %v5468
    %v5470 = vrot.slane %v5463, %v5469
    %v5471 = vlaneseq
    %v5472 = vshrl.u32 %v5471, 7
    %v5473 = vsub.s32 0, %v5472
    %v5474 = vrot.slane %v5465, %v5473
    %v5475 = vadd.f32 %v5391, %v5470
    %v5476 = vadd.f32 %v5392, %v5474
    %vm5477 = vcmp.ge.f32.partialorder %v5475, 0.0
    %vm5478 = vcmp.ge.f32.partialorder %v5476, 0.0
    %v5479 = vmul.f32 %v5475, 0.2
    %v5480 = vmul.f32 %v5476, 0.2
    %v5481 = vsel %vm5477, %v5475, %v5479
    %v5482 = vsel %vm5478, %v5476, %v5480
    %v5483 = vld [vmem:[%s21] sm:$0x3]
    %vm5484 = vcmask 64512
    %v5486 = vsel %vm5484, %v5483, 0
    %5488 = vmatprep.subr.mxu0 0.0
    %5489 = vmatpush1.msra.mxu0 0.0
    %5490 = vmatprep.subr.mxu0 0.0
    %5491 = vmatpush1.msra.mxu0 0.0
    %5492 = vmatprep.subr.mxu0 0.0
    %5493 = vmatpush1.msra.mxu0 0.0
    %5494 = vmatprep.subr.mxu0 0.0
    %5495 = vmatpush1.msra.mxu0 0.0
    %5496 = vmatprep.subr.mxu0 0.0
    %5497 = vmatpush1.msra.mxu0 0.0
    %5498 = vmatprep.subr.mxu0 0.0
    %5499 = vmatpush1.msra.mxu0 0.0
    %5500 = vmatprep.subr.mxu0 0.0
    %5501 = vmatpush1.msra.mxu0 0.0
    %5502 = vmatprep.subr.mxu0 0.0
    %5503 = vmatpush1.msra.mxu0 0.0
    %5504 = vmatprep.subr.mxu0 0.0
    %5505 = vmatpush1.msra.mxu0 0.0
    %5506 = vmatprep.subr.mxu0 0.0
    %5507 = vmatpush1.msra.mxu0 0.0
    %5508 = vmatprep.subr.mxu0 0.0
    %5509 = vmatpush1.msra.mxu0 0.0
    %5510 = vmatprep.subr.mxu0 0.0
    %5511 = vmatpush1.msra.mxu0 0.0
    %5512 = vmatprep.subr.mxu0 0.0
    %5513 = vmatpush1.msra.mxu0 0.0
    %5514 = vmatprep.subr.mxu0 0.0
    %5515 = vmatpush1.msra.mxu0 0.0
    %5516 = vmatprep.subr.mxu0 0.0
    %5517 = vmatpush1.msra.mxu0 0.0
    %5518 = vmatprep.subr.mxu0 %v5482
    %5519 = vmatpush1.msra.mxu0 %v5481
    %5520 = vmatprep.subr.mxu0 0.0
    %5521 = vmatpush2.msra.mxu0 0.0
    %5522 = vmatprep.subr.mxu0 0.0
    %5523 = vmatpush2.msra.mxu0 0.0
    %5524 = vmatprep.subr.mxu0 0.0
    %5525 = vmatpush2.msra.mxu0 0.0
    %5526 = vmatprep.subr.mxu0 0.0
    %5527 = vmatpush2.msra.mxu0 0.0
    %5528 = vmatprep.subr.mxu0 0.0
    %5529 = vmatpush2.msra.mxu0 0.0
    %5530 = vmatprep.subr.mxu0 0.0
    %5531 = vmatpush2.msra.mxu0 0.0
    %5532 = vmatprep.subr.mxu0 0.0
    %5533 = vmatpush2.msra.mxu0 0.0
    %5534 = vmatprep.subr.mxu0 0.0
    %5535 = vmatpush2.msra.mxu0 0.0
    %5536 = vmatprep.subr.mxu0 0.0
    %5537 = vmatpush2.msra.mxu0 0.0
    %5538 = vmatprep.subr.mxu0 0.0
    %5539 = vmatpush2.msra.mxu0 0.0
    %5540 = vmatprep.subr.mxu0 0.0
    %5541 = vmatpush2.msra.mxu0 0.0
    %5542 = vmatprep.subr.mxu0 0.0
    %5543 = vmatpush2.msra.mxu0 0.0
    %5544 = vmatprep.subr.mxu0 0.0
    %5545 = vmatpush2.msra.mxu0 0.0
    %5546 = vmatprep.subr.mxu0 0.0
    %5547 = vmatpush2.msra.mxu0 0.0
    %5548 = vmatprep.subr.mxu0 0.0
    %5549 = vmatpush2.msra.mxu0 0.0
    %5550 = vmatprep.subr.mxu0 0.0
    %5551 = vmatpush2.msra.mxu0 0.0
    %5552 = vmatprep.mubr.f32.mxu0 0.0
    %5553 = vmatmul.mubr.f32.gmra.mxu0 %v5486
    %v5554 = vpop.f32.mrf.mxu0
    %v5555 = vadd.f32 0.0, %v5554
    %v5556 = vpop.f32.mrf.mxu0
    %v5557 = vadd.f32 0.0, %v5556
    %5558 = vdwg.mxu0
    %v5559 = vld [vmem:[%s22] sm:$0xff]
    %v5560 = vld [vmem:[%s22 + $0x8] sm:$0xff]
    %v5561 = vld [vmem:[%s22 + $0x10] sm:$0xff]
    %v5562 = vld [vmem:[%s22 + $0x18] sm:$0xff]
    %v5563 = vld [vmem:[%s22 + $0x20] sm:$0xff]
    %v5564 = vld [vmem:[%s22 + $0x28] sm:$0xff]
    %v5565 = vld [vmem:[%s22 + $0x30] sm:$0xff]
    %v5566 = vld [vmem:[%s22 + $0x38] sm:$0xff]
    %v5567 = vld [vmem:[%s22 + $0x40] sm:$0xff]
    %v5568 = vld [vmem:[%s22 + $0x48] sm:$0xff]
    %v5569 = vld [vmem:[%s22 + $0x50] sm:$0xff]
    %v5570 = vld [vmem:[%s22 + $0x58] sm:$0xff]
    %v5571 = vld [vmem:[%s22 + $0x60] sm:$0xff]
    %v5572 = vld [vmem:[%s22 + $0x68] sm:$0xff]
    %v5573 = vld [vmem:[%s22 + $0x70] sm:$0xff]
    %v5574 = vld [vmem:[%s22 + $0x78] sm:$0xff]
    %v5575 = vld [vmem:[%s22 + $0x80] sm:$0xff]
    %v5576 = vld [vmem:[%s22 + $0x88] sm:$0xff]
    %v5577 = vld [vmem:[%s22 + $0x90] sm:$0xff]
    %v5578 = vld [vmem:[%s22 + $0x98] sm:$0xff]
    %v5579 = vld [vmem:[%s22 + $0xa0] sm:$0xff]
    %v5580 = vld [vmem:[%s22 + $0xa8] sm:$0xff]
    %v5581 = vld [vmem:[%s22 + $0xb0] sm:$0xff]
    %v5582 = vld [vmem:[%s22 + $0xb8] sm:$0xff]
    %v5583 = vld [vmem:[%s22 + $0xc0] sm:$0xff]
    %v5584 = vld [vmem:[%s22 + $0xc8] sm:$0xff]
    %v5585 = vld [vmem:[%s22 + $0xd0] sm:$0xff]
    %v5586 = vld [vmem:[%s22 + $0xd8] sm:$0xff]
    %v5587 = vld [vmem:[%s22 + $0xe0] sm:$0xff]
    %v5588 = vld [vmem:[%s22 + $0xe8] sm:$0xff]
    %v5589 = vld [vmem:[%s22 + $0xf0] sm:$0xff]
    %v5590 = vld [vmem:[%s22 + $0xf8] sm:$0xff]
    %s5591 = scalar_lea.vmem %s21, 2
    %v5592 = vld [vmem:[%s5591] sm:$0x3]
    %v5594 = vsel %vm5484, %v5592, 0
    %5596 = vmatprep.subr.mxu0 0.0
    %5597 = vmatpush1.msra.mxu0 0.0
    %5598 = vmatprep.subr.mxu0 0.0
    %5599 = vmatpush1.msra.mxu0 0.0
    %5600 = vmatprep.subr.mxu0 0.0
    %5601 = vmatpush1.msra.mxu0 0.0
    %5602 = vmatprep.subr.mxu0 0.0
    %5603 = vmatpush1.msra.mxu0 0.0
    %5604 = vmatprep.subr.mxu0 0.0
    %5605 = vmatpush1.msra.mxu0 0.0
    %5606 = vmatprep.subr.mxu0 0.0
    %5607 = vmatpush1.msra.mxu0 0.0
    %5608 = vmatprep.subr.mxu0 0.0
    %5609 = vmatpush1.msra.mxu0 0.0
    %5610 = vmatprep.subr.mxu0 0.0
    %5611 = vmatpush1.msra.mxu0 0.0
    %5612 = vmatprep.subr.mxu0 0.0
    %5613 = vmatpush1.msra.mxu0 0.0
    %5614 = vmatprep.subr.mxu0 0.0
    %5615 = vmatpush1.msra.mxu0 0.0
    %5616 = vmatprep.subr.mxu0 0.0
    %5617 = vmatpush1.msra.mxu0 0.0
    %5618 = vmatprep.subr.mxu0 0.0
    %5619 = vmatpush1.msra.mxu0 0.0
    %5620 = vmatprep.subr.mxu0 0.0
    %5621 = vmatpush1.msra.mxu0 0.0
    %5622 = vmatprep.subr.mxu0 0.0
    %5623 = vmatpush1.msra.mxu0 0.0
    %5624 = vmatprep.subr.mxu0 0.0
    %5625 = vmatpush1.msra.mxu0 0.0
    %5626 = vmatprep.subr.mxu0 %v5482
    %5627 = vmatpush1.msra.mxu0 %v5481
    %5628 = vmatprep.subr.mxu0 0.0
    %5629 = vmatpush2.msra.mxu0 0.0
    %5630 = vmatprep.subr.mxu0 0.0
    %5631 = vmatpush2.msra.mxu0 0.0
    %5632 = vmatprep.subr.mxu0 0.0
    %5633 = vmatpush2.msra.mxu0 0.0
    %5634 = vmatprep.subr.mxu0 0.0
    %5635 = vmatpush2.msra.mxu0 0.0
    %5636 = vmatprep.subr.mxu0 0.0
    %5637 = vmatpush2.msra.mxu0 0.0
    %5638 = vmatprep.subr.mxu0 0.0
    %5639 = vmatpush2.msra.mxu0 0.0
    %5640 = vmatprep.subr.mxu0 0.0
    %5641 = vmatpush2.msra.mxu0 0.0
    %5642 = vmatprep.subr.mxu0 0.0
    %5643 = vmatpush2.msra.mxu0 0.0
    %5644 = vmatprep.subr.mxu0 0.0
    %5645 = vmatpush2.msra.mxu0 0.0
    %5646 = vmatprep.subr.mxu0 0.0
    %5647 = vmatpush2.msra.mxu0 0.0
    %5648 = vmatprep.subr.mxu0 0.0
    %5649 = vmatpush2.msra.mxu0 0.0
    %5650 = vmatprep.subr.mxu0 0.0
    %5651 = vmatpush2.msra.mxu0 0.0
    %5652 = vmatprep.subr.mxu0 0.0
    %5653 = vmatpush2.msra.mxu0 0.0
    %5654 = vmatprep.subr.mxu0 0.0
    %5655 = vmatpush2.msra.mxu0 0.0
    %5656 = vmatprep.subr.mxu0 0.0
    %5657 = vmatpush2.msra.mxu0 0.0
    %5658 = vmatprep.subr.mxu0 0.0
    %5659 = vmatpush2.msra.mxu0 0.0
    %5660 = vmatprep.mubr.f32.mxu0 0.0
    %5661 = vmatmul.mubr.f32.gmra.mxu0 %v5594
    %v5662 = vpop.f32.mrf.mxu0
    %v5663 = vadd.f32 0.0, %v5662
    %v5664 = vpop.f32.mrf.mxu0
    %v5665 = vadd.f32 0.0, %v5664
    %5666 = vdwg.mxu0
    %s5667 = scalar_lea.vmem %s22, 256
    %v5668 = vld [vmem:[%s5667] sm:$0xff]
    %v5669 = vld [vmem:[%s5667 + $0x8] sm:$0xff]
    %v5670 = vld [vmem:[%s5667 + $0x10] sm:$0xff]
    %v5671 = vld [vmem:[%s5667 + $0x18] sm:$0xff]
    %v5672 = vld [vmem:[%s5667 + $0x20] sm:$0xff]
    %v5673 = vld [vmem:[%s5667 + $0x28] sm:$0xff]
    %v5674 = vld [vmem:[%s5667 + $0x30] sm:$0xff]
    %v5675 = vld [vmem:[%s5667 + $0x38] sm:$0xff]
    %v5676 = vld [vmem:[%s5667 + $0x40] sm:$0xff]
    %v5677 = vld [vmem:[%s5667 + $0x48] sm:$0xff]
    %v5678 = vld [vmem:[%s5667 + $0x50] sm:$0xff]
    %v5679 = vld [vmem:[%s5667 + $0x58] sm:$0xff]
    %v5680 = vld [vmem:[%s5667 + $0x60] sm:$0xff]
    %v5681 = vld [vmem:[%s5667 + $0x68] sm:$0xff]
    %v5682 = vld [vmem:[%s5667 + $0x70] sm:$0xff]
    %v5683 = vld [vmem:[%s5667 + $0x78] sm:$0xff]
    %v5684 = vld [vmem:[%s5667 + $0x80] sm:$0xff]
    %v5685 = vld [vmem:[%s5667 + $0x88] sm:$0xff]
    %v5686 = vld [vmem:[%s5667 + $0x90] sm:$0xff]
    %v5687 = vld [vmem:[%s5667 + $0x98] sm:$0xff]
    %v5688 = vld [vmem:[%s5667 + $0xa0] sm:$0xff]
    %v5689 = vld [vmem:[%s5667 + $0xa8] sm:$0xff]
    %v5690 = vld [vmem:[%s5667 + $0xb0] sm:$0xff]
    %v5691 = vld [vmem:[%s5667 + $0xb8] sm:$0xff]
    %v5692 = vld [vmem:[%s5667 + $0xc0] sm:$0xff]
    %v5693 = vld [vmem:[%s5667 + $0xc8] sm:$0xff]
    %v5694 = vld [vmem:[%s5667 + $0xd0] sm:$0xff]
    %v5695 = vld [vmem:[%s5667 + $0xd8] sm:$0xff]
    %v5696 = vld [vmem:[%s5667 + $0xe0] sm:$0xff]
    %v5697 = vld [vmem:[%s5667 + $0xe8] sm:$0xff]
    %v5698 = vld [vmem:[%s5667 + $0xf0] sm:$0xff]
    %v5699 = vld [vmem:[%s5667 + $0xf8] sm:$0xff]
    %5700 = vmatprep.subr.mxu0 0.0
    %5701 = vmatpush1.msra.mxu0 %v5683
    %5702 = vmatprep.subr.mxu0 0.0
    %5703 = vmatpush1.msra.mxu0 %v5682
    %5704 = vmatprep.subr.mxu0 0.0
    %5705 = vmatpush1.msra.mxu0 %v5681
    %5706 = vmatprep.subr.mxu0 0.0
    %5707 = vmatpush1.msra.mxu0 %v5680
    %5708 = vmatprep.subr.mxu0 0.0
    %5709 = vmatpush1.msra.mxu0 %v5679
    %5710 = vmatprep.subr.mxu0 0.0
    %5711 = vmatpush1.msra.mxu0 %v5678
    %5712 = vmatprep.subr.mxu0 0.0
    %5713 = vmatpush1.msra.mxu0 %v5677
    %5714 = vmatprep.subr.mxu0 0.0
    %5715 = vmatpush1.msra.mxu0 %v5676
    %5716 = vmatprep.subr.mxu0 0.0
    %5717 = vmatpush1.msra.mxu0 %v5675
    %5718 = vmatprep.subr.mxu0 0.0
    %5719 = vmatpush1.msra.mxu0 %v5674
    %5720 = vmatprep.subr.mxu0 0.0
    %5721 = vmatpush1.msra.mxu0 %v5673
    %5722 = vmatprep.subr.mxu0 0.0
    %5723 = vmatpush1.msra.mxu0 %v5672
    %5724 = vmatprep.subr.mxu0 0.0
    %5725 = vmatpush1.msra.mxu0 %v5671
    %5726 = vmatprep.subr.mxu0 0.0
    %5727 = vmatpush1.msra.mxu0 %v5670
    %5728 = vmatprep.subr.mxu0 0.0
    %5729 = vmatpush1.msra.mxu0 %v5669
    %5730 = vmatprep.subr.mxu0 0.0
    %5731 = vmatpush1.msra.mxu0 %v5668
    %5732 = vmatprep.subr.mxu0 0.0
    %5733 = vmatpush2.msra.mxu0 %v5699
    %5734 = vmatprep.subr.mxu0 0.0
    %5735 = vmatpush2.msra.mxu0 %v5698
    %5736 = vmatprep.subr.mxu0 0.0
    %5737 = vmatpush2.msra.mxu0 %v5697
    %5738 = vmatprep.subr.mxu0 0.0
    %5739 = vmatpush2.msra.mxu0 %v5696
    %5740 = vmatprep.subr.mxu0 0.0
    %5741 = vmatpush2.msra.mxu0 %v5695
    %5742 = vmatprep.subr.mxu0 0.0
    %5743 = vmatpush2.msra.mxu0 %v5694
    %5744 = vmatprep.subr.mxu0 0.0
    %5745 = vmatpush2.msra.mxu0 %v5693
    %5746 = vmatprep.subr.mxu0 0.0
    %5747 = vmatpush2.msra.mxu0 %v5692
    %5748 = vmatprep.subr.mxu0 0.0
    %5749 = vmatpush2.msra.mxu0 %v5691
    %5750 = vmatprep.subr.mxu0 0.0
    %5751 = vmatpush2.msra.mxu0 %v5690
    %5752 = vmatprep.subr.mxu0 0.0
    %5753 = vmatpush2.msra.mxu0 %v5689
    %5754 = vmatprep.subr.mxu0 0.0
    %5755 = vmatpush2.msra.mxu0 %v5688
    %5756 = vmatprep.subr.mxu0 0.0
    %5757 = vmatpush2.msra.mxu0 %v5687
    %5758 = vmatprep.subr.mxu0 0.0
    %5759 = vmatpush2.msra.mxu0 %v5686
    %5760 = vmatprep.subr.mxu0 0.0
    %5761 = vmatpush2.msra.mxu0 %v5685
    %5762 = vmatprep.subr.mxu0 0.0
    %5763 = vmatpush2.msra.mxu0 %v5684
    %5764 = vmatprep.mubr.f32.mxu0 %v5665
    %5765 = vmatmul.mubr.f32.gmra.mxu0 %v5663
    %v5766 = vpop.f32.mrf.mxu0
    %v5767 = vadd.f32 0.0, %v5766
    %v5768 = vpop.f32.mrf.mxu0
    %5769 = vdwg.mxu0
    %5770 = vmatprep.subr.mxu0 0.0
    %5771 = vmatpush1.msra.mxu0 %v5574
    %5772 = vmatprep.subr.mxu0 0.0
    %5773 = vmatpush1.msra.mxu0 %v5573
    %5774 = vmatprep.subr.mxu0 0.0
    %5775 = vmatpush1.msra.mxu0 %v5572
    %5776 = vmatprep.subr.mxu0 0.0
    %5777 = vmatpush1.msra.mxu0 %v5571
    %5778 = vmatprep.subr.mxu0 0.0
    %5779 = vmatpush1.msra.mxu0 %v5570
    %5780 = vmatprep.subr.mxu0 0.0
    %5781 = vmatpush1.msra.mxu0 %v5569
    %5782 = vmatprep.subr.mxu0 0.0
    %5783 = vmatpush1.msra.mxu0 %v5568
    %5784 = vmatprep.subr.mxu0 0.0
    %5785 = vmatpush1.msra.mxu0 %v5567
    %5786 = vmatprep.subr.mxu0 0.0
    %5787 = vmatpush1.msra.mxu0 %v5566
    %5788 = vmatprep.subr.mxu0 0.0
    %5789 = vmatpush1.msra.mxu0 %v5565
    %5790 = vmatprep.subr.mxu0 0.0
    %5791 = vmatpush1.msra.mxu0 %v5564
    %5792 = vmatprep.subr.mxu0 0.0
    %5793 = vmatpush1.msra.mxu0 %v5563
    %5794 = vmatprep.subr.mxu0 0.0
    %5795 = vmatpush1.msra.mxu0 %v5562
    %5796 = vmatprep.subr.mxu0 0.0
    %5797 = vmatpush1.msra.mxu0 %v5561
    %5798 = vmatprep.subr.mxu0 0.0
    %5799 = vmatpush1.msra.mxu0 %v5560
    %5800 = vmatprep.subr.mxu0 0.0
    %5801 = vmatpush1.msra.mxu0 %v5559
    %5802 = vmatprep.subr.mxu0 0.0
    %5803 = vmatpush2.msra.mxu0 %v5590
    %5804 = vmatprep.subr.mxu0 0.0
    %5805 = vmatpush2.msra.mxu0 %v5589
    %5806 = vmatprep.subr.mxu0 0.0
    %5807 = vmatpush2.msra.mxu0 %v5588
    %5808 = vmatprep.subr.mxu0 0.0
    %5809 = vmatpush2.msra.mxu0 %v5587
    %5810 = vmatprep.subr.mxu0 0.0
    %5811 = vmatpush2.msra.mxu0 %v5586
    %5812 = vmatprep.subr.mxu0 0.0
    %5813 = vmatpush2.msra.mxu0 %v5585
    %5814 = vmatprep.subr.mxu0 0.0
    %5815 = vmatpush2.msra.mxu0 %v5584
    %5816 = vmatprep.subr.mxu0 0.0
    %5817 = vmatpush2.msra.mxu0 %v5583
    %5818 = vmatprep.subr.mxu0 0.0
    %5819 = vmatpush2.msra.mxu0 %v5582
    %5820 = vmatprep.subr.mxu0 0.0
    %5821 = vmatpush2.msra.mxu0 %v5581
    %5822 = vmatprep.subr.mxu0 0.0
    %5823 = vmatpush2.msra.mxu0 %v5580
    %5824 = vmatprep.subr.mxu0 0.0
    %5825 = vmatpush2.msra.mxu0 %v5579
    %5826 = vmatprep.subr.mxu0 0.0
    %5827 = vmatpush2.msra.mxu0 %v5578
    %5828 = vmatprep.subr.mxu0 0.0
    %5829 = vmatpush2.msra.mxu0 %v5577
    %5830 = vmatprep.subr.mxu0 0.0
    %5831 = vmatpush2.msra.mxu0 %v5576
    %5832 = vmatprep.subr.mxu0 0.0
    %5833 = vmatpush2.msra.mxu0 %v5575
    %5834 = vmatprep.mubr.f32.mxu0 %v5557
    %5835 = vmatmul.mubr.f32.gmra.mxu0 %v5555
    %v5836 = vpop.f32.mrf.mxu0
    %v5837 = vadd.f32 %v5767, %v5836
    %v5838 = vpop.f32.mrf.mxu0
    %5839 = vdwg.mxu0
    %s5840 = scalar_lea.vmem %s21, 4
    %v5841 = vld [vmem:[%s5840] sm:$0x3]
    %v5843 = vsel %vm5484, %v5841, 0
    %5845 = vmatprep.subr.mxu0 0.0
    %5846 = vmatpush1.msra.mxu0 0.0
    %5847 = vmatprep.subr.mxu0 0.0
    %5848 = vmatpush1.msra.mxu0 0.0
    %5849 = vmatprep.subr.mxu0 0.0
    %5850 = vmatpush1.msra.mxu0 0.0
    %5851 = vmatprep.subr.mxu0 0.0
    %5852 = vmatpush1.msra.mxu0 0.0
    %5853 = vmatprep.subr.mxu0 0.0
    %5854 = vmatpush1.msra.mxu0 0.0
    %5855 = vmatprep.subr.mxu0 0.0
    %5856 = vmatpush1.msra.mxu0 0.0
    %5857 = vmatprep.subr.mxu0 0.0
    %5858 = vmatpush1.msra.mxu0 0.0
    %5859 = vmatprep.subr.mxu0 0.0
    %5860 = vmatpush1.msra.mxu0 0.0
    %5861 = vmatprep.subr.mxu0 0.0
    %5862 = vmatpush1.msra.mxu0 0.0
    %5863 = vmatprep.subr.mxu0 0.0
    %5864 = vmatpush1.msra.mxu0 0.0
    %5865 = vmatprep.subr.mxu0 0.0
    %5866 = vmatpush1.msra.mxu0 0.0
    %5867 = vmatprep.subr.mxu0 0.0
    %5868 = vmatpush1.msra.mxu0 0.0
    %5869 = vmatprep.subr.mxu0 0.0
    %5870 = vmatpush1.msra.mxu0 0.0
    %5871 = vmatprep.subr.mxu0 0.0
    %5872 = vmatpush1.msra.mxu0 0.0
    %5873 = vmatprep.subr.mxu0 0.0
    %5874 = vmatpush1.msra.mxu0 0.0
    %5875 = vmatprep.subr.mxu0 %v5482
    %5876 = vmatpush1.msra.mxu0 %v5481
    %5877 = vmatprep.subr.mxu0 0.0
    %5878 = vmatpush2.msra.mxu0 0.0
    %5879 = vmatprep.subr.mxu0 0.0
    %5880 = vmatpush2.msra.mxu0 0.0
    %5881 = vmatprep.subr.mxu0 0.0
    %5882 = vmatpush2.msra.mxu0 0.0
    %5883 = vmatprep.subr.mxu0 0.0
    %5884 = vmatpush2.msra.mxu0 0.0
    %5885 = vmatprep.subr.mxu0 0.0
    %5886 = vmatpush2.msra.mxu0 0.0
    %5887 = vmatprep.subr.mxu0 0.0
    %5888 = vmatpush2.msra.mxu0 0.0
    %5889 = vmatprep.subr.mxu0 0.0
    %5890 = vmatpush2.msra.mxu0 0.0
    %5891 = vmatprep.subr.mxu0 0.0
    %5892 = vmatpush2.msra.mxu0 0.0
    %5893 = vmatprep.subr.mxu0 0.0
    %5894 = vmatpush2.msra.mxu0 0.0
    %5895 = vmatprep.subr.mxu0 0.0
    %5896 = vmatpush2.msra.mxu0 0.0
    %5897 = vmatprep.subr.mxu0 0.0
    %5898 = vmatpush2.msra.mxu0 0.0
    %5899 = vmatprep.subr.mxu0 0.0
    %5900 = vmatpush2.msra.mxu0 0.0
    %5901 = vmatprep.subr.mxu0 0.0
    %5902 = vmatpush2.msra.mxu0 0.0
    %5903 = vmatprep.subr.mxu0 0.0
    %5904 = vmatpush2.msra.mxu0 0.0
    %5905 = vmatprep.subr.mxu0 0.0
    %5906 = vmatpush2.msra.mxu0 0.0
    %5907 = vmatprep.subr.mxu0 0.0
    %5908 = vmatpush2.msra.mxu0 0.0
    %5909 = vmatprep.mubr.f32.mxu0 0.0
    %5910 = vmatmul.mubr.f32.gmra.mxu0 %v5843
    %v5911 = vpop.f32.mrf.mxu0
    %v5912 = vadd.f32 0.0, %v5911
    %v5913 = vpop.f32.mrf.mxu0
    %v5914 = vadd.f32 0.0, %v5913
    %5915 = vdwg.mxu0
    %s5916 = scalar_lea.vmem %s22, 512
    %v5917 = vld [vmem:[%s5916] sm:$0xff]
    %v5918 = vld [vmem:[%s5916 + $0x8] sm:$0xff]
    %v5919 = vld [vmem:[%s5916 + $0x10] sm:$0xff]
    %v5920 = vld [vmem:[%s5916 + $0x18] sm:$0xff]
    %v5921 = vld [vmem:[%s5916 + $0x20] sm:$0xff]
    %v5922 = vld [vmem:[%s5916 + $0x28] sm:$0xff]
    %v5923 = vld [vmem:[%s5916 + $0x30] sm:$0xff]
    %v5924 = vld [vmem:[%s5916 + $0x38] sm:$0xff]
    %v5925 = vld [vmem:[%s5916 + $0x40] sm:$0xff]
    %v5926 = vld [vmem:[%s5916 + $0x48] sm:$0xff]
    %v5927 = vld [vmem:[%s5916 + $0x50] sm:$0xff]
    %v5928 = vld [vmem:[%s5916 + $0x58] sm:$0xff]
    %v5929 = vld [vmem:[%s5916 + $0x60] sm:$0xff]
    %v5930 = vld [vmem:[%s5916 + $0x68] sm:$0xff]
    %v5931 = vld [vmem:[%s5916 + $0x70] sm:$0xff]
    %v5932 = vld [vmem:[%s5916 + $0x78] sm:$0xff]
    %v5933 = vld [vmem:[%s5916 + $0x80] sm:$0xff]
    %v5934 = vld [vmem:[%s5916 + $0x88] sm:$0xff]
    %v5935 = vld [vmem:[%s5916 + $0x90] sm:$0xff]
    %v5936 = vld [vmem:[%s5916 + $0x98] sm:$0xff]
    %v5937 = vld [vmem:[%s5916 + $0xa0] sm:$0xff]
    %v5938 = vld [vmem:[%s5916 + $0xa8] sm:$0xff]
    %v5939 = vld [vmem:[%s5916 + $0xb0] sm:$0xff]
    %v5940 = vld [vmem:[%s5916 + $0xb8] sm:$0xff]
    %v5941 = vld [vmem:[%s5916 + $0xc0] sm:$0xff]
    %v5942 = vld [vmem:[%s5916 + $0xc8] sm:$0xff]
    %v5943 = vld [vmem:[%s5916 + $0xd0] sm:$0xff]
    %v5944 = vld [vmem:[%s5916 + $0xd8] sm:$0xff]
    %v5945 = vld [vmem:[%s5916 + $0xe0] sm:$0xff]
    %v5946 = vld [vmem:[%s5916 + $0xe8] sm:$0xff]
    %v5947 = vld [vmem:[%s5916 + $0xf0] sm:$0xff]
    %v5948 = vld [vmem:[%s5916 + $0xf8] sm:$0xff]
    %5949 = vmatprep.subr.mxu0 0.0
    %5950 = vmatpush1.msra.mxu0 %v5932
    %5951 = vmatprep.subr.mxu0 0.0
    %5952 = vmatpush1.msra.mxu0 %v5931
    %5953 = vmatprep.subr.mxu0 0.0
    %5954 = vmatpush1.msra.mxu0 %v5930
    %5955 = vmatprep.subr.mxu0 0.0
    %5956 = vmatpush1.msra.mxu0 %v5929
    %5957 = vmatprep.subr.mxu0 0.0
    %5958 = vmatpush1.msra.mxu0 %v5928
    %5959 = vmatprep.subr.mxu0 0.0
    %5960 = vmatpush1.msra.mxu0 %v5927
    %5961 = vmatprep.subr.mxu0 0.0
    %5962 = vmatpush1.msra.mxu0 %v5926
    %5963 = vmatprep.subr.mxu0 0.0
    %5964 = vmatpush1.msra.mxu0 %v5925
    %5965 = vmatprep.subr.mxu0 0.0
    %5966 = vmatpush1.msra.mxu0 %v5924
    %5967 = vmatprep.subr.mxu0 0.0
    %5968 = vmatpush1.msra.mxu0 %v5923
    %5969 = vmatprep.subr.mxu0 0.0
    %5970 = vmatpush1.msra.mxu0 %v5922
    %5971 = vmatprep.subr.mxu0 0.0
    %5972 = vmatpush1.msra.mxu0 %v5921
    %5973 = vmatprep.subr.mxu0 0.0
    %5974 = vmatpush1.msra.mxu0 %v5920
    %5975 = vmatprep.subr.mxu0 0.0
    %5976 = vmatpush1.msra.mxu0 %v5919
    %5977 = vmatprep.subr.mxu0 0.0
    %5978 = vmatpush1.msra.mxu0 %v5918
    %5979 = vmatprep.subr.mxu0 0.0
    %5980 = vmatpush1.msra.mxu0 %v5917
    %5981 = vmatprep.subr.mxu0 0.0
    %5982 = vmatpush2.msra.mxu0 %v5948
    %5983 = vmatprep.subr.mxu0 0.0
    %5984 = vmatpush2.msra.mxu0 %v5947
    %5985 = vmatprep.subr.mxu0 0.0
    %5986 = vmatpush2.msra.mxu0 %v5946
    %5987 = vmatprep.subr.mxu0 0.0
    %5988 = vmatpush2.msra.mxu0 %v5945
    %5989 = vmatprep.subr.mxu0 0.0
    %5990 = vmatpush2.msra.mxu0 %v5944
    %5991 = vmatprep.subr.mxu0 0.0
    %5992 = vmatpush2.msra.mxu0 %v5943
    %5993 = vmatprep.subr.mxu0 0.0
    %5994 = vmatpush2.msra.mxu0 %v5942
    %5995 = vmatprep.subr.mxu0 0.0
    %5996 = vmatpush2.msra.mxu0 %v5941
    %5997 = vmatprep.subr.mxu0 0.0
    %5998 = vmatpush2.msra.mxu0 %v5940
    %5999 = vmatprep.subr.mxu0 0.0
    %6000 = vmatpush2.msra.mxu0 %v5939
    %6001 = vmatprep.subr.mxu0 0.0
    %6002 = vmatpush2.msra.mxu0 %v5938
    %6003 = vmatprep.subr.mxu0 0.0
    %6004 = vmatpush2.msra.mxu0 %v5937
    %6005 = vmatprep.subr.mxu0 0.0
    %6006 = vmatpush2.msra.mxu0 %v5936
    %6007 = vmatprep.subr.mxu0 0.0
    %6008 = vmatpush2.msra.mxu0 %v5935
    %6009 = vmatprep.subr.mxu0 0.0
    %6010 = vmatpush2.msra.mxu0 %v5934
    %6011 = vmatprep.subr.mxu0 0.0
    %6012 = vmatpush2.msra.mxu0 %v5933
    %6013 = vmatprep.mubr.f32.mxu0 %v5914
    %6014 = vmatmul.mubr.f32.gmra.mxu0 %v5912
    %v6015 = vpop.f32.mrf.mxu0
    %v6016 = vadd.f32 0.0, %v6015
    %v6017 = vpop.f32.mrf.mxu0
    %6018 = vdwg.mxu0
    %v6019 = vadd.f32 %v5837, %v6016
    %s6020 = scalar_lea.vmem %s21, 6
    %v6021 = vld [vmem:[%s6020] sm:$0x3]
    %v6023 = vsel %vm5484, %v6021, 0
    %6025 = vmatprep.subr.mxu0 0.0
    %6026 = vmatpush1.msra.mxu0 0.0
    %6027 = vmatprep.subr.mxu0 0.0
    %6028 = vmatpush1.msra.mxu0 0.0
    %6029 = vmatprep.subr.mxu0 0.0
    %6030 = vmatpush1.msra.mxu0 0.0
    %6031 = vmatprep.subr.mxu0 0.0
    %6032 = vmatpush1.msra.mxu0 0.0
    %6033 = vmatprep.subr.mxu0 0.0
    %6034 = vmatpush1.msra.mxu0 0.0
    %6035 = vmatprep.subr.mxu0 0.0
    %6036 = vmatpush1.msra.mxu0 0.0
    %6037 = vmatprep.subr.mxu0 0.0
    %6038 = vmatpush1.msra.mxu0 0.0
    %6039 = vmatprep.subr.mxu0 0.0
    %6040 = vmatpush1.msra.mxu0 0.0
    %6041 = vmatprep.subr.mxu0 0.0
    %6042 = vmatpush1.msra.mxu0 0.0
    %6043 = vmatprep.subr.mxu0 0.0
    %6044 = vmatpush1.msra.mxu0 0.0
    %6045 = vmatprep.subr.mxu0 0.0
    %6046 = vmatpush1.msra.mxu0 0.0
    %6047 = vmatprep.subr.mxu0 0.0
    %6048 = vmatpush1.msra.mxu0 0.0
    %6049 = vmatprep.subr.mxu0 0.0
    %6050 = vmatpush1.msra.mxu0 0.0
    %6051 = vmatprep.subr.mxu0 0.0
    %6052 = vmatpush1.msra.mxu0 0.0
    %6053 = vmatprep.subr.mxu0 0.0
    %6054 = vmatpush1.msra.mxu0 0.0
    %6055 = vmatprep.subr.mxu0 %v5482
    %6056 = vmatpush1.msra.mxu0 %v5481
    %6057 = vmatprep.subr.mxu0 0.0
    %6058 = vmatpush2.msra.mxu0 0.0
    %6059 = vmatprep.subr.mxu0 0.0
    %6060 = vmatpush2.msra.mxu0 0.0
    %6061 = vmatprep.subr.mxu0 0.0
    %6062 = vmatpush2.msra.mxu0 0.0
    %6063 = vmatprep.subr.mxu0 0.0
    %6064 = vmatpush2.msra.mxu0 0.0
    %6065 = vmatprep.subr.mxu0 0.0
    %6066 = vmatpush2.msra.mxu0 0.0
    %6067 = vmatprep.subr.mxu0 0.0
    %6068 = vmatpush2.msra.mxu0 0.0
    %6069 = vmatprep.subr.mxu0 0.0
    %6070 = vmatpush2.msra.mxu0 0.0
    %6071 = vmatprep.subr.mxu0 0.0
    %6072 = vmatpush2.msra.mxu0 0.0
    %6073 = vmatprep.subr.mxu0 0.0
    %6074 = vmatpush2.msra.mxu0 0.0
    %6075 = vmatprep.subr.mxu0 0.0
    %6076 = vmatpush2.msra.mxu0 0.0
    %6077 = vmatprep.subr.mxu0 0.0
    %6078 = vmatpush2.msra.mxu0 0.0
    %6079 = vmatprep.subr.mxu0 0.0
    %6080 = vmatpush2.msra.mxu0 0.0
    %6081 = vmatprep.subr.mxu0 0.0
    %6082 = vmatpush2.msra.mxu0 0.0
    %6083 = vmatprep.subr.mxu0 0.0
    %6084 = vmatpush2.msra.mxu0 0.0
    %6085 = vmatprep.subr.mxu0 0.0
    %6086 = vmatpush2.msra.mxu0 0.0
    %6087 = vmatprep.subr.mxu0 0.0
    %6088 = vmatpush2.msra.mxu0 0.0
    %6089 = vmatprep.mubr.f32.mxu0 0.0
    %6090 = vmatmul.mubr.f32.gmra.mxu0 %v6023
    %v6091 = vpop.f32.mrf.mxu0
    %v6092 = vadd.f32 0.0, %v6091
    %v6093 = vpop.f32.mrf.mxu0
    %v6094 = vadd.f32 0.0, %v6093
    %6095 = vdwg.mxu0
    %s6096 = scalar_lea.vmem %s22, 768
    %v6097 = vld [vmem:[%s6096] sm:$0xff]
    %v6098 = vld [vmem:[%s6096 + $0x8] sm:$0xff]
    %v6099 = vld [vmem:[%s6096 + $0x10] sm:$0xff]
    %v6100 = vld [vmem:[%s6096 + $0x18] sm:$0xff]
    %v6101 = vld [vmem:[%s6096 + $0x20] sm:$0xff]
    %v6102 = vld [vmem:[%s6096 + $0x28] sm:$0xff]
    %v6103 = vld [vmem:[%s6096 + $0x30] sm:$0xff]
    %v6104 = vld [vmem:[%s6096 + $0x38] sm:$0xff]
    %v6105 = vld [vmem:[%s6096 + $0x40] sm:$0xff]
    %v6106 = vld [vmem:[%s6096 + $0x48] sm:$0xff]
    %v6107 = vld [vmem:[%s6096 + $0x50] sm:$0xff]
    %v6108 = vld [vmem:[%s6096 + $0x58] sm:$0xff]
    %v6109 = vld [vmem:[%s6096 + $0x60] sm:$0xff]
    %v6110 = vld [vmem:[%s6096 + $0x68] sm:$0xff]
    %v6111 = vld [vmem:[%s6096 + $0x70] sm:$0xff]
    %v6112 = vld [vmem:[%s6096 + $0x78] sm:$0xff]
    %v6113 = vld [vmem:[%s6096 + $0x80] sm:$0xff]
    %v6114 = vld [vmem:[%s6096 + $0x88] sm:$0xff]
    %v6115 = vld [vmem:[%s6096 + $0x90] sm:$0xff]
    %v6116 = vld [vmem:[%s6096 + $0x98] sm:$0xff]
    %v6117 = vld [vmem:[%s6096 + $0xa0] sm:$0xff]
    %v6118 = vld [vmem:[%s6096 + $0xa8] sm:$0xff]
    %v6119 = vld [vmem:[%s6096 + $0xb0] sm:$0xff]
    %v6120 = vld [vmem:[%s6096 + $0xb8] sm:$0xff]
    %v6121 = vld [vmem:[%s6096 + $0xc0] sm:$0xff]
    %v6122 = vld [vmem:[%s6096 + $0xc8] sm:$0xff]
    %v6123 = vld [vmem:[%s6096 + $0xd0] sm:$0xff]
    %v6124 = vld [vmem:[%s6096 + $0xd8] sm:$0xff]
    %v6125 = vld [vmem:[%s6096 + $0xe0] sm:$0xff]
    %v6126 = vld [vmem:[%s6096 + $0xe8] sm:$0xff]
    %v6127 = vld [vmem:[%s6096 + $0xf0] sm:$0xff]
    %v6128 = vld [vmem:[%s6096 + $0xf8] sm:$0xff]
    %6129 = vmatprep.subr.mxu0 0.0
    %6130 = vmatpush1.msra.mxu0 %v6112
    %6131 = vmatprep.subr.mxu0 0.0
    %6132 = vmatpush1.msra.mxu0 %v6111
    %6133 = vmatprep.subr.mxu0 0.0
    %6134 = vmatpush1.msra.mxu0 %v6110
    %6135 = vmatprep.subr.mxu0 0.0
    %6136 = vmatpush1.msra.mxu0 %v6109
    %6137 = vmatprep.subr.mxu0 0.0
    %6138 = vmatpush1.msra.mxu0 %v6108
    %6139 = vmatprep.subr.mxu0 0.0
    %6140 = vmatpush1.msra.mxu0 %v6107
    %6141 = vmatprep.subr.mxu0 0.0
    %6142 = vmatpush1.msra.mxu0 %v6106
    %6143 = vmatprep.subr.mxu0 0.0
    %6144 = vmatpush1.msra.mxu0 %v6105
    %6145 = vmatprep.subr.mxu0 0.0
    %6146 = vmatpush1.msra.mxu0 %v6104
    %6147 = vmatprep.subr.mxu0 0.0
    %6148 = vmatpush1.msra.mxu0 %v6103
    %6149 = vmatprep.subr.mxu0 0.0
    %6150 = vmatpush1.msra.mxu0 %v6102
    %6151 = vmatprep.subr.mxu0 0.0
    %6152 = vmatpush1.msra.mxu0 %v6101
    %6153 = vmatprep.subr.mxu0 0.0
    %6154 = vmatpush1.msra.mxu0 %v6100
    %6155 = vmatprep.subr.mxu0 0.0
    %6156 = vmatpush1.msra.mxu0 %v6099
    %6157 = vmatprep.subr.mxu0 0.0
    %6158 = vmatpush1.msra.mxu0 %v6098
    %6159 = vmatprep.subr.mxu0 0.0
    %6160 = vmatpush1.msra.mxu0 %v6097
    %6161 = vmatprep.subr.mxu0 0.0
    %6162 = vmatpush2.msra.mxu0 %v6128
    %6163 = vmatprep.subr.mxu0 0.0
    %6164 = vmatpush2.msra.mxu0 %v6127
    %6165 = vmatprep.subr.mxu0 0.0
    %6166 = vmatpush2.msra.mxu0 %v6126
    %6167 = vmatprep.subr.mxu0 0.0
    %6168 = vmatpush2.msra.mxu0 %v6125
    %6169 = vmatprep.subr.mxu0 0.0
    %6170 = vmatpush2.msra.mxu0 %v6124
    %6171 = vmatprep.subr.mxu0 0.0
    %6172 = vmatpush2.msra.mxu0 %v6123
    %6173 = vmatprep.subr.mxu0 0.0
    %6174 = vmatpush2.msra.mxu0 %v6122
    %6175 = vmatprep.subr.mxu0 0.0
    %6176 = vmatpush2.msra.mxu0 %v6121
    %6177 = vmatprep.subr.mxu0 0.0
    %6178 = vmatpush2.msra.mxu0 %v6120
    %6179 = vmatprep.subr.mxu0 0.0
    %6180 = vmatpush2.msra.mxu0 %v6119
    %6181 = vmatprep.subr.mxu0 0.0
    %6182 = vmatpush2.msra.mxu0 %v6118
    %6183 = vmatprep.subr.mxu0 0.0
    %6184 = vmatpush2.msra.mxu0 %v6117
    %6185 = vmatprep.subr.mxu0 0.0
    %6186 = vmatpush2.msra.mxu0 %v6116
    %6187 = vmatprep.subr.mxu0 0.0
    %6188 = vmatpush2.msra.mxu0 %v6115
    %6189 = vmatprep.subr.mxu0 0.0
    %6190 = vmatpush2.msra.mxu0 %v6114
    %6191 = vmatprep.subr.mxu0 0.0
    %6192 = vmatpush2.msra.mxu0 %v6113
    %6193 = vmatprep.mubr.f32.mxu0 %v6094
    %6194 = vmatmul.mubr.f32.gmra.mxu0 %v6092
    %v6195 = vpop.f32.mrf.mxu0
    %v6196 = vadd.f32 0.0, %v6195
    %v6197 = vpop.f32.mrf.mxu0
    %6198 = vdwg.mxu0
    %v6199 = vadd.f32 %v6019, %v6196
    %vm6200 = vcmask 9216
    %v6201 = vsel %vm6200, %v6199, -inf
    %6202 = vmax.xlane.f32.xlu0 %v6201
    %v6203 = vpop.xlane.xlu0 %6202
    %v6204 = vsub.f32 %v6199, %v6203
    %v6205 = vmul.f32 %v6204, 1.442695
    %v6206 = vpow.pop %v6205
    %v6207 = vsel %vm6200, %v6206, 0.0
    %6208 = vadd.xlane.f32.xlu0 %v6207
    %v6209 = vpop.xlane.xlu0 %6208
    %v6210 = vlog2.pop %v6209
    %v6211 = vmul.f32 %v6210, 0.6931472
    %v6212 = vsub.f32 %v6204, %v6211
    %6213 = vst.msk [vmem:[#allocation2] sm:$0x3] %vm6200, %v6212
    // Predicated region
    $region94: #{discriminator_forward.1} parent=1 // pred_check
      _
    $region95: #{discriminator_forward.1} parent=1 // pred_check_branch
      %6215 = sbr.rel (0) target = $region97
    $region96: #{discriminator_forward.1} parent=1 // pred_region
      %s6217 = ssub.s32 32, 32
      %6218 = vsyncadd [#allocation3], %s6217
      %s6220 = sshll.u32 [#allocation2], 4
      %s6221 = int_to_ptr.vmem [resolvable:$true] %s6220
      %6223 = dma.vmem_to_hbm [thread:$0]  %s6221, 32, %s23, [#allocation3]
    $region97: #{discriminator_forward.1} parent=1 // pred_fallthru
      _
    // Predicated region
    $region98: #{discriminator_forward.1} parent=1 // pred_check
      _
    $region99: #{discriminator_forward.1} parent=1 // pred_check_branch
      %6225 = sbr.rel (0) target = $region101
    $region100: #{discriminator_forward.1} parent=1 // pred_region
      %6226 = dma.done [#allocation3], 32
    $region101: #{discriminator_forward.1} parent=1 // pred_fallthru
      _
    %6227 = vsyncpa [#allocation3], 1

</llo_original>
